<compile_context>
chip_gen: v6e
topology: v6e:2x2x1
jax: 0.10.0
libtpu: 0.0.40
codegen_flags: <defaults>
</compile_context>

<pallas_src>
import functools

import jax
import jax.numpy as jnp
from jax import lax
from jax.experimental import pallas as pl
from jax.experimental.pallas import tpu as pltpu


# ----------------------------------------------------------------------------
# helpers
# ----------------------------------------------------------------------------
def _vmem_cap_bytes():
    try:
        cap = getattr(pltpu.get_tpu_info(), "vmem_capacity_bytes", None)
        if cap:
            return int(cap)
    except Exception:
        pass
    return 64 * 2**20  # conservative: v7x per-TensorCore VMEM


def _compiler_params(semantics, est_vmem_bytes):
    cap = int(0.8 * _vmem_cap_bytes())               # generation-aware ceiling
    limit = int(min(cap, max(32 * 2**20, 2 * est_vmem_bytes)))
    return pltpu.CompilerParams(dimension_semantics=semantics,
                                vmem_limit_bytes=limit)


def _silu_f32(v):
    return v * jax.nn.sigmoid(v)


def _largest_divisor_leq(n, cap):
    cap = max(1, min(n, cap))
    for d in range(cap, 0, -1):
        if n % d == 0:
            return d
    return 1


def _stats_to_scale_shift(sum_c, sumsq_c, count, gamma, beta, groups, eps):
    """Per-(sample, channel) sums -> GroupNorm(+affine) scale/shift."""
    N, C = sum_c.shape
    rep = C // groups
    s = sum_c.reshape(N, groups, rep).sum(axis=-1)
    ss = sumsq_c.reshape(N, groups, rep).sum(axis=-1)
    mean = s / count
    var = jnp.maximum(ss / count - mean * mean, 0.0)  # clamp one-pass variance
    inv = lax.rsqrt(var + eps)
    inv_c = jnp.repeat(inv, rep, axis=1)
    mean_c = jnp.repeat(mean, rep, axis=1)
    scale = gamma[None, :].astype(jnp.float32) * inv_c
    shift = beta[None, :].astype(jnp.float32) - mean_c * scale
    return scale.reshape(N, 1, C), shift.reshape(N, 1, C)


# ----------------------------------------------------------------------------
# GroupNorm1 pass 1: per-channel sum / sum-of-squares, several frames per step
# ----------------------------------------------------------------------------
def _gn_stats_kernel(x_ref, o_ref):
    # x_ref: (1, Tt, H, W, C) frames; o_ref: (1, 2, C) running [sum, sumsq].
    x = x_ref[0].astype(jnp.float32)                          # (Tt, H, W, C)
    s = jnp.sum(x, axis=0, keepdims=True)
    s = jnp.sum(s, axis=1, keepdims=True)
    s = jnp.sum(s, axis=2, keepdims=True)                     # (1, 1, 1, C)
    ss = jnp.sum(x * x, axis=0, keepdims=True)
    ss = jnp.sum(ss, axis=1, keepdims=True)
    ss = jnp.sum(ss, axis=2, keepdims=True)

    @pl.when(pl.program_id(1) == 0)
    def _():
        o_ref[...] = jnp.zeros_like(o_ref)

    o_ref[:, 0:1, :] = o_ref[:, 0:1, :] + s[0]
    o_ref[:, 1:2, :] = o_ref[:, 1:2, :] + ss[0]


def gn_scale_shift(x, gamma, beta, groups, eps):
    """GroupNorm(+affine) folded into per-(sample, channel) scale/shift."""
    N, T, H, W, C = x.shape
    frame_bytes = H * W * C * x.dtype.itemsize
    tt = _largest_divisor_leq(T, max(1, (4 * 2**20) // max(frame_bytes, 1)))
    est = 2 * tt * frame_bytes + 2 * tt * H * W * C * 4 + 4 * C * 4
    stats = pl.pallas_call(
        _gn_stats_kernel,
        out_shape=jax.ShapeDtypeStruct((N, 2, C), jnp.float32),
        grid=(N, T // tt),
        in_specs=[pl.BlockSpec((1, tt, H, W, C), lambda n, t: (n, t, 0, 0, 0))],
        out_specs=pl.BlockSpec((1, 2, C), lambda n, t: (n, 0, 0)),
        compiler_params=_compiler_params(("parallel", "arbitrary"), est),
    )(x)
    count = T * H * W * (C // groups)
    return _stats_to_scale_shift(stats[:, 0], stats[:, 1], count,
                                 gamma, beta, groups, eps)


# ----------------------------------------------------------------------------
# fused GroupNorm-apply + SiLU + 3x3x3 causal conv (+bias, +stats, +residual)
# ----------------------------------------------------------------------------
def _fused_conv_body(x_ref, scale_ref, shift_ref, w_ref, b_ref,
                     res_ref, sw_ref, sb_ref, o_ref, stats_ref, ring_ref):
    """One output frame per grid step (n, t). T is sequential; ring_ref carries
    the last three normalized+SiLU'd, replicate-padded bf16 frames so each
    input frame is read from HBM and normalized exactly once."""
    t = pl.program_id(1)
    H, W = o_ref.shape[2], o_ref.shape[3]
    Cin = x_ref.shape[-1]
    Cout = o_ref.shape[-1]

    # ---- GroupNorm-apply + SiLU + replicate pad (H and W), once per frame ----
    xf = x_ref[0, 0].astype(jnp.float32)                                  # (H, W, Cin)
    scale = scale_ref[0].astype(jnp.float32).reshape(1, 1, Cin)
    shift = shift_ref[0].astype(jnp.float32).reshape(1, 1, Cin)
    y = _silu_f32(xf * scale + shift).astype(ring_ref.dtype)              # bf16 to MXU
    yh = jnp.concatenate([y[0:1], y, y[H - 1:H]], axis=0)                 # (H+2, W, Cin)
    yp = jnp.concatenate([yh[:, 0:1, :], yh, yh[:, W - 1:W, :]], axis=1)  # (H+2, W+2, Cin)

    slot_cur = t % 3
    for s in range(3):                       # static, predicated ring write
        @pl.when(slot_cur == s)
        def _(s=s):
            ring_ref[s] = yp

    # ---- 3x3x3 causal conv: kh folded into the MXU contraction (K = 3*Cin) ----
    acc = None
    for kt in range(3):
        tap = jnp.maximum(t + (kt - 2), 0)   # causal replicate pad in T
        yk = ring_ref[tap % 3]               # (H+2, W+2, Cin) bf16
        for kw in range(3):
            lhs = jnp.concatenate(
                [yk[kh:kh + H, kw:kw + W, :] for kh in range(3)],
                axis=-1).reshape(H * W, 3 * Cin)
            r = jnp.dot(lhs, w_ref[kt, kw], preferred_element_type=jnp.float32)
            acc = r if acc is None else acc + r

    out = acc + b_ref[0]                                                   # (H*W, Cout) f32

    # ---- fused GroupNorm2 statistics of the f32 conv output (conv1 only) ----
    if stats_ref is not None:
        stats_ref[0, 0, 0:1, :] = jnp.sum(out, axis=0, keepdims=True)
        stats_ref[0, 0, 1:2, :] = jnp.sum(out * out, axis=0, keepdims=True)

    # ---- fused residual / 1x1x1 conv_shortcut (conv2 only) ----
    if res_ref is not None:
        rx = res_ref[0, 0]                                                 # (H, W, Cr)
        rxm = rx.reshape(H * W, rx.shape[-1])
        if sw_ref is not None:
            out = out + jnp.dot(rxm, sw_ref[...],
                                preferred_element_type=jnp.float32) + sb_ref[0]
        else:
            out = out + rxm.astype(jnp.float32)

    o_ref[0, 0] = out.reshape(H, W, Cout).astype(o_ref.dtype)


def _conv1_kernel(x, sc, sh, w, b, o, stats, ring):
    _fused_conv_body(x, sc, sh, w, b, None, None, None, o, stats, ring)


def _conv2_id_kernel(x, sc, sh, w, b, res, o, ring):
    _fused_conv_body(x, sc, sh, w, b, res, None, None, o, None, ring)


def _conv2_proj_kernel(x, sc, sh, w, b, res, sw, sb, o, ring):
    _fused_conv_body(x, sc, sh, w, b, res, sw, sb, o, None, ring)


def fused_norm_silu_conv3d(x, scale, shift, w, b, *, out_dtype, emit_stats=False,
                           residual=None, shortcut_w=None, shortcut_b=None):
    N, T, H, W, Cin = x.shape
    Cout = w.shape[-1]
    assert (residual is None) == emit_stats

    # fold kh into the contraction: (kt,kh,kw,Cin,Cout) -> (kt,kw,3*Cin,Cout)
    wf = jnp.transpose(w, (0, 2, 1, 3, 4)).reshape(3, 3, 3 * Cin, Cout)
    wf = wf.astype(jnp.bfloat16)
    b2 = b.reshape(1, 1, Cout).astype(jnp.float32)

    in_specs = [
        pl.BlockSpec((1, 1, H, W, Cin), lambda n, t: (n, t, 0, 0, 0)),
        pl.BlockSpec((1, 1, Cin), lambda n, t: (n, 0, 0)),
        pl.BlockSpec((1, 1, Cin), lambda n, t: (n, 0, 0)),
        pl.BlockSpec((3, 3, 3 * Cin, Cout), lambda n, t: (0, 0, 0, 0)),
        pl.BlockSpec((1, 1, Cout), lambda n, t: (0, 0, 0)),
    ]
    args = [x.astype(jnp.bfloat16), scale, shift, wf, b2]

    out_itemsize = jnp.dtype(out_dtype).itemsize
    est = (2 * H * W * Cin * 2                      # input frames (bf16, dbl-buffered)
           + 3 * (H + 2) * (W + 2) * Cin * 2        # ring scratch
           + 2 * 27 * Cin * Cout * 2                # folded weights (dbl-buffered)
           + 2 * H * W * Cout * out_itemsize        # output frames
           + 4 * H * W * 3 * Cin * 2                # lhs temporaries
           + 2 * H * W * Cout * 4                   # f32 accumulator
           + 4 * H * W * Cin * 4)                   # f32 norm/SiLU temporaries

    if residual is not None:
        Cr = residual.shape[-1]
        in_specs.append(pl.BlockSpec((1, 1, H, W, Cr), lambda n, t: (n, t, 0, 0, 0)))
        args.append(residual.astype(jnp.bfloat16))
        est += 2 * H * W * Cr * 2
        if shortcut_w is not None:
            in_specs.append(pl.BlockSpec((Cr, Cout), lambda n, t: (0, 0)))
            in_specs.append(pl.BlockSpec((1, 1, Cout), lambda n, t: (0, 0, 0)))
            args.append(shortcut_w.astype(jnp.bfloat16))
            args.append(shortcut_b.reshape(1, 1, Cout).astype(jnp.float32))
            est += 2 * Cr * Cout * 2
            kernel = _conv2_proj_kernel
        else:
            kernel = _conv2_id_kernel
        out_shape = jax.ShapeDtypeStruct((N, T, H, W, Cout), out_dtype)
        out_specs = pl.BlockSpec((1, 1, H, W, Cout), lambda n, t: (n, t, 0, 0, 0))
    else:
        kernel = _conv1_kernel
        out_shape = (jax.ShapeDtypeStruct((N, T, H, W, Cout), out_dtype),
                     jax.ShapeDtypeStruct((N, T, 2, Cout), jnp.float32))
        out_specs = (pl.BlockSpec((1, 1, H, W, Cout), lambda n, t: (n, t, 0, 0, 0)),
                     pl.BlockSpec((1, 1, 2, Cout), lambda n, t: (n, t, 0, 0)))

    return pl.pallas_call(
        kernel,
        out_shape=out_shape,
        grid=(N, T),
        in_specs=in_specs,
        out_specs=out_specs,
        scratch_shapes=[pltpu.VMEM((3, H + 2, W + 2, Cin), jnp.bfloat16)],
        compiler_params=_compiler_params(("parallel", "arbitrary"), est),
    )(*args)


# ----------------------------------------------------------------------------
# full ResnetBlockCausal3D forward
# ----------------------------------------------------------------------------
def resnet_block_causal3d(x, params, *, groups, eps):
    N, T, H, W, Cin = x.shape
    Cout = params["conv1_w"].shape[-1]

    # GroupNorm1 statistics from the full-precision input.
    scale1, shift1 = gn_scale_shift(x, params["norm1_gamma"], params["norm1_beta"],
                                    groups, eps)

    # norm1 + SiLU + conv1, emitting per-frame GroupNorm2 statistics of the
    # f32 conv output (no separate stats pass over h).
    h, hstats = fused_norm_silu_conv3d(
        x, scale1, shift1, params["conv1_w"], params["conv1_b"],
        out_dtype=jnp.bfloat16, emit_stats=True)

    hsum = hstats.sum(axis=1)                                 # (N, 2, Cout)
    count2 = T * H * W * (Cout // groups)
    scale2, shift2 = _stats_to_scale_shift(hsum[:, 0], hsum[:, 1], count2,
                                           params["norm2_gamma"],
                                           params["norm2_beta"], groups, eps)

    # dropout(p=0.0) == identity in eval mode
    if "shortcut_w" in params:
        return fused_norm_silu_conv3d(
            h, scale2, shift2, params["conv2_w"], params["conv2_b"],
            out_dtype=x.dtype, residual=x,
            shortcut_w=params["shortcut_w"], shortcut_b=params["shortcut_b"])
    return fused_norm_silu_conv3d(
        h, scale2, shift2, params["conv2_w"], params["conv2_b"],
        out_dtype=x.dtype, residual=x)


# ----------------------------------------------------------------------------
# references
# ----------------------------------------------------------------------------
def _ref_f32(x, params, *, groups, eps):
    """Exact module semantics, all-f32."""
    def gn(v, gamma, beta):
        N, T, H, W, C = v.shape
        vg = v.reshape(N, T * H * W, groups, C // groups)
        mu = vg.mean(axis=(1, 3), keepdims=True)
        var = ((vg - mu) ** 2).mean(axis=(1, 3), keepdims=True)
        vn = ((vg - mu) * lax.rsqrt(var + eps)).reshape(N, T, H, W, C)
        return vn * gamma.reshape(1, 1, 1, 1, C) + beta.reshape(1, 1, 1, 1, C)

    def conv3(v, w, b):
        vp = jnp.pad(v, ((0, 0), (2, 0), (1, 1), (1, 1), (0, 0)), mode="edge")
        y = lax.conv_general_dilated(vp, w, (1, 1, 1), "VALID",
                                     dimension_numbers=("NDHWC", "DHWIO", "NDHWC"))
        return y + b.reshape(1, 1, 1, 1, -1)

    h = conv3(_silu_f32(gn(x, params["norm1_gamma"], params["norm1_beta"])),
              params["conv1_w"], params["conv1_b"])
    y = conv3(_silu_f32(gn(h, params["norm2_gamma"], params["norm2_beta"])),
              params["conv2_w"], params["conv2_b"])
    if "shortcut_w" in params:
        res = jnp.einsum("nthwc,cd->nthwd", x, params["shortcut_w"]) \
              + params["shortcut_b"].reshape(1, 1, 1, 1, -1)
    else:
        res = x
    return y + res


def _ref_bf16(x, params, *, groups, eps):
    """Reference emulating the kernel's precision choices (bf16 MXU inputs,
    f32 accumulation, bf16 h, GN2 stats from the f32 conv1 output)."""
    bf16 = jnp.bfloat16

    def scale_shift_from(v_f32, gamma, beta):
        N, T, H, W, C = v_f32.shape
        vf = v_f32.reshape(N, T * H * W, groups, C // groups)
        mean = vf.mean(axis=(1, 3))
        var = jnp.maximum((vf * vf).mean(axis=(1, 3)) - mean * mean, 0.0)
        inv = lax.rsqrt(var + eps)
        rep = C // groups
        scale = gamma[None, :].astype(jnp.float32) * jnp.repeat(inv, rep, axis=1)
        shift = beta[None, :].astype(jnp.float32) - jnp.repeat(mean, rep, axis=1) * scale
        return scale, shift

    def norm_silu(v_bf, scale, shift):
        y = v_bf.astype(jnp.float32) * scale[:, None, None, None, :] \
            + shift[:, None, None, None, :]
        return _silu_f32(y).astype(bf16)

    def conv3(v_bf, w, b):
        vp = jnp.pad(v_bf, ((0, 0), (2, 0), (1, 1), (1, 1), (0, 0)), mode="edge")
        y = lax.conv_general_dilated(vp, w.astype(bf16), (1, 1, 1), "VALID",
                                     dimension_numbers=("NDHWC", "DHWIO", "NDHWC"),
                                     preferred_element_type=jnp.float32)
        return y + b.reshape(1, 1, 1, 1, -1).astype(jnp.float32)

    x_bf = x.astype(bf16)
    s1, t1 = scale_shift_from(x.astype(jnp.float32),
                              params["norm1_gamma"], params["norm1_beta"])
    h_f32 = conv3(norm_silu(x_bf, s1, t1), params["conv1_w"], params["conv1_b"])
    h_bf = h_f32.astype(bf16)
    s2, t2 = scale_shift_from(h_f32, params["norm2_gamma"], params["norm2_beta"])
    y = conv3(norm_silu(h_bf, s2, t2), params["conv2_w"], params["conv2_b"])
    if "shortcut_w" in params:
        res = jnp.einsum("nthwc,cd->nthwd", x_bf, params["shortcut_w"].astype(bf16),
                         preferred_element_type=jnp.float32) \
              + params["shortcut_b"].reshape(1, 1, 1, 1, -1).astype(jnp.float32)
    else:
        res = x_bf.astype(jnp.float32)
    return (y + res).astype(x.dtype)


# ----------------------------------------------------------------------------
# main
# ----------------------------------------------------------------------------
def _run_case(key, *, N, T, H, W, Cin, Cout, groups, eps, with_shortcut):
    ks = jax.random.split(key, 12)
    x = jax.random.normal(ks[0], (N, T, H, W, Cin), jnp.float32)
    params = {
        "norm1_gamma": 1.0 + 0.1 * jax.random.normal(ks[1], (Cin,), jnp.float32),
        "norm1_beta": 0.1 * jax.random.normal(ks[2], (Cin,), jnp.float32),
        # conv weights in DHWIO layout (kt, kh, kw, Cin, Cout)
        "conv1_w": 0.05 * jax.random.normal(ks[3], (3, 3, 3, Cin, Cout), jnp.float32),
        "conv1_b": 0.05 * jax.random.normal(ks[4], (Cout,), jnp.float32),
        "norm2_gamma": 1.0 + 0.1 * jax.random.normal(ks[5], (Cout,), jnp.float32),
        "norm2_beta": 0.1 * jax.random.normal(ks[6], (Cout,), jnp.float32),
        "conv2_w": 0.05 * jax.random.normal(ks[7], (3, 3, 3, Cout, Cout), jnp.float32),
        "conv2_b": 0.05 * jax.random.normal(ks[8], (Cout,), jnp.float32),
    }
    if with_shortcut:
        params["shortcut_w"] = 0.1 * jax.random.normal(ks[9], (Cin, Cout), jnp.float32)
        params["shortcut_b"] = 0.05 * jax.random.normal(ks[10], (Cout,), jnp.float32)

    fwd = jax.jit(functools.partial(resnet_block_causal3d, groups=groups, eps=eps))
    out = jax.block_until_ready(fwd(x, params))
    assert out.shape == (N, T, H, W, Cout)
    assert out.dtype == x.dtype

    ref_b = _ref_bf16(x, params, groups=groups, eps=eps)
    err_b = float(jnp.max(jnp.abs(out - ref_b)))
    assert jnp.allclose(out, ref_b, rtol=5e-3, atol=5e-3), ("bf16-ref mismatch", err_b)

    ref_f = _ref_f32(x, params, groups=groups, eps=eps)
    err_f = float(jnp.max(jnp.abs(out - ref_f)))
    assert jnp.allclose(out, ref_f, rtol=5e-2, atol=1e-1), ("f32-ref mismatch", err_f)


if __name__ == "__main__":
    key = jax.random.PRNGKey(0)
    k1, k2 = jax.random.split(key)
    # Cin != Cout -> fused conv_shortcut projection path
    _run_case(k1, N=2, T=4, H=8, W=8, Cin=32, Cout=64, groups=8, eps=1e-6,
              with_shortcut=True)
    # Cin == Cout -> identity residual path
    _run_case(k2, N=1, T=3, H=8, W=8, Cin=32, Cout=32, groups=8, eps=1e-6,
              with_shortcut=False)
    print("KERNEL_OK")
</pallas_src>

<mosaic_0001>
module attributes {stable_mosaic.version = 11 : i64} {
  func.func @_gn_stats_kernel(%arg0: i32, %arg1: i32, %arg2: memref<1x4x8x8x32xf32, #tpu.memory_space<vmem>>, %arg3: memref<1x2x32xf32, #tpu.memory_space<vmem>>) attributes {dimension_semantics = [#tpu.dimension_semantics<parallel>, #tpu.dimension_semantics<arbitrary>], iteration_bounds = array<i64: 2, 1>, scalar_prefetch = 0 : i64, scratch_operands = 0 : i64, tpu.core_type = #tpu.core_type<tc>, window_params = [{transform_indices = @transform_0, window_bounds = array<i64: 1, 4, 8, 8, 32>}, {transform_indices = @transform_1, window_bounds = array<i64: 1, 2, 32>}]} {
    %c0 = arith.constant 0 : index
    %c0_0 = arith.constant 0 : index
    %c0_1 = arith.constant 0 : index
    %c0_2 = arith.constant 0 : index
    %c0_3 = arith.constant 0 : index
    %0 = vector.load %arg2[%c0, %c0_0, %c0_1, %c0_2, %c0_3] : memref<1x4x8x8x32xf32, #tpu.memory_space<vmem>>, vector<1x4x8x8x32xf32>
    %1 = vector.shape_cast %0 : vector<1x4x8x8x32xf32> to vector<4x8x8x32xf32>
    %cst = arith.constant dense<0.000000e+00> : vector<8x8x32xf32>
    %2 = vector.multi_reduction <add>, %1, %cst [0] : vector<4x8x8x32xf32> to vector<8x8x32xf32>
    %3 = vector.shape_cast %2 : vector<8x8x32xf32> to vector<1x8x8x32xf32>
    %cst_4 = arith.constant dense<0.000000e+00> : vector<1x8x32xf32>
    %4 = vector.multi_reduction <add>, %3, %cst_4 [1] : vector<1x8x8x32xf32> to vector<1x8x32xf32>
    %5 = vector.shape_cast %4 : vector<1x8x32xf32> to vector<1x1x8x32xf32>
    %cst_5 = arith.constant dense<0.000000e+00> : vector<1x1x32xf32>
    %6 = vector.multi_reduction <add>, %5, %cst_5 [2] : vector<1x1x8x32xf32> to vector<1x1x32xf32>
    %7 = vector.shape_cast %6 : vector<1x1x32xf32> to vector<1x1x1x32xf32>
    %8 = arith.mulf %1, %1 : vector<4x8x8x32xf32>
    %cst_6 = arith.constant dense<0.000000e+00> : vector<8x8x32xf32>
    %9 = vector.multi_reduction <add>, %8, %cst_6 [0] : vector<4x8x8x32xf32> to vector<8x8x32xf32>
    %10 = vector.shape_cast %9 : vector<8x8x32xf32> to vector<1x8x8x32xf32>
    %cst_7 = arith.constant dense<0.000000e+00> : vector<1x8x32xf32>
    %11 = vector.multi_reduction <add>, %10, %cst_7 [1] : vector<1x8x8x32xf32> to vector<1x8x32xf32>
    %12 = vector.shape_cast %11 : vector<1x8x32xf32> to vector<1x1x8x32xf32>
    %cst_8 = arith.constant dense<0.000000e+00> : vector<1x1x32xf32>
    %13 = vector.multi_reduction <add>, %12, %cst_8 [2] : vector<1x1x8x32xf32> to vector<1x1x32xf32>
    %14 = vector.shape_cast %13 : vector<1x1x32xf32> to vector<1x1x1x32xf32>
    %c0_i32 = arith.constant 0 : i32
    %15 = arith.cmpi eq, %arg1, %c0_i32 : i32
    %16 = arith.extui %15 : i1 to i32
    %c0_i32_9 = arith.constant 0 : i32
    %17 = arith.cmpi ne, %16, %c0_i32_9 : i32
    scf.if %17 {
      %cst_21 = arith.constant 0.000000e+00 : f32
      %26 = vector.broadcast %cst_21 : f32 to vector<1x2x32xf32>
      %c0_22 = arith.constant 0 : index
      %c0_23 = arith.constant 0 : index
      %c0_24 = arith.constant 0 : index
      %27 = vector.load %arg3[%c0_22, %c0_23, %c0_24] : memref<1x2x32xf32, #tpu.memory_space<vmem>>, vector<1x2x32xf32>
      tpu.vector_store %arg3[%c0_22, %c0_23, %c0_24], %26 {strides = array<i32>} : memref<1x2x32xf32, #tpu.memory_space<vmem>>, vector<1x2x32xf32>,
    } else {
    }
    %c0_10 = arith.constant 0 : index
    %c0_11 = arith.constant 0 : index
    %c0_12 = arith.constant 0 : index
    %18 = vector.load %arg3[%c0_10, %c0_11, %c0_12] : memref<1x2x32xf32, #tpu.memory_space<vmem>>, vector<1x1x32xf32>
    %19 = vector.shape_cast %7 : vector<1x1x1x32xf32> to vector<1x1x32xf32>
    %20 = arith.addf %18, %19 : vector<1x1x32xf32>
    %c0_13 = arith.constant 0 : index
    %c0_14 = arith.constant 0 : index
    %c0_15 = arith.constant 0 : index
    %21 = vector.load %arg3[%c0_13, %c0_14, %c0_15] : memref<1x2x32xf32, #tpu.memory_space<vmem>>, vector<1x1x32xf32>
    tpu.vector_store %arg3[%c0_13, %c0_14, %c0_15], %20 {strides = array<i32>} : memref<1x2x32xf32, #tpu.memory_space<vmem>>, vector<1x1x32xf32>,
    %c0_16 = arith.constant 0 : index
    %c1 = arith.constant 1 : index
    %c0_17 = arith.constant 0 : index
    %22 = vector.load %arg3[%c0_16, %c1, %c0_17] : memref<1x2x32xf32, #tpu.memory_space<vmem>>, vector<1x1x32xf32>
    %23 = vector.shape_cast %14 : vector<1x1x1x32xf32> to vector<1x1x32xf32>
    %24 = arith.addf %22, %23 : vector<1x1x32xf32>
    %c0_18 = arith.constant 0 : index
    %c1_19 = arith.constant 1 : index
    %c0_20 = arith.constant 0 : index
    %25 = vector.load %arg3[%c0_18, %c1_19, %c0_20] : memref<1x2x32xf32, #tpu.memory_space<vmem>>, vector<1x1x32xf32>
    tpu.vector_store %arg3[%c0_18, %c1_19, %c0_20], %24 {strides = array<i32>} : memref<1x2x32xf32, #tpu.memory_space<vmem>>, vector<1x1x32xf32>,
    return
  }
  func.func @transform_0(%arg0: i32, %arg1: i32) -> (i32, i32, i32, i32, i32) {
    %c0_i32 = arith.constant 0 : i32
    %c0_i32_0 = arith.constant 0 : i32
    %c0_i32_1 = arith.constant 0 : i32
    %c0_i32_2 = arith.constant 0 : i32
    return %arg0, %arg1, %c0_i32, %c0_i32_0, %c0_i32_1 : i32, i32, i32, i32, i32
  }
  func.func @transform_1(%arg0: i32, %arg1: i32) -> (i32, i32, i32) {
    %c0_i32 = arith.constant 0 : i32
    %c0_i32_0 = arith.constant 0 : i32
    %c0_i32_1 = arith.constant 0 : i32
    return %arg0, %c0_i32, %c0_i32_0 : i32, i32, i32
  }
}

module attributes {stable_mosaic.version = 11 : i64} {
  func.func @_conv1_kernel(%arg0: i32, %arg1: i32, %arg2: memref<1x1x8x8x32xbf16, #tpu.memory_space<vmem>>, %arg3: memref<1x1x32xf32, #tpu.memory_space<vmem>>, %arg4: memref<1x1x32xf32, #tpu.memory_space<vmem>>, %arg5: memref<3x3x96x64xbf16, #tpu.memory_space<vmem>>, %arg6: memref<1x1x64xf32, #tpu.memory_space<vmem>>, %arg7: memref<1x1x8x8x64xbf16, #tpu.memory_space<vmem>>, %arg8: memref<1x1x2x64xf32, #tpu.memory_space<vmem>>, %arg9: memref<3x10x10x32xbf16, #tpu.memory_space<vmem>>) attributes {dimension_semantics = [#tpu.dimension_semantics<parallel>, #tpu.dimension_semantics<arbitrary>], iteration_bounds = array<i64: 2, 4>, scalar_prefetch = 0 : i64, scratch_operands = 1 : i64, tpu.core_type = #tpu.core_type<tc>, window_params = [{transform_indices = @transform_0, window_bounds = array<i64: 1, 1, 8, 8, 32>}, {transform_indices = @transform_1, window_bounds = array<i64: 1, 1, 32>}, {transform_indices = @transform_2, window_bounds = array<i64: 1, 1, 32>}, {pipeline_mode = #tpu.pipeline_mode<synchronous>, transform_indices = @transform_3, window_bounds = array<i64: 3, 3, 96, 64>}, {pipeline_mode = #tpu.pipeline_mode<synchronous>, transform_indices = @transform_4, window_bounds = array<i64: 1, 1, 64>}, {transform_indices = @transform_5, window_bounds = array<i64: 1, 1, 8, 8, 64>}, {transform_indices = @transform_6, window_bounds = array<i64: 1, 1, 2, 64>}]} {
    %c0 = arith.constant 0 : index
    %c0_0 = arith.constant 0 : index
    %c0_1 = arith.constant 0 : index
    %c0_2 = arith.constant 0 : index
    %c0_3 = arith.constant 0 : index
    %0 = vector.load %arg2[%c0, %c0_0, %c0_1, %c0_2, %c0_3] : memref<1x1x8x8x32xbf16, #tpu.memory_space<vmem>>, vector<1x1x8x8x32xbf16>
    %1 = vector.shape_cast %0 : vector<1x1x8x8x32xbf16> to vector<8x8x32xbf16>
    %2 = arith.extf %1 : vector<8x8x32xbf16> to vector<8x8x32xf32>
    %c0_4 = arith.constant 0 : index
    %c0_5 = arith.constant 0 : index
    %c0_6 = arith.constant 0 : index
    %3 = vector.load %arg3[%c0_4, %c0_5, %c0_6] : memref<1x1x32xf32, #tpu.memory_space<vmem>>, vector<1x1x32xf32>
    %4 = vector.shape_cast %3 : vector<1x1x32xf32> to vector<1x32xf32>
    %5 = vector.shape_cast %4 : vector<1x32xf32> to vector<1x1x32xf32>
    %c0_7 = arith.constant 0 : index
    %c0_8 = arith.constant 0 : index
    %c0_9 = arith.constant 0 : index
    %6 = vector.load %arg4[%c0_7, %c0_8, %c0_9] : memref<1x1x32xf32, #tpu.memory_space<vmem>>, vector<1x1x32xf32>
    %7 = vector.shape_cast %6 : vector<1x1x32xf32> to vector<1x32xf32>
    %8 = vector.shape_cast %7 : vector<1x32xf32> to vector<1x1x32xf32>
    %9 = vector.broadcast %5 : vector<1x1x32xf32> to vector<8x8x32xf32>
    %10 = arith.mulf %2, %9 : vector<8x8x32xf32>
    %11 = vector.broadcast %8 : vector<1x1x32xf32> to vector<8x8x32xf32>
    %12 = arith.addf %10, %11 : vector<8x8x32xf32>
    %13 = arith.negf %12 : vector<8x8x32xf32>
    %14 = math.exp %13 : vector<8x8x32xf32>
    %cst = arith.constant 1.000000e+00 : f32
    %15 = vector.broadcast %cst : f32 to vector<8x8x32xf32>
    %16 = arith.addf %15, %14 : vector<8x8x32xf32>
    %17 = arith.divf %15, %16 : vector<8x8x32xf32>
    %18 = arith.mulf %12, %17 : vector<8x8x32xf32>
    %19 = arith.truncf %18 : vector<8x8x32xf32> to vector<8x8x32xbf16>
    %20 = vector.extract_strided_slice %19 {offsets = [0, 0, 0], sizes = [1, 8, 32], strides = [1, 1, 1]} : vector<8x8x32xbf16> to vector<1x8x32xbf16>
    %21 = vector.extract_strided_slice %19 {offsets = [7, 0, 0], sizes = [1, 8, 32], strides = [1, 1, 1]} : vector<8x8x32xbf16> to vector<1x8x32xbf16>
    %22 = tpu.concatenate %20, %19, %21 in 0 : vector<1x8x32xbf16>, vector<8x8x32xbf16>, vector<1x8x32xbf16> -> vector<10x8x32xbf16>
    %23 = vector.extract_strided_slice %22 {offsets = [0, 0, 0], sizes = [10, 1, 32], strides = [1, 1, 1]} : vector<10x8x32xbf16> to vector<10x1x32xbf16>
    %24 = vector.extract_strided_slice %22 {offsets = [0, 7, 0], sizes = [10, 1, 32], strides = [1, 1, 1]} : vector<10x8x32xbf16> to vector<10x1x32xbf16>
    %25 = tpu.concatenate %23, %22, %24 in 1 : vector<10x1x32xbf16>, vector<10x8x32xbf16>, vector<10x1x32xbf16> -> vector<10x10x32xbf16>
    %c3_i32 = arith.constant 3 : i32
    %c0_i32 = arith.constant 0 : i32
    %26 = arith.cmpi eq, %c3_i32, %c0_i32 : i32
    %c1_i32 = arith.constant 1 : i32
    %27 = arith.select %26, %c1_i32, %c3_i32 : i32
    %28 = arith.remsi %arg1, %27 : i32
    %c0_i32_10 = arith.constant 0 : i32
    %29 = arith.cmpi ne, %28, %c0_i32_10 : i32
    %c0_i32_11 = arith.constant 0 : i32
    %30 = arith.cmpi slt, %28, %c0_i32_11 : i32
    %c0_i32_12 = arith.constant 0 : i32
    %31 = arith.cmpi slt, %27, %c0_i32_12 : i32
    %32 = arith.xori %30, %31 : i1
    %33 = arith.andi %32, %29 : i1
    %34 = arith.addi %28, %27 : i32
    %35 = arith.select %33, %34, %28 : i32
    %c0_i32_13 = arith.constant 0 : i32
    %36 = arith.cmpi eq, %35, %c0_i32_13 : i32
    %37 = arith.extui %36 : i1 to i32
    %c0_i32_14 = arith.constant 0 : i32
    %38 = arith.cmpi ne, %37, %c0_i32_14 : i32
    scf.if %38 {
      %c0_110 = arith.constant 0 : index
      %c0_111 = arith.constant 0 : index
      %c0_112 = arith.constant 0 : index
      %c0_113 = arith.constant 0 : index
      %190 = vector.load %arg9[%c0_110, %c0_111, %c0_112, %c0_113] : memref<3x10x10x32xbf16, #tpu.memory_space<vmem>>, vector<1x10x10x32xbf16>
      %191 = vector.shape_cast %190 : vector<1x10x10x32xbf16> to vector<10x10x32xbf16>
      %192 = vector.shape_cast %25 : vector<10x10x32xbf16> to vector<1x10x10x32xbf16>
      tpu.vector_store %arg9[%c0_110, %c0_111, %c0_112, %c0_113], %192 {strides = array<i32>} : memref<3x10x10x32xbf16, #tpu.memory_space<vmem>>, vector<1x10x10x32xbf16>,
    } else {
    }
    %c1_i32_15 = arith.constant 1 : i32
    %39 = arith.cmpi eq, %35, %c1_i32_15 : i32
    %40 = arith.extui %39 : i1 to i32
    %c0_i32_16 = arith.constant 0 : i32
    %41 = arith.cmpi ne, %40, %c0_i32_16 : i32
    scf.if %41 {
      %c1_110 = arith.constant 1 : index
      %c0_111 = arith.constant 0 : index
      %c0_112 = arith.constant 0 : index
      %c0_113 = arith.constant 0 : index
      %190 = vector.load %arg9[%c1_110, %c0_111, %c0_112, %c0_113] : memref<3x10x10x32xbf16, #tpu.memory_space<vmem>>, vector<1x10x10x32xbf16>
      %191 = vector.shape_cast %190 : vector<1x10x10x32xbf16> to vector<10x10x32xbf16>
      %192 = vector.shape_cast %25 : vector<10x10x32xbf16> to vector<1x10x10x32xbf16>
      tpu.vector_store %arg9[%c1_110, %c0_111, %c0_112, %c0_113], %192 {strides = array<i32>} : memref<3x10x10x32xbf16, #tpu.memory_space<vmem>>, vector<1x10x10x32xbf16>,
    } else {
    }
    %c2_i32 = arith.constant 2 : i32
    %42 = arith.cmpi eq, %35, %c2_i32 : i32
    %43 = arith.extui %42 : i1 to i32
    %c0_i32_17 = arith.constant 0 : i32
    %44 = arith.cmpi ne, %43, %c0_i32_17 : i32
    scf.if %44 {
      %c2_110 = arith.constant 2 : index
      %c0_111 = arith.constant 0 : index
      %c0_112 = arith.constant 0 : index
      %c0_113 = arith.constant 0 : index
      %190 = vector.load %arg9[%c2_110, %c0_111, %c0_112, %c0_113] : memref<3x10x10x32xbf16, #tpu.memory_space<vmem>>, vector<1x10x10x32xbf16>
      %191 = vector.shape_cast %190 : vector<1x10x10x32xbf16> to vector<10x10x32xbf16>
      %192 = vector.shape_cast %25 : vector<10x10x32xbf16> to vector<1x10x10x32xbf16>
      tpu.vector_store %arg9[%c2_110, %c0_111, %c0_112, %c0_113], %192 {strides = array<i32>} : memref<3x10x10x32xbf16, #tpu.memory_space<vmem>>, vector<1x10x10x32xbf16>,
    } else {
    }
    %c-2_i32 = arith.constant -2 : i32
    %45 = arith.addi %arg1, %c-2_i32 : i32
    %c0_i32_18 = arith.constant 0 : i32
    %46 = arith.maxsi %45, %c0_i32_18 : i32
    %c3_i32_19 = arith.constant 3 : i32
    %c0_i32_20 = arith.constant 0 : i32
    %47 = arith.cmpi eq, %c3_i32_19, %c0_i32_20 : i32
    %c1_i32_21 = arith.constant 1 : i32
    %48 = arith.select %47, %c1_i32_21, %c3_i32_19 : i32
    %49 = arith.remsi %46, %48 : i32
    %c0_i32_22 = arith.constant 0 : i32
    %50 = arith.cmpi ne, %49, %c0_i32_22 : i32
    %c0_i32_23 = arith.constant 0 : i32
    %51 = arith.cmpi slt, %49, %c0_i32_23 : i32
    %c0_i32_24 = arith.constant 0 : i32
    %52 = arith.cmpi slt, %48, %c0_i32_24 : i32
    %53 = arith.xori %51, %52 : i1
    %54 = arith.andi %53, %50 : i1
    %55 = arith.addi %49, %48 : i32
    %56 = arith.select %54, %55, %49 : i32
    %57 = arith.index_cast %56 : i32 to index
    %c0_25 = arith.constant 0 : index
    %c0_26 = arith.constant 0 : index
    %c0_27 = arith.constant 0 : index
    %58 = vector.load %arg9[%57, %c0_25, %c0_26, %c0_27] : memref<3x10x10x32xbf16, #tpu.memory_space<vmem>>, vector<1x10x10x32xbf16>
    %59 = vector.shape_cast %58 : vector<1x10x10x32xbf16> to vector<10x10x32xbf16>
    %60 = vector.extract_strided_slice %59 {offsets = [0, 0, 0], sizes = [8, 8, 32], strides = [1, 1, 1]} : vector<10x10x32xbf16> to vector<8x8x32xbf16>
    %61 = vector.extract_strided_slice %59 {offsets = [1, 0, 0], sizes = [8, 8, 32], strides = [1, 1, 1]} : vector<10x10x32xbf16> to vector<8x8x32xbf16>
    %62 = vector.extract_strided_slice %59 {offsets = [2, 0, 0], sizes = [8, 8, 32], strides = [1, 1, 1]} : vector<10x10x32xbf16> to vector<8x8x32xbf16>
    %63 = tpu.concatenate %60, %61, %62 in 2 : vector<8x8x32xbf16>, vector<8x8x32xbf16>, vector<8x8x32xbf16> -> vector<8x8x96xbf16>
    %64 = vector.shape_cast %63 : vector<8x8x96xbf16> to vector<64x96xbf16>
    %c0_28 = arith.constant 0 : index
    %c0_29 = arith.constant 0 : index
    %c0_30 = arith.constant 0 : index
    %c0_31 = arith.constant 0 : index
    %65 = vector.load %arg5[%c0_28, %c0_29, %c0_30, %c0_31] : memref<3x3x96x64xbf16, #tpu.memory_space<vmem>>, vector<1x1x96x64xbf16>
    %66 = vector.shape_cast %65 : vector<1x1x96x64xbf16> to vector<96x64xbf16>
    %cst_32 = arith.constant dense<0.000000e+00> : vector<64x64xf32>
    %67 = tpu.matmul %64, %66, %cst_32 {dimension_numbers = #tpu.dot_dimension_numbers<[1], [0], [0], [1], [0, 0, 1, 1], [], []>} : vector<64x96xbf16>, vector<96x64xbf16>, vector<64x64xf32> -> vector<64x64xf32>
    %68 = vector.extract_strided_slice %59 {offsets = [0, 1, 0], sizes = [8, 8, 32], strides = [1, 1, 1]} : vector<10x10x32xbf16> to vector<8x8x32xbf16>
    %69 = vector.extract_strided_slice %59 {offsets = [1, 1, 0], sizes = [8, 8, 32], strides = [1, 1, 1]} : vector<10x10x32xbf16> to vector<8x8x32xbf16>
    %70 = vector.extract_strided_slice %59 {offsets = [2, 1, 0], sizes = [8, 8, 32], strides = [1, 1, 1]} : vector<10x10x32xbf16> to vector<8x8x32xbf16>
    %71 = tpu.concatenate %68, %69, %70 in 2 : vector<8x8x32xbf16>, vector<8x8x32xbf16>, vector<8x8x32xbf16> -> vector<8x8x96xbf16>
    %72 = vector.shape_cast %71 : vector<8x8x96xbf16> to vector<64x96xbf16>
    %c0_33 = arith.constant 0 : index
    %c1 = arith.constant 1 : index
    %c0_34 = arith.constant 0 : index
    %c0_35 = arith.constant 0 : index
    %73 = vector.load %arg5[%c0_33, %c1, %c0_34, %c0_35] : memref<3x3x96x64xbf16, #tpu.memory_space<vmem>>, vector<1x1x96x64xbf16>
    %74 = vector.shape_cast %73 : vector<1x1x96x64xbf16> to vector<96x64xbf16>
    %cst_36 = arith.constant dense<0.000000e+00> : vector<64x64xf32>
    %75 = tpu.matmul %72, %74, %cst_36 {dimension_numbers = #tpu.dot_dimension_numbers<[1], [0], [0], [1], [0, 0, 1, 1], [], []>} : vector<64x96xbf16>, vector<96x64xbf16>, vector<64x64xf32> -> vector<64x64xf32>
    %76 = arith.addf %67, %75 : vector<64x64xf32>
    %77 = vector.extract_strided_slice %59 {offsets = [0, 2, 0], sizes = [8, 8, 32], strides = [1, 1, 1]} : vector<10x10x32xbf16> to vector<8x8x32xbf16>
    %78 = vector.extract_strided_slice %59 {offsets = [1, 2, 0], sizes = [8, 8, 32], strides = [1, 1, 1]} : vector<10x10x32xbf16> to vector<8x8x32xbf16>
    %79 = vector.extract_strided_slice %59 {offsets = [2, 2, 0], sizes = [8, 8, 32], strides = [1, 1, 1]} : vector<10x10x32xbf16> to vector<8x8x32xbf16>
    %80 = tpu.concatenate %77, %78, %79 in 2 : vector<8x8x32xbf16>, vector<8x8x32xbf16>, vector<8x8x32xbf16> -> vector<8x8x96xbf16>
    %81 = vector.shape_cast %80 : vector<8x8x96xbf16> to vector<64x96xbf16>
    %c0_37 = arith.constant 0 : index
    %c2 = arith.constant 2 : index
    %c0_38 = arith.constant 0 : index
    %c0_39 = arith.constant 0 : index
    %82 = vector.load %arg5[%c0_37, %c2, %c0_38, %c0_39] : memref<3x3x96x64xbf16, #tpu.memory_space<vmem>>, vector<1x1x96x64xbf16>
    %83 = vector.shape_cast %82 : vector<1x1x96x64xbf16> to vector<96x64xbf16>
    %cst_40 = arith.constant dense<0.000000e+00> : vector<64x64xf32>
    %84 = tpu.matmul %81, %83, %cst_40 {dimension_numbers = #tpu.dot_dimension_numbers<[1], [0], [0], [1], [0, 0, 1, 1], [], []>} : vector<64x96xbf16>, vector<96x64xbf16>, vector<64x64xf32> -> vector<64x64xf32>
    %85 = arith.addf %76, %84 : vector<64x64xf32>
    %c-1_i32 = arith.constant -1 : i32
    %86 = arith.addi %arg1, %c-1_i32 : i32
    %c0_i32_41 = arith.constant 0 : i32
    %87 = arith.maxsi %86, %c0_i32_41 : i32
    %c3_i32_42 = arith.constant 3 : i32
    %c0_i32_43 = arith.constant 0 : i32
    %88 = arith.cmpi eq, %c3_i32_42, %c0_i32_43 : i32
    %c1_i32_44 = arith.constant 1 : i32
    %89 = arith.select %88, %c1_i32_44, %c3_i32_42 : i32
    %90 = arith.remsi %87, %89 : i32
    %c0_i32_45 = arith.constant 0 : i32
    %91 = arith.cmpi ne, %90, %c0_i32_45 : i32
    %c0_i32_46 = arith.constant 0 : i32
    %92 = arith.cmpi slt, %90, %c0_i32_46 : i32
    %c0_i32_47 = arith.constant 0 : i32
    %93 = arith.cmpi slt, %89, %c0_i32_47 : i32
    %94 = arith.xori %92, %93 : i1
    %95 = arith.andi %94, %91 : i1
    %96 = arith.addi %90, %89 : i32
    %97 = arith.select %95, %96, %90 : i32
    %98 = arith.index_cast %97 : i32 to index
    %c0_48 = arith.constant 0 : index
    %c0_49 = arith.constant 0 : index
    %c0_50 = arith.constant 0 : index
    %99 = vector.load %arg9[%98, %c0_48, %c0_49, %c0_50] : memref<3x10x10x32xbf16, #tpu.memory_space<vmem>>, vector<1x10x10x32xbf16>
    %100 = vector.shape_cast %99 : vector<1x10x10x32xbf16> to vector<10x10x32xbf16>
    %101 = vector.extract_strided_slice %100 {offsets = [0, 0, 0], sizes = [8, 8, 32], strides = [1, 1, 1]} : vector<10x10x32xbf16> to vector<8x8x32xbf16>
    %102 = vector.extract_strided_slice %100 {offsets = [1, 0, 0], sizes = [8, 8, 32], strides = [1, 1, 1]} : vector<10x10x32xbf16> to vector<8x8x32xbf16>
    %103 = vector.extract_strided_slice %100 {offsets = [2, 0, 0], sizes = [8, 8, 32], strides = [1, 1, 1]} : vector<10x10x32xbf16> to vector<8x8x32xbf16>
    %104 = tpu.concatenate %101, %102, %103 in 2 : vector<8x8x32xbf16>, vector<8x8x32xbf16>, vector<8x8x32xbf16> -> vector<8x8x96xbf16>
    %105 = vector.shape_cast %104 : vector<8x8x96xbf16> to vector<64x96xbf16>
    %c1_51 = arith.constant 1 : index
    %c0_52 = arith.constant 0 : index
    %c0_53 = arith.constant 0 : index
    %c0_54 = arith.constant 0 : index
    %106 = vector.load %arg5[%c1_51, %c0_52, %c0_53, %c0_54] : memref<3x3x96x64xbf16, #tpu.memory_space<vmem>>, vector<1x1x96x64xbf16>
    %107 = vector.shape_cast %106 : vector<1x1x96x64xbf16> to vector<96x64xbf16>
    %cst_55 = arith.constant dense<0.000000e+00> : vector<64x64xf32>
    %108 = tpu.matmul %105, %107, %cst_55 {dimension_numbers = #tpu.dot_dimension_numbers<[1], [0], [0], [1], [0, 0, 1, 1], [], []>} : vector<64x96xbf16>, vector<96x64xbf16>, vector<64x64xf32> -> vector<64x64xf32>
    %109 = arith.addf %85, %108 : vector<64x64xf32>
    %110 = vector.extract_strided_slice %100 {offsets = [0, 1, 0], sizes = [8, 8, 32], strides = [1, 1, 1]} : vector<10x10x32xbf16> to vector<8x8x32xbf16>
    %111 = vector.extract_strided_slice %100 {offsets = [1, 1, 0], sizes = [8, 8, 32], strides = [1, 1, 1]} : vector<10x10x32xbf16> to vector<8x8x32xbf16>
    %112 = vector.extract_strided_slice %100 {offsets = [2, 1, 0], sizes = [8, 8, 32], strides = [1, 1, 1]} : vector<10x10x32xbf16> to vector<8x8x32xbf16>
    %113 = tpu.concatenate %110, %111, %112 in 2 : vector<8x8x32xbf16>, vector<8x8x32xbf16>, vector<8x8x32xbf16> -> vector<8x8x96xbf16>
    %114 = vector.shape_cast %113 : vector<8x8x96xbf16> to vector<64x96xbf16>
    %c1_56 = arith.constant 1 : index
    %c1_57 = arith.constant 1 : index
    %c0_58 = arith.constant 0 : index
    %c0_59 = arith.constant 0 : index
    %115 = vector.load %arg5[%c1_56, %c1_57, %c0_58, %c0_59] : memref<3x3x96x64xbf16, #tpu.memory_space<vmem>>, vector<1x1x96x64xbf16>
    %116 = vector.shape_cast %115 : vector<1x1x96x64xbf16> to vector<96x64xbf16>
    %cst_60 = arith.constant dense<0.000000e+00> : vector<64x64xf32>
    %117 = tpu.matmul %114, %116, %cst_60 {dimension_numbers = #tpu.dot_dimension_numbers<[1], [0], [0], [1], [0, 0, 1, 1], [], []>} : vector<64x96xbf16>, vector<96x64xbf16>, vector<64x64xf32> -> vector<64x64xf32>
    %118 = arith.addf %109, %117 : vector<64x64xf32>
    %119 = vector.extract_strided_slice %100 {offsets = [0, 2, 0], sizes = [8, 8, 32], strides = [1, 1, 1]} : vector<10x10x32xbf16> to vector<8x8x32xbf16>
    %120 = vector.extract_strided_slice %100 {offsets = [1, 2, 0], sizes = [8, 8, 32], strides = [1, 1, 1]} : vector<10x10x32xbf16> to vector<8x8x32xbf16>
    %121 = vector.extract_strided_slice %100 {offsets = [2, 2, 0], sizes = [8, 8, 32], strides = [1, 1, 1]} : vector<10x10x32xbf16> to vector<8x8x32xbf16>
    %122 = tpu.concatenate %119, %120, %121 in 2 : vector<8x8x32xbf16>, vector<8x8x32xbf16>, vector<8x8x32xbf16> -> vector<8x8x96xbf16>
    %123 = vector.shape_cast %122 : vector<8x8x96xbf16> to vector<64x96xbf16>
    %c1_61 = arith.constant 1 : index
    %c2_62 = arith.constant 2 : index
    %c0_63 = arith.constant 0 : index
    %c0_64 = arith.constant 0 : index
    %124 = vector.load %arg5[%c1_61, %c2_62, %c0_63, %c0_64] : memref<3x3x96x64xbf16, #tpu.memory_space<vmem>>, vector<1x1x96x64xbf16>
    %125 = vector.shape_cast %124 : vector<1x1x96x64xbf16> to vector<96x64xbf16>
    %cst_65 = arith.constant dense<0.000000e+00> : vector<64x64xf32>
    %126 = tpu.matmul %123, %125, %cst_65 {dimension_numbers = #tpu.dot_dimension_numbers<[1], [0], [0], [1], [0, 0, 1, 1], [], []>} : vector<64x96xbf16>, vector<96x64xbf16>, vector<64x64xf32> -> vector<64x64xf32>
    %127 = arith.addf %118, %126 : vector<64x64xf32>
    %c0_i32_66 = arith.constant 0 : i32
    %128 = arith.addi %arg1, %c0_i32_66 : i32
    %c0_i32_67 = arith.constant 0 : i32
    %129 = arith.maxsi %128, %c0_i32_67 : i32
    %c3_i32_68 = arith.constant 3 : i32
    %c0_i32_69 = arith.constant 0 : i32
    %130 = arith.cmpi eq, %c3_i32_68, %c0_i32_69 : i32
    %c1_i32_70 = arith.constant 1 : i32
    %131 = arith.select %130, %c1_i32_70, %c3_i32_68 : i32
    %132 = arith.remsi %129, %131 : i32
    %c0_i32_71 = arith.constant 0 : i32
    %133 = arith.cmpi ne, %132, %c0_i32_71 : i32
    %c0_i32_72 = arith.constant 0 : i32
    %134 = arith.cmpi slt, %132, %c0_i32_72 : i32
    %c0_i32_73 = arith.constant 0 : i32
    %135 = arith.cmpi slt, %131, %c0_i32_73 : i32
    %136 = arith.xori %134, %135 : i1
    %137 = arith.andi %136, %133 : i1
    %138 = arith.addi %132, %131 : i32
    %139 = arith.select %137, %138, %132 : i32
    %140 = arith.index_cast %139 : i32 to index
    %c0_74 = arith.constant 0 : index
    %c0_75 = arith.constant 0 : index
    %c0_76 = arith.constant 0 : index
    %141 = vector.load %arg9[%140, %c0_74, %c0_75, %c0_76] : memref<3x10x10x32xbf16, #tpu.memory_space<vmem>>, vector<1x10x10x32xbf16>
    %142 = vector.shape_cast %141 : vector<1x10x10x32xbf16> to vector<10x10x32xbf16>
    %143 = vector.extract_strided_slice %142 {offsets = [0, 0, 0], sizes = [8, 8, 32], strides = [1, 1, 1]} : vector<10x10x32xbf16> to vector<8x8x32xbf16>
    %144 = vector.extract_strided_slice %142 {offsets = [1, 0, 0], sizes = [8, 8, 32], strides = [1, 1, 1]} : vector<10x10x32xbf16> to vector<8x8x32xbf16>
    %145 = vector.extract_strided_slice %142 {offsets = [2, 0, 0], sizes = [8, 8, 32], strides = [1, 1, 1]} : vector<10x10x32xbf16> to vector<8x8x32xbf16>
    %146 = tpu.concatenate %143, %144, %145 in 2 : vector<8x8x32xbf16>, vector<8x8x32xbf16>, vector<8x8x32xbf16> -> vector<8x8x96xbf16>
    %147 = vector.shape_cast %146 : vector<8x8x96xbf16> to vector<64x96xbf16>
    %c2_77 = arith.constant 2 : index
    %c0_78 = arith.constant 0 : index
    %c0_79 = arith.constant 0 : index
    %c0_80 = arith.constant 0 : index
    %148 = vector.load %arg5[%c2_77, %c0_78, %c0_79, %c0_80] : memref<3x3x96x64xbf16, #tpu.memory_space<vmem>>, vector<1x1x96x64xbf16>
    %149 = vector.shape_cast %148 : vector<1x1x96x64xbf16> to vector<96x64xbf16>
    %cst_81 = arith.constant dense<0.000000e+00> : vector<64x64xf32>
    %150 = tpu.matmul %147, %149, %cst_81 {dimension_numbers = #tpu.dot_dimension_numbers<[1], [0], [0], [1], [0, 0, 1, 1], [], []>} : vector<64x96xbf16>, vector<96x64xbf16>, vector<64x64xf32> -> vector<64x64xf32>
    %151 = arith.addf %127, %150 : vector<64x64xf32>
    %152 = vector.extract_strided_slice %142 {offsets = [0, 1, 0], sizes = [8, 8, 32], strides = [1, 1, 1]} : vector<10x10x32xbf16> to vector<8x8x32xbf16>
    %153 = vector.extract_strided_slice %142 {offsets = [1, 1, 0], sizes = [8, 8, 32], strides = [1, 1, 1]} : vector<10x10x32xbf16> to vector<8x8x32xbf16>
    %154 = vector.extract_strided_slice %142 {offsets = [2, 1, 0], sizes = [8, 8, 32], strides = [1, 1, 1]} : vector<10x10x32xbf16> to vector<8x8x32xbf16>
    %155 = tpu.concatenate %152, %153, %154 in 2 : vector<8x8x32xbf16>, vector<8x8x32xbf16>, vector<8x8x32xbf16> -> vector<8x8x96xbf16>
    %156 = vector.shape_cast %155 : vector<8x8x96xbf16> to vector<64x96xbf16>
    %c2_82 = arith.constant 2 : index
    %c1_83 = arith.constant 1 : index
    %c0_84 = arith.constant 0 : index
    %c0_85 = arith.constant 0 : index
    %157 = vector.load %arg5[%c2_82, %c1_83, %c0_84, %c0_85] : memref<3x3x96x64xbf16, #tpu.memory_space<vmem>>, vector<1x1x96x64xbf16>
    %158 = vector.shape_cast %157 : vector<1x1x96x64xbf16> to vector<96x64xbf16>
    %cst_86 = arith.constant dense<0.000000e+00> : vector<64x64xf32>
    %159 = tpu.matmul %156, %158, %cst_86 {dimension_numbers = #tpu.dot_dimension_numbers<[1], [0], [0], [1], [0, 0, 1, 1], [], []>} : vector<64x96xbf16>, vector<96x64xbf16>, vector<64x64xf32> -> vector<64x64xf32>
    %160 = arith.addf %151, %159 : vector<64x64xf32>
    %161 = vector.extract_strided_slice %142 {offsets = [0, 2, 0], sizes = [8, 8, 32], strides = [1, 1, 1]} : vector<10x10x32xbf16> to vector<8x8x32xbf16>
    %162 = vector.extract_strided_slice %142 {offsets = [1, 2, 0], sizes = [8, 8, 32], strides = [1, 1, 1]} : vector<10x10x32xbf16> to vector<8x8x32xbf16>
    %163 = vector.extract_strided_slice %142 {offsets = [2, 2, 0], sizes = [8, 8, 32], strides = [1, 1, 1]} : vector<10x10x32xbf16> to vector<8x8x32xbf16>
    %164 = tpu.concatenate %161, %162, %163 in 2 : vector<8x8x32xbf16>, vector<8x8x32xbf16>, vector<8x8x32xbf16> -> vector<8x8x96xbf16>
    %165 = vector.shape_cast %164 : vector<8x8x96xbf16> to vector<64x96xbf16>
    %c2_87 = arith.constant 2 : index
    %c2_88 = arith.constant 2 : index
    %c0_89 = arith.constant 0 : index
    %c0_90 = arith.constant 0 : index
    %166 = vector.load %arg5[%c2_87, %c2_88, %c0_89, %c0_90] : memref<3x3x96x64xbf16, #tpu.memory_space<vmem>>, vector<1x1x96x64xbf16>
    %167 = vector.shape_cast %166 : vector<1x1x96x64xbf16> to vector<96x64xbf16>
    %cst_91 = arith.constant dense<0.000000e+00> : vector<64x64xf32>
    %168 = tpu.matmul %165, %167, %cst_91 {dimension_numbers = #tpu.dot_dimension_numbers<[1], [0], [0], [1], [0, 0, 1, 1], [], []>} : vector<64x96xbf16>, vector<96x64xbf16>, vector<64x64xf32> -> vector<64x64xf32>
    %169 = arith.addf %160, %168 : vector<64x64xf32>
    %c0_92 = arith.constant 0 : index
    %c0_93 = arith.constant 0 : index
    %c0_94 = arith.constant 0 : index
    %170 = vector.load %arg6[%c0_92, %c0_93, %c0_94] : memref<1x1x64xf32, #tpu.memory_space<vmem>>, vector<1x1x64xf32>
    %171 = vector.shape_cast %170 : vector<1x1x64xf32> to vector<1x64xf32>
    %172 = vector.broadcast %171 : vector<1x64xf32> to vector<64x64xf32>
    %173 = arith.addf %169, %172 : vector<64x64xf32>
    %cst_95 = arith.constant dense<0.000000e+00> : vector<64xf32>
    %174 = vector.multi_reduction <add>, %173, %cst_95 [0] : vector<64x64xf32> to vector<64xf32>
    %175 = vector.shape_cast %174 : vector<64xf32> to vector<1x64xf32>
    %c0_96 = arith.constant 0 : index
    %c0_97 = arith.constant 0 : index
    %c0_98 = arith.constant 0 : index
    %c0_99 = arith.constant 0 : index
    %176 = vector.load %arg8[%c0_96, %c0_97, %c0_98, %c0_99] : memref<1x1x2x64xf32, #tpu.memory_space<vmem>>, vector<1x1x1x64xf32>
    %177 = vector.shape_cast %176 : vector<1x1x1x64xf32> to vector<1x64xf32>
    %178 = vector.shape_cast %175 : vector<1x64xf32> to vector<1x1x1x64xf32>
    tpu.vector_store %arg8[%c0_96, %c0_97, %c0_98, %c0_99], %178 {strides = array<i32>} : memref<1x1x2x64xf32, #tpu.memory_space<vmem>>, vector<1x1x1x64xf32>,
    %179 = arith.mulf %173, %173 : vector<64x64xf32>
    %cst_100 = arith.constant dense<0.000000e+00> : vector<64xf32>
    %180 = vector.multi_reduction <add>, %179, %cst_100 [0] : vector<64x64xf32> to vector<64xf32>
    %181 = vector.shape_cast %180 : vector<64xf32> to vector<1x64xf32>
    %c0_101 = arith.constant 0 : index
    %c0_102 = arith.constant 0 : index
    %c1_103 = arith.constant 1 : index
    %c0_104 = arith.constant 0 : index
    %182 = vector.load %arg8[%c0_101, %c0_102, %c1_103, %c0_104] : memref<1x1x2x64xf32, #tpu.memory_space<vmem>>, vector<1x1x1x64xf32>
    %183 = vector.shape_cast %182 : vector<1x1x1x64xf32> to vector<1x64xf32>
    %184 = vector.shape_cast %181 : vector<1x64xf32> to vector<1x1x1x64xf32>
    tpu.vector_store %arg8[%c0_101, %c0_102, %c1_103, %c0_104], %184 {strides = array<i32>} : memref<1x1x2x64xf32, #tpu.memory_space<vmem>>, vector<1x1x1x64xf32>,
    %185 = vector.shape_cast %173 : vector<64x64xf32> to vector<8x8x64xf32>
    %186 = arith.truncf %185 : vector<8x8x64xf32> to vector<8x8x64xbf16>
    %c0_105 = arith.constant 0 : index
    %c0_106 = arith.constant 0 : index
    %c0_107 = arith.constant 0 : index
    %c0_108 = arith.constant 0 : index
    %c0_109 = arith.constant 0 : index
    %187 = vector.load %arg7[%c0_105, %c0_106, %c0_107, %c0_108, %c0_109] : memref<1x1x8x8x64xbf16, #tpu.memory_space<vmem>>, vector<1x1x8x8x64xbf16>
    %188 = vector.shape_cast %187 : vector<1x1x8x8x64xbf16> to vector<8x8x64xbf16>
    %189 = vector.shape_cast %186 : vector<8x8x64xbf16> to vector<1x1x8x8x64xbf16>
    tpu.vector_store %arg7[%c0_105, %c0_106, %c0_107, %c0_108, %c0_109], %189 {strides = array<i32>} : memref<1x1x8x8x64xbf16, #tpu.memory_space<vmem>>, vector<1x1x8x8x64xbf16>,
    return
  }
  func.func @transform_0(%arg0: i32, %arg1: i32) -> (i32, i32, i32, i32, i32) {
    %c0_i32 = arith.constant 0 : i32
    %c0_i32_0 = arith.constant 0 : i32
    %c0_i32_1 = arith.constant 0 : i32
    %c0_i32_2 = arith.constant 0 : i32
    return %arg0, %arg1, %c0_i32, %c0_i32_0, %c0_i32_1 : i32, i32, i32, i32, i32
  }
  func.func @transform_1(%arg0: i32, %arg1: i32) -> (i32, i32, i32) {
    %c0_i32 = arith.constant 0 : i32
    %c0_i32_0 = arith.constant 0 : i32
    %c0_i32_1 = arith.constant 0 : i32
    return %arg0, %c0_i32, %c0_i32_0 : i32, i32, i32
  }
  func.func @transform_2(%arg0: i32, %arg1: i32) -> (i32, i32, i32) {
    %c0_i32 = arith.constant 0 : i32
    %c0_i32_0 = arith.constant 0 : i32
    %c0_i32_1 = arith.constant 0 : i32
    return %arg0, %c0_i32, %c0_i32_0 : i32, i32, i32
  }
  func.func @transform_3(%arg0: i32, %arg1: i32) -> (i32, i32, i32, i32) {
    %c0_i32 = arith.constant 0 : i32
    %c0_i32_0 = arith.constant 0 : i32
    %c0_i32_1 = arith.constant 0 : i32
    %c0_i32_2 = arith.constant 0 : i32
    %c0_i32_3 = arith.constant 0 : i32
    return %c0_i32, %c0_i32_0, %c0_i32_1, %c0_i32_2 : i32, i32, i32, i32
  }
  func.func @transform_4(%arg0: i32, %arg1: i32) -> (i32, i32, i32) {
    %c0_i32 = arith.constant 0 : i32
    %c0_i32_0 = arith.constant 0 : i32
    %c0_i32_1 = arith.constant 0 : i32
    %c0_i32_2 = arith.constant 0 : i32
    return %c0_i32, %c0_i32_0, %c0_i32_1 : i32, i32, i32
  }
  func.func @transform_5(%arg0: i32, %arg1: i32) -> (i32, i32, i32, i32, i32) {
    %c0_i32 = arith.constant 0 : i32
    %c0_i32_0 = arith.constant 0 : i32
    %c0_i32_1 = arith.constant 0 : i32
    %c0_i32_2 = arith.constant 0 : i32
    return %arg0, %arg1, %c0_i32, %c0_i32_0, %c0_i32_1 : i32, i32, i32, i32, i32
  }
  func.func @transform_6(%arg0: i32, %arg1: i32) -> (i32, i32, i32, i32) {
    %c0_i32 = arith.constant 0 : i32
    %c0_i32_0 = arith.constant 0 : i32
    %c0_i32_1 = arith.constant 0 : i32
    return %arg0, %arg1, %c0_i32, %c0_i32_0 : i32, i32, i32, i32
  }
}

module attributes {stable_mosaic.version = 11 : i64} {
  func.func @_conv2_proj_kernel(%arg0: i32, %arg1: i32, %arg2: memref<1x1x8x8x64xbf16, #tpu.memory_space<vmem>>, %arg3: memref<1x1x64xf32, #tpu.memory_space<vmem>>, %arg4: memref<1x1x64xf32, #tpu.memory_space<vmem>>, %arg5: memref<3x3x192x64xbf16, #tpu.memory_space<vmem>>, %arg6: memref<1x1x64xf32, #tpu.memory_space<vmem>>, %arg7: memref<1x1x8x8x32xbf16, #tpu.memory_space<vmem>>, %arg8: memref<32x64xbf16, #tpu.memory_space<vmem>>, %arg9: memref<1x1x64xf32, #tpu.memory_space<vmem>>, %arg10: memref<1x1x8x8x64xf32, #tpu.memory_space<vmem>>, %arg11: memref<3x10x10x64xbf16, #tpu.memory_space<vmem>>) attributes {dimension_semantics = [#tpu.dimension_semantics<parallel>, #tpu.dimension_semantics<arbitrary>], iteration_bounds = array<i64: 2, 4>, scalar_prefetch = 0 : i64, scratch_operands = 1 : i64, tpu.core_type = #tpu.core_type<tc>, window_params = [{transform_indices = @transform_0, window_bounds = array<i64: 1, 1, 8, 8, 64>}, {transform_indices = @transform_1, window_bounds = array<i64: 1, 1, 64>}, {transform_indices = @transform_2, window_bounds = array<i64: 1, 1, 64>}, {pipeline_mode = #tpu.pipeline_mode<synchronous>, transform_indices = @transform_3, window_bounds = array<i64: 3, 3, 192, 64>}, {pipeline_mode = #tpu.pipeline_mode<synchronous>, transform_indices = @transform_4, window_bounds = array<i64: 1, 1, 64>}, {transform_indices = @transform_5, window_bounds = array<i64: 1, 1, 8, 8, 32>}, {pipeline_mode = #tpu.pipeline_mode<synchronous>, transform_indices = @transform_6, window_bounds = array<i64: 32, 64>}, {pipeline_mode = #tpu.pipeline_mode<synchronous>, transform_indices = @transform_7, window_bounds = array<i64: 1, 1, 64>}, {transform_indices = @transform_8, window_bounds = array<i64: 1, 1, 8, 8, 64>}]} {
    %c0 = arith.constant 0 : index
    %c0_0 = arith.constant 0 : index
    %c0_1 = arith.constant 0 : index
    %c0_2 = arith.constant 0 : index
    %c0_3 = arith.constant 0 : index
    %0 = vector.load %arg2[%c0, %c0_0, %c0_1, %c0_2, %c0_3] : memref<1x1x8x8x64xbf16, #tpu.memory_space<vmem>>, vector<1x1x8x8x64xbf16>
    %1 = vector.shape_cast %0 : vector<1x1x8x8x64xbf16> to vector<8x8x64xbf16>
    %2 = arith.extf %1 : vector<8x8x64xbf16> to vector<8x8x64xf32>
    %c0_4 = arith.constant 0 : index
    %c0_5 = arith.constant 0 : index
    %c0_6 = arith.constant 0 : index
    %3 = vector.load %arg3[%c0_4, %c0_5, %c0_6] : memref<1x1x64xf32, #tpu.memory_space<vmem>>, vector<1x1x64xf32>
    %4 = vector.shape_cast %3 : vector<1x1x64xf32> to vector<1x64xf32>
    %5 = vector.shape_cast %4 : vector<1x64xf32> to vector<1x1x64xf32>
    %c0_7 = arith.constant 0 : index
    %c0_8 = arith.constant 0 : index
    %c0_9 = arith.constant 0 : index
    %6 = vector.load %arg4[%c0_7, %c0_8, %c0_9] : memref<1x1x64xf32, #tpu.memory_space<vmem>>, vector<1x1x64xf32>
    %7 = vector.shape_cast %6 : vector<1x1x64xf32> to vector<1x64xf32>
    %8 = vector.shape_cast %7 : vector<1x64xf32> to vector<1x1x64xf32>
    %9 = vector.broadcast %5 : vector<1x1x64xf32> to vector<8x8x64xf32>
    %10 = arith.mulf %2, %9 : vector<8x8x64xf32>
    %11 = vector.broadcast %8 : vector<1x1x64xf32> to vector<8x8x64xf32>
    %12 = arith.addf %10, %11 : vector<8x8x64xf32>
    %13 = arith.negf %12 : vector<8x8x64xf32>
    %14 = math.exp %13 : vector<8x8x64xf32>
    %cst = arith.constant 1.000000e+00 : f32
    %15 = vector.broadcast %cst : f32 to vector<8x8x64xf32>
    %16 = arith.addf %15, %14 : vector<8x8x64xf32>
    %17 = arith.divf %15, %16 : vector<8x8x64xf32>
    %18 = arith.mulf %12, %17 : vector<8x8x64xf32>
    %19 = arith.truncf %18 : vector<8x8x64xf32> to vector<8x8x64xbf16>
    %20 = vector.extract_strided_slice %19 {offsets = [0, 0, 0], sizes = [1, 8, 64], strides = [1, 1, 1]} : vector<8x8x64xbf16> to vector<1x8x64xbf16>
    %21 = vector.extract_strided_slice %19 {offsets = [7, 0, 0], sizes = [1, 8, 64], strides = [1, 1, 1]} : vector<8x8x64xbf16> to vector<1x8x64xbf16>
    %22 = tpu.concatenate %20, %19, %21 in 0 : vector<1x8x64xbf16>, vector<8x8x64xbf16>, vector<1x8x64xbf16> -> vector<10x8x64xbf16>
    %23 = vector.extract_strided_slice %22 {offsets = [0, 0, 0], sizes = [10, 1, 64], strides = [1, 1, 1]} : vector<10x8x64xbf16> to vector<10x1x64xbf16>
    %24 = vector.extract_strided_slice %22 {offsets = [0, 7, 0], sizes = [10, 1, 64], strides = [1, 1, 1]} : vector<10x8x64xbf16> to vector<10x1x64xbf16>
    %25 = tpu.concatenate %23, %22, %24 in 1 : vector<10x1x64xbf16>, vector<10x8x64xbf16>, vector<10x1x64xbf16> -> vector<10x10x64xbf16>
    %c3_i32 = arith.constant 3 : i32
    %c0_i32 = arith.constant 0 : i32
    %26 = arith.cmpi eq, %c3_i32, %c0_i32 : i32
    %c1_i32 = arith.constant 1 : i32
    %27 = arith.select %26, %c1_i32, %c3_i32 : i32
    %28 = arith.remsi %arg1, %27 : i32
    %c0_i32_10 = arith.constant 0 : i32
    %29 = arith.cmpi ne, %28, %c0_i32_10 : i32
    %c0_i32_11 = arith.constant 0 : i32
    %30 = arith.cmpi slt, %28, %c0_i32_11 : i32
    %c0_i32_12 = arith.constant 0 : i32
    %31 = arith.cmpi slt, %27, %c0_i32_12 : i32
    %32 = arith.xori %30, %31 : i1
    %33 = arith.andi %32, %29 : i1
    %34 = arith.addi %28, %27 : i32
    %35 = arith.select %33, %34, %28 : i32
    %c0_i32_13 = arith.constant 0 : i32
    %36 = arith.cmpi eq, %35, %c0_i32_13 : i32
    %37 = arith.extui %36 : i1 to i32
    %c0_i32_14 = arith.constant 0 : i32
    %38 = arith.cmpi ne, %37, %c0_i32_14 : i32
    scf.if %38 {
      %c0_111 = arith.constant 0 : index
      %c0_112 = arith.constant 0 : index
      %c0_113 = arith.constant 0 : index
      %c0_114 = arith.constant 0 : index
      %188 = vector.load %arg11[%c0_111, %c0_112, %c0_113, %c0_114] : memref<3x10x10x64xbf16, #tpu.memory_space<vmem>>, vector<1x10x10x64xbf16>
      %189 = vector.shape_cast %188 : vector<1x10x10x64xbf16> to vector<10x10x64xbf16>
      %190 = vector.shape_cast %25 : vector<10x10x64xbf16> to vector<1x10x10x64xbf16>
      tpu.vector_store %arg11[%c0_111, %c0_112, %c0_113, %c0_114], %190 {strides = array<i32>} : memref<3x10x10x64xbf16, #tpu.memory_space<vmem>>, vector<1x10x10x64xbf16>,
    } else {
    }
    %c1_i32_15 = arith.constant 1 : i32
    %39 = arith.cmpi eq, %35, %c1_i32_15 : i32
    %40 = arith.extui %39 : i1 to i32
    %c0_i32_16 = arith.constant 0 : i32
    %41 = arith.cmpi ne, %40, %c0_i32_16 : i32
    scf.if %41 {
      %c1_111 = arith.constant 1 : index
      %c0_112 = arith.constant 0 : index
      %c0_113 = arith.constant 0 : index
      %c0_114 = arith.constant 0 : index
      %188 = vector.load %arg11[%c1_111, %c0_112, %c0_113, %c0_114] : memref<3x10x10x64xbf16, #tpu.memory_space<vmem>>, vector<1x10x10x64xbf16>
      %189 = vector.shape_cast %188 : vector<1x10x10x64xbf16> to vector<10x10x64xbf16>
      %190 = vector.shape_cast %25 : vector<10x10x64xbf16> to vector<1x10x10x64xbf16>
      tpu.vector_store %arg11[%c1_111, %c0_112, %c0_113, %c0_114], %190 {strides = array<i32>} : memref<3x10x10x64xbf16, #tpu.memory_space<vmem>>, vector<1x10x10x64xbf16>,
    } else {
    }
    %c2_i32 = arith.constant 2 : i32
    %42 = arith.cmpi eq, %35, %c2_i32 : i32
    %43 = arith.extui %42 : i1 to i32
    %c0_i32_17 = arith.constant 0 : i32
    %44 = arith.cmpi ne, %43, %c0_i32_17 : i32
    scf.if %44 {
      %c2_111 = arith.constant 2 : index
      %c0_112 = arith.constant 0 : index
      %c0_113 = arith.constant 0 : index
      %c0_114 = arith.constant 0 : index
      %188 = vector.load %arg11[%c2_111, %c0_112, %c0_113, %c0_114] : memref<3x10x10x64xbf16, #tpu.memory_space<vmem>>, vector<1x10x10x64xbf16>
      %189 = vector.shape_cast %188 : vector<1x10x10x64xbf16> to vector<10x10x64xbf16>
      %190 = vector.shape_cast %25 : vector<10x10x64xbf16> to vector<1x10x10x64xbf16>
      tpu.vector_store %arg11[%c2_111, %c0_112, %c0_113, %c0_114], %190 {strides = array<i32>} : memref<3x10x10x64xbf16, #tpu.memory_space<vmem>>, vector<1x10x10x64xbf16>,
    } else {
    }
    %c-2_i32 = arith.constant -2 : i32
    %45 = arith.addi %arg1, %c-2_i32 : i32
    %c0_i32_18 = arith.constant 0 : i32
    %46 = arith.maxsi %45, %c0_i32_18 : i32
    %c3_i32_19 = arith.constant 3 : i32
    %c0_i32_20 = arith.constant 0 : i32
    %47 = arith.cmpi eq, %c3_i32_19, %c0_i32_20 : i32
    %c1_i32_21 = arith.constant 1 : i32
    %48 = arith.select %47, %c1_i32_21, %c3_i32_19 : i32
    %49 = arith.remsi %46, %48 : i32
    %c0_i32_22 = arith.constant 0 : i32
    %50 = arith.cmpi ne, %49, %c0_i32_22 : i32
    %c0_i32_23 = arith.constant 0 : i32
    %51 = arith.cmpi slt, %49, %c0_i32_23 : i32
    %c0_i32_24 = arith.constant 0 : i32
    %52 = arith.cmpi slt, %48, %c0_i32_24 : i32
    %53 = arith.xori %51, %52 : i1
    %54 = arith.andi %53, %50 : i1
    %55 = arith.addi %49, %48 : i32
    %56 = arith.select %54, %55, %49 : i32
    %57 = arith.index_cast %56 : i32 to index
    %c0_25 = arith.constant 0 : index
    %c0_26 = arith.constant 0 : index
    %c0_27 = arith.constant 0 : index
    %58 = vector.load %arg11[%57, %c0_25, %c0_26, %c0_27] : memref<3x10x10x64xbf16, #tpu.memory_space<vmem>>, vector<1x10x10x64xbf16>
    %59 = vector.shape_cast %58 : vector<1x10x10x64xbf16> to vector<10x10x64xbf16>
    %60 = vector.extract_strided_slice %59 {offsets = [0, 0, 0], sizes = [8, 8, 64], strides = [1, 1, 1]} : vector<10x10x64xbf16> to vector<8x8x64xbf16>
    %61 = vector.extract_strided_slice %59 {offsets = [1, 0, 0], sizes = [8, 8, 64], strides = [1, 1, 1]} : vector<10x10x64xbf16> to vector<8x8x64xbf16>
    %62 = vector.extract_strided_slice %59 {offsets = [2, 0, 0], sizes = [8, 8, 64], strides = [1, 1, 1]} : vector<10x10x64xbf16> to vector<8x8x64xbf16>
    %63 = tpu.concatenate %60, %61, %62 in 2 : vector<8x8x64xbf16>, vector<8x8x64xbf16>, vector<8x8x64xbf16> -> vector<8x8x192xbf16>
    %64 = vector.shape_cast %63 : vector<8x8x192xbf16> to vector<64x192xbf16>
    %c0_28 = arith.constant 0 : index
    %c0_29 = arith.constant 0 : index
    %c0_30 = arith.constant 0 : index
    %c0_31 = arith.constant 0 : index
    %65 = vector.load %arg5[%c0_28, %c0_29, %c0_30, %c0_31] : memref<3x3x192x64xbf16, #tpu.memory_space<vmem>>, vector<1x1x192x64xbf16>
    %66 = vector.shape_cast %65 : vector<1x1x192x64xbf16> to vector<192x64xbf16>
    %cst_32 = arith.constant dense<0.000000e+00> : vector<64x64xf32>
    %67 = tpu.matmul %64, %66, %cst_32 {dimension_numbers = #tpu.dot_dimension_numbers<[1], [0], [0], [1], [0, 0, 1, 1], [], []>} : vector<64x192xbf16>, vector<192x64xbf16>, vector<64x64xf32> -> vector<64x64xf32>
    %68 = vector.extract_strided_slice %59 {offsets = [0, 1, 0], sizes = [8, 8, 64], strides = [1, 1, 1]} : vector<10x10x64xbf16> to vector<8x8x64xbf16>
    %69 = vector.extract_strided_slice %59 {offsets = [1, 1, 0], sizes = [8, 8, 64], strides = [1, 1, 1]} : vector<10x10x64xbf16> to vector<8x8x64xbf16>
    %70 = vector.extract_strided_slice %59 {offsets = [2, 1, 0], sizes = [8, 8, 64], strides = [1, 1, 1]} : vector<10x10x64xbf16> to vector<8x8x64xbf16>
    %71 = tpu.concatenate %68, %69, %70 in 2 : vector<8x8x64xbf16>, vector<8x8x64xbf16>, vector<8x8x64xbf16> -> vector<8x8x192xbf16>
    %72 = vector.shape_cast %71 : vector<8x8x192xbf16> to vector<64x192xbf16>
    %c0_33 = arith.constant 0 : index
    %c1 = arith.constant 1 : index
    %c0_34 = arith.constant 0 : index
    %c0_35 = arith.constant 0 : index
    %73 = vector.load %arg5[%c0_33, %c1, %c0_34, %c0_35] : memref<3x3x192x64xbf16, #tpu.memory_space<vmem>>, vector<1x1x192x64xbf16>
    %74 = vector.shape_cast %73 : vector<1x1x192x64xbf16> to vector<192x64xbf16>
    %cst_36 = arith.constant dense<0.000000e+00> : vector<64x64xf32>
    %75 = tpu.matmul %72, %74, %cst_36 {dimension_numbers = #tpu.dot_dimension_numbers<[1], [0], [0], [1], [0, 0, 1, 1], [], []>} : vector<64x192xbf16>, vector<192x64xbf16>, vector<64x64xf32> -> vector<64x64xf32>
    %76 = arith.addf %67, %75 : vector<64x64xf32>
    %77 = vector.extract_strided_slice %59 {offsets = [0, 2, 0], sizes = [8, 8, 64], strides = [1, 1, 1]} : vector<10x10x64xbf16> to vector<8x8x64xbf16>
    %78 = vector.extract_strided_slice %59 {offsets = [1, 2, 0], sizes = [8, 8, 64], strides = [1, 1, 1]} : vector<10x10x64xbf16> to vector<8x8x64xbf16>
    %79 = vector.extract_strided_slice %59 {offsets = [2, 2, 0], sizes = [8, 8, 64], strides = [1, 1, 1]} : vector<10x10x64xbf16> to vector<8x8x64xbf16>
    %80 = tpu.concatenate %77, %78, %79 in 2 : vector<8x8x64xbf16>, vector<8x8x64xbf16>, vector<8x8x64xbf16> -> vector<8x8x192xbf16>
    %81 = vector.shape_cast %80 : vector<8x8x192xbf16> to vector<64x192xbf16>
    %c0_37 = arith.constant 0 : index
    %c2 = arith.constant 2 : index
    %c0_38 = arith.constant 0 : index
    %c0_39 = arith.constant 0 : index
    %82 = vector.load %arg5[%c0_37, %c2, %c0_38, %c0_39] : memref<3x3x192x64xbf16, #tpu.memory_space<vmem>>, vector<1x1x192x64xbf16>
    %83 = vector.shape_cast %82 : vector<1x1x192x64xbf16> to vector<192x64xbf16>
    %cst_40 = arith.constant dense<0.000000e+00> : vector<64x64xf32>
    %84 = tpu.matmul %81, %83, %cst_40 {dimension_numbers = #tpu.dot_dimension_numbers<[1], [0], [0], [1], [0, 0, 1, 1], [], []>} : vector<64x192xbf16>, vector<192x64xbf16>, vector<64x64xf32> -> vector<64x64xf32>
    %85 = arith.addf %76, %84 : vector<64x64xf32>
    %c-1_i32 = arith.constant -1 : i32
    %86 = arith.addi %arg1, %c-1_i32 : i32
    %c0_i32_41 = arith.constant 0 : i32
    %87 = arith.maxsi %86, %c0_i32_41 : i32
    %c3_i32_42 = arith.constant 3 : i32
    %c0_i32_43 = arith.constant 0 : i32
    %88 = arith.cmpi eq, %c3_i32_42, %c0_i32_43 : i32
    %c1_i32_44 = arith.constant 1 : i32
    %89 = arith.select %88, %c1_i32_44, %c3_i32_42 : i32
    %90 = arith.remsi %87, %89 : i32
    %c0_i32_45 = arith.constant 0 : i32
    %91 = arith.cmpi ne, %90, %c0_i32_45 : i32
    %c0_i32_46 = arith.constant 0 : i32
    %92 = arith.cmpi slt, %90, %c0_i32_46 : i32
    %c0_i32_47 = arith.constant 0 : i32
    %93 = arith.cmpi slt, %89, %c0_i32_47 : i32
    %94 = arith.xori %92, %93 : i1
    %95 = arith.andi %94, %91 : i1
    %96 = arith.addi %90, %89 : i32
    %97 = arith.select %95, %96, %90 : i32
    %98 = arith.index_cast %97 : i32 to index
    %c0_48 = arith.constant 0 : index
    %c0_49 = arith.constant 0 : index
    %c0_50 = arith.constant 0 : index
    %99 = vector.load %arg11[%98, %c0_48, %c0_49, %c0_50] : memref<3x10x10x64xbf16, #tpu.memory_space<vmem>>, vector<1x10x10x64xbf16>
    %100 = vector.shape_cast %99 : vector<1x10x10x64xbf16> to vector<10x10x64xbf16>
    %101 = vector.extract_strided_slice %100 {offsets = [0, 0, 0], sizes = [8, 8, 64], strides = [1, 1, 1]} : vector<10x10x64xbf16> to vector<8x8x64xbf16>
    %102 = vector.extract_strided_slice %100 {offsets = [1, 0, 0], sizes = [8, 8, 64], strides = [1, 1, 1]} : vector<10x10x64xbf16> to vector<8x8x64xbf16>
    %103 = vector.extract_strided_slice %100 {offsets = [2, 0, 0], sizes = [8, 8, 64], strides = [1, 1, 1]} : vector<10x10x64xbf16> to vector<8x8x64xbf16>
    %104 = tpu.concatenate %101, %102, %103 in 2 : vector<8x8x64xbf16>, vector<8x8x64xbf16>, vector<8x8x64xbf16> -> vector<8x8x192xbf16>
    %105 = vector.shape_cast %104 : vector<8x8x192xbf16> to vector<64x192xbf16>
    %c1_51 = arith.constant 1 : index
    %c0_52 = arith.constant 0 : index
    %c0_53 = arith.constant 0 : index
    %c0_54 = arith.constant 0 : index
    %106 = vector.load %arg5[%c1_51, %c0_52, %c0_53, %c0_54] : memref<3x3x192x64xbf16, #tpu.memory_space<vmem>>, vector<1x1x192x64xbf16>
    %107 = vector.shape_cast %106 : vector<1x1x192x64xbf16> to vector<192x64xbf16>
    %cst_55 = arith.constant dense<0.000000e+00> : vector<64x64xf32>
    %108 = tpu.matmul %105, %107, %cst_55 {dimension_numbers = #tpu.dot_dimension_numbers<[1], [0], [0], [1], [0, 0, 1, 1], [], []>} : vector<64x192xbf16>, vector<192x64xbf16>, vector<64x64xf32> -> vector<64x64xf32>
    %109 = arith.addf %85, %108 : vector<64x64xf32>
    %110 = vector.extract_strided_slice %100 {offsets = [0, 1, 0], sizes = [8, 8, 64], strides = [1, 1, 1]} : vector<10x10x64xbf16> to vector<8x8x64xbf16>
    %111 = vector.extract_strided_slice %100 {offsets = [1, 1, 0], sizes = [8, 8, 64], strides = [1, 1, 1]} : vector<10x10x64xbf16> to vector<8x8x64xbf16>
    %112 = vector.extract_strided_slice %100 {offsets = [2, 1, 0], sizes = [8, 8, 64], strides = [1, 1, 1]} : vector<10x10x64xbf16> to vector<8x8x64xbf16>
    %113 = tpu.concatenate %110, %111, %112 in 2 : vector<8x8x64xbf16>, vector<8x8x64xbf16>, vector<8x8x64xbf16> -> vector<8x8x192xbf16>
    %114 = vector.shape_cast %113 : vector<8x8x192xbf16> to vector<64x192xbf16>
    %c1_56 = arith.constant 1 : index
    %c1_57 = arith.constant 1 : index
    %c0_58 = arith.constant 0 : index
    %c0_59 = arith.constant 0 : index
    %115 = vector.load %arg5[%c1_56, %c1_57, %c0_58, %c0_59] : memref<3x3x192x64xbf16, #tpu.memory_space<vmem>>, vector<1x1x192x64xbf16>
    %116 = vector.shape_cast %115 : vector<1x1x192x64xbf16> to vector<192x64xbf16>
    %cst_60 = arith.constant dense<0.000000e+00> : vector<64x64xf32>
    %117 = tpu.matmul %114, %116, %cst_60 {dimension_numbers = #tpu.dot_dimension_numbers<[1], [0], [0], [1], [0, 0, 1, 1], [], []>} : vector<64x192xbf16>, vector<192x64xbf16>, vector<64x64xf32> -> vector<64x64xf32>
    %118 = arith.addf %109, %117 : vector<64x64xf32>
    %119 = vector.extract_strided_slice %100 {offsets = [0, 2, 0], sizes = [8, 8, 64], strides = [1, 1, 1]} : vector<10x10x64xbf16> to vector<8x8x64xbf16>
    %120 = vector.extract_strided_slice %100 {offsets = [1, 2, 0], sizes = [8, 8, 64], strides = [1, 1, 1]} : vector<10x10x64xbf16> to vector<8x8x64xbf16>
    %121 = vector.extract_strided_slice %100 {offsets = [2, 2, 0], sizes = [8, 8, 64], strides = [1, 1, 1]} : vector<10x10x64xbf16> to vector<8x8x64xbf16>
    %122 = tpu.concatenate %119, %120, %121 in 2 : vector<8x8x64xbf16>, vector<8x8x64xbf16>, vector<8x8x64xbf16> -> vector<8x8x192xbf16>
    %123 = vector.shape_cast %122 : vector<8x8x192xbf16> to vector<64x192xbf16>
    %c1_61 = arith.constant 1 : index
    %c2_62 = arith.constant 2 : index
    %c0_63 = arith.constant 0 : index
    %c0_64 = arith.constant 0 : index
    %124 = vector.load %arg5[%c1_61, %c2_62, %c0_63, %c0_64] : memref<3x3x192x64xbf16, #tpu.memory_space<vmem>>, vector<1x1x192x64xbf16>
    %125 = vector.shape_cast %124 : vector<1x1x192x64xbf16> to vector<192x64xbf16>
    %cst_65 = arith.constant dense<0.000000e+00> : vector<64x64xf32>
    %126 = tpu.matmul %123, %125, %cst_65 {dimension_numbers = #tpu.dot_dimension_numbers<[1], [0], [0], [1], [0, 0, 1, 1], [], []>} : vector<64x192xbf16>, vector<192x64xbf16>, vector<64x64xf32> -> vector<64x64xf32>
    %127 = arith.addf %118, %126 : vector<64x64xf32>
    %c0_i32_66 = arith.constant 0 : i32
    %128 = arith.addi %arg1, %c0_i32_66 : i32
    %c0_i32_67 = arith.constant 0 : i32
    %129 = arith.maxsi %128, %c0_i32_67 : i32
    %c3_i32_68 = arith.constant 3 : i32
    %c0_i32_69 = arith.constant 0 : i32
    %130 = arith.cmpi eq, %c3_i32_68, %c0_i32_69 : i32
    %c1_i32_70 = arith.constant 1 : i32
    %131 = arith.select %130, %c1_i32_70, %c3_i32_68 : i32
    %132 = arith.remsi %129, %131 : i32
    %c0_i32_71 = arith.constant 0 : i32
    %133 = arith.cmpi ne, %132, %c0_i32_71 : i32
    %c0_i32_72 = arith.constant 0 : i32
    %134 = arith.cmpi slt, %132, %c0_i32_72 : i32
    %c0_i32_73 = arith.constant 0 : i32
    %135 = arith.cmpi slt, %131, %c0_i32_73 : i32
    %136 = arith.xori %134, %135 : i1
    %137 = arith.andi %136, %133 : i1
    %138 = arith.addi %132, %131 : i32
    %139 = arith.select %137, %138, %132 : i32
    %140 = arith.index_cast %139 : i32 to index
    %c0_74 = arith.constant 0 : index
    %c0_75 = arith.constant 0 : index
    %c0_76 = arith.constant 0 : index
    %141 = vector.load %arg11[%140, %c0_74, %c0_75, %c0_76] : memref<3x10x10x64xbf16, #tpu.memory_space<vmem>>, vector<1x10x10x64xbf16>
    %142 = vector.shape_cast %141 : vector<1x10x10x64xbf16> to vector<10x10x64xbf16>
    %143 = vector.extract_strided_slice %142 {offsets = [0, 0, 0], sizes = [8, 8, 64], strides = [1, 1, 1]} : vector<10x10x64xbf16> to vector<8x8x64xbf16>
    %144 = vector.extract_strided_slice %142 {offsets = [1, 0, 0], sizes = [8, 8, 64], strides = [1, 1, 1]} : vector<10x10x64xbf16> to vector<8x8x64xbf16>
    %145 = vector.extract_strided_slice %142 {offsets = [2, 0, 0], sizes = [8, 8, 64], strides = [1, 1, 1]} : vector<10x10x64xbf16> to vector<8x8x64xbf16>
    %146 = tpu.concatenate %143, %144, %145 in 2 : vector<8x8x64xbf16>, vector<8x8x64xbf16>, vector<8x8x64xbf16> -> vector<8x8x192xbf16>
    %147 = vector.shape_cast %146 : vector<8x8x192xbf16> to vector<64x192xbf16>
    %c2_77 = arith.constant 2 : index
    %c0_78 = arith.constant 0 : index
    %c0_79 = arith.constant 0 : index
    %c0_80 = arith.constant 0 : index
    %148 = vector.load %arg5[%c2_77, %c0_78, %c0_79, %c0_80] : memref<3x3x192x64xbf16, #tpu.memory_space<vmem>>, vector<1x1x192x64xbf16>
    %149 = vector.shape_cast %148 : vector<1x1x192x64xbf16> to vector<192x64xbf16>
    %cst_81 = arith.constant dense<0.000000e+00> : vector<64x64xf32>
    %150 = tpu.matmul %147, %149, %cst_81 {dimension_numbers = #tpu.dot_dimension_numbers<[1], [0], [0], [1], [0, 0, 1, 1], [], []>} : vector<64x192xbf16>, vector<192x64xbf16>, vector<64x64xf32> -> vector<64x64xf32>
    %151 = arith.addf %127, %150 : vector<64x64xf32>
    %152 = vector.extract_strided_slice %142 {offsets = [0, 1, 0], sizes = [8, 8, 64], strides = [1, 1, 1]} : vector<10x10x64xbf16> to vector<8x8x64xbf16>
    %153 = vector.extract_strided_slice %142 {offsets = [1, 1, 0], sizes = [8, 8, 64], strides = [1, 1, 1]} : vector<10x10x64xbf16> to vector<8x8x64xbf16>
    %154 = vector.extract_strided_slice %142 {offsets = [2, 1, 0], sizes = [8, 8, 64], strides = [1, 1, 1]} : vector<10x10x64xbf16> to vector<8x8x64xbf16>
    %155 = tpu.concatenate %152, %153, %154 in 2 : vector<8x8x64xbf16>, vector<8x8x64xbf16>, vector<8x8x64xbf16> -> vector<8x8x192xbf16>
    %156 = vector.shape_cast %155 : vector<8x8x192xbf16> to vector<64x192xbf16>
    %c2_82 = arith.constant 2 : index
    %c1_83 = arith.constant 1 : index
    %c0_84 = arith.constant 0 : index
    %c0_85 = arith.constant 0 : index
    %157 = vector.load %arg5[%c2_82, %c1_83, %c0_84, %c0_85] : memref<3x3x192x64xbf16, #tpu.memory_space<vmem>>, vector<1x1x192x64xbf16>
    %158 = vector.shape_cast %157 : vector<1x1x192x64xbf16> to vector<192x64xbf16>
    %cst_86 = arith.constant dense<0.000000e+00> : vector<64x64xf32>
    %159 = tpu.matmul %156, %158, %cst_86 {dimension_numbers = #tpu.dot_dimension_numbers<[1], [0], [0], [1], [0, 0, 1, 1], [], []>} : vector<64x192xbf16>, vector<192x64xbf16>, vector<64x64xf32> -> vector<64x64xf32>
    %160 = arith.addf %151, %159 : vector<64x64xf32>
    %161 = vector.extract_strided_slice %142 {offsets = [0, 2, 0], sizes = [8, 8, 64], strides = [1, 1, 1]} : vector<10x10x64xbf16> to vector<8x8x64xbf16>
    %162 = vector.extract_strided_slice %142 {offsets = [1, 2, 0], sizes = [8, 8, 64], strides = [1, 1, 1]} : vector<10x10x64xbf16> to vector<8x8x64xbf16>
    %163 = vector.extract_strided_slice %142 {offsets = [2, 2, 0], sizes = [8, 8, 64], strides = [1, 1, 1]} : vector<10x10x64xbf16> to vector<8x8x64xbf16>
    %164 = tpu.concatenate %161, %162, %163 in 2 : vector<8x8x64xbf16>, vector<8x8x64xbf16>, vector<8x8x64xbf16> -> vector<8x8x192xbf16>
    %165 = vector.shape_cast %164 : vector<8x8x192xbf16> to vector<64x192xbf16>
    %c2_87 = arith.constant 2 : index
    %c2_88 = arith.constant 2 : index
    %c0_89 = arith.constant 0 : index
    %c0_90 = arith.constant 0 : index
    %166 = vector.load %arg5[%c2_87, %c2_88, %c0_89, %c0_90] : memref<3x3x192x64xbf16, #tpu.memory_space<vmem>>, vector<1x1x192x64xbf16>
    %167 = vector.shape_cast %166 : vector<1x1x192x64xbf16> to vector<192x64xbf16>
    %cst_91 = arith.constant dense<0.000000e+00> : vector<64x64xf32>
    %168 = tpu.matmul %165, %167, %cst_91 {dimension_numbers = #tpu.dot_dimension_numbers<[1], [0], [0], [1], [0, 0, 1, 1], [], []>} : vector<64x192xbf16>, vector<192x64xbf16>, vector<64x64xf32> -> vector<64x64xf32>
    %169 = arith.addf %160, %168 : vector<64x64xf32>
    %c0_92 = arith.constant 0 : index
    %c0_93 = arith.constant 0 : index
    %c0_94 = arith.constant 0 : index
    %170 = vector.load %arg6[%c0_92, %c0_93, %c0_94] : memref<1x1x64xf32, #tpu.memory_space<vmem>>, vector<1x1x64xf32>
    %171 = vector.shape_cast %170 : vector<1x1x64xf32> to vector<1x64xf32>
    %172 = vector.broadcast %171 : vector<1x64xf32> to vector<64x64xf32>
    %173 = arith.addf %169, %172 : vector<64x64xf32>
    %c0_95 = arith.constant 0 : index
    %c0_96 = arith.constant 0 : index
    %c0_97 = arith.constant 0 : index
    %c0_98 = arith.constant 0 : index
    %c0_99 = arith.constant 0 : index
    %174 = vector.load %arg7[%c0_95, %c0_96, %c0_97, %c0_98, %c0_99] : memref<1x1x8x8x32xbf16, #tpu.memory_space<vmem>>, vector<1x1x8x8x32xbf16>
    %175 = vector.shape_cast %174 : vector<1x1x8x8x32xbf16> to vector<8x8x32xbf16>
    %176 = vector.shape_cast %175 : vector<8x8x32xbf16> to vector<64x32xbf16>
    %c0_100 = arith.constant 0 : index
    %c0_101 = arith.constant 0 : index
    %177 = vector.load %arg8[%c0_100, %c0_101] : memref<32x64xbf16, #tpu.memory_space<vmem>>, vector<32x64xbf16>
    %cst_102 = arith.constant dense<0.000000e+00> : vector<64x64xf32>
    %178 = tpu.matmul %176, %177, %cst_102 {dimension_numbers = #tpu.dot_dimension_numbers<[1], [0], [0], [1], [0, 0, 1, 1], [], []>} : vector<64x32xbf16>, vector<32x64xbf16>, vector<64x64xf32> -> vector<64x64xf32>
    %179 = arith.addf %173, %178 : vector<64x64xf32>
    %c0_103 = arith.constant 0 : index
    %c0_104 = arith.constant 0 : index
    %c0_105 = arith.constant 0 : index
    %180 = vector.load %arg9[%c0_103, %c0_104, %c0_105] : memref<1x1x64xf32, #tpu.memory_space<vmem>>, vector<1x1x64xf32>
    %181 = vector.shape_cast %180 : vector<1x1x64xf32> to vector<1x64xf32>
    %182 = vector.broadcast %181 : vector<1x64xf32> to vector<64x64xf32>
    %183 = arith.addf %179, %182 : vector<64x64xf32>
    %184 = vector.shape_cast %183 : vector<64x64xf32> to vector<8x8x64xf32>
    %c0_106 = arith.constant 0 : index
    %c0_107 = arith.constant 0 : index
    %c0_108 = arith.constant 0 : index
    %c0_109 = arith.constant 0 : index
    %c0_110 = arith.constant 0 : index
    %185 = vector.load %arg10[%c0_106, %c0_107, %c0_108, %c0_109, %c0_110] : memref<1x1x8x8x64xf32, #tpu.memory_space<vmem>>, vector<1x1x8x8x64xf32>
    %186 = vector.shape_cast %185 : vector<1x1x8x8x64xf32> to vector<8x8x64xf32>
    %187 = vector.shape_cast %184 : vector<8x8x64xf32> to vector<1x1x8x8x64xf32>
    tpu.vector_store %arg10[%c0_106, %c0_107, %c0_108, %c0_109, %c0_110], %187 {strides = array<i32>} : memref<1x1x8x8x64xf32, #tpu.memory_space<vmem>>, vector<1x1x8x8x64xf32>,
    return
  }
  func.func @transform_0(%arg0: i32, %arg1: i32) -> (i32, i32, i32, i32, i32) {
    %c0_i32 = arith.constant 0 : i32
    %c0_i32_0 = arith.constant 0 : i32
    %c0_i32_1 = arith.constant 0 : i32
    %c0_i32_2 = arith.constant 0 : i32
    return %arg0, %arg1, %c0_i32, %c0_i32_0, %c0_i32_1 : i32, i32, i32, i32, i32
  }
  func.func @transform_1(%arg0: i32, %arg1: i32) -> (i32, i32, i32) {
    %c0_i32 = arith.constant 0 : i32
    %c0_i32_0 = arith.constant 0 : i32
    %c0_i32_1 = arith.constant 0 : i32
    return %arg0, %c0_i32, %c0_i32_0 : i32, i32, i32
  }
  func.func @transform_2(%arg0: i32, %arg1: i32) -> (i32, i32, i32) {
    %c0_i32 = arith.constant 0 : i32
    %c0_i32_0 = arith.constant 0 : i32
    %c0_i32_1 = arith.constant 0 : i32
    return %arg0, %c0_i32, %c0_i32_0 : i32, i32, i32
  }
  func.func @transform_3(%arg0: i32, %arg1: i32) -> (i32, i32, i32, i32) {
    %c0_i32 = arith.constant 0 : i32
    %c0_i32_0 = arith.constant 0 : i32
    %c0_i32_1 = arith.constant 0 : i32
    %c0_i32_2 = arith.constant 0 : i32
    %c0_i32_3 = arith.constant 0 : i32
    return %c0_i32, %c0_i32_0, %c0_i32_1, %c0_i32_2 : i32, i32, i32, i32
  }
  func.func @transform_4(%arg0: i32, %arg1: i32) -> (i32, i32, i32) {
    %c0_i32 = arith.constant 0 : i32
    %c0_i32_0 = arith.constant 0 : i32
    %c0_i32_1 = arith.constant 0 : i32
    %c0_i32_2 = arith.constant 0 : i32
    return %c0_i32, %c0_i32_0, %c0_i32_1 : i32, i32, i32
  }
  func.func @transform_5(%arg0: i32, %arg1: i32) -> (i32, i32, i32, i32, i32) {
    %c0_i32 = arith.constant 0 : i32
    %c0_i32_0 = arith.constant 0 : i32
    %c0_i32_1 = arith.constant 0 : i32
    %c0_i32_2 = arith.constant 0 : i32
    return %arg0, %arg1, %c0_i32, %c0_i32_0, %c0_i32_1 : i32, i32, i32, i32, i32
  }
  func.func @transform_6(%arg0: i32, %arg1: i32) -> (i32, i32) {
    %c0_i32 = arith.constant 0 : i32
    %c0_i32_0 = arith.constant 0 : i32
    %c0_i32_1 = arith.constant 0 : i32
    return %c0_i32, %c0_i32_0 : i32, i32
  }
  func.func @transform_7(%arg0: i32, %arg1: i32) -> (i32, i32, i32) {
    %c0_i32 = arith.constant 0 : i32
    %c0_i32_0 = arith.constant 0 : i32
    %c0_i32_1 = arith.constant 0 : i32
    %c0_i32_2 = arith.constant 0 : i32
    return %c0_i32, %c0_i32_0, %c0_i32_1 : i32, i32, i32
  }
  func.func @transform_8(%arg0: i32, %arg1: i32) -> (i32, i32, i32, i32, i32) {
    %c0_i32 = arith.constant 0 : i32
    %c0_i32_0 = arith.constant 0 : i32
    %c0_i32_1 = arith.constant 0 : i32
    %c0_i32_2 = arith.constant 0 : i32
    return %arg0, %arg1, %c0_i32, %c0_i32_0, %c0_i32_1 : i32, i32, i32, i32, i32
  }
}

</mosaic_0001>

<llo_original>
// kernel: squeeze.4
$region0: #{squeeze.4}
  %s0 = inlined_call_operand.vmem [shape: f32[2,32], index: 0, kind: input, shape index: {}]
  %s1 = inlined_call_operand.vmem [shape: f32[2,8,4], index: 1, kind: output, shape index: {}]
  $region1: #{squeeze.4} parent=0
    #allocation0 [shape = 'u8[4096]{0}', space=vmem, size = 0x1000, scoped, tag = 'scoped mem for input reshape']
    %s3 = sshll.u32 1, 2
    %s4 = ssub.s32 %s3, 1
    %v5 = vld [vmem:[%s0] sm:%s4]
    %6 = vst [vmem:[#allocation0] sm:%s4] %v5
    %v7 = vld [vmem:[#allocation0] sm:$0x3]
    %vm8 = vcmask 31744
    %9 = vst.msk [vmem:[%s1] ss:$8 sm:$0x3] %vm8, %v7
    %v10 = vld [vmem:[#allocation0] sm:$0x3]
    %11 = vrot.lane.b32.xlu0 %v10, 124
    %v12 = vpop.permute.xlu0 %11
    %vm13 = vcmask 31744
    %s14 = scalar_lea.vmem %s1, 1
    %15 = vst.msk [vmem:[%s14] ss:$8 sm:$0x3] %vm13, %v12
    %v16 = vld [vmem:[#allocation0] sm:$0x3]
    %17 = vrot.lane.b32.xlu0 %v16, 120
    %v18 = vpop.permute.xlu0 %17
    %vm19 = vcmask 31744
    %s20 = scalar_lea.vmem %s1, 2
    %21 = vst.msk [vmem:[%s20] ss:$8 sm:$0x3] %vm19, %v18
    %v22 = vld [vmem:[#allocation0] sm:$0x3]
    %23 = vrot.lane.b32.xlu0 %v22, 116
    %v24 = vpop.permute.xlu0 %23
    %vm25 = vcmask 31744
    %s26 = scalar_lea.vmem %s1, 3
    %27 = vst.msk [vmem:[%s26] ss:$8 sm:$0x3] %vm25, %v24
    %v28 = vld [vmem:[#allocation0] sm:$0x3]
    %29 = vrot.lane.b32.xlu0 %v28, 112
    %v30 = vpop.permute.xlu0 %29
    %vm31 = vcmask 31744
    %s32 = scalar_lea.vmem %s1, 4
    %33 = vst.msk [vmem:[%s32] ss:$8 sm:$0x3] %vm31, %v30
    %v34 = vld [vmem:[#allocation0] sm:$0x3]
    %35 = vrot.lane.b32.xlu0 %v34, 108
    %v36 = vpop.permute.xlu0 %35
    %vm37 = vcmask 31744
    %s38 = scalar_lea.vmem %s1, 5
    %39 = vst.msk [vmem:[%s38] ss:$8 sm:$0x3] %vm37, %v36
    %v40 = vld [vmem:[#allocation0] sm:$0x3]
    %41 = vrot.lane.b32.xlu0 %v40, 104
    %v42 = vpop.permute.xlu0 %41
    %vm43 = vcmask 31744
    %s44 = scalar_lea.vmem %s1, 6
    %45 = vst.msk [vmem:[%s44] ss:$8 sm:$0x3] %vm43, %v42
    %v46 = vld [vmem:[#allocation0] sm:$0x3]
    %47 = vrot.lane.b32.xlu0 %v46, 100
    %v48 = vpop.permute.xlu0 %47
    %vm49 = vcmask 31744
    %s50 = scalar_lea.vmem %s1, 7
    %51 = vst.msk [vmem:[%s50] ss:$8 sm:$0x3] %vm49, %v48

// kernel: squeeze.6
$region0: #{squeeze.6}
  %s0 = inlined_call_operand.vmem [shape: f32[2,64], index: 0, kind: input, shape index: {}]
  %s1 = inlined_call_operand.vmem [shape: f32[2,8,8], index: 1, kind: output, shape index: {}]
  $region1: #{squeeze.6} parent=0
    #allocation0 [shape = 'u8[4096]{0}', space=vmem, size = 0x1000, scoped, tag = 'scoped mem for input reshape']
    %s3 = sshll.u32 1, 2
    %s4 = ssub.s32 %s3, 1
    %v5 = vld [vmem:[%s0] sm:%s4]
    %6 = vst [vmem:[#allocation0] sm:%s4] %v5
    %v7 = vld [vmem:[#allocation0] sm:$0x3]
    %vm8 = vcmask 64512
    %9 = vst.msk [vmem:[%s1] ss:$8 sm:$0x3] %vm8, %v7
    %v10 = vld [vmem:[#allocation0] sm:$0x3]
    %11 = vrot.lane.b32.xlu0 %v10, 120
    %v12 = vpop.permute.xlu0 %11
    %vm13 = vcmask 64512
    %s14 = scalar_lea.vmem %s1, 1
    %15 = vst.msk [vmem:[%s14] ss:$8 sm:$0x3] %vm13, %v12
    %v16 = vld [vmem:[#allocation0] sm:$0x3]
    %17 = vrot.lane.b32.xlu0 %v16, 112
    %v18 = vpop.permute.xlu0 %17
    %vm19 = vcmask 64512
    %s20 = scalar_lea.vmem %s1, 2
    %21 = vst.msk [vmem:[%s20] ss:$8 sm:$0x3] %vm19, %v18
    %v22 = vld [vmem:[#allocation0] sm:$0x3]
    %23 = vrot.lane.b32.xlu0 %v22, 104
    %v24 = vpop.permute.xlu0 %23
    %vm25 = vcmask 64512
    %s26 = scalar_lea.vmem %s1, 3
    %27 = vst.msk [vmem:[%s26] ss:$8 sm:$0x3] %vm25, %v24
    %v28 = vld [vmem:[#allocation0] sm:$0x3]
    %29 = vrot.lane.b32.xlu0 %v28, 96
    %v30 = vpop.permute.xlu0 %29
    %vm31 = vcmask 64512
    %s32 = scalar_lea.vmem %s1, 4
    %33 = vst.msk [vmem:[%s32] ss:$8 sm:$0x3] %vm31, %v30
    %v34 = vld [vmem:[#allocation0] sm:$0x3]
    %35 = vrot.lane.b32.xlu0 %v34, 88
    %v36 = vpop.permute.xlu0 %35
    %vm37 = vcmask 64512
    %s38 = scalar_lea.vmem %s1, 5
    %39 = vst.msk [vmem:[%s38] ss:$8 sm:$0x3] %vm37, %v36
    %v40 = vld [vmem:[#allocation0] sm:$0x3]
    %41 = vrot.lane.b32.xlu0 %v40, 80
    %v42 = vpop.permute.xlu0 %41
    %vm43 = vcmask 64512
    %s44 = scalar_lea.vmem %s1, 6
    %45 = vst.msk [vmem:[%s44] ss:$8 sm:$0x3] %vm43, %v42
    %v46 = vld [vmem:[#allocation0] sm:$0x3]
    %47 = vrot.lane.b32.xlu0 %v46, 72
    %v48 = vpop.permute.xlu0 %47
    %vm49 = vcmask 64512
    %s50 = scalar_lea.vmem %s1, 7
    %51 = vst.msk [vmem:[%s50] ss:$8 sm:$0x3] %vm49, %v48

// kernel: resnet_block_causal3d.3
$region0: #{resnet_block_causal3d.3}
  #allocation0 [shape = 'u32[]', space=smem, size = 0x4, offset = 0x4, fixed_abs, tag = 'smem constant byte address 0x4 - core index']
  #allocation1 [shape = 'u32[144,128]{1,0:T(1,128)}', space=vmem, size = 0x12000, scoped, tag = 'internal scratch']
  %s0 = inlined_call_operand.hbm [shape: f32[2,4,8,8,32], index: 0, kind: input, shape index: {}]
  %s1 = inlined_call_operand.vmem [shape: f32[2,2,32], index: 1, kind: output, shape index: {}]
  %s2 = sld [smem:[#allocation0]]
  $region45: #{resnet_block_causal3d.3} parent=0
    _
  %s4 = ssub.s32 1, %s2
  %s5 = scalar_select 0, %s4, %s2
  $region1: #{resnet_block_causal3d.3} parent=0
    #allocation2 [shape = 'u8[262144]{0}', space=vmem, size = 0x40000, scoped, tag = 'input window, operand 0']
    #allocation3 [shape = 's32[2]{0}', space=sflag, size = 0x8, scoped, tag = 'scoped memory for resnet_block_causal3d.3']
    %6 = vsyncpa [#allocation3], 0
    %s7 = scalar_lea.sflag [#allocation3], 1
    %8 = vsyncpa %s7, 0
    loop: start=0, step=1, limit=4
    $region2: #{resnet_block_causal3d.3} parent=1 // loop_pre_header
      _
    $region3: #{resnet_block_causal3d.3} parent=1 // loop_header
      %s10 = sphi 0, %s14
      %p11 = scmp.ge.s32.totalorder %s10, 4
      %s17 = sphi 0, %s29
      %s18 = sphi 0, %s25
      %s19 = sphi 0, %s17
      %s20 = sphi 0, %s18
      %s21 = sphi 0, %s19
      %s22 = sphi 0, %s20
      %s34 = sphi 0, %s36
      %s37 = sphi 0, %s34
      %s38 = sphi 0, %s37
      %s54 = sphi 0, %s38
      %s60 = sphi 0, %s62
      %s63 = sphi 0, %s60
      %s64 = sphi 0, %s63
      %s80 = sphi 0, %s64
    $region4: #{resnet_block_causal3d.3} parent=1 // loop_header_branch
      %13 = sbr.rel (%p11) target = $region8
    $region5: #{resnet_block_causal3d.3} parent=1 // loop_body
      %s15 = ssub.s32 %s10, 1
      %s16 = ssub.s32 %s10, 2
      %s23 = sadd.s32 1, %s18
      %p24 = scmp.ge.s32.totalorder %s23, 1
      %s25 = scalar_select %p24, 0, %s23
      %s26 = sadd.s32 1, %s17
      %s27 = scalar_select %p24, %s26, %s17
      %p28 = scmp.ge.s32.totalorder %s27, 2
      %s29 = scalar_select %p28, 0, %s27
      %s30 = ssub.s32 %s17, %s29
      %s31 = ssub.s32 %s18, %s25
      %s32 = sor.u32 %s30, %s31
      %p33 = scmp.eq.s32.totalorder %s32, 0
      %s35 = sadd.s32 %s34, 1
      %s36 = scalar_select %p33, %s34, %s35
      %p39 = pneg %p33
      %p40 = scmp.eq.s32.totalorder %s10, 1
      %p41 = por %p39, %p40
      %p42 = scmp.ne.s32.totalorder %s34, %s37
      %p43 = scmp.eq.s32.totalorder %s10, 0
      %p44 = por %p42, %p43
      %p45 = scmp.ne.s32.totalorder %s34, %s37
      %p46 = scmp.eq.s32.totalorder %s15, 1
      %p47 = por %p45, %p46
      %p48 = scmp.ne.s32.totalorder %s37, %s38
      %p49 = scmp.eq.s32.totalorder %s15, 0
      %p50 = por %p48, %p49
      %p51 = scmp.ne.s32.totalorder %s37, %s38
      %p52 = scmp.eq.s32.totalorder %s16, 1
      %p53 = por %p51, %p52
      %p55 = scmp.ne.s32.totalorder %s38, %s54
      %p56 = scmp.eq.s32.totalorder %s16, 0
      %p57 = por %p55, %p56
      %s58 = ssub.s32 %s17, %s29
      %p59 = scmp.eq.s32.totalorder %s58, 0
      %s61 = sadd.s32 %s60, 1
      %s62 = scalar_select %p59, %s60, %s61
      %p65 = pneg %p59
      %p66 = scmp.eq.s32.totalorder %s10, 1
      %p67 = por %p65, %p66
      %p68 = scmp.ne.s32.totalorder %s60, %s63
      %p69 = scmp.eq.s32.totalorder %s10, 0
      %p70 = por %p68, %p69
      %p71 = scmp.ne.s32.totalorder %s60, %s63
      %p72 = scmp.eq.s32.totalorder %s15, 1
      %p73 = por %p71, %p72
      %p74 = scmp.ne.s32.totalorder %s63, %s64
      %p75 = scmp.eq.s32.totalorder %s15, 0
      %p76 = por %p74, %p75
      %p77 = scmp.ne.s32.totalorder %s63, %s64
      %p78 = scmp.eq.s32.totalorder %s16, 1
      %p79 = por %p77, %p78
      %p81 = scmp.ne.s32.totalorder %s64, %s80
      %p82 = scmp.eq.s32.totalorder %s16, 0
      %p83 = por %p81, %p82
      %p84 = scmp.le.s32.totalorder 1, %s10
      %p85 = scmp.lt.s32.totalorder %s10, 3
      %p86 = pnand %p84, %p85
      %p87 = pneg %p86
      // Predicated region
      $region9: #{resnet_block_causal3d.3} parent=5 // pred_check
        _
      $region10: #{resnet_block_causal3d.3} parent=5 // pred_check_branch
        %89 = sbr.rel (%p86) target = $region12
      $region11: #{resnet_block_causal3d.3} parent=5 // pred_region
        %s90 = ssub.s32 %s10, 1
      $region12: #{resnet_block_causal3d.3} parent=5 // pred_fallthru
        _
      %p91 = scmp.lt.s32.totalorder %s10, 2
      // Predicated region
      $region13: #{resnet_block_causal3d.3} parent=5 // pred_check
        %p92 = pneg %p91
      $region14: #{resnet_block_causal3d.3} parent=5 // pred_check_branch
        %94 = sbr.rel (%p92) target = $region16
      $region15: #{resnet_block_causal3d.3} parent=5 // pred_region
        // Predicated region
        $region17: #{resnet_block_causal3d.3} parent=15 // pred_check
          %p95 = pneg %p44
        $region18: #{resnet_block_causal3d.3} parent=15 // pred_check_branch
          %97 = sbr.rel (%p95) target = $region20
        $region19: #{resnet_block_causal3d.3} parent=15 // pred_region
          %s98 = sand.u32 %s34, 1
          %s99 = scalar_lea.sflag [#allocation3], %s98
          %s100 = sand.u32 %s34, 1
          %s101 = smul.addr %s100, 256
          %s102 = scalar_lea.vmem [#allocation2], %s101
          %s103 = smul.u32 4, %s18
          %s105 = ssub.s32 4096, 4096
          %106 = vsyncadd %s99, %s105
          %s107 = smul.addr %s103, 8
          %s108 = smul.addr %s17, 32
          %s109 = sadd.s32 %s107, %s108
          %s110 = smul.addr %s109, 128
          %s111 = scalar_lea.hbm %s0, %s110
          %s112 = sshll.u32 %s102, 4
          %s113 = int_to_ptr.vmem [resolvable:$true] %s112
          %118 = dma.hbm_to_vmem [thread:$0]  %s111, 4096, %s113, %s99, 128, 128, 8
        $region20: #{resnet_block_causal3d.3} parent=15 // pred_fallthru
          _
      $region16: #{resnet_block_causal3d.3} parent=5 // pred_fallthru
        _
      %p119 = scmp.le.s32.totalorder 1, %s10
      %p120 = scmp.lt.s32.totalorder %s10, 3
      %p121 = pnand %p119, %p120
      %p122 = pneg %p121
      // Predicated region
      $region21: #{resnet_block_causal3d.3} parent=5 // pred_check
        _
      $region22: #{resnet_block_causal3d.3} parent=5 // pred_check_branch
        %124 = sbr.rel (%p121) target = $region24
      $region23: #{resnet_block_causal3d.3} parent=5 // pred_region
        %s125 = ssub.s32 %s10, 1
        %s126 = sand.u32 %s37, 1
        %s127 = scalar_lea.sflag [#allocation3], %s126
        %s128 = sand.u32 %s37, 1
        %s129 = smul.addr %s128, 256
        %s130 = scalar_lea.vmem [#allocation2], %s129
        // Predicated region
        $region25: #{resnet_block_causal3d.3} parent=23 // pred_check
          %p131 = pneg %p50
        $region26: #{resnet_block_causal3d.3} parent=23 // pred_check_branch
          %133 = sbr.rel (%p131) target = $region28
        $region27: #{resnet_block_causal3d.3} parent=23 // pred_region
          %134 = dma.done %s127, 4096
        $region28: #{resnet_block_causal3d.3} parent=23 // pred_fallthru
          _
        %s135 = sand.u32 %s37, 1
        %s136 = scalar_lea.sflag [#allocation3], %s135
        %s137 = sand.u32 %s37, 1
        %s138 = smul.addr %s137, 256
        %s139 = scalar_lea.vmem [#allocation2], %s138
        %p140 = pneg %p50
        %p141 = pneg %p47
        %p142 = pneg %p76
        %p143 = pneg %p73
        %p144 = scmp.lt.s32.totalorder %s19, 1
        %s145 = scalar_select %p144, %s19, 1
        %s146 = smul.addr %s145, 2
        %s147 = scalar_lea.vmem %s1, %s146
        %s148 = smul.u32 4, %s20
        %p149 = scmp.lt.s32.totalorder %s19, 1
        %s150 = scalar_select %p149, %s19, 1
        %s151 = smul.addr %s150, 2
        %s152 = scalar_lea.vmem %s1, %s151
        %v153 = vld [vmem:[%s130] sm:$0xff]
        %v154 = vld [vmem:[%s130 + $0x8] sm:$0xff]
        %v155 = vld [vmem:[%s130 + $0x10] sm:$0xff]
        %v156 = vld [vmem:[%s130 + $0x18] sm:$0xff]
        %v157 = vld [vmem:[%s130 + $0x20] sm:$0xff]
        %v158 = vld [vmem:[%s130 + $0x28] sm:$0xff]
        %v159 = vld [vmem:[%s130 + $0x30] sm:$0xff]
        %v160 = vld [vmem:[%s130 + $0x38] sm:$0xff]
        %v161 = vld [vmem:[%s130 + $0x40] sm:$0xff]
        %v162 = vld [vmem:[%s130 + $0x48] sm:$0xff]
        %v163 = vld [vmem:[%s130 + $0x50] sm:$0xff]
        %v164 = vld [vmem:[%s130 + $0x58] sm:$0xff]
        %v165 = vld [vmem:[%s130 + $0x60] sm:$0xff]
        %v166 = vld [vmem:[%s130 + $0x68] sm:$0xff]
        %v167 = vld [vmem:[%s130 + $0x70] sm:$0xff]
        %v168 = vld [vmem:[%s130 + $0x78] sm:$0xff]
        %v169 = vld [vmem:[%s130 + $0x80] sm:$0xff]
        %v170 = vld [vmem:[%s130 + $0x88] sm:$0xff]
        %v171 = vld [vmem:[%s130 + $0x90] sm:$0xff]
        %v172 = vld [vmem:[%s130 + $0x98] sm:$0xff]
        %v173 = vld [vmem:[%s130 + $0xa0] sm:$0xff]
        %v174 = vld [vmem:[%s130 + $0xa8] sm:$0xff]
        %v175 = vld [vmem:[%s130 + $0xb0] sm:$0xff]
        %v176 = vld [vmem:[%s130 + $0xb8] sm:$0xff]
        %v177 = vld [vmem:[%s130 + $0xc0] sm:$0xff]
        %v178 = vld [vmem:[%s130 + $0xc8] sm:$0xff]
        %v179 = vld [vmem:[%s130 + $0xd0] sm:$0xff]
        %v180 = vld [vmem:[%s130 + $0xd8] sm:$0xff]
        %v181 = vld [vmem:[%s130 + $0xe0] sm:$0xff]
        %v182 = vld [vmem:[%s130 + $0xe8] sm:$0xff]
        %v183 = vld [vmem:[%s130 + $0xf0] sm:$0xff]
        %v184 = vld [vmem:[%s130 + $0xf8] sm:$0xff]
        %vm185 = vcmask 261120
        %v186 = vsel %vm185, %v153, 0.0
        %v187 = vsel %vm185, %v161, 0.0
        %v188 = vadd.f32 %v186, %v187
        %v189 = vsel %vm185, %v169, 0.0
        %v190 = vadd.f32 %v188, %v189
        %v191 = vsel %vm185, %v177, 0.0
        %v192 = vadd.f32 %v190, %v191
        %v193 = vsel %vm185, %v154, 0.0
        %v194 = vsel %vm185, %v162, 0.0
        %v195 = vadd.f32 %v193, %v194
        %v196 = vsel %vm185, %v170, 0.0
        %v197 = vadd.f32 %v195, %v196
        %v198 = vsel %vm185, %v178, 0.0
        %v199 = vadd.f32 %v197, %v198
        %v200 = vsel %vm185, %v155, 0.0
        %v201 = vsel %vm185, %v163, 0.0
        %v202 = vadd.f32 %v200, %v201
        %v203 = vsel %vm185, %v171, 0.0
        %v204 = vadd.f32 %v202, %v203
        %v205 = vsel %vm185, %v179, 0.0
        %v206 = vadd.f32 %v204, %v205
        %v207 = vsel %vm185, %v156, 0.0
        %v208 = vsel %vm185, %v164, 0.0
        %v209 = vadd.f32 %v207, %v208
        %v210 = vsel %vm185, %v172, 0.0
        %v211 = vadd.f32 %v209, %v210
        %v212 = vsel %vm185, %v180, 0.0
        %v213 = vadd.f32 %v211, %v212
        %v214 = vsel %vm185, %v157, 0.0
        %v215 = vsel %vm185, %v165, 0.0
        %v216 = vadd.f32 %v214, %v215
        %v217 = vsel %vm185, %v173, 0.0
        %v218 = vadd.f32 %v216, %v217
        %v219 = vsel %vm185, %v181, 0.0
        %v220 = vadd.f32 %v218, %v219
        %v221 = vsel %vm185, %v158, 0.0
        %v222 = vsel %vm185, %v166, 0.0
        %v223 = vadd.f32 %v221, %v222
        %v224 = vsel %vm185, %v174, 0.0
        %v225 = vadd.f32 %v223, %v224
        %v226 = vsel %vm185, %v182, 0.0
        %v227 = vadd.f32 %v225, %v226
        %v228 = vsel %vm185, %v159, 0.0
        %v229 = vsel %vm185, %v167, 0.0
        %v230 = vadd.f32 %v228, %v229
        %v231 = vsel %vm185, %v175, 0.0
        %v232 = vadd.f32 %v230, %v231
        %v233 = vsel %vm185, %v183, 0.0
        %v234 = vadd.f32 %v232, %v233
        %v235 = vsel %vm185, %v160, 0.0
        %v236 = vsel %vm185, %v168, 0.0
        %v237 = vadd.f32 %v235, %v236
        %v238 = vsel %vm185, %v176, 0.0
        %v239 = vadd.f32 %v237, %v238
        %v240 = vsel %vm185, %v184, 0.0
        %v241 = vadd.f32 %v239, %v240
        %v242 = vsel %vm185, %v192, 0.0
        %v243 = vsel %vm185, %v199, 0.0
        %v244 = vadd.f32 %v242, %v243
        %v245 = vsel %vm185, %v206, 0.0
        %v246 = vadd.f32 %v244, %v245
        %v247 = vsel %vm185, %v213, 0.0
        %v248 = vadd.f32 %v246, %v247
        %v249 = vsel %vm185, %v220, 0.0
        %v250 = vadd.f32 %v248, %v249
        %v251 = vsel %vm185, %v227, 0.0
        %v252 = vadd.f32 %v250, %v251
        %v253 = vsel %vm185, %v234, 0.0
        %v254 = vadd.f32 %v252, %v253
        %v255 = vsel %vm185, %v241, 0.0
        %v256 = vadd.f32 %v254, %v255
        %v257 = vsel %vm185, %v256, 0.0
        %v258 = vrot.slane %v257, 4
        %v259 = vadd.f32 %v257, %v258
        %v260 = vrot.slane %v259, 2
        %v261 = vadd.f32 %v259, %v260
        %v262 = vrot.slane %v261, 1
        %v263 = vadd.f32 %v261, %v262
        %v264 = vmul.f32 %v153, %v153
        %v265 = vmul.f32 %v154, %v154
        %v266 = vmul.f32 %v155, %v155
        %v267 = vmul.f32 %v156, %v156
        %v268 = vmul.f32 %v157, %v157
        %v269 = vmul.f32 %v158, %v158
        %v270 = vmul.f32 %v159, %v159
        %v271 = vmul.f32 %v160, %v160
        %v272 = vmul.f32 %v161, %v161
        %v273 = vmul.f32 %v162, %v162
        %v274 = vmul.f32 %v163, %v163
        %v275 = vmul.f32 %v164, %v164
        %v276 = vmul.f32 %v165, %v165
        %v277 = vmul.f32 %v166, %v166
        %v278 = vmul.f32 %v167, %v167
        %v279 = vmul.f32 %v168, %v168
        %v280 = vmul.f32 %v169, %v169
        %v281 = vmul.f32 %v170, %v170
        %v282 = vmul.f32 %v171, %v171
        %v283 = vmul.f32 %v172, %v172
        %v284 = vmul.f32 %v173, %v173
        %v285 = vmul.f32 %v174, %v174
        %v286 = vmul.f32 %v175, %v175
        %v287 = vmul.f32 %v176, %v176
        %v288 = vmul.f32 %v177, %v177
        %v289 = vmul.f32 %v178, %v178
        %v290 = vmul.f32 %v179, %v179
        %v291 = vmul.f32 %v180, %v180
        %v292 = vmul.f32 %v181, %v181
        %v293 = vmul.f32 %v182, %v182
        %v294 = vmul.f32 %v183, %v183
        %v295 = vmul.f32 %v184, %v184
        %v296 = vsel %vm185, %v264, 0.0
        %v297 = vsel %vm185, %v272, 0.0
        %v298 = vadd.f32 %v296, %v297
        %v299 = vsel %vm185, %v280, 0.0
        %v300 = vadd.f32 %v298, %v299
        %v301 = vsel %vm185, %v288, 0.0
        %v302 = vadd.f32 %v300, %v301
        %v303 = vsel %vm185, %v265, 0.0
        %v304 = vsel %vm185, %v273, 0.0
        %v305 = vadd.f32 %v303, %v304
        %v306 = vsel %vm185, %v281, 0.0
        %v307 = vadd.f32 %v305, %v306
        %v308 = vsel %vm185, %v289, 0.0
        %v309 = vadd.f32 %v307, %v308
        %v310 = vsel %vm185, %v266, 0.0
        %v311 = vsel %vm185, %v274, 0.0
        %v312 = vadd.f32 %v310, %v311
        %v313 = vsel %vm185, %v282, 0.0
        %v314 = vadd.f32 %v312, %v313
        %v315 = vsel %vm185, %v290, 0.0
        %v316 = vadd.f32 %v314, %v315
        %v317 = vsel %vm185, %v267, 0.0
        %v318 = vsel %vm185, %v275, 0.0
        %v319 = vadd.f32 %v317, %v318
        %v320 = vsel %vm185, %v283, 0.0
        %v321 = vadd.f32 %v319, %v320
        %v322 = vsel %vm185, %v291, 0.0
        %v323 = vadd.f32 %v321, %v322
        %v324 = vsel %vm185, %v268, 0.0
        %v325 = vsel %vm185, %v276, 0.0
        %v326 = vadd.f32 %v324, %v325
        %v327 = vsel %vm185, %v284, 0.0
        %v328 = vadd.f32 %v326, %v327
        %v329 = vsel %vm185, %v292, 0.0
        %v330 = vadd.f32 %v328, %v329
        %v331 = vsel %vm185, %v269, 0.0
        %v332 = vsel %vm185, %v277, 0.0
        %v333 = vadd.f32 %v331, %v332
        %v334 = vsel %vm185, %v285, 0.0
        %v335 = vadd.f32 %v333, %v334
        %v336 = vsel %vm185, %v293, 0.0
        %v337 = vadd.f32 %v335, %v336
        %v338 = vsel %vm185, %v270, 0.0
        %v339 = vsel %vm185, %v278, 0.0
        %v340 = vadd.f32 %v338, %v339
        %v341 = vsel %vm185, %v286, 0.0
        %v342 = vadd.f32 %v340, %v341
        %v343 = vsel %vm185, %v294, 0.0
        %v344 = vadd.f32 %v342, %v343
        %v345 = vsel %vm185, %v271, 0.0
        %v346 = vsel %vm185, %v279, 0.0
        %v347 = vadd.f32 %v345, %v346
        %v348 = vsel %vm185, %v287, 0.0
        %v349 = vadd.f32 %v347, %v348
        %v350 = vsel %vm185, %v295, 0.0
        %v351 = vadd.f32 %v349, %v350
        %v352 = vsel %vm185, %v302, 0.0
        %v353 = vsel %vm185, %v309, 0.0
        %v354 = vadd.f32 %v352, %v353
        %v355 = vsel %vm185, %v316, 0.0
        %v356 = vadd.f32 %v354, %v355
        %v357 = vsel %vm185, %v323, 0.0
        %v358 = vadd.f32 %v356, %v357
        %v359 = vsel %vm185, %v330, 0.0
        %v360 = vadd.f32 %v358, %v359
        %v361 = vsel %vm185, %v337, 0.0
        %v362 = vadd.f32 %v360, %v361
        %v363 = vsel %vm185, %v344, 0.0
        %v364 = vadd.f32 %v362, %v363
        %v365 = vsel %vm185, %v351, 0.0
        %v366 = vadd.f32 %v364, %v365
        %v367 = vsel %vm185, %v366, 0.0
        %v368 = vrot.slane %v367, 4
        %v369 = vadd.f32 %v367, %v368
        %v370 = vrot.slane %v369, 2
        %v371 = vadd.f32 %v369, %v370
        %v372 = vrot.slane %v371, 1
        %v373 = vadd.f32 %v371, %v372
        %p374 = scmp.eq.s32.totalorder %s20, 0
        // Predicated region
        $region29: #{resnet_block_causal3d.3} parent=23 // pred_check
          %p375 = pneg %p374
        $region30: #{resnet_block_causal3d.3} parent=23 // pred_check_branch
          %377 = sbr.rel (%p375) target = $region32
        $region31: #{resnet_block_causal3d.3} parent=23 // pred_region
          %vm378 = vcmask 254976
          %379 = vst.msk [vmem:[%s152] sm:$0x3] %vm378, 0.0
        $region32: #{resnet_block_causal3d.3} parent=23 // pred_fallthru
          _
        %v380 = vld [vmem:[%s152] sm:$0x1]
        %v381 = vadd.f32 %v380, %v263
        %vm382 = vcmask 253952
        %383 = vst.msk [vmem:[%s152] sm:$0x1] %vm382, %v381
        %v384 = vld [vmem:[%s152 + $0x1] sm:$0x1]
        %v385 = vadd.f32 %v384, %v373
        %386 = vst.msk [vmem:[%s152 + $0x1] sm:$0x1] %vm382, %v385
        %p387 = scmp.lt.s32.totalorder %s19, 1
        %s388 = scalar_select %p387, %s19, 1
        %s389 = smul.addr %s388, 2
        %s390 = scalar_lea.vmem %s1, %s389
        // Predicated region
        $region33: #{resnet_block_causal3d.3} parent=23 // pred_check
          %p391 = pneg %p73
        $region34: #{resnet_block_causal3d.3} parent=23 // pred_check_branch
          %393 = sbr.rel (%p391) target = $region36
        $region35: #{resnet_block_causal3d.3} parent=23 // pred_region
          _
        $region36: #{resnet_block_causal3d.3} parent=23 // pred_fallthru
          _
      $region24: #{resnet_block_causal3d.3} parent=5 // pred_fallthru
        _
      %p394 = scmp.le.s32.totalorder 2, %s10
      // Predicated region
      $region37: #{resnet_block_causal3d.3} parent=5 // pred_check
        %p395 = pneg %p394
      $region38: #{resnet_block_causal3d.3} parent=5 // pred_check_branch
        %397 = sbr.rel (%p395) target = $region40
      $region39: #{resnet_block_causal3d.3} parent=5 // pred_region
        %s398 = ssub.s32 %s10, 2
        // Predicated region
        $region41: #{resnet_block_causal3d.3} parent=39 // pred_check
          %p399 = pneg %p79
        $region42: #{resnet_block_causal3d.3} parent=39 // pred_check_branch
          %401 = sbr.rel (%p399) target = $region44
        $region43: #{resnet_block_causal3d.3} parent=39 // pred_region
          %p402 = scmp.lt.s32.totalorder %s21, 1
          %s403 = scalar_select %p402, %s21, 1
          %s404 = smul.addr %s403, 2
          %s405 = scalar_lea.vmem %s1, %s404
        $region44: #{resnet_block_causal3d.3} parent=39 // pred_fallthru
          _
      $region40: #{resnet_block_causal3d.3} parent=5 // pred_fallthru
        _
    $region6: #{resnet_block_causal3d.3} parent=1 // loop_footer
      %s14 = sadd.s32 1, %s10
    $region7: #{resnet_block_causal3d.3} parent=1 // loop_footer_branch
      %9 = sbr.rel target = $region3
    $region8: #{resnet_block_causal3d.3} parent=1 // loop_exit
      _
    %406 = vsyncpa [#allocation3], 1
    %s407 = scalar_lea.sflag [#allocation3], 1
    %408 = vsyncpa %s407, 1

// kernel: resnet_block_causal3d.4
$region0: #{resnet_block_causal3d.4}
  #allocation0 [shape = 'u32[]', space=smem, size = 0x4, offset = 0x4, fixed_abs, tag = 'smem constant byte address 0x4 - core index']
  #allocation1 [shape = 'u32[144,128]{1,0:T(1,128)}', space=vmem, size = 0x12000, scoped, tag = 'internal scratch']
  #allocation2 [shape = 'bf16[3,10,10,32]{3,2,1,0:T(8,128)(2,1)}', space=vmem, size = 0x1e000, scoped, tag = 'scratch operand']
  %s0 = inlined_call_operand.vmem [shape: bf16[2,4,8,8,32], index: 0, kind: input, shape index: {}]
  %s1 = inlined_call_operand.vmem [shape: f32[2,1,32], index: 1, kind: input, shape index: {}]
  %s2 = inlined_call_operand.vmem [shape: f32[2,1,32], index: 2, kind: input, shape index: {}]
  %s3 = inlined_call_operand.vmem [shape: bf16[3,3,96,64], index: 3, kind: input, shape index: {}]
  %s4 = inlined_call_operand.vmem [shape: f32[1,1,64], index: 4, kind: input, shape index: {}]
  %s5 = inlined_call_operand.vmem [shape: bf16[2,4,8,8,64], index: 5, kind: output, shape index: {0}]
  %s6 = inlined_call_operand.vmem [shape: f32[2,4,2,64], index: 6, kind: output, shape index: {1}]
  %7 = xla_tuple %s5, %s6
  %s8 = sld [smem:[#allocation0]]
  $region73: #{resnet_block_causal3d.4} parent=0
    _
  %s10 = ssub.s32 1, %s8
  %s11 = scalar_select 0, %s10, %s8
  loop: start=0, step=1, limit=10
  $region2: #{resnet_block_causal3d.4} parent=0 // loop_pre_header
    _
  $region3: #{resnet_block_causal3d.4} parent=0 // loop_header
    %s13 = sphi 0, %s17
    %p14 = scmp.ge.s32.totalorder %s13, 10
    %s20 = sphi 0, %s32
    %s21 = sphi 0, %s28
    %s22 = sphi 0, %s20
    %s23 = sphi 0, %s21
    %s24 = sphi 0, %s22
    %s25 = sphi 0, %s23
    %s37 = sphi 0, %s39
    %s40 = sphi 0, %s37
    %s41 = sphi 0, %s40
    %s57 = sphi 0, %s41
    %s63 = sphi 0, %s65
    %s66 = sphi 0, %s63
    %s67 = sphi 0, %s66
    %s83 = sphi 0, %s67
    %s89 = sphi 0, %s91
    %s92 = sphi 0, %s89
    %s93 = sphi 0, %s92
    %s109 = sphi 0, %s93
    %s113 = sphi 0, %s113
    %s115 = sphi 0, %s113
    %s116 = sphi 0, %s115
    %s130 = sphi 0, %s116
    %s134 = sphi 0, %s134
    %s136 = sphi 0, %s134
    %s137 = sphi 0, %s136
    %s151 = sphi 0, %s137
    %s159 = sphi 0, %s161
    %s162 = sphi 0, %s159
    %s163 = sphi 0, %s162
    %s179 = sphi 0, %s163
    %s187 = sphi 0, %s189
    %s190 = sphi 0, %s187
    %s191 = sphi 0, %s190
    %s207 = sphi 0, %s191
  $region4: #{resnet_block_causal3d.4} parent=0 // loop_header_branch
    %16 = sbr.rel (%p14) target = $region8
  $region5: #{resnet_block_causal3d.4} parent=0 // loop_body
    %s18 = ssub.s32 %s13, 1
    %s19 = ssub.s32 %s13, 2
    %s26 = sadd.s32 1, %s21
    %p27 = scmp.ge.s32.totalorder %s26, 4
    %s28 = scalar_select %p27, 0, %s26
    %s29 = sadd.s32 1, %s20
    %s30 = scalar_select %p27, %s29, %s20
    %p31 = scmp.ge.s32.totalorder %s30, 2
    %s32 = scalar_select %p31, 0, %s30
    %s33 = ssub.s32 %s20, %s32
    %s34 = ssub.s32 %s21, %s28
    %s35 = sor.u32 %s33, %s34
    %p36 = scmp.eq.s32.totalorder %s35, 0
    %s38 = sadd.s32 %s37, 1
    %s39 = scalar_select %p36, %s37, %s38
    %p42 = pneg %p36
    %p43 = scmp.eq.s32.totalorder %s13, 7
    %p44 = por %p42, %p43
    %p45 = scmp.ne.s32.totalorder %s37, %s40
    %p46 = scmp.eq.s32.totalorder %s13, 0
    %p47 = por %p45, %p46
    %p48 = scmp.ne.s32.totalorder %s37, %s40
    %p49 = scmp.eq.s32.totalorder %s18, 7
    %p50 = por %p48, %p49
    %p51 = scmp.ne.s32.totalorder %s40, %s41
    %p52 = scmp.eq.s32.totalorder %s18, 0
    %p53 = por %p51, %p52
    %p54 = scmp.ne.s32.totalorder %s40, %s41
    %p55 = scmp.eq.s32.totalorder %s19, 7
    %p56 = por %p54, %p55
    %p58 = scmp.ne.s32.totalorder %s41, %s57
    %p59 = scmp.eq.s32.totalorder %s19, 0
    %p60 = por %p58, %p59
    %s61 = ssub.s32 %s20, %s32
    %p62 = scmp.eq.s32.totalorder %s61, 0
    %s64 = sadd.s32 %s63, 1
    %s65 = scalar_select %p62, %s63, %s64
    %p68 = pneg %p62
    %p69 = scmp.eq.s32.totalorder %s13, 7
    %p70 = por %p68, %p69
    %p71 = scmp.ne.s32.totalorder %s63, %s66
    %p72 = scmp.eq.s32.totalorder %s13, 0
    %p73 = por %p71, %p72
    %p74 = scmp.ne.s32.totalorder %s63, %s66
    %p75 = scmp.eq.s32.totalorder %s18, 7
    %p76 = por %p74, %p75
    %p77 = scmp.ne.s32.totalorder %s66, %s67
    %p78 = scmp.eq.s32.totalorder %s18, 0
    %p79 = por %p77, %p78
    %p80 = scmp.ne.s32.totalorder %s66, %s67
    %p81 = scmp.eq.s32.totalorder %s19, 7
    %p82 = por %p80, %p81
    %p84 = scmp.ne.s32.totalorder %s67, %s83
    %p85 = scmp.eq.s32.totalorder %s19, 0
    %p86 = por %p84, %p85
    %s87 = ssub.s32 %s20, %s32
    %p88 = scmp.eq.s32.totalorder %s87, 0
    %s90 = sadd.s32 %s89, 1
    %s91 = scalar_select %p88, %s89, %s90
    %p94 = pneg %p88
    %p95 = scmp.eq.s32.totalorder %s13, 7
    %p96 = por %p94, %p95
    %p97 = scmp.ne.s32.totalorder %s89, %s92
    %p98 = scmp.eq.s32.totalorder %s13, 0
    %p99 = por %p97, %p98
    %p100 = scmp.ne.s32.totalorder %s89, %s92
    %p101 = scmp.eq.s32.totalorder %s18, 7
    %p102 = por %p100, %p101
    %p103 = scmp.ne.s32.totalorder %s92, %s93
    %p104 = scmp.eq.s32.totalorder %s18, 0
    %p105 = por %p103, %p104
    %p106 = scmp.ne.s32.totalorder %s92, %s93
    %p107 = scmp.eq.s32.totalorder %s19, 7
    %p108 = por %p106, %p107
    %p110 = scmp.ne.s32.totalorder %s93, %s109
    %p111 = scmp.eq.s32.totalorder %s19, 0
    %p112 = por %p110, %p111
    %s114 = sadd.s32 %s113, 1
    %p117 = scmp.eq.s32.totalorder %s13, 7
    %p118 = scmp.ne.s32.totalorder %s113, %s115
    %p119 = scmp.eq.s32.totalorder %s13, 0
    %p120 = por %p118, %p119
    %p121 = scmp.ne.s32.totalorder %s113, %s115
    %p122 = scmp.eq.s32.totalorder %s18, 7
    %p123 = por %p121, %p122
    %p124 = scmp.ne.s32.totalorder %s115, %s116
    %p125 = scmp.eq.s32.totalorder %s18, 0
    %p126 = por %p124, %p125
    %p127 = scmp.ne.s32.totalorder %s115, %s116
    %p128 = scmp.eq.s32.totalorder %s19, 7
    %p129 = por %p127, %p128
    %p131 = scmp.ne.s32.totalorder %s116, %s130
    %p132 = scmp.eq.s32.totalorder %s19, 0
    %p133 = por %p131, %p132
    %s135 = sadd.s32 %s134, 1
    %p138 = scmp.eq.s32.totalorder %s13, 7
    %p139 = scmp.ne.s32.totalorder %s134, %s136
    %p140 = scmp.eq.s32.totalorder %s13, 0
    %p141 = por %p139, %p140
    %p142 = scmp.ne.s32.totalorder %s134, %s136
    %p143 = scmp.eq.s32.totalorder %s18, 7
    %p144 = por %p142, %p143
    %p145 = scmp.ne.s32.totalorder %s136, %s137
    %p146 = scmp.eq.s32.totalorder %s18, 0
    %p147 = por %p145, %p146
    %p148 = scmp.ne.s32.totalorder %s136, %s137
    %p149 = scmp.eq.s32.totalorder %s19, 7
    %p150 = por %p148, %p149
    %p152 = scmp.ne.s32.totalorder %s137, %s151
    %p153 = scmp.eq.s32.totalorder %s19, 0
    %p154 = por %p152, %p153
    %s155 = ssub.s32 %s20, %s32
    %s156 = ssub.s32 %s21, %s28
    %s157 = sor.u32 %s155, %s156
    %p158 = scmp.eq.s32.totalorder %s157, 0
    %s160 = sadd.s32 %s159, 1
    %s161 = scalar_select %p158, %s159, %s160
    %p164 = pneg %p158
    %p165 = scmp.eq.s32.totalorder %s13, 7
    %p166 = por %p164, %p165
    %p167 = scmp.ne.s32.totalorder %s159, %s162
    %p168 = scmp.eq.s32.totalorder %s13, 0
    %p169 = por %p167, %p168
    %p170 = scmp.ne.s32.totalorder %s159, %s162
    %p171 = scmp.eq.s32.totalorder %s18, 7
    %p172 = por %p170, %p171
    %p173 = scmp.ne.s32.totalorder %s162, %s163
    %p174 = scmp.eq.s32.totalorder %s18, 0
    %p175 = por %p173, %p174
    %p176 = scmp.ne.s32.totalorder %s162, %s163
    %p177 = scmp.eq.s32.totalorder %s19, 7
    %p178 = por %p176, %p177
    %p180 = scmp.ne.s32.totalorder %s163, %s179
    %p181 = scmp.eq.s32.totalorder %s19, 0
    %p182 = por %p180, %p181
    %s183 = ssub.s32 %s20, %s32
    %s184 = ssub.s32 %s21, %s28
    %s185 = sor.u32 %s183, %s184
    %p186 = scmp.eq.s32.totalorder %s185, 0
    %s188 = sadd.s32 %s187, 1
    %s189 = scalar_select %p186, %s187, %s188
    %p192 = pneg %p186
    %p193 = scmp.eq.s32.totalorder %s13, 7
    %p194 = por %p192, %p193
    %p195 = scmp.ne.s32.totalorder %s187, %s190
    %p196 = scmp.eq.s32.totalorder %s13, 0
    %p197 = por %p195, %p196
    %p198 = scmp.ne.s32.totalorder %s187, %s190
    %p199 = scmp.eq.s32.totalorder %s18, 7
    %p200 = por %p198, %p199
    %p201 = scmp.ne.s32.totalorder %s190, %s191
    %p202 = scmp.eq.s32.totalorder %s18, 0
    %p203 = por %p201, %p202
    %p204 = scmp.ne.s32.totalorder %s190, %s191
    %p205 = scmp.eq.s32.totalorder %s19, 7
    %p206 = por %p204, %p205
    %p208 = scmp.ne.s32.totalorder %s191, %s207
    %p209 = scmp.eq.s32.totalorder %s19, 0
    %p210 = por %p208, %p209
    %p211 = scmp.le.s32.totalorder 1, %s13
    %p212 = scmp.lt.s32.totalorder %s13, 9
    %p213 = pnand %p211, %p212
    %p214 = pneg %p213
    // Predicated region
    $region9: #{resnet_block_causal3d.4} parent=5 // pred_check
      _
    $region10: #{resnet_block_causal3d.4} parent=5 // pred_check_branch
      %216 = sbr.rel (%p213) target = $region12
    $region11: #{resnet_block_causal3d.4} parent=5 // pred_region
      %s217 = ssub.s32 %s13, 1
      // Predicated region
      $region13: #{resnet_block_causal3d.4} parent=11 // pred_check
        %p218 = pneg %p126
      $region14: #{resnet_block_causal3d.4} parent=11 // pred_check_branch
        %220 = sbr.rel (%p218) target = $region16
      $region15: #{resnet_block_causal3d.4} parent=11 // pred_region
        _
      $region16: #{resnet_block_causal3d.4} parent=11 // pred_fallthru
        _
      // Predicated region
      $region17: #{resnet_block_causal3d.4} parent=11 // pred_check
        %p221 = pneg %p147
      $region18: #{resnet_block_causal3d.4} parent=11 // pred_check_branch
        %223 = sbr.rel (%p221) target = $region20
      $region19: #{resnet_block_causal3d.4} parent=11 // pred_region
        _
      $region20: #{resnet_block_causal3d.4} parent=11 // pred_fallthru
        _
    $region12: #{resnet_block_causal3d.4} parent=5 // pred_fallthru
      _
    %p224 = scmp.lt.s32.totalorder %s13, 8
    // Predicated region
    $region21: #{resnet_block_causal3d.4} parent=5 // pred_check
      %p225 = pneg %p224
    $region22: #{resnet_block_causal3d.4} parent=5 // pred_check_branch
      %227 = sbr.rel (%p225) target = $region24
    $region23: #{resnet_block_causal3d.4} parent=5 // pred_region
      // Predicated region
      $region25: #{resnet_block_causal3d.4} parent=23 // pred_check
        %p228 = pneg %p47
      $region26: #{resnet_block_causal3d.4} parent=23 // pred_check_branch
        %230 = sbr.rel (%p228) target = $region28
      $region27: #{resnet_block_causal3d.4} parent=23 // pred_region
        %p231 = scmp.lt.s32.totalorder %s20, 1
        %s232 = scalar_select %p231, %s20, 1
        %p233 = scmp.lt.s32.totalorder %s21, 3
        %s234 = scalar_select %p233, %s21, 3
        %s235 = smul.addr %s234, 8
        %s236 = smul.addr %s232, 32
        %s237 = sadd.s32 %s235, %s236
        %s238 = smul.addr %s237, 4
        %s239 = scalar_lea.vmem %s0, %s238
      $region28: #{resnet_block_causal3d.4} parent=23 // pred_fallthru
        _
      // Predicated region
      $region29: #{resnet_block_causal3d.4} parent=23 // pred_check
        %p240 = pneg %p73
      $region30: #{resnet_block_causal3d.4} parent=23 // pred_check_branch
        %242 = sbr.rel (%p240) target = $region32
      $region31: #{resnet_block_causal3d.4} parent=23 // pred_region
        %p243 = scmp.lt.s32.totalorder %s20, 1
        %s244 = scalar_select %p243, %s20, 1
        %s245 = scalar_lea.vmem %s1, %s244
      $region32: #{resnet_block_causal3d.4} parent=23 // pred_fallthru
        _
      // Predicated region
      $region33: #{resnet_block_causal3d.4} parent=23 // pred_check
        %p246 = pneg %p99
      $region34: #{resnet_block_causal3d.4} parent=23 // pred_check_branch
        %248 = sbr.rel (%p246) target = $region36
      $region35: #{resnet_block_causal3d.4} parent=23 // pred_region
        %p249 = scmp.lt.s32.totalorder %s20, 1
        %s250 = scalar_select %p249, %s20, 1
        %s251 = scalar_lea.vmem %s2, %s250
      $region36: #{resnet_block_causal3d.4} parent=23 // pred_fallthru
        _
    $region24: #{resnet_block_causal3d.4} parent=5 // pred_fallthru
      _
    %p252 = scmp.le.s32.totalorder 1, %s13
    %p253 = scmp.lt.s32.totalorder %s13, 9
    %p254 = pnand %p252, %p253
    %p255 = pneg %p254
    // Predicated region
    $region37: #{resnet_block_causal3d.4} parent=5 // pred_check
      _
    $region38: #{resnet_block_causal3d.4} parent=5 // pred_check_branch
      %257 = sbr.rel (%p254) target = $region40
    $region39: #{resnet_block_causal3d.4} parent=5 // pred_region
      %s258 = ssub.s32 %s13, 1
      %p259 = scmp.lt.s32.totalorder %s22, 1
      %s260 = scalar_select %p259, %s22, 1
      %p261 = scmp.lt.s32.totalorder %s23, 3
      %s262 = scalar_select %p261, %s23, 3
      %s263 = smul.addr %s262, 8
      %s264 = smul.addr %s260, 32
      %s265 = sadd.s32 %s263, %s264
      %s266 = smul.addr %s265, 4
      %s267 = scalar_lea.vmem %s0, %s266
      %p268 = pneg %p53
      %p269 = pneg %p50
      %p270 = scmp.lt.s32.totalorder %s22, 1
      %s271 = scalar_select %p270, %s22, 1
      %s272 = scalar_lea.vmem %s1, %s271
      %p273 = pneg %p79
      %p274 = pneg %p76
      %p275 = scmp.lt.s32.totalorder %s22, 1
      %s276 = scalar_select %p275, %s22, 1
      %s277 = scalar_lea.vmem %s2, %s276
      %p278 = pneg %p105
      %p279 = pneg %p102
      %p280 = pneg %p126
      %p281 = pneg %p123
      %p282 = pneg %p147
      %p283 = pneg %p144
      %p284 = pneg %p175
      %p285 = pneg %p172
      %p286 = scmp.lt.s32.totalorder %s22, 1
      %s287 = scalar_select %p286, %s22, 1
      %p288 = scmp.lt.s32.totalorder %s23, 3
      %s289 = scalar_select %p288, %s23, 3
      %s290 = smul.addr %s289, 8
      %s291 = smul.addr %s287, 32
      %s292 = sadd.s32 %s290, %s291
      %s293 = smul.addr %s292, 4
      %s294 = scalar_lea.vmem %s5, %s293
      %p295 = pneg %p203
      %p296 = pneg %p200
      %p297 = scmp.lt.s32.totalorder %s22, 1
      %s298 = scalar_select %p297, %s22, 1
      %p299 = scmp.lt.s32.totalorder %s23, 3
      %s300 = scalar_select %p299, %s23, 3
      %s301 = smul.addr %s298, 4
      %s302 = sadd.s32 %s300, %s301
      %s303 = smul.addr %s302, 2
      %s304 = scalar_lea.vmem %s6, %s303
      %p305 = scmp.lt.s32.totalorder %s22, 1
      %s306 = scalar_select %p305, %s22, 1
      %p307 = scmp.lt.s32.totalorder %s23, 3
      %s308 = scalar_select %p307, %s23, 3
      %s309 = smul.addr %s308, 8
      %s310 = smul.addr %s306, 32
      %s311 = sadd.s32 %s309, %s310
      %s312 = smul.addr %s311, 4
      %s313 = scalar_lea.vmem %s0, %s312
      %p314 = scmp.lt.s32.totalorder %s22, 1
      %s315 = scalar_select %p314, %s22, 1
      %s316 = scalar_lea.vmem %s1, %s315
      %p317 = scmp.lt.s32.totalorder %s22, 1
      %s318 = scalar_select %p317, %s22, 1
      %s319 = scalar_lea.vmem %s2, %s318
      %p320 = scmp.lt.s32.totalorder %s22, 1
      %s321 = scalar_select %p320, %s22, 1
      %p322 = scmp.lt.s32.totalorder %s23, 3
      %s323 = scalar_select %p322, %s23, 3
      %s324 = smul.addr %s323, 8
      %s325 = smul.addr %s321, 32
      %s326 = sadd.s32 %s324, %s325
      %s327 = smul.addr %s326, 4
      %s328 = scalar_lea.vmem %s5, %s327
      %p329 = scmp.lt.s32.totalorder %s22, 1
      %s330 = scalar_select %p329, %s22, 1
      %p331 = scmp.lt.s32.totalorder %s23, 3
      %s332 = scalar_select %p331, %s23, 3
      %s333 = smul.addr %s330, 4
      %s334 = sadd.s32 %s332, %s333
      %s335 = smul.addr %s334, 2
      %s336 = scalar_lea.vmem %s6, %s335
      %v338 = vld [vmem:[%s313] sm:$0xf]
      %v339 = vld [vmem:[%s313 + $0x4] sm:$0xf]
      %v340 = vld [vmem:[%s313 + $0x8] sm:$0xf]
      %v341 = vld [vmem:[%s313 + $0xc] sm:$0xf]
      %v342 = vld [vmem:[%s313 + $0x10] sm:$0xf]
      %v343 = vld [vmem:[%s313 + $0x14] sm:$0xf]
      %v344 = vld [vmem:[%s313 + $0x18] sm:$0xf]
      %v345 = vld [vmem:[%s313 + $0x1c] sm:$0xf]
      %v346 = vunpack.c.l.bf16 %v338
      %v347 = vunpack.c.l.bf16 %v339
      %v348 = vunpack.c.l.bf16 %v340
      %v349 = vunpack.c.l.bf16 %v341
      %v350 = vunpack.c.l.bf16 %v342
      %v351 = vunpack.c.l.bf16 %v343
      %v352 = vunpack.c.l.bf16 %v344
      %v353 = vunpack.c.l.bf16 %v345
      %v354 = vld [vmem:[%s316] sm:$0x1]
      %v355 = vld [vmem:[%s319] sm:$0x1]
      %v357 = vlaneseq
      %v358 = vshrl.u32 %v357, 7
      %v359 = vsub.s32 0, %v358
      %v360 = vrot.slane %v354, %v359
      %v362 = vmul.f32 %v346, %v360
      %v363 = vmul.f32 %v347, %v360
      %v364 = vmul.f32 %v348, %v360
      %v365 = vmul.f32 %v349, %v360
      %v366 = vmul.f32 %v350, %v360
      %v367 = vmul.f32 %v351, %v360
      %v368 = vmul.f32 %v352, %v360
      %v369 = vmul.f32 %v353, %v360
      %v371 = vlaneseq
      %v372 = vshrl.u32 %v371, 7
      %v373 = vsub.s32 0, %v372
      %v374 = vrot.slane %v355, %v373
      %v376 = vadd.f32 %v362, %v374
      %v377 = vadd.f32 %v363, %v374
      %v378 = vadd.f32 %v364, %v374
      %v379 = vadd.f32 %v365, %v374
      %v380 = vadd.f32 %v366, %v374
      %v381 = vadd.f32 %v367, %v374
      %v382 = vadd.f32 %v368, %v374
      %v383 = vadd.f32 %v369, %v374
      %v384 = vxor.u32 %v376, 2147483648
      %v385 = vxor.u32 %v377, 2147483648
      %v386 = vxor.u32 %v378, 2147483648
      %v387 = vxor.u32 %v379, 2147483648
      %v388 = vxor.u32 %v380, 2147483648
      %v389 = vxor.u32 %v381, 2147483648
      %v390 = vxor.u32 %v382, 2147483648
      %v391 = vxor.u32 %v383, 2147483648
      %v392 = vmul.f32 %v384, 1.442695
      %v393 = vpow.pop %v392
      %v394 = vmul.f32 %v385, 1.442695
      %v395 = vpow.pop %v394
      %v396 = vmul.f32 %v386, 1.442695
      %v397 = vpow.pop %v396
      %v398 = vmul.f32 %v387, 1.442695
      %v399 = vpow.pop %v398
      %v400 = vmul.f32 %v388, 1.442695
      %v401 = vpow.pop %v400
      %v402 = vmul.f32 %v389, 1.442695
      %v403 = vpow.pop %v402
      %v404 = vmul.f32 %v390, 1.442695
      %v405 = vpow.pop %v404
      %v406 = vmul.f32 %v391, 1.442695
      %v407 = vpow.pop %v406
      %v408 = vadd.f32 %v393, 1.0
      %v409 = vadd.f32 %v395, 1.0
      %v410 = vadd.f32 %v397, 1.0
      %v411 = vadd.f32 %v399, 1.0
      %v412 = vadd.f32 %v401, 1.0
      %v413 = vadd.f32 %v403, 1.0
      %v414 = vadd.f32 %v405, 1.0
      %v415 = vadd.f32 %v407, 1.0
      %v416 = vrcp.pop %v408
      %v417 = vmul.f32 1.0, %v416
      %v418 = vrcp.pop %v409
      %v419 = vmul.f32 1.0, %v418
      %v420 = vrcp.pop %v410
      %v421 = vmul.f32 1.0, %v420
      %v422 = vrcp.pop %v411
      %v423 = vmul.f32 1.0, %v422
      %v424 = vrcp.pop %v412
      %v425 = vmul.f32 1.0, %v424
      %v426 = vrcp.pop %v413
      %v427 = vmul.f32 1.0, %v426
      %v428 = vrcp.pop %v414
      %v429 = vmul.f32 1.0, %v428
      %v430 = vrcp.pop %v415
      %v431 = vmul.f32 1.0, %v430
      %v432 = vmul.f32 %v376, %v417
      %v433 = vmul.f32 %v377, %v419
      %v434 = vmul.f32 %v378, %v421
      %v435 = vmul.f32 %v379, %v423
      %v436 = vmul.f32 %v380, %v425
      %v437 = vmul.f32 %v381, %v427
      %v438 = vmul.f32 %v382, %v429
      %v439 = vmul.f32 %v383, %v431
      %v440 = vpack.c.bf16 %v432, %v432
      %v441 = vpack.c.bf16 %v433, %v433
      %v442 = vpack.c.bf16 %v434, %v434
      %v443 = vpack.c.bf16 %v435, %v435
      %v444 = vpack.c.bf16 %v436, %v436
      %v445 = vpack.c.bf16 %v437, %v437
      %v446 = vpack.c.bf16 %v438, %v438
      %v447 = vpack.c.bf16 %v439, %v439
      %v449 = vshrl.u32 %v440, 16
      %v451 = vrot.slane %v449, 7
      %v452 = vshll.u32 %v440, 16
      %v454 = vor.u32 %v451, %v452
      %v456 = vshrl.u32 %v441, 16
      %v458 = vrot.slane %v456, 7
      %v459 = vshll.u32 %v441, 16
      %v461 = vor.u32 %v458, %v459
      %v463 = vshrl.u32 %v442, 16
      %v465 = vrot.slane %v463, 7
      %v466 = vshll.u32 %v442, 16
      %v468 = vor.u32 %v465, %v466
      %v470 = vshrl.u32 %v443, 16
      %v472 = vrot.slane %v470, 7
      %v473 = vshll.u32 %v443, 16
      %v475 = vor.u32 %v472, %v473
      %v477 = vshrl.u32 %v444, 16
      %v479 = vrot.slane %v477, 7
      %v480 = vshll.u32 %v444, 16
      %v482 = vor.u32 %v479, %v480
      %v484 = vshrl.u32 %v445, 16
      %v486 = vrot.slane %v484, 7
      %v487 = vshll.u32 %v445, 16
      %v489 = vor.u32 %v486, %v487
      %v491 = vshrl.u32 %v446, 16
      %v493 = vrot.slane %v491, 7
      %v494 = vshll.u32 %v446, 16
      %v496 = vor.u32 %v493, %v494
      %v498 = vshrl.u32 %v447, 16
      %v500 = vrot.slane %v498, 7
      %v501 = vshll.u32 %v447, 16
      %v503 = vor.u32 %v500, %v501
      %v520 = vrot.slane %v440, 7
      %v521 = vrot.slane %v441, 7
      %v522 = vrot.slane %v442, 7
      %v523 = vrot.slane %v443, 7
      %v524 = vrot.slane %v444, 7
      %v525 = vrot.slane %v445, 7
      %v526 = vrot.slane %v446, 7
      %v527 = vrot.slane %v447, 7
      %vm536 = vcmask 1040384
      %vm537 = vsmask.f32 256
      %vm538 = vmand %vm536, %vm537
      %v539 = vsel %vm538, %v440, %v454
      %v540 = vsel %vm538, %v441, %v461
      %v541 = vsel %vm538, %v442, %v468
      %v542 = vsel %vm538, %v443, %v475
      %v543 = vsel %vm538, %v444, %v482
      %v544 = vsel %vm538, %v445, %v489
      %v545 = vsel %vm538, %v446, %v496
      %v546 = vsel %vm538, %v447, %v503
      %vm547 = vcmask 1044480
      %vm548 = vsmask.f32 4352
      %vm549 = vmand %vm547, %vm548
      %v550 = vsel %vm549, %v539, %v520
      %v551 = vsel %vm549, %v540, %v521
      %v552 = vsel %vm549, %v541, %v522
      %v553 = vsel %vm549, %v542, %v523
      %v554 = vsel %vm549, %v543, %v524
      %v555 = vsel %vm549, %v544, %v525
      %v556 = vsel %vm549, %v545, %v526
      %v557 = vsel %vm549, %v546, %v527
      %p558 = scmp.lt.s32.totalorder %s23, 0
      %s559 = ssub.s32 0, %s23
      %s560 = scalar_select %p558, %s559, %s23
      %s561 = sdiv.u32.pop %s560, 3
      %s562 = srem.u32.pop %s560, 3
      %s563 = ssub.s32 0, %s562
      %s564 = scalar_select %p558, %s563, %s562
      %p565 = scmp.ne.s32.totalorder %s564, 0
      %p566 = scmp.lt.s32.totalorder %s564, 0
      %p567 = pnand %p566, %p565
      %p568 = pneg %p567
      %s569 = sadd.s32 %s564, 3
      %s570 = scalar_select %p568, %s569, %s564
      %p571 = scmp.eq.s32.totalorder %s570, 0
      // Predicated region
      $region41: #{resnet_block_causal3d.4} parent=39 // pred_check
        %p572 = pneg %p571
      $region42: #{resnet_block_causal3d.4} parent=39 // pred_check_branch
        %574 = sbr.rel (%p572) target = $region44
      $region43: #{resnet_block_causal3d.4} parent=39 // pred_region
        %v583 = vunpack.c.l.b16 %v550
        %v584 = vunpack.c.h.b16 %v550
        %v585 = vunpack.c.l.b16 %v551
        %v586 = vunpack.c.h.b16 %v551
        %v587 = vunpack.c.l.b16 %v552
        %v588 = vunpack.c.h.b16 %v552
        %v589 = vunpack.c.l.b16 %v553
        %v590 = vunpack.c.h.b16 %v553
        %v591 = vunpack.c.l.b16 %v554
        %v592 = vunpack.c.h.b16 %v554
        %v593 = vunpack.c.l.b16 %v555
        %v594 = vunpack.c.h.b16 %v555
        %v595 = vunpack.c.l.b16 %v556
        %v596 = vunpack.c.h.b16 %v556
        %v597 = vunpack.c.l.b16 %v557
        %v598 = vunpack.c.h.b16 %v557
        %v599 = vpack.c.b16 %v583, %v583
        %v600 = vpack.c.b16 %v584, %v584
        %v601 = vpack.c.b16 %v585, %v585
        %v602 = vpack.c.b16 %v586, %v586
        %v603 = vpack.c.b16 %v587, %v587
        %v604 = vpack.c.b16 %v588, %v588
        %v605 = vpack.c.b16 %v589, %v589
        %v606 = vpack.c.b16 %v590, %v590
        %v607 = vpack.c.b16 %v591, %v591
        %v608 = vpack.c.b16 %v592, %v592
        %v609 = vpack.c.b16 %v593, %v593
        %v610 = vpack.c.b16 %v594, %v594
        %v611 = vpack.c.b16 %v595, %v595
        %v612 = vpack.c.b16 %v596, %v596
        %v613 = vpack.c.b16 %v597, %v597
        %v614 = vpack.c.b16 %v598, %v598
        %vm631 = vcmask 257024
        %632 = vst.msk [vmem:[#allocation2] sm:$0xf] %vm631, %v599
        %vm633 = vcmask 253952
        %634 = vst.msk [vmem:[#allocation2 + $0x4] sm:$0x1] %vm633, %v600
        %635 = vst.msk [vmem:[#allocation2 + $0x8] sm:$0xf] %vm631, %v599
        %636 = vst.msk [vmem:[#allocation2 + $0xc] sm:$0x1] %vm633, %v600
        %637 = vst.msk [vmem:[#allocation2 + $0x10] sm:$0xf] %vm631, %v601
        %638 = vst.msk [vmem:[#allocation2 + $0x14] sm:$0x1] %vm633, %v602
        %639 = vst.msk [vmem:[#allocation2 + $0x18] sm:$0xf] %vm631, %v603
        %640 = vst.msk [vmem:[#allocation2 + $0x1c] sm:$0x1] %vm633, %v604
        %641 = vst.msk [vmem:[#allocation2 + $0x20] sm:$0xf] %vm631, %v605
        %642 = vst.msk [vmem:[#allocation2 + $0x24] sm:$0x1] %vm633, %v606
        %643 = vst.msk [vmem:[#allocation2 + $0x28] sm:$0xf] %vm631, %v607
        %644 = vst.msk [vmem:[#allocation2 + $0x2c] sm:$0x1] %vm633, %v608
        %645 = vst.msk [vmem:[#allocation2 + $0x30] sm:$0xf] %vm631, %v609
        %646 = vst.msk [vmem:[#allocation2 + $0x34] sm:$0x1] %vm633, %v610
        %647 = vst.msk [vmem:[#allocation2 + $0x38] sm:$0xf] %vm631, %v611
        %648 = vst.msk [vmem:[#allocation2 + $0x3c] sm:$0x1] %vm633, %v612
        %649 = vst.msk [vmem:[#allocation2 + $0x40] sm:$0xf] %vm631, %v613
        %650 = vst.msk [vmem:[#allocation2 + $0x44] sm:$0x1] %vm633, %v614
        %651 = vst.msk [vmem:[#allocation2 + $0x48] sm:$0xf] %vm631, %v613
        %652 = vst.msk [vmem:[#allocation2 + $0x4c] sm:$0x1] %vm633, %v614
      $region44: #{resnet_block_causal3d.4} parent=39 // pred_fallthru
        _
      %p653 = scmp.eq.s32.totalorder %s570, 1
      // Predicated region
      $region45: #{resnet_block_causal3d.4} parent=39 // pred_check
        %p654 = pneg %p653
      $region46: #{resnet_block_causal3d.4} parent=39 // pred_check_branch
        %656 = sbr.rel (%p654) target = $region48
      $region47: #{resnet_block_causal3d.4} parent=39 // pred_region
        %v665 = vunpack.c.l.b16 %v550
        %v666 = vunpack.c.h.b16 %v550
        %v667 = vunpack.c.l.b16 %v551
        %v668 = vunpack.c.h.b16 %v551
        %v669 = vunpack.c.l.b16 %v552
        %v670 = vunpack.c.h.b16 %v552
        %v671 = vunpack.c.l.b16 %v553
        %v672 = vunpack.c.h.b16 %v553
        %v673 = vunpack.c.l.b16 %v554
        %v674 = vunpack.c.h.b16 %v554
        %v675 = vunpack.c.l.b16 %v555
        %v676 = vunpack.c.h.b16 %v555
        %v677 = vunpack.c.l.b16 %v556
        %v678 = vunpack.c.h.b16 %v556
        %v679 = vunpack.c.l.b16 %v557
        %v680 = vunpack.c.h.b16 %v557
        %v681 = vpack.c.b16 %v665, %v665
        %v682 = vpack.c.b16 %v666, %v666
        %v683 = vpack.c.b16 %v667, %v667
        %v684 = vpack.c.b16 %v668, %v668
        %v685 = vpack.c.b16 %v669, %v669
        %v686 = vpack.c.b16 %v670, %v670
        %v687 = vpack.c.b16 %v671, %v671
        %v688 = vpack.c.b16 %v672, %v672
        %v689 = vpack.c.b16 %v673, %v673
        %v690 = vpack.c.b16 %v674, %v674
        %v691 = vpack.c.b16 %v675, %v675
        %v692 = vpack.c.b16 %v676, %v676
        %v693 = vpack.c.b16 %v677, %v677
        %v694 = vpack.c.b16 %v678, %v678
        %v695 = vpack.c.b16 %v679, %v679
        %v696 = vpack.c.b16 %v680, %v680
        %s713 = scalar_lea.vmem [#allocation2], 80
        %vm714 = vcmask 257024
        %715 = vst.msk [vmem:[%s713] sm:$0xf] %vm714, %v681
        %vm716 = vcmask 253952
        %717 = vst.msk [vmem:[%s713 + $0x4] sm:$0x1] %vm716, %v682
        %718 = vst.msk [vmem:[%s713 + $0x8] sm:$0xf] %vm714, %v681
        %719 = vst.msk [vmem:[%s713 + $0xc] sm:$0x1] %vm716, %v682
        %720 = vst.msk [vmem:[%s713 + $0x10] sm:$0xf] %vm714, %v683
        %721 = vst.msk [vmem:[%s713 + $0x14] sm:$0x1] %vm716, %v684
        %722 = vst.msk [vmem:[%s713 + $0x18] sm:$0xf] %vm714, %v685
        %723 = vst.msk [vmem:[%s713 + $0x1c] sm:$0x1] %vm716, %v686
        %724 = vst.msk [vmem:[%s713 + $0x20] sm:$0xf] %vm714, %v687
        %725 = vst.msk [vmem:[%s713 + $0x24] sm:$0x1] %vm716, %v688
        %726 = vst.msk [vmem:[%s713 + $0x28] sm:$0xf] %vm714, %v689
        %727 = vst.msk [vmem:[%s713 + $0x2c] sm:$0x1] %vm716, %v690
        %728 = vst.msk [vmem:[%s713 + $0x30] sm:$0xf] %vm714, %v691
        %729 = vst.msk [vmem:[%s713 + $0x34] sm:$0x1] %vm716, %v692
        %730 = vst.msk [vmem:[%s713 + $0x38] sm:$0xf] %vm714, %v693
        %731 = vst.msk [vmem:[%s713 + $0x3c] sm:$0x1] %vm716, %v694
        %732 = vst.msk [vmem:[%s713 + $0x40] sm:$0xf] %vm714, %v695
        %733 = vst.msk [vmem:[%s713 + $0x44] sm:$0x1] %vm716, %v696
        %734 = vst.msk [vmem:[%s713 + $0x48] sm:$0xf] %vm714, %v695
        %735 = vst.msk [vmem:[%s713 + $0x4c] sm:$0x1] %vm716, %v696
      $region48: #{resnet_block_causal3d.4} parent=39 // pred_fallthru
        _
      %p736 = scmp.eq.s32.totalorder %s570, 2
      // Predicated region
      $region49: #{resnet_block_causal3d.4} parent=39 // pred_check
        %p737 = pneg %p736
      $region50: #{resnet_block_causal3d.4} parent=39 // pred_check_branch
        %739 = sbr.rel (%p737) target = $region52
      $region51: #{resnet_block_causal3d.4} parent=39 // pred_region
        %v748 = vunpack.c.l.b16 %v550
        %v749 = vunpack.c.h.b16 %v550
        %v750 = vunpack.c.l.b16 %v551
        %v751 = vunpack.c.h.b16 %v551
        %v752 = vunpack.c.l.b16 %v552
        %v753 = vunpack.c.h.b16 %v552
        %v754 = vunpack.c.l.b16 %v553
        %v755 = vunpack.c.h.b16 %v553
        %v756 = vunpack.c.l.b16 %v554
        %v757 = vunpack.c.h.b16 %v554
        %v758 = vunpack.c.l.b16 %v555
        %v759 = vunpack.c.h.b16 %v555
        %v760 = vunpack.c.l.b16 %v556
        %v761 = vunpack.c.h.b16 %v556
        %v762 = vunpack.c.l.b16 %v557
        %v763 = vunpack.c.h.b16 %v557
        %v764 = vpack.c.b16 %v748, %v748
        %v765 = vpack.c.b16 %v749, %v749
        %v766 = vpack.c.b16 %v750, %v750
        %v767 = vpack.c.b16 %v751, %v751
        %v768 = vpack.c.b16 %v752, %v752
        %v769 = vpack.c.b16 %v753, %v753
        %v770 = vpack.c.b16 %v754, %v754
        %v771 = vpack.c.b16 %v755, %v755
        %v772 = vpack.c.b16 %v756, %v756
        %v773 = vpack.c.b16 %v757, %v757
        %v774 = vpack.c.b16 %v758, %v758
        %v775 = vpack.c.b16 %v759, %v759
        %v776 = vpack.c.b16 %v760, %v760
        %v777 = vpack.c.b16 %v761, %v761
        %v778 = vpack.c.b16 %v762, %v762
        %v779 = vpack.c.b16 %v763, %v763
        %s796 = scalar_lea.vmem [#allocation2], 160
        %vm797 = vcmask 257024
        %798 = vst.msk [vmem:[%s796] sm:$0xf] %vm797, %v764
        %vm799 = vcmask 253952
        %800 = vst.msk [vmem:[%s796 + $0x4] sm:$0x1] %vm799, %v765
        %801 = vst.msk [vmem:[%s796 + $0x8] sm:$0xf] %vm797, %v764
        %802 = vst.msk [vmem:[%s796 + $0xc] sm:$0x1] %vm799, %v765
        %803 = vst.msk [vmem:[%s796 + $0x10] sm:$0xf] %vm797, %v766
        %804 = vst.msk [vmem:[%s796 + $0x14] sm:$0x1] %vm799, %v767
        %805 = vst.msk [vmem:[%s796 + $0x18] sm:$0xf] %vm797, %v768
        %806 = vst.msk [vmem:[%s796 + $0x1c] sm:$0x1] %vm799, %v769
        %807 = vst.msk [vmem:[%s796 + $0x20] sm:$0xf] %vm797, %v770
        %808 = vst.msk [vmem:[%s796 + $0x24] sm:$0x1] %vm799, %v771
        %809 = vst.msk [vmem:[%s796 + $0x28] sm:$0xf] %vm797, %v772
        %810 = vst.msk [vmem:[%s796 + $0x2c] sm:$0x1] %vm799, %v773
        %811 = vst.msk [vmem:[%s796 + $0x30] sm:$0xf] %vm797, %v774
        %812 = vst.msk [vmem:[%s796 + $0x34] sm:$0x1] %vm799, %v775
        %813 = vst.msk [vmem:[%s796 + $0x38] sm:$0xf] %vm797, %v776
        %814 = vst.msk [vmem:[%s796 + $0x3c] sm:$0x1] %vm799, %v777
        %815 = vst.msk [vmem:[%s796 + $0x40] sm:$0xf] %vm797, %v778
        %816 = vst.msk [vmem:[%s796 + $0x44] sm:$0x1] %vm799, %v779
        %817 = vst.msk [vmem:[%s796 + $0x48] sm:$0xf] %vm797, %v778
        %818 = vst.msk [vmem:[%s796 + $0x4c] sm:$0x1] %vm799, %v779
      $region52: #{resnet_block_causal3d.4} parent=39 // pred_fallthru
        _
      %s819 = sadd.s32 %s23, 4294967294
      %p820 = scmp.gt.s32.totalorder %s819, 0
      %s821 = scalar_select %p820, %s819, 0
      %p822 = scmp.lt.s32.totalorder %s821, 0
      %s823 = ssub.s32 0, %s821
      %s824 = scalar_select %p822, %s823, %s821
      %s825 = sdiv.u32.pop %s824, 3
      %s826 = srem.u32.pop %s824, 3
      %s827 = ssub.s32 0, %s826
      %s828 = scalar_select %p822, %s827, %s826
      %p829 = scmp.ne.s32.totalorder %s828, 0
      %p830 = scmp.lt.s32.totalorder %s828, 0
      %p831 = pnand %p830, %p829
      %p832 = pneg %p831
      %s833 = sadd.s32 %s828, 3
      %s834 = scalar_select %p832, %s833, %s828
      %s835 = smul.u32 %s834, 20
      %s836 = smul.addr %s835, 4
      %s837 = scalar_lea.vmem [#allocation2], %s836
      %v838 = vld [vmem:[%s837] sm:$0xf]
      %v839 = vld [vmem:[%s837 + $0x4] sm:$0x1]
      %v840 = vld [vmem:[%s837 + $0x8] sm:$0xf]
      %v841 = vld [vmem:[%s837 + $0xc] sm:$0x1]
      %v842 = vld [vmem:[%s837 + $0x10] sm:$0xf]
      %v843 = vld [vmem:[%s837 + $0x14] sm:$0x1]
      %v844 = vld [vmem:[%s837 + $0x18] sm:$0xf]
      %v845 = vld [vmem:[%s837 + $0x1c] sm:$0x1]
      %v846 = vld [vmem:[%s837 + $0x20] sm:$0xf]
      %v847 = vld [vmem:[%s837 + $0x24] sm:$0x1]
      %v848 = vld [vmem:[%s837 + $0x28] sm:$0xf]
      %v849 = vld [vmem:[%s837 + $0x2c] sm:$0x1]
      %v850 = vld [vmem:[%s837 + $0x30] sm:$0xf]
      %v851 = vld [vmem:[%s837 + $0x34] sm:$0x1]
      %v852 = vld [vmem:[%s837 + $0x38] sm:$0xf]
      %v853 = vld [vmem:[%s837 + $0x3c] sm:$0x1]
      %v854 = vld [vmem:[%s837 + $0x40] sm:$0xf]
      %v855 = vld [vmem:[%s837 + $0x44] sm:$0x1]
      %v856 = vld [vmem:[%s837 + $0x48] sm:$0xf]
      %v857 = vld [vmem:[%s837 + $0x4c] sm:$0x1]
      %v866 = vunpack.c.l.b16 %v840
      %v867 = vunpack.c.l.b16 %v842
      %v868 = vunpack.c.l.b16 %v844
      %v869 = vunpack.c.l.b16 %v846
      %v870 = vunpack.c.l.b16 %v848
      %v871 = vunpack.c.l.b16 %v850
      %v872 = vunpack.c.l.b16 %v852
      %v873 = vunpack.c.l.b16 %v854
      %v874 = vpack.c.b16 %v866, %v866
      %v875 = vpack.c.b16 %v867, %v867
      %v876 = vpack.c.b16 %v868, %v868
      %v877 = vpack.c.b16 %v869, %v869
      %v878 = vpack.c.b16 %v870, %v870
      %v879 = vpack.c.b16 %v871, %v871
      %v880 = vpack.c.b16 %v872, %v872
      %v881 = vpack.c.b16 %v873, %v873
      %882 = vrot.lane.b32.xlu0 %v874, 32
      %v883 = vpop.permute.xlu0 %882
      %884 = vrot.lane.b32.xlu0 %v875, 32
      %v885 = vpop.permute.xlu0 %884
      %886 = vrot.lane.b32.xlu0 %v876, 32
      %v887 = vpop.permute.xlu0 %886
      %888 = vrot.lane.b32.xlu0 %v877, 32
      %v889 = vpop.permute.xlu0 %888
      %890 = vrot.lane.b32.xlu0 %v878, 32
      %v891 = vpop.permute.xlu0 %890
      %892 = vrot.lane.b32.xlu0 %v879, 32
      %v893 = vpop.permute.xlu0 %892
      %894 = vrot.lane.b32.xlu0 %v880, 32
      %v895 = vpop.permute.xlu0 %894
      %896 = vrot.lane.b32.xlu0 %v881, 32
      %v897 = vpop.permute.xlu0 %896
      %v899 = vunpack.c.l.b16 %v856
      %v900 = vpack.c.b16 %v899, %v899
      %901 = vrot.lane.b32.xlu0 %v875, 64
      %v902 = vpop.permute.xlu0 %901
      %903 = vrot.lane.b32.xlu0 %v876, 64
      %v904 = vpop.permute.xlu0 %903
      %905 = vrot.lane.b32.xlu0 %v877, 64
      %v906 = vpop.permute.xlu0 %905
      %907 = vrot.lane.b32.xlu0 %v878, 64
      %v908 = vpop.permute.xlu0 %907
      %909 = vrot.lane.b32.xlu0 %v879, 64
      %v910 = vpop.permute.xlu0 %909
      %911 = vrot.lane.b32.xlu0 %v880, 64
      %v912 = vpop.permute.xlu0 %911
      %913 = vrot.lane.b32.xlu0 %v881, 64
      %v914 = vpop.permute.xlu0 %913
      %915 = vrot.lane.b32.xlu0 %v900, 64
      %v916 = vpop.permute.xlu0 %915
      %vm917 = vcmask 261120
      %v920 = vsel %vm917, %v838, %v883
      %v923 = vsel %vm917, %v840, %v885
      %v926 = vsel %vm917, %v842, %v887
      %v929 = vsel %vm917, %v844, %v889
      %v932 = vsel %vm917, %v846, %v891
      %v935 = vsel %vm917, %v848, %v893
      %v938 = vsel %vm917, %v850, %v895
      %v941 = vsel %vm917, %v852, %v897
      %vm942 = vcmask 523264
      %v944 = vsel %vm942, %v920, %v902
      %v946 = vsel %vm942, %v923, %v904
      %v948 = vsel %vm942, %v926, %v906
      %v950 = vsel %vm942, %v929, %v908
      %v952 = vsel %vm942, %v932, %v910
      %v954 = vsel %vm942, %v935, %v912
      %v956 = vsel %vm942, %v938, %v914
      %v958 = vsel %vm942, %v941, %v916
      %v959 = vld [vmem:[%s3] sm:$0xf]
      %v960 = vld [vmem:[%s3 + $0x4] sm:$0xf]
      %v961 = vld [vmem:[%s3 + $0x8] sm:$0xf]
      %v962 = vld [vmem:[%s3 + $0xc] sm:$0xf]
      %v963 = vld [vmem:[%s3 + $0x10] sm:$0xf]
      %v964 = vld [vmem:[%s3 + $0x14] sm:$0xf]
      %v965 = vld [vmem:[%s3 + $0x18] sm:$0xf]
      %v966 = vld [vmem:[%s3 + $0x1c] sm:$0xf]
      %v967 = vld [vmem:[%s3 + $0x20] sm:$0xf]
      %v968 = vld [vmem:[%s3 + $0x24] sm:$0xf]
      %v969 = vld [vmem:[%s3 + $0x28] sm:$0xf]
      %v970 = vld [vmem:[%s3 + $0x2c] sm:$0xf]
      %v980 = vunpack.c.l.b16 %v838
      %v981 = vunpack.c.l.b16 %v839
      %v982 = vunpack.c.l.b16 %v841
      %v983 = vunpack.c.l.b16 %v843
      %v984 = vunpack.c.l.b16 %v845
      %v985 = vunpack.c.l.b16 %v847
      %v986 = vunpack.c.l.b16 %v849
      %v987 = vunpack.c.l.b16 %v851
      %v988 = vunpack.c.l.b16 %v853
      %v989 = vpack.c.b16 %v981, %v980
      %v990 = vpack.c.b16 %v982, %v866
      %v991 = vpack.c.b16 %v983, %v867
      %v992 = vpack.c.b16 %v984, %v868
      %v993 = vpack.c.b16 %v985, %v869
      %v994 = vpack.c.b16 %v986, %v870
      %v995 = vpack.c.b16 %v987, %v871
      %v996 = vpack.c.b16 %v988, %v872
      %v998 = vunpack.c.l.b16 %v855
      %v999 = vpack.c.b16 %v998, %v873
      %1000 = vrot.lane.b32.xlu0 %v990, 32
      %v1001 = vpop.permute.xlu0 %1000
      %1002 = vrot.lane.b32.xlu0 %v991, 32
      %v1003 = vpop.permute.xlu0 %1002
      %1004 = vrot.lane.b32.xlu0 %v992, 32
      %v1005 = vpop.permute.xlu0 %1004
      %1006 = vrot.lane.b32.xlu0 %v993, 32
      %v1007 = vpop.permute.xlu0 %1006
      %1008 = vrot.lane.b32.xlu0 %v994, 32
      %v1009 = vpop.permute.xlu0 %1008
      %1010 = vrot.lane.b32.xlu0 %v995, 32
      %v1011 = vpop.permute.xlu0 %1010
      %1012 = vrot.lane.b32.xlu0 %v996, 32
      %v1013 = vpop.permute.xlu0 %1012
      %1014 = vrot.lane.b32.xlu0 %v999, 32
      %v1015 = vpop.permute.xlu0 %1014
      %v1017 = vunpack.c.l.b16 %v857
      %v1018 = vpack.c.b16 %v1017, %v899
      %1019 = vrot.lane.b32.xlu0 %v991, 64
      %v1020 = vpop.permute.xlu0 %1019
      %1021 = vrot.lane.b32.xlu0 %v992, 64
      %v1022 = vpop.permute.xlu0 %1021
      %1023 = vrot.lane.b32.xlu0 %v993, 64
      %v1024 = vpop.permute.xlu0 %1023
      %1025 = vrot.lane.b32.xlu0 %v994, 64
      %v1026 = vpop.permute.xlu0 %1025
      %1027 = vrot.lane.b32.xlu0 %v995, 64
      %v1028 = vpop.permute.xlu0 %1027
      %1029 = vrot.lane.b32.xlu0 %v996, 64
      %v1030 = vpop.permute.xlu0 %1029
      %1031 = vrot.lane.b32.xlu0 %v999, 64
      %v1032 = vpop.permute.xlu0 %1031
      %1033 = vrot.lane.b32.xlu0 %v1018, 64
      %v1034 = vpop.permute.xlu0 %1033
      %v1037 = vsel %vm917, %v989, %v1001
      %v1040 = vsel %vm917, %v990, %v1003
      %v1043 = vsel %vm917, %v991, %v1005
      %v1046 = vsel %vm917, %v992, %v1007
      %v1049 = vsel %vm917, %v993, %v1009
      %v1052 = vsel %vm917, %v994, %v1011
      %v1055 = vsel %vm917, %v995, %v1013
      %v1058 = vsel %vm917, %v996, %v1015
      %v1060 = vsel %vm942, %v1037, %v1020
      %v1062 = vsel %vm942, %v1040, %v1022
      %v1064 = vsel %vm942, %v1043, %v1024
      %v1066 = vsel %vm942, %v1046, %v1026
      %v1068 = vsel %vm942, %v1049, %v1028
      %v1070 = vsel %vm942, %v1052, %v1030
      %v1072 = vsel %vm942, %v1055, %v1032
      %v1074 = vsel %vm942, %v1058, %v1034
      %v1083 = vunpack.c.l.b16 %v1060
      %v1084 = vunpack.c.h.b16 %v1060
      %v1085 = vunpack.c.l.b16 %v1062
      %v1086 = vunpack.c.h.b16 %v1062
      %v1087 = vunpack.c.l.b16 %v1064
      %v1088 = vunpack.c.h.b16 %v1064
      %v1089 = vunpack.c.l.b16 %v1066
      %v1090 = vunpack.c.h.b16 %v1066
      %v1091 = vunpack.c.l.b16 %v1068
      %v1092 = vunpack.c.h.b16 %v1068
      %v1093 = vunpack.c.l.b16 %v1070
      %v1094 = vunpack.c.h.b16 %v1070
      %v1095 = vunpack.c.l.b16 %v1072
      %v1096 = vunpack.c.h.b16 %v1072
      %v1097 = vunpack.c.l.b16 %v1074
      %v1098 = vunpack.c.h.b16 %v1074
      %v1099 = vpack.c.b16 %v1083, %v1083
      %v1100 = vpack.c.b16 %v1084, %v1084
      %v1101 = vpack.c.b16 %v1085, %v1085
      %v1102 = vpack.c.b16 %v1086, %v1086
      %v1103 = vpack.c.b16 %v1087, %v1087
      %v1104 = vpack.c.b16 %v1088, %v1088
      %v1105 = vpack.c.b16 %v1089, %v1089
      %v1106 = vpack.c.b16 %v1090, %v1090
      %v1107 = vpack.c.b16 %v1091, %v1091
      %v1108 = vpack.c.b16 %v1092, %v1092
      %v1109 = vpack.c.b16 %v1093, %v1093
      %v1110 = vpack.c.b16 %v1094, %v1094
      %v1111 = vpack.c.b16 %v1095, %v1095
      %v1112 = vpack.c.b16 %v1096, %v1096
      %v1113 = vpack.c.b16 %v1097, %v1097
      %v1114 = vpack.c.b16 %v1098, %v1098
      %vm1115 = vsmask.f32 3328
      %vm1116 = vsmask.f32 7440
      %vm1117 = vmor %vm1115, %vm1116
      %v1119 = vshrl.u32 %v1099, 16
      %v1121 = vrot.slane %v1119, 4
      %v1122 = vshll.u32 %v1099, 16
      %v1124 = vrot.slane %v1122, 5
      %v1125 = vor.u32 %v1121, %v1124
      %v1126 = vrot.slane %v1125, 4
      %v1128 = vshll.u32 %v1100, 16
      %v1130 = vrot.slane %v1128, 5
      %v1131 = vsel %vm1117, %v1126, %v1130
      %v1133 = vshrl.u32 %v1101, 16
      %v1135 = vrot.slane %v1133, 4
      %v1136 = vshll.u32 %v1101, 16
      %v1138 = vrot.slane %v1136, 5
      %v1139 = vor.u32 %v1135, %v1138
      %v1140 = vrot.slane %v1139, 4
      %v1142 = vshll.u32 %v1102, 16
      %v1144 = vrot.slane %v1142, 5
      %v1145 = vsel %vm1117, %v1140, %v1144
      %v1147 = vshrl.u32 %v1103, 16
      %v1149 = vrot.slane %v1147, 4
      %v1150 = vshll.u32 %v1103, 16
      %v1152 = vrot.slane %v1150, 5
      %v1153 = vor.u32 %v1149, %v1152
      %v1154 = vrot.slane %v1153, 4
      %v1156 = vshll.u32 %v1104, 16
      %v1158 = vrot.slane %v1156, 5
      %v1159 = vsel %vm1117, %v1154, %v1158
      %v1161 = vshrl.u32 %v1105, 16
      %v1163 = vrot.slane %v1161, 4
      %v1164 = vshll.u32 %v1105, 16
      %v1166 = vrot.slane %v1164, 5
      %v1167 = vor.u32 %v1163, %v1166
      %v1168 = vrot.slane %v1167, 4
      %v1170 = vshll.u32 %v1106, 16
      %v1172 = vrot.slane %v1170, 5
      %v1173 = vsel %vm1117, %v1168, %v1172
      %v1175 = vshrl.u32 %v1107, 16
      %v1177 = vrot.slane %v1175, 4
      %v1178 = vshll.u32 %v1107, 16
      %v1180 = vrot.slane %v1178, 5
      %v1181 = vor.u32 %v1177, %v1180
      %v1182 = vrot.slane %v1181, 4
      %v1184 = vshll.u32 %v1108, 16
      %v1186 = vrot.slane %v1184, 5
      %v1187 = vsel %vm1117, %v1182, %v1186
      %v1189 = vshrl.u32 %v1109, 16
      %v1191 = vrot.slane %v1189, 4
      %v1192 = vshll.u32 %v1109, 16
      %v1194 = vrot.slane %v1192, 5
      %v1195 = vor.u32 %v1191, %v1194
      %v1196 = vrot.slane %v1195, 4
      %v1198 = vshll.u32 %v1110, 16
      %v1200 = vrot.slane %v1198, 5
      %v1201 = vsel %vm1117, %v1196, %v1200
      %v1203 = vshrl.u32 %v1111, 16
      %v1205 = vrot.slane %v1203, 4
      %v1206 = vshll.u32 %v1111, 16
      %v1208 = vrot.slane %v1206, 5
      %v1209 = vor.u32 %v1205, %v1208
      %v1210 = vrot.slane %v1209, 4
      %v1212 = vshll.u32 %v1112, 16
      %v1214 = vrot.slane %v1212, 5
      %v1215 = vsel %vm1117, %v1210, %v1214
      %v1217 = vshrl.u32 %v1113, 16
      %v1219 = vrot.slane %v1217, 4
      %v1220 = vshll.u32 %v1113, 16
      %v1222 = vrot.slane %v1220, 5
      %v1223 = vor.u32 %v1219, %v1222
      %v1224 = vrot.slane %v1223, 4
      %v1226 = vshll.u32 %v1114, 16
      %v1228 = vrot.slane %v1226, 5
      %v1229 = vsel %vm1117, %v1224, %v1228
      %s1230 = scalar_lea.vmem %s3, 48
      %v1231 = vld [vmem:[%s1230] sm:$0xf]
      %v1232 = vld [vmem:[%s1230 + $0x4] sm:$0xf]
      %v1233 = vld [vmem:[%s1230 + $0x8] sm:$0xf]
      %v1234 = vld [vmem:[%s1230 + $0xc] sm:$0xf]
      %v1235 = vld [vmem:[%s1230 + $0x10] sm:$0xf]
      %v1236 = vld [vmem:[%s1230 + $0x14] sm:$0xf]
      %v1237 = vld [vmem:[%s1230 + $0x18] sm:$0xf]
      %v1238 = vld [vmem:[%s1230 + $0x1c] sm:$0xf]
      %v1239 = vld [vmem:[%s1230 + $0x20] sm:$0xf]
      %v1240 = vld [vmem:[%s1230 + $0x24] sm:$0xf]
      %v1241 = vld [vmem:[%s1230 + $0x28] sm:$0xf]
      %v1242 = vld [vmem:[%s1230 + $0x2c] sm:$0xf]
      %v1243 = vunpack.c.l.b16 %v1131
      %v1244 = vunpack.c.l.b16 %v1145
      %v1245 = vunpack.c.l.b16 %v1159
      %v1246 = vunpack.c.l.b16 %v1173
      %v1247 = vunpack.c.l.b16 %v1187
      %v1248 = vunpack.c.l.b16 %v1201
      %v1249 = vunpack.c.l.b16 %v1215
      %v1250 = vunpack.c.l.b16 %v1229
      %v1251 = vpack.c.b16 %v1244, %v1243
      %v1252 = vpack.c.b16 %v1246, %v1245
      %v1253 = vpack.c.b16 %v1248, %v1247
      %v1254 = vpack.c.b16 %v1250, %v1249
      %v1267 = vunpack.c.l.b16 %v1231
      %v1268 = vunpack.c.l.b16 %v1232
      %v1269 = vunpack.c.l.b16 %v1233
      %v1270 = vunpack.c.l.b16 %v1234
      %v1271 = vunpack.c.l.b16 %v1235
      %v1272 = vunpack.c.l.b16 %v1236
      %v1273 = vunpack.c.l.b16 %v1237
      %v1274 = vunpack.c.l.b16 %v1238
      %v1275 = vunpack.c.l.b16 %v1239
      %v1276 = vunpack.c.l.b16 %v1240
      %v1277 = vunpack.c.l.b16 %v1241
      %v1278 = vunpack.c.l.b16 %v1242
      %v1279 = vpack.c.b16 %v1268, %v1267
      %v1280 = vpack.c.b16 %v1270, %v1269
      %v1281 = vpack.c.b16 %v1272, %v1271
      %v1282 = vpack.c.b16 %v1274, %v1273
      %v1283 = vpack.c.b16 %v1276, %v1275
      %v1284 = vpack.c.b16 %v1278, %v1277
      %vm1291 = vcmask 785408
      %v1293 = vsel %vm1291, %v1251, 0
      %v1296 = vsel %vm1291, %v1252, 0
      %v1299 = vsel %vm1291, %v1253, 0
      %v1302 = vsel %vm1291, %v1254, 0
      %1304 = vmatprep.subr.bf16.mxu0 0
      %1305 = vmatpush1.bf16.msra.mxu0 0
      %1306 = vmatprep.subr.bf16.mxu0 0
      %1307 = vmatpush1.bf16.msra.mxu0 0
      %1308 = vmatprep.subr.bf16.mxu0 0
      %1309 = vmatpush1.bf16.msra.mxu0 %v1284
      %1310 = vmatprep.subr.bf16.mxu0 0
      %1311 = vmatpush1.bf16.msra.mxu0 %v1283
      %1312 = vmatprep.subr.bf16.mxu0 0
      %1313 = vmatpush1.bf16.msra.mxu0 %v1282
      %1314 = vmatprep.subr.bf16.mxu0 0
      %1315 = vmatpush1.bf16.msra.mxu0 %v1281
      %1316 = vmatprep.subr.bf16.mxu0 0
      %1317 = vmatpush1.bf16.msra.mxu0 %v1280
      %1318 = vmatprep.subr.bf16.mxu0 0
      %1319 = vmatpush1.bf16.msra.mxu0 %v1279
      %1320 = vmatprep.subr.bf16.mxu0 0
      %1321 = vmatpush2.bf16.msra.mxu0 0
      %1322 = vmatprep.subr.bf16.mxu0 0
      %1323 = vmatpush2.bf16.msra.mxu0 0
      %1324 = vmatprep.subr.bf16.mxu0 0
      %1325 = vmatpush2.bf16.msra.mxu0 0
      %1326 = vmatprep.subr.bf16.mxu0 0
      %1327 = vmatpush2.bf16.msra.mxu0 0
      %1328 = vmatprep.subr.bf16.mxu0 0
      %1329 = vmatpush2.bf16.msra.mxu0 0
      %1330 = vmatprep.subr.bf16.mxu0 0
      %1331 = vmatpush2.bf16.msra.mxu0 0
      %1332 = vmatprep.subr.bf16.mxu0 0
      %1333 = vmatpush2.bf16.msra.mxu0 0
      %1334 = vmatprep.subr.bf16.mxu0 0
      %1335 = vmatpush2.bf16.msra.mxu0 0
      %1336 = vmatprep.mubr.bf16.mxu0 0
      %1337 = vmatmul.mubr.bf16.gmra.mxu0 %v1293
      %v1338 = vpop.f32.mrf.mxu0
      %v1339 = vadd.f32 0.0, %v1338
      %v1340 = vpop.f32.mrf.mxu0
      %v1341 = vpop.f32.mrf.mxu0
      %v1342 = vadd.f32 0.0, %v1341
      %v1343 = vpop.f32.mrf.mxu0
      %1344 = vmatprep.mubr.bf16.mxu0 0
      %1345 = vmatmul.mubr.bf16.gmra.mxu0 %v1296
      %v1346 = vpop.f32.mrf.mxu0
      %v1347 = vadd.f32 0.0, %v1346
      %v1348 = vpop.f32.mrf.mxu0
      %v1349 = vpop.f32.mrf.mxu0
      %v1350 = vadd.f32 0.0, %v1349
      %v1351 = vpop.f32.mrf.mxu0
      %1352 = vmatprep.mubr.bf16.mxu0 0
      %1353 = vmatmul.mubr.bf16.gmra.mxu0 %v1299
      %v1354 = vpop.f32.mrf.mxu0
      %v1355 = vadd.f32 0.0, %v1354
      %v1356 = vpop.f32.mrf.mxu0
      %v1357 = vpop.f32.mrf.mxu0
      %v1358 = vadd.f32 0.0, %v1357
      %v1359 = vpop.f32.mrf.mxu0
      %1360 = vmatprep.mubr.bf16.mxu0 0
      %1361 = vmatmul.mubr.bf16.gmra.mxu0 %v1302
      %v1362 = vpop.f32.mrf.mxu0
      %v1363 = vadd.f32 0.0, %v1362
      %v1364 = vpop.f32.mrf.mxu0
      %v1365 = vpop.f32.mrf.mxu0
      %v1366 = vadd.f32 0.0, %v1365
      %v1367 = vpop.f32.mrf.mxu0
      %1368 = vdwg.mxu0
      %v1377 = vunpack.c.l.b16 %v944
      %v1378 = vunpack.c.l.b16 %v946
      %v1379 = vunpack.c.l.b16 %v948
      %v1380 = vunpack.c.l.b16 %v950
      %v1381 = vunpack.c.l.b16 %v952
      %v1382 = vunpack.c.l.b16 %v954
      %v1383 = vunpack.c.l.b16 %v956
      %v1384 = vunpack.c.l.b16 %v958
      %v1385 = vpack.c.b16 %v1378, %v1377
      %v1386 = vpack.c.b16 %v1380, %v1379
      %v1387 = vpack.c.b16 %v1382, %v1381
      %v1388 = vpack.c.b16 %v1384, %v1383
      %v1401 = vunpack.c.l.b16 %v959
      %v1402 = vunpack.c.l.b16 %v960
      %v1403 = vunpack.c.l.b16 %v961
      %v1404 = vunpack.c.l.b16 %v962
      %v1405 = vunpack.c.l.b16 %v963
      %v1406 = vunpack.c.l.b16 %v964
      %v1407 = vunpack.c.l.b16 %v965
      %v1408 = vunpack.c.l.b16 %v966
      %v1409 = vunpack.c.l.b16 %v967
      %v1410 = vunpack.c.l.b16 %v968
      %v1411 = vunpack.c.l.b16 %v969
      %v1412 = vunpack.c.l.b16 %v970
      %v1413 = vpack.c.b16 %v1402, %v1401
      %v1414 = vpack.c.b16 %v1404, %v1403
      %v1415 = vpack.c.b16 %v1406, %v1405
      %v1416 = vpack.c.b16 %v1408, %v1407
      %v1417 = vpack.c.b16 %v1410, %v1409
      %v1418 = vpack.c.b16 %v1412, %v1411
      %v1426 = vsel %vm1291, %v1385, 0
      %v1429 = vsel %vm1291, %v1386, 0
      %v1432 = vsel %vm1291, %v1387, 0
      %v1435 = vsel %vm1291, %v1388, 0
      %1437 = vmatprep.subr.bf16.mxu0 0
      %1438 = vmatpush1.bf16.msra.mxu0 0
      %1439 = vmatprep.subr.bf16.mxu0 0
      %1440 = vmatpush1.bf16.msra.mxu0 0
      %1441 = vmatprep.subr.bf16.mxu0 0
      %1442 = vmatpush1.bf16.msra.mxu0 %v1418
      %1443 = vmatprep.subr.bf16.mxu0 0
      %1444 = vmatpush1.bf16.msra.mxu0 %v1417
      %1445 = vmatprep.subr.bf16.mxu0 0
      %1446 = vmatpush1.bf16.msra.mxu0 %v1416
      %1447 = vmatprep.subr.bf16.mxu0 0
      %1448 = vmatpush1.bf16.msra.mxu0 %v1415
      %1449 = vmatprep.subr.bf16.mxu0 0
      %1450 = vmatpush1.bf16.msra.mxu0 %v1414
      %1451 = vmatprep.subr.bf16.mxu0 0
      %1452 = vmatpush1.bf16.msra.mxu0 %v1413
      %1453 = vmatprep.subr.bf16.mxu0 0
      %1454 = vmatpush2.bf16.msra.mxu0 0
      %1455 = vmatprep.subr.bf16.mxu0 0
      %1456 = vmatpush2.bf16.msra.mxu0 0
      %1457 = vmatprep.subr.bf16.mxu0 0
      %1458 = vmatpush2.bf16.msra.mxu0 0
      %1459 = vmatprep.subr.bf16.mxu0 0
      %1460 = vmatpush2.bf16.msra.mxu0 0
      %1461 = vmatprep.subr.bf16.mxu0 0
      %1462 = vmatpush2.bf16.msra.mxu0 0
      %1463 = vmatprep.subr.bf16.mxu0 0
      %1464 = vmatpush2.bf16.msra.mxu0 0
      %1465 = vmatprep.subr.bf16.mxu0 0
      %1466 = vmatpush2.bf16.msra.mxu0 0
      %1467 = vmatprep.subr.bf16.mxu0 0
      %1468 = vmatpush2.bf16.msra.mxu0 0
      %1469 = vmatprep.mubr.bf16.mxu0 0
      %1470 = vmatmul.mubr.bf16.gmra.mxu0 %v1426
      %v1471 = vpop.f32.mrf.mxu0
      %v1472 = vadd.f32 %v1339, %v1471
      %v1473 = vpop.f32.mrf.mxu0
      %v1474 = vpop.f32.mrf.mxu0
      %v1475 = vadd.f32 %v1342, %v1474
      %v1476 = vpop.f32.mrf.mxu0
      %1477 = vmatprep.mubr.bf16.mxu0 0
      %1478 = vmatmul.mubr.bf16.gmra.mxu0 %v1429
      %v1479 = vpop.f32.mrf.mxu0
      %v1480 = vadd.f32 %v1347, %v1479
      %v1481 = vpop.f32.mrf.mxu0
      %v1482 = vpop.f32.mrf.mxu0
      %v1483 = vadd.f32 %v1350, %v1482
      %v1484 = vpop.f32.mrf.mxu0
      %1485 = vmatprep.mubr.bf16.mxu0 0
      %1486 = vmatmul.mubr.bf16.gmra.mxu0 %v1432
      %v1487 = vpop.f32.mrf.mxu0
      %v1488 = vadd.f32 %v1355, %v1487
      %v1489 = vpop.f32.mrf.mxu0
      %v1490 = vpop.f32.mrf.mxu0
      %v1491 = vadd.f32 %v1358, %v1490
      %v1492 = vpop.f32.mrf.mxu0
      %1493 = vmatprep.mubr.bf16.mxu0 0
      %1494 = vmatmul.mubr.bf16.gmra.mxu0 %v1435
      %v1495 = vpop.f32.mrf.mxu0
      %v1496 = vadd.f32 %v1363, %v1495
      %v1497 = vpop.f32.mrf.mxu0
      %v1498 = vpop.f32.mrf.mxu0
      %v1499 = vadd.f32 %v1366, %v1498
      %v1500 = vpop.f32.mrf.mxu0
      %1501 = vdwg.mxu0
      %vm1502 = vcmask 1042432
      %vm1503 = vcmask 1046532
      %vm1504 = vmor %vm1502, %vm1503
      %v1505 = vrot.slane %v1099, 5
      %v1506 = vrot.slane %v1505, 4
      %v1507 = vrot.slane %v1100, 5
      %v1508 = vsel %vm1504, %v1506, %v1507
      %v1509 = vrot.slane %v1101, 5
      %v1510 = vrot.slane %v1509, 4
      %v1511 = vrot.slane %v1102, 5
      %v1512 = vsel %vm1504, %v1510, %v1511
      %v1513 = vrot.slane %v1103, 5
      %v1514 = vrot.slane %v1513, 4
      %v1515 = vrot.slane %v1104, 5
      %v1516 = vsel %vm1504, %v1514, %v1515
      %v1517 = vrot.slane %v1105, 5
      %v1518 = vrot.slane %v1517, 4
      %v1519 = vrot.slane %v1106, 5
      %v1520 = vsel %vm1504, %v1518, %v1519
      %v1521 = vrot.slane %v1107, 5
      %v1522 = vrot.slane %v1521, 4
      %v1523 = vrot.slane %v1108, 5
      %v1524 = vsel %vm1504, %v1522, %v1523
      %v1525 = vrot.slane %v1109, 5
      %v1526 = vrot.slane %v1525, 4
      %v1527 = vrot.slane %v1110, 5
      %v1528 = vsel %vm1504, %v1526, %v1527
      %v1529 = vrot.slane %v1111, 5
      %v1530 = vrot.slane %v1529, 4
      %v1531 = vrot.slane %v1112, 5
      %v1532 = vsel %vm1504, %v1530, %v1531
      %v1533 = vrot.slane %v1113, 5
      %v1534 = vrot.slane %v1533, 4
      %v1535 = vrot.slane %v1114, 5
      %v1536 = vsel %vm1504, %v1534, %v1535
      %s1537 = scalar_lea.vmem %s3, 96
      %v1538 = vld [vmem:[%s1537] sm:$0xf]
      %v1539 = vld [vmem:[%s1537 + $0x4] sm:$0xf]
      %v1540 = vld [vmem:[%s1537 + $0x8] sm:$0xf]
      %v1541 = vld [vmem:[%s1537 + $0xc] sm:$0xf]
      %v1542 = vld [vmem:[%s1537 + $0x10] sm:$0xf]
      %v1543 = vld [vmem:[%s1537 + $0x14] sm:$0xf]
      %v1544 = vld [vmem:[%s1537 + $0x18] sm:$0xf]
      %v1545 = vld [vmem:[%s1537 + $0x1c] sm:$0xf]
      %v1546 = vld [vmem:[%s1537 + $0x20] sm:$0xf]
      %v1547 = vld [vmem:[%s1537 + $0x24] sm:$0xf]
      %v1548 = vld [vmem:[%s1537 + $0x28] sm:$0xf]
      %v1549 = vld [vmem:[%s1537 + $0x2c] sm:$0xf]
      %v1550 = vunpack.c.l.b16 %v1508
      %v1551 = vunpack.c.l.b16 %v1512
      %v1552 = vunpack.c.l.b16 %v1516
      %v1553 = vunpack.c.l.b16 %v1520
      %v1554 = vunpack.c.l.b16 %v1524
      %v1555 = vunpack.c.l.b16 %v1528
      %v1556 = vunpack.c.l.b16 %v1532
      %v1557 = vunpack.c.l.b16 %v1536
      %v1558 = vpack.c.b16 %v1551, %v1550
      %v1559 = vpack.c.b16 %v1553, %v1552
      %v1560 = vpack.c.b16 %v1555, %v1554
      %v1561 = vpack.c.b16 %v1557, %v1556
      %v1574 = vunpack.c.l.b16 %v1538
      %v1575 = vunpack.c.l.b16 %v1539
      %v1576 = vunpack.c.l.b16 %v1540
      %v1577 = vunpack.c.l.b16 %v1541
      %v1578 = vunpack.c.l.b16 %v1542
      %v1579 = vunpack.c.l.b16 %v1543
      %v1580 = vunpack.c.l.b16 %v1544
      %v1581 = vunpack.c.l.b16 %v1545
      %v1582 = vunpack.c.l.b16 %v1546
      %v1583 = vunpack.c.l.b16 %v1547
      %v1584 = vunpack.c.l.b16 %v1548
      %v1585 = vunpack.c.l.b16 %v1549
      %v1586 = vpack.c.b16 %v1575, %v1574
      %v1587 = vpack.c.b16 %v1577, %v1576
      %v1588 = vpack.c.b16 %v1579, %v1578
      %v1589 = vpack.c.b16 %v1581, %v1580
      %v1590 = vpack.c.b16 %v1583, %v1582
      %v1591 = vpack.c.b16 %v1585, %v1584
      %v1599 = vsel %vm1291, %v1558, 0
      %v1602 = vsel %vm1291, %v1559, 0
      %v1605 = vsel %vm1291, %v1560, 0
      %v1608 = vsel %vm1291, %v1561, 0
      %1610 = vmatprep.subr.bf16.mxu0 0
      %1611 = vmatpush1.bf16.msra.mxu0 0
      %1612 = vmatprep.subr.bf16.mxu0 0
      %1613 = vmatpush1.bf16.msra.mxu0 0
      %1614 = vmatprep.subr.bf16.mxu0 0
      %1615 = vmatpush1.bf16.msra.mxu0 %v1591
      %1616 = vmatprep.subr.bf16.mxu0 0
      %1617 = vmatpush1.bf16.msra.mxu0 %v1590
      %1618 = vmatprep.subr.bf16.mxu0 0
      %1619 = vmatpush1.bf16.msra.mxu0 %v1589
      %1620 = vmatprep.subr.bf16.mxu0 0
      %1621 = vmatpush1.bf16.msra.mxu0 %v1588
      %1622 = vmatprep.subr.bf16.mxu0 0
      %1623 = vmatpush1.bf16.msra.mxu0 %v1587
      %1624 = vmatprep.subr.bf16.mxu0 0
      %1625 = vmatpush1.bf16.msra.mxu0 %v1586
      %1626 = vmatprep.subr.bf16.mxu0 0
      %1627 = vmatpush2.bf16.msra.mxu0 0
      %1628 = vmatprep.subr.bf16.mxu0 0
      %1629 = vmatpush2.bf16.msra.mxu0 0
      %1630 = vmatprep.subr.bf16.mxu0 0
      %1631 = vmatpush2.bf16.msra.mxu0 0
      %1632 = vmatprep.subr.bf16.mxu0 0
      %1633 = vmatpush2.bf16.msra.mxu0 0
      %1634 = vmatprep.subr.bf16.mxu0 0
      %1635 = vmatpush2.bf16.msra.mxu0 0
      %1636 = vmatprep.subr.bf16.mxu0 0
      %1637 = vmatpush2.bf16.msra.mxu0 0
      %1638 = vmatprep.subr.bf16.mxu0 0
      %1639 = vmatpush2.bf16.msra.mxu0 0
      %1640 = vmatprep.subr.bf16.mxu0 0
      %1641 = vmatpush2.bf16.msra.mxu0 0
      %1642 = vmatprep.mubr.bf16.mxu0 0
      %1643 = vmatmul.mubr.bf16.gmra.mxu0 %v1599
      %v1644 = vpop.f32.mrf.mxu0
      %v1645 = vadd.f32 0.0, %v1644
      %v1646 = vpop.f32.mrf.mxu0
      %v1647 = vpop.f32.mrf.mxu0
      %v1648 = vadd.f32 0.0, %v1647
      %v1649 = vpop.f32.mrf.mxu0
      %1650 = vmatprep.mubr.bf16.mxu0 0
      %1651 = vmatmul.mubr.bf16.gmra.mxu0 %v1602
      %v1652 = vpop.f32.mrf.mxu0
      %v1653 = vadd.f32 0.0, %v1652
      %v1654 = vpop.f32.mrf.mxu0
      %v1655 = vpop.f32.mrf.mxu0
      %v1656 = vadd.f32 0.0, %v1655
      %v1657 = vpop.f32.mrf.mxu0
      %1658 = vmatprep.mubr.bf16.mxu0 0
      %1659 = vmatmul.mubr.bf16.gmra.mxu0 %v1605
      %v1660 = vpop.f32.mrf.mxu0
      %v1661 = vadd.f32 0.0, %v1660
      %v1662 = vpop.f32.mrf.mxu0
      %v1663 = vpop.f32.mrf.mxu0
      %v1664 = vadd.f32 0.0, %v1663
      %v1665 = vpop.f32.mrf.mxu0
      %1666 = vmatprep.mubr.bf16.mxu0 0
      %1667 = vmatmul.mubr.bf16.gmra.mxu0 %v1608
      %v1668 = vpop.f32.mrf.mxu0
      %v1669 = vadd.f32 0.0, %v1668
      %v1670 = vpop.f32.mrf.mxu0
      %v1671 = vpop.f32.mrf.mxu0
      %v1672 = vadd.f32 0.0, %v1671
      %v1673 = vpop.f32.mrf.mxu0
      %1674 = vdwg.mxu0
      %v1675 = vadd.f32 %v1472, %v1645
      %v1676 = vadd.f32 %v1475, %v1648
      %v1677 = vadd.f32 %v1480, %v1653
      %v1678 = vadd.f32 %v1483, %v1656
      %v1679 = vadd.f32 %v1488, %v1661
      %v1680 = vadd.f32 %v1491, %v1664
      %v1681 = vadd.f32 %v1496, %v1669
      %v1682 = vadd.f32 %v1499, %v1672
      %s1683 = sadd.s32 %s23, 4294967295
      %p1684 = scmp.gt.s32.totalorder %s1683, 0
      %s1685 = scalar_select %p1684, %s1683, 0
      %p1686 = scmp.lt.s32.totalorder %s1685, 0
      %s1687 = ssub.s32 0, %s1685
      %s1688 = scalar_select %p1686, %s1687, %s1685
      %s1689 = sdiv.u32.pop %s1688, 3
      %s1690 = srem.u32.pop %s1688, 3
      %s1691 = ssub.s32 0, %s1690
      %s1692 = scalar_select %p1686, %s1691, %s1690
      %p1693 = scmp.ne.s32.totalorder %s1692, 0
      %p1694 = scmp.lt.s32.totalorder %s1692, 0
      %p1695 = pnand %p1694, %p1693
      %p1696 = pneg %p1695
      %s1697 = sadd.s32 %s1692, 3
      %s1698 = scalar_select %p1696, %s1697, %s1692
      %s1699 = smul.u32 %s1698, 20
      %s1700 = smul.addr %s1699, 4
      %s1701 = scalar_lea.vmem [#allocation2], %s1700
      %v1702 = vld [vmem:[%s1701] sm:$0xf]
      %v1703 = vld [vmem:[%s1701 + $0x4] sm:$0x1]
      %v1704 = vld [vmem:[%s1701 + $0x8] sm:$0xf]
      %v1705 = vld [vmem:[%s1701 + $0xc] sm:$0x1]
      %v1706 = vld [vmem:[%s1701 + $0x10] sm:$0xf]
      %v1707 = vld [vmem:[%s1701 + $0x14] sm:$0x1]
      %v1708 = vld [vmem:[%s1701 + $0x18] sm:$0xf]
      %v1709 = vld [vmem:[%s1701 + $0x1c] sm:$0x1]
      %v1710 = vld [vmem:[%s1701 + $0x20] sm:$0xf]
      %v1711 = vld [vmem:[%s1701 + $0x24] sm:$0x1]
      %v1712 = vld [vmem:[%s1701 + $0x28] sm:$0xf]
      %v1713 = vld [vmem:[%s1701 + $0x2c] sm:$0x1]
      %v1714 = vld [vmem:[%s1701 + $0x30] sm:$0xf]
      %v1715 = vld [vmem:[%s1701 + $0x34] sm:$0x1]
      %v1716 = vld [vmem:[%s1701 + $0x38] sm:$0xf]
      %v1717 = vld [vmem:[%s1701 + $0x3c] sm:$0x1]
      %v1718 = vld [vmem:[%s1701 + $0x40] sm:$0xf]
      %v1719 = vld [vmem:[%s1701 + $0x44] sm:$0x1]
      %v1720 = vld [vmem:[%s1701 + $0x48] sm:$0xf]
      %v1721 = vld [vmem:[%s1701 + $0x4c] sm:$0x1]
      %v1730 = vunpack.c.l.b16 %v1704
      %v1731 = vunpack.c.l.b16 %v1706
      %v1732 = vunpack.c.l.b16 %v1708
      %v1733 = vunpack.c.l.b16 %v1710
      %v1734 = vunpack.c.l.b16 %v1712
      %v1735 = vunpack.c.l.b16 %v1714
      %v1736 = vunpack.c.l.b16 %v1716
      %v1737 = vunpack.c.l.b16 %v1718
      %v1738 = vpack.c.b16 %v1730, %v1730
      %v1739 = vpack.c.b16 %v1731, %v1731
      %v1740 = vpack.c.b16 %v1732, %v1732
      %v1741 = vpack.c.b16 %v1733, %v1733
      %v1742 = vpack.c.b16 %v1734, %v1734
      %v1743 = vpack.c.b16 %v1735, %v1735
      %v1744 = vpack.c.b16 %v1736, %v1736
      %v1745 = vpack.c.b16 %v1737, %v1737
      %1746 = vrot.lane.b32.xlu0 %v1738, 32
      %v1747 = vpop.permute.xlu0 %1746
      %1748 = vrot.lane.b32.xlu0 %v1739, 32
      %v1749 = vpop.permute.xlu0 %1748
      %1750 = vrot.lane.b32.xlu0 %v1740, 32
      %v1751 = vpop.permute.xlu0 %1750
      %1752 = vrot.lane.b32.xlu0 %v1741, 32
      %v1753 = vpop.permute.xlu0 %1752
      %1754 = vrot.lane.b32.xlu0 %v1742, 32
      %v1755 = vpop.permute.xlu0 %1754
      %1756 = vrot.lane.b32.xlu0 %v1743, 32
      %v1757 = vpop.permute.xlu0 %1756
      %1758 = vrot.lane.b32.xlu0 %v1744, 32
      %v1759 = vpop.permute.xlu0 %1758
      %1760 = vrot.lane.b32.xlu0 %v1745, 32
      %v1761 = vpop.permute.xlu0 %1760
      %v1763 = vunpack.c.l.b16 %v1720
      %v1764 = vpack.c.b16 %v1763, %v1763
      %1765 = vrot.lane.b32.xlu0 %v1739, 64
      %v1766 = vpop.permute.xlu0 %1765
      %1767 = vrot.lane.b32.xlu0 %v1740, 64
      %v1768 = vpop.permute.xlu0 %1767
      %1769 = vrot.lane.b32.xlu0 %v1741, 64
      %v1770 = vpop.permute.xlu0 %1769
      %1771 = vrot.lane.b32.xlu0 %v1742, 64
      %v1772 = vpop.permute.xlu0 %1771
      %1773 = vrot.lane.b32.xlu0 %v1743, 64
      %v1774 = vpop.permute.xlu0 %1773
      %1775 = vrot.lane.b32.xlu0 %v1744, 64
      %v1776 = vpop.permute.xlu0 %1775
      %1777 = vrot.lane.b32.xlu0 %v1745, 64
      %v1778 = vpop.permute.xlu0 %1777
      %1779 = vrot.lane.b32.xlu0 %v1764, 64
      %v1780 = vpop.permute.xlu0 %1779
      %v1783 = vsel %vm917, %v1702, %v1747
      %v1786 = vsel %vm917, %v1704, %v1749
      %v1789 = vsel %vm917, %v1706, %v1751
      %v1792 = vsel %vm917, %v1708, %v1753
      %v1795 = vsel %vm917, %v1710, %v1755
      %v1798 = vsel %vm917, %v1712, %v1757
      %v1801 = vsel %vm917, %v1714, %v1759
      %v1804 = vsel %vm917, %v1716, %v1761
      %v1806 = vsel %vm942, %v1783, %v1766
      %v1808 = vsel %vm942, %v1786, %v1768
      %v1810 = vsel %vm942, %v1789, %v1770
      %v1812 = vsel %vm942, %v1792, %v1772
      %v1814 = vsel %vm942, %v1795, %v1774
      %v1816 = vsel %vm942, %v1798, %v1776
      %v1818 = vsel %vm942, %v1801, %v1778
      %v1820 = vsel %vm942, %v1804, %v1780
      %s1821 = scalar_lea.vmem %s3, 144
      %v1822 = vld [vmem:[%s1821] sm:$0xf]
      %v1823 = vld [vmem:[%s1821 + $0x4] sm:$0xf]
      %v1824 = vld [vmem:[%s1821 + $0x8] sm:$0xf]
      %v1825 = vld [vmem:[%s1821 + $0xc] sm:$0xf]
      %v1826 = vld [vmem:[%s1821 + $0x10] sm:$0xf]
      %v1827 = vld [vmem:[%s1821 + $0x14] sm:$0xf]
      %v1828 = vld [vmem:[%s1821 + $0x18] sm:$0xf]
      %v1829 = vld [vmem:[%s1821 + $0x1c] sm:$0xf]
      %v1830 = vld [vmem:[%s1821 + $0x20] sm:$0xf]
      %v1831 = vld [vmem:[%s1821 + $0x24] sm:$0xf]
      %v1832 = vld [vmem:[%s1821 + $0x28] sm:$0xf]
      %v1833 = vld [vmem:[%s1821 + $0x2c] sm:$0xf]
      %v1842 = vunpack.c.l.b16 %v1806
      %v1843 = vunpack.c.l.b16 %v1808
      %v1844 = vunpack.c.l.b16 %v1810
      %v1845 = vunpack.c.l.b16 %v1812
      %v1846 = vunpack.c.l.b16 %v1814
      %v1847 = vunpack.c.l.b16 %v1816
      %v1848 = vunpack.c.l.b16 %v1818
      %v1849 = vunpack.c.l.b16 %v1820
      %v1850 = vpack.c.b16 %v1843, %v1842
      %v1851 = vpack.c.b16 %v1845, %v1844
      %v1852 = vpack.c.b16 %v1847, %v1846
      %v1853 = vpack.c.b16 %v1849, %v1848
      %v1866 = vunpack.c.l.b16 %v1822
      %v1867 = vunpack.c.l.b16 %v1823
      %v1868 = vunpack.c.l.b16 %v1824
      %v1869 = vunpack.c.l.b16 %v1825
      %v1870 = vunpack.c.l.b16 %v1826
      %v1871 = vunpack.c.l.b16 %v1827
      %v1872 = vunpack.c.l.b16 %v1828
      %v1873 = vunpack.c.l.b16 %v1829
      %v1874 = vunpack.c.l.b16 %v1830
      %v1875 = vunpack.c.l.b16 %v1831
      %v1876 = vunpack.c.l.b16 %v1832
      %v1877 = vunpack.c.l.b16 %v1833
      %v1878 = vpack.c.b16 %v1867, %v1866
      %v1879 = vpack.c.b16 %v1869, %v1868
      %v1880 = vpack.c.b16 %v1871, %v1870
      %v1881 = vpack.c.b16 %v1873, %v1872
      %v1882 = vpack.c.b16 %v1875, %v1874
      %v1883 = vpack.c.b16 %v1877, %v1876
      %v1891 = vsel %vm1291, %v1850, 0
      %v1894 = vsel %vm1291, %v1851, 0
      %v1897 = vsel %vm1291, %v1852, 0
      %v1900 = vsel %vm1291, %v1853, 0
      %1902 = vmatprep.subr.bf16.mxu0 0
      %1903 = vmatpush1.bf16.msra.mxu0 0
      %1904 = vmatprep.subr.bf16.mxu0 0
      %1905 = vmatpush1.bf16.msra.mxu0 0
      %1906 = vmatprep.subr.bf16.mxu0 0
      %1907 = vmatpush1.bf16.msra.mxu0 %v1883
      %1908 = vmatprep.subr.bf16.mxu0 0
      %1909 = vmatpush1.bf16.msra.mxu0 %v1882
      %1910 = vmatprep.subr.bf16.mxu0 0
      %1911 = vmatpush1.bf16.msra.mxu0 %v1881
      %1912 = vmatprep.subr.bf16.mxu0 0
      %1913 = vmatpush1.bf16.msra.mxu0 %v1880
      %1914 = vmatprep.subr.bf16.mxu0 0
      %1915 = vmatpush1.bf16.msra.mxu0 %v1879
      %1916 = vmatprep.subr.bf16.mxu0 0
      %1917 = vmatpush1.bf16.msra.mxu0 %v1878
      %1918 = vmatprep.subr.bf16.mxu0 0
      %1919 = vmatpush2.bf16.msra.mxu0 0
      %1920 = vmatprep.subr.bf16.mxu0 0
      %1921 = vmatpush2.bf16.msra.mxu0 0
      %1922 = vmatprep.subr.bf16.mxu0 0
      %1923 = vmatpush2.bf16.msra.mxu0 0
      %1924 = vmatprep.subr.bf16.mxu0 0
      %1925 = vmatpush2.bf16.msra.mxu0 0
      %1926 = vmatprep.subr.bf16.mxu0 0
      %1927 = vmatpush2.bf16.msra.mxu0 0
      %1928 = vmatprep.subr.bf16.mxu0 0
      %1929 = vmatpush2.bf16.msra.mxu0 0
      %1930 = vmatprep.subr.bf16.mxu0 0
      %1931 = vmatpush2.bf16.msra.mxu0 0
      %1932 = vmatprep.subr.bf16.mxu0 0
      %1933 = vmatpush2.bf16.msra.mxu0 0
      %1934 = vmatprep.mubr.bf16.mxu0 0
      %1935 = vmatmul.mubr.bf16.gmra.mxu0 %v1891
      %v1936 = vpop.f32.mrf.mxu0
      %v1937 = vadd.f32 0.0, %v1936
      %v1938 = vpop.f32.mrf.mxu0
      %v1939 = vpop.f32.mrf.mxu0
      %v1940 = vadd.f32 0.0, %v1939
      %v1941 = vpop.f32.mrf.mxu0
      %1942 = vmatprep.mubr.bf16.mxu0 0
      %1943 = vmatmul.mubr.bf16.gmra.mxu0 %v1894
      %v1944 = vpop.f32.mrf.mxu0
      %v1945 = vadd.f32 0.0, %v1944
      %v1946 = vpop.f32.mrf.mxu0
      %v1947 = vpop.f32.mrf.mxu0
      %v1948 = vadd.f32 0.0, %v1947
      %v1949 = vpop.f32.mrf.mxu0
      %1950 = vmatprep.mubr.bf16.mxu0 0
      %1951 = vmatmul.mubr.bf16.gmra.mxu0 %v1897
      %v1952 = vpop.f32.mrf.mxu0
      %v1953 = vadd.f32 0.0, %v1952
      %v1954 = vpop.f32.mrf.mxu0
      %v1955 = vpop.f32.mrf.mxu0
      %v1956 = vadd.f32 0.0, %v1955
      %v1957 = vpop.f32.mrf.mxu0
      %1958 = vmatprep.mubr.bf16.mxu0 0
      %1959 = vmatmul.mubr.bf16.gmra.mxu0 %v1900
      %v1960 = vpop.f32.mrf.mxu0
      %v1961 = vadd.f32 0.0, %v1960
      %v1962 = vpop.f32.mrf.mxu0
      %v1963 = vpop.f32.mrf.mxu0
      %v1964 = vadd.f32 0.0, %v1963
      %v1965 = vpop.f32.mrf.mxu0
      %1966 = vdwg.mxu0
      %v1967 = vadd.f32 %v1675, %v1937
      %v1968 = vadd.f32 %v1676, %v1940
      %v1969 = vadd.f32 %v1677, %v1945
      %v1970 = vadd.f32 %v1678, %v1948
      %v1971 = vadd.f32 %v1679, %v1953
      %v1972 = vadd.f32 %v1680, %v1956
      %v1973 = vadd.f32 %v1681, %v1961
      %v1974 = vadd.f32 %v1682, %v1964
      %v1984 = vunpack.c.l.b16 %v1702
      %v1985 = vunpack.c.l.b16 %v1703
      %v1986 = vunpack.c.l.b16 %v1705
      %v1987 = vunpack.c.l.b16 %v1707
      %v1988 = vunpack.c.l.b16 %v1709
      %v1989 = vunpack.c.l.b16 %v1711
      %v1990 = vunpack.c.l.b16 %v1713
      %v1991 = vunpack.c.l.b16 %v1715
      %v1992 = vunpack.c.l.b16 %v1717
      %v1993 = vpack.c.b16 %v1985, %v1984
      %v1994 = vpack.c.b16 %v1986, %v1730
      %v1995 = vpack.c.b16 %v1987, %v1731
      %v1996 = vpack.c.b16 %v1988, %v1732
      %v1997 = vpack.c.b16 %v1989, %v1733
      %v1998 = vpack.c.b16 %v1990, %v1734
      %v1999 = vpack.c.b16 %v1991, %v1735
      %v2000 = vpack.c.b16 %v1992, %v1736
      %v2002 = vunpack.c.l.b16 %v1719
      %v2003 = vpack.c.b16 %v2002, %v1737
      %2004 = vrot.lane.b32.xlu0 %v1994, 32
      %v2005 = vpop.permute.xlu0 %2004
      %2006 = vrot.lane.b32.xlu0 %v1995, 32
      %v2007 = vpop.permute.xlu0 %2006
      %2008 = vrot.lane.b32.xlu0 %v1996, 32
      %v2009 = vpop.permute.xlu0 %2008
      %2010 = vrot.lane.b32.xlu0 %v1997, 32
      %v2011 = vpop.permute.xlu0 %2010
      %2012 = vrot.lane.b32.xlu0 %v1998, 32
      %v2013 = vpop.permute.xlu0 %2012
      %2014 = vrot.lane.b32.xlu0 %v1999, 32
      %v2015 = vpop.permute.xlu0 %2014
      %2016 = vrot.lane.b32.xlu0 %v2000, 32
      %v2017 = vpop.permute.xlu0 %2016
      %2018 = vrot.lane.b32.xlu0 %v2003, 32
      %v2019 = vpop.permute.xlu0 %2018
      %v2021 = vunpack.c.l.b16 %v1721
      %v2022 = vpack.c.b16 %v2021, %v1763
      %2023 = vrot.lane.b32.xlu0 %v1995, 64
      %v2024 = vpop.permute.xlu0 %2023
      %2025 = vrot.lane.b32.xlu0 %v1996, 64
      %v2026 = vpop.permute.xlu0 %2025
      %2027 = vrot.lane.b32.xlu0 %v1997, 64
      %v2028 = vpop.permute.xlu0 %2027
      %2029 = vrot.lane.b32.xlu0 %v1998, 64
      %v2030 = vpop.permute.xlu0 %2029
      %2031 = vrot.lane.b32.xlu0 %v1999, 64
      %v2032 = vpop.permute.xlu0 %2031
      %2033 = vrot.lane.b32.xlu0 %v2000, 64
      %v2034 = vpop.permute.xlu0 %2033
      %2035 = vrot.lane.b32.xlu0 %v2003, 64
      %v2036 = vpop.permute.xlu0 %2035
      %2037 = vrot.lane.b32.xlu0 %v2022, 64
      %v2038 = vpop.permute.xlu0 %2037
      %v2041 = vsel %vm917, %v1993, %v2005
      %v2044 = vsel %vm917, %v1994, %v2007
      %v2047 = vsel %vm917, %v1995, %v2009
      %v2050 = vsel %vm917, %v1996, %v2011
      %v2053 = vsel %vm917, %v1997, %v2013
      %v2056 = vsel %vm917, %v1998, %v2015
      %v2059 = vsel %vm917, %v1999, %v2017
      %v2062 = vsel %vm917, %v2000, %v2019
      %v2064 = vsel %vm942, %v2041, %v2024
      %v2066 = vsel %vm942, %v2044, %v2026
      %v2068 = vsel %vm942, %v2047, %v2028
      %v2070 = vsel %vm942, %v2050, %v2030
      %v2072 = vsel %vm942, %v2053, %v2032
      %v2074 = vsel %vm942, %v2056, %v2034
      %v2076 = vsel %vm942, %v2059, %v2036
      %v2078 = vsel %vm942, %v2062, %v2038
      %v2087 = vunpack.c.l.b16 %v2064
      %v2088 = vunpack.c.h.b16 %v2064
      %v2089 = vunpack.c.l.b16 %v2066
      %v2090 = vunpack.c.h.b16 %v2066
      %v2091 = vunpack.c.l.b16 %v2068
      %v2092 = vunpack.c.h.b16 %v2068
      %v2093 = vunpack.c.l.b16 %v2070
      %v2094 = vunpack.c.h.b16 %v2070
      %v2095 = vunpack.c.l.b16 %v2072
      %v2096 = vunpack.c.h.b16 %v2072
      %v2097 = vunpack.c.l.b16 %v2074
      %v2098 = vunpack.c.h.b16 %v2074
      %v2099 = vunpack.c.l.b16 %v2076
      %v2100 = vunpack.c.h.b16 %v2076
      %v2101 = vunpack.c.l.b16 %v2078
      %v2102 = vunpack.c.h.b16 %v2078
      %v2103 = vpack.c.b16 %v2087, %v2087
      %v2104 = vpack.c.b16 %v2088, %v2088
      %v2105 = vpack.c.b16 %v2089, %v2089
      %v2106 = vpack.c.b16 %v2090, %v2090
      %v2107 = vpack.c.b16 %v2091, %v2091
      %v2108 = vpack.c.b16 %v2092, %v2092
      %v2109 = vpack.c.b16 %v2093, %v2093
      %v2110 = vpack.c.b16 %v2094, %v2094
      %v2111 = vpack.c.b16 %v2095, %v2095
      %v2112 = vpack.c.b16 %v2096, %v2096
      %v2113 = vpack.c.b16 %v2097, %v2097
      %v2114 = vpack.c.b16 %v2098, %v2098
      %v2115 = vpack.c.b16 %v2099, %v2099
      %v2116 = vpack.c.b16 %v2100, %v2100
      %v2117 = vpack.c.b16 %v2101, %v2101
      %v2118 = vpack.c.b16 %v2102, %v2102
      %v2120 = vshrl.u32 %v2103, 16
      %v2122 = vrot.slane %v2120, 4
      %v2123 = vshll.u32 %v2103, 16
      %v2125 = vrot.slane %v2123, 5
      %v2126 = vor.u32 %v2122, %v2125
      %v2127 = vrot.slane %v2126, 4
      %v2129 = vshll.u32 %v2104, 16
      %v2131 = vrot.slane %v2129, 5
      %v2132 = vsel %vm1117, %v2127, %v2131
      %v2134 = vshrl.u32 %v2105, 16
      %v2136 = vrot.slane %v2134, 4
      %v2137 = vshll.u32 %v2105, 16
      %v2139 = vrot.slane %v2137, 5
      %v2140 = vor.u32 %v2136, %v2139
      %v2141 = vrot.slane %v2140, 4
      %v2143 = vshll.u32 %v2106, 16
      %v2145 = vrot.slane %v2143, 5
      %v2146 = vsel %vm1117, %v2141, %v2145
      %v2148 = vshrl.u32 %v2107, 16
      %v2150 = vrot.slane %v2148, 4
      %v2151 = vshll.u32 %v2107, 16
      %v2153 = vrot.slane %v2151, 5
      %v2154 = vor.u32 %v2150, %v2153
      %v2155 = vrot.slane %v2154, 4
      %v2157 = vshll.u32 %v2108, 16
      %v2159 = vrot.slane %v2157, 5
      %v2160 = vsel %vm1117, %v2155, %v2159
      %v2162 = vshrl.u32 %v2109, 16
      %v2164 = vrot.slane %v2162, 4
      %v2165 = vshll.u32 %v2109, 16
      %v2167 = vrot.slane %v2165, 5
      %v2168 = vor.u32 %v2164, %v2167
      %v2169 = vrot.slane %v2168, 4
      %v2171 = vshll.u32 %v2110, 16
      %v2173 = vrot.slane %v2171, 5
      %v2174 = vsel %vm1117, %v2169, %v2173
      %v2176 = vshrl.u32 %v2111, 16
      %v2178 = vrot.slane %v2176, 4
      %v2179 = vshll.u32 %v2111, 16
      %v2181 = vrot.slane %v2179, 5
      %v2182 = vor.u32 %v2178, %v2181
      %v2183 = vrot.slane %v2182, 4
      %v2185 = vshll.u32 %v2112, 16
      %v2187 = vrot.slane %v2185, 5
      %v2188 = vsel %vm1117, %v2183, %v2187
      %v2190 = vshrl.u32 %v2113, 16
      %v2192 = vrot.slane %v2190, 4
      %v2193 = vshll.u32 %v2113, 16
      %v2195 = vrot.slane %v2193, 5
      %v2196 = vor.u32 %v2192, %v2195
      %v2197 = vrot.slane %v2196, 4
      %v2199 = vshll.u32 %v2114, 16
      %v2201 = vrot.slane %v2199, 5
      %v2202 = vsel %vm1117, %v2197, %v2201
      %v2204 = vshrl.u32 %v2115, 16
      %v2206 = vrot.slane %v2204, 4
      %v2207 = vshll.u32 %v2115, 16
      %v2209 = vrot.slane %v2207, 5
      %v2210 = vor.u32 %v2206, %v2209
      %v2211 = vrot.slane %v2210, 4
      %v2213 = vshll.u32 %v2116, 16
      %v2215 = vrot.slane %v2213, 5
      %v2216 = vsel %vm1117, %v2211, %v2215
      %v2218 = vshrl.u32 %v2117, 16
      %v2220 = vrot.slane %v2218, 4
      %v2221 = vshll.u32 %v2117, 16
      %v2223 = vrot.slane %v2221, 5
      %v2224 = vor.u32 %v2220, %v2223
      %v2225 = vrot.slane %v2224, 4
      %v2227 = vshll.u32 %v2118, 16
      %v2229 = vrot.slane %v2227, 5
      %v2230 = vsel %vm1117, %v2225, %v2229
      %s2231 = scalar_lea.vmem %s3, 192
      %v2232 = vld [vmem:[%s2231] sm:$0xf]
      %v2233 = vld [vmem:[%s2231 + $0x4] sm:$0xf]
      %v2234 = vld [vmem:[%s2231 + $0x8] sm:$0xf]
      %v2235 = vld [vmem:[%s2231 + $0xc] sm:$0xf]
      %v2236 = vld [vmem:[%s2231 + $0x10] sm:$0xf]
      %v2237 = vld [vmem:[%s2231 + $0x14] sm:$0xf]
      %v2238 = vld [vmem:[%s2231 + $0x18] sm:$0xf]
      %v2239 = vld [vmem:[%s2231 + $0x1c] sm:$0xf]
      %v2240 = vld [vmem:[%s2231 + $0x20] sm:$0xf]
      %v2241 = vld [vmem:[%s2231 + $0x24] sm:$0xf]
      %v2242 = vld [vmem:[%s2231 + $0x28] sm:$0xf]
      %v2243 = vld [vmem:[%s2231 + $0x2c] sm:$0xf]
      %v2244 = vunpack.c.l.b16 %v2132
      %v2245 = vunpack.c.l.b16 %v2146
      %v2246 = vunpack.c.l.b16 %v2160
      %v2247 = vunpack.c.l.b16 %v2174
      %v2248 = vunpack.c.l.b16 %v2188
      %v2249 = vunpack.c.l.b16 %v2202
      %v2250 = vunpack.c.l.b16 %v2216
      %v2251 = vunpack.c.l.b16 %v2230
      %v2252 = vpack.c.b16 %v2245, %v2244
      %v2253 = vpack.c.b16 %v2247, %v2246
      %v2254 = vpack.c.b16 %v2249, %v2248
      %v2255 = vpack.c.b16 %v2251, %v2250
      %v2268 = vunpack.c.l.b16 %v2232
      %v2269 = vunpack.c.l.b16 %v2233
      %v2270 = vunpack.c.l.b16 %v2234
      %v2271 = vunpack.c.l.b16 %v2235
      %v2272 = vunpack.c.l.b16 %v2236
      %v2273 = vunpack.c.l.b16 %v2237
      %v2274 = vunpack.c.l.b16 %v2238
      %v2275 = vunpack.c.l.b16 %v2239
      %v2276 = vunpack.c.l.b16 %v2240
      %v2277 = vunpack.c.l.b16 %v2241
      %v2278 = vunpack.c.l.b16 %v2242
      %v2279 = vunpack.c.l.b16 %v2243
      %v2280 = vpack.c.b16 %v2269, %v2268
      %v2281 = vpack.c.b16 %v2271, %v2270
      %v2282 = vpack.c.b16 %v2273, %v2272
      %v2283 = vpack.c.b16 %v2275, %v2274
      %v2284 = vpack.c.b16 %v2277, %v2276
      %v2285 = vpack.c.b16 %v2279, %v2278
      %v2293 = vsel %vm1291, %v2252, 0
      %v2296 = vsel %vm1291, %v2253, 0
      %v2299 = vsel %vm1291, %v2254, 0
      %v2302 = vsel %vm1291, %v2255, 0
      %2304 = vmatprep.subr.bf16.mxu0 0
      %2305 = vmatpush1.bf16.msra.mxu0 0
      %2306 = vmatprep.subr.bf16.mxu0 0
      %2307 = vmatpush1.bf16.msra.mxu0 0
      %2308 = vmatprep.subr.bf16.mxu0 0
      %2309 = vmatpush1.bf16.msra.mxu0 %v2285
      %2310 = vmatprep.subr.bf16.mxu0 0
      %2311 = vmatpush1.bf16.msra.mxu0 %v2284
      %2312 = vmatprep.subr.bf16.mxu0 0
      %2313 = vmatpush1.bf16.msra.mxu0 %v2283
      %2314 = vmatprep.subr.bf16.mxu0 0
      %2315 = vmatpush1.bf16.msra.mxu0 %v2282
      %2316 = vmatprep.subr.bf16.mxu0 0
      %2317 = vmatpush1.bf16.msra.mxu0 %v2281
      %2318 = vmatprep.subr.bf16.mxu0 0
      %2319 = vmatpush1.bf16.msra.mxu0 %v2280
      %2320 = vmatprep.subr.bf16.mxu0 0
      %2321 = vmatpush2.bf16.msra.mxu0 0
      %2322 = vmatprep.subr.bf16.mxu0 0
      %2323 = vmatpush2.bf16.msra.mxu0 0
      %2324 = vmatprep.subr.bf16.mxu0 0
      %2325 = vmatpush2.bf16.msra.mxu0 0
      %2326 = vmatprep.subr.bf16.mxu0 0
      %2327 = vmatpush2.bf16.msra.mxu0 0
      %2328 = vmatprep.subr.bf16.mxu0 0
      %2329 = vmatpush2.bf16.msra.mxu0 0
      %2330 = vmatprep.subr.bf16.mxu0 0
      %2331 = vmatpush2.bf16.msra.mxu0 0
      %2332 = vmatprep.subr.bf16.mxu0 0
      %2333 = vmatpush2.bf16.msra.mxu0 0
      %2334 = vmatprep.subr.bf16.mxu0 0
      %2335 = vmatpush2.bf16.msra.mxu0 0
      %2336 = vmatprep.mubr.bf16.mxu0 0
      %2337 = vmatmul.mubr.bf16.gmra.mxu0 %v2293
      %v2338 = vpop.f32.mrf.mxu0
      %v2339 = vadd.f32 0.0, %v2338
      %v2340 = vpop.f32.mrf.mxu0
      %v2341 = vpop.f32.mrf.mxu0
      %v2342 = vadd.f32 0.0, %v2341
      %v2343 = vpop.f32.mrf.mxu0
      %2344 = vmatprep.mubr.bf16.mxu0 0
      %2345 = vmatmul.mubr.bf16.gmra.mxu0 %v2296
      %v2346 = vpop.f32.mrf.mxu0
      %v2347 = vadd.f32 0.0, %v2346
      %v2348 = vpop.f32.mrf.mxu0
      %v2349 = vpop.f32.mrf.mxu0
      %v2350 = vadd.f32 0.0, %v2349
      %v2351 = vpop.f32.mrf.mxu0
      %2352 = vmatprep.mubr.bf16.mxu0 0
      %2353 = vmatmul.mubr.bf16.gmra.mxu0 %v2299
      %v2354 = vpop.f32.mrf.mxu0
      %v2355 = vadd.f32 0.0, %v2354
      %v2356 = vpop.f32.mrf.mxu0
      %v2357 = vpop.f32.mrf.mxu0
      %v2358 = vadd.f32 0.0, %v2357
      %v2359 = vpop.f32.mrf.mxu0
      %2360 = vmatprep.mubr.bf16.mxu0 0
      %2361 = vmatmul.mubr.bf16.gmra.mxu0 %v2302
      %v2362 = vpop.f32.mrf.mxu0
      %v2363 = vadd.f32 0.0, %v2362
      %v2364 = vpop.f32.mrf.mxu0
      %v2365 = vpop.f32.mrf.mxu0
      %v2366 = vadd.f32 0.0, %v2365
      %v2367 = vpop.f32.mrf.mxu0
      %2368 = vdwg.mxu0
      %v2369 = vadd.f32 %v1967, %v2339
      %v2370 = vadd.f32 %v1968, %v2342
      %v2371 = vadd.f32 %v1969, %v2347
      %v2372 = vadd.f32 %v1970, %v2350
      %v2373 = vadd.f32 %v1971, %v2355
      %v2374 = vadd.f32 %v1972, %v2358
      %v2375 = vadd.f32 %v1973, %v2363
      %v2376 = vadd.f32 %v1974, %v2366
      %v2377 = vrot.slane %v2103, 5
      %v2378 = vrot.slane %v2377, 4
      %v2379 = vrot.slane %v2104, 5
      %v2380 = vsel %vm1504, %v2378, %v2379
      %v2381 = vrot.slane %v2105, 5
      %v2382 = vrot.slane %v2381, 4
      %v2383 = vrot.slane %v2106, 5
      %v2384 = vsel %vm1504, %v2382, %v2383
      %v2385 = vrot.slane %v2107, 5
      %v2386 = vrot.slane %v2385, 4
      %v2387 = vrot.slane %v2108, 5
      %v2388 = vsel %vm1504, %v2386, %v2387
      %v2389 = vrot.slane %v2109, 5
      %v2390 = vrot.slane %v2389, 4
      %v2391 = vrot.slane %v2110, 5
      %v2392 = vsel %vm1504, %v2390, %v2391
      %v2393 = vrot.slane %v2111, 5
      %v2394 = vrot.slane %v2393, 4
      %v2395 = vrot.slane %v2112, 5
      %v2396 = vsel %vm1504, %v2394, %v2395
      %v2397 = vrot.slane %v2113, 5
      %v2398 = vrot.slane %v2397, 4
      %v2399 = vrot.slane %v2114, 5
      %v2400 = vsel %vm1504, %v2398, %v2399
      %v2401 = vrot.slane %v2115, 5
      %v2402 = vrot.slane %v2401, 4
      %v2403 = vrot.slane %v2116, 5
      %v2404 = vsel %vm1504, %v2402, %v2403
      %v2405 = vrot.slane %v2117, 5
      %v2406 = vrot.slane %v2405, 4
      %v2407 = vrot.slane %v2118, 5
      %v2408 = vsel %vm1504, %v2406, %v2407
      %s2409 = scalar_lea.vmem %s3, 240
      %v2410 = vld [vmem:[%s2409] sm:$0xf]
      %v2411 = vld [vmem:[%s2409 + $0x4] sm:$0xf]
      %v2412 = vld [vmem:[%s2409 + $0x8] sm:$0xf]
      %v2413 = vld [vmem:[%s2409 + $0xc] sm:$0xf]
      %v2414 = vld [vmem:[%s2409 + $0x10] sm:$0xf]
      %v2415 = vld [vmem:[%s2409 + $0x14] sm:$0xf]
      %v2416 = vld [vmem:[%s2409 + $0x18] sm:$0xf]
      %v2417 = vld [vmem:[%s2409 + $0x1c] sm:$0xf]
      %v2418 = vld [vmem:[%s2409 + $0x20] sm:$0xf]
      %v2419 = vld [vmem:[%s2409 + $0x24] sm:$0xf]
      %v2420 = vld [vmem:[%s2409 + $0x28] sm:$0xf]
      %v2421 = vld [vmem:[%s2409 + $0x2c] sm:$0xf]
      %v2422 = vunpack.c.l.b16 %v2380
      %v2423 = vunpack.c.l.b16 %v2384
      %v2424 = vunpack.c.l.b16 %v2388
      %v2425 = vunpack.c.l.b16 %v2392
      %v2426 = vunpack.c.l.b16 %v2396
      %v2427 = vunpack.c.l.b16 %v2400
      %v2428 = vunpack.c.l.b16 %v2404
      %v2429 = vunpack.c.l.b16 %v2408
      %v2430 = vpack.c.b16 %v2423, %v2422
      %v2431 = vpack.c.b16 %v2425, %v2424
      %v2432 = vpack.c.b16 %v2427, %v2426
      %v2433 = vpack.c.b16 %v2429, %v2428
      %v2446 = vunpack.c.l.b16 %v2410
      %v2447 = vunpack.c.l.b16 %v2411
      %v2448 = vunpack.c.l.b16 %v2412
      %v2449 = vunpack.c.l.b16 %v2413
      %v2450 = vunpack.c.l.b16 %v2414
      %v2451 = vunpack.c.l.b16 %v2415
      %v2452 = vunpack.c.l.b16 %v2416
      %v2453 = vunpack.c.l.b16 %v2417
      %v2454 = vunpack.c.l.b16 %v2418
      %v2455 = vunpack.c.l.b16 %v2419
      %v2456 = vunpack.c.l.b16 %v2420
      %v2457 = vunpack.c.l.b16 %v2421
      %v2458 = vpack.c.b16 %v2447, %v2446
      %v2459 = vpack.c.b16 %v2449, %v2448
      %v2460 = vpack.c.b16 %v2451, %v2450
      %v2461 = vpack.c.b16 %v2453, %v2452
      %v2462 = vpack.c.b16 %v2455, %v2454
      %v2463 = vpack.c.b16 %v2457, %v2456
      %v2471 = vsel %vm1291, %v2430, 0
      %v2474 = vsel %vm1291, %v2431, 0
      %v2477 = vsel %vm1291, %v2432, 0
      %v2480 = vsel %vm1291, %v2433, 0
      %2482 = vmatprep.subr.bf16.mxu0 0
      %2483 = vmatpush1.bf16.msra.mxu0 0
      %2484 = vmatprep.subr.bf16.mxu0 0
      %2485 = vmatpush1.bf16.msra.mxu0 0
      %2486 = vmatprep.subr.bf16.mxu0 0
      %2487 = vmatpush1.bf16.msra.mxu0 %v2463
      %2488 = vmatprep.subr.bf16.mxu0 0
      %2489 = vmatpush1.bf16.msra.mxu0 %v2462
      %2490 = vmatprep.subr.bf16.mxu0 0
      %2491 = vmatpush1.bf16.msra.mxu0 %v2461
      %2492 = vmatprep.subr.bf16.mxu0 0
      %2493 = vmatpush1.bf16.msra.mxu0 %v2460
      %2494 = vmatprep.subr.bf16.mxu0 0
      %2495 = vmatpush1.bf16.msra.mxu0 %v2459
      %2496 = vmatprep.subr.bf16.mxu0 0
      %2497 = vmatpush1.bf16.msra.mxu0 %v2458
      %2498 = vmatprep.subr.bf16.mxu0 0
      %2499 = vmatpush2.bf16.msra.mxu0 0
      %2500 = vmatprep.subr.bf16.mxu0 0
      %2501 = vmatpush2.bf16.msra.mxu0 0
      %2502 = vmatprep.subr.bf16.mxu0 0
      %2503 = vmatpush2.bf16.msra.mxu0 0
      %2504 = vmatprep.subr.bf16.mxu0 0
      %2505 = vmatpush2.bf16.msra.mxu0 0
      %2506 = vmatprep.subr.bf16.mxu0 0
      %2507 = vmatpush2.bf16.msra.mxu0 0
      %2508 = vmatprep.subr.bf16.mxu0 0
      %2509 = vmatpush2.bf16.msra.mxu0 0
      %2510 = vmatprep.subr.bf16.mxu0 0
      %2511 = vmatpush2.bf16.msra.mxu0 0
      %2512 = vmatprep.subr.bf16.mxu0 0
      %2513 = vmatpush2.bf16.msra.mxu0 0
      %2514 = vmatprep.mubr.bf16.mxu0 0
      %2515 = vmatmul.mubr.bf16.gmra.mxu0 %v2471
      %v2516 = vpop.f32.mrf.mxu0
      %v2517 = vadd.f32 0.0, %v2516
      %v2518 = vpop.f32.mrf.mxu0
      %v2519 = vpop.f32.mrf.mxu0
      %v2520 = vadd.f32 0.0, %v2519
      %v2521 = vpop.f32.mrf.mxu0
      %2522 = vmatprep.mubr.bf16.mxu0 0
      %2523 = vmatmul.mubr.bf16.gmra.mxu0 %v2474
      %v2524 = vpop.f32.mrf.mxu0
      %v2525 = vadd.f32 0.0, %v2524
      %v2526 = vpop.f32.mrf.mxu0
      %v2527 = vpop.f32.mrf.mxu0
      %v2528 = vadd.f32 0.0, %v2527
      %v2529 = vpop.f32.mrf.mxu0
      %2530 = vmatprep.mubr.bf16.mxu0 0
      %2531 = vmatmul.mubr.bf16.gmra.mxu0 %v2477
      %v2532 = vpop.f32.mrf.mxu0
      %v2533 = vadd.f32 0.0, %v2532
      %v2534 = vpop.f32.mrf.mxu0
      %v2535 = vpop.f32.mrf.mxu0
      %v2536 = vadd.f32 0.0, %v2535
      %v2537 = vpop.f32.mrf.mxu0
      %2538 = vmatprep.mubr.bf16.mxu0 0
      %2539 = vmatmul.mubr.bf16.gmra.mxu0 %v2480
      %v2540 = vpop.f32.mrf.mxu0
      %v2541 = vadd.f32 0.0, %v2540
      %v2542 = vpop.f32.mrf.mxu0
      %v2543 = vpop.f32.mrf.mxu0
      %v2544 = vadd.f32 0.0, %v2543
      %v2545 = vpop.f32.mrf.mxu0
      %2546 = vdwg.mxu0
      %v2547 = vadd.f32 %v2369, %v2517
      %v2548 = vadd.f32 %v2370, %v2520
      %v2549 = vadd.f32 %v2371, %v2525
      %v2550 = vadd.f32 %v2372, %v2528
      %v2551 = vadd.f32 %v2373, %v2533
      %v2552 = vadd.f32 %v2374, %v2536
      %v2553 = vadd.f32 %v2375, %v2541
      %v2554 = vadd.f32 %v2376, %v2544
      %p2555 = scmp.gt.s32.totalorder %s23, 0
      %s2556 = scalar_select %p2555, %s23, 0
      %p2557 = scmp.lt.s32.totalorder %s2556, 0
      %s2558 = ssub.s32 0, %s2556
      %s2559 = scalar_select %p2557, %s2558, %s2556
      %s2560 = sdiv.u32.pop %s2559, 3
      %s2561 = srem.u32.pop %s2559, 3
      %s2562 = ssub.s32 0, %s2561
      %s2563 = scalar_select %p2557, %s2562, %s2561
      %p2564 = scmp.ne.s32.totalorder %s2563, 0
      %p2565 = scmp.lt.s32.totalorder %s2563, 0
      %p2566 = pnand %p2565, %p2564
      %p2567 = pneg %p2566
      %s2568 = sadd.s32 %s2563, 3
      %s2569 = scalar_select %p2567, %s2568, %s2563
      %s2570 = smul.u32 %s2569, 20
      %s2571 = smul.addr %s2570, 4
      %s2572 = scalar_lea.vmem [#allocation2], %s2571
      %v2573 = vld [vmem:[%s2572] sm:$0xf]
      %v2574 = vld [vmem:[%s2572 + $0x4] sm:$0x1]
      %v2575 = vld [vmem:[%s2572 + $0x8] sm:$0xf]
      %v2576 = vld [vmem:[%s2572 + $0xc] sm:$0x1]
      %v2577 = vld [vmem:[%s2572 + $0x10] sm:$0xf]
      %v2578 = vld [vmem:[%s2572 + $0x14] sm:$0x1]
      %v2579 = vld [vmem:[%s2572 + $0x18] sm:$0xf]
      %v2580 = vld [vmem:[%s2572 + $0x1c] sm:$0x1]
      %v2581 = vld [vmem:[%s2572 + $0x20] sm:$0xf]
      %v2582 = vld [vmem:[%s2572 + $0x24] sm:$0x1]
      %v2583 = vld [vmem:[%s2572 + $0x28] sm:$0xf]
      %v2584 = vld [vmem:[%s2572 + $0x2c] sm:$0x1]
      %v2585 = vld [vmem:[%s2572 + $0x30] sm:$0xf]
      %v2586 = vld [vmem:[%s2572 + $0x34] sm:$0x1]
      %v2587 = vld [vmem:[%s2572 + $0x38] sm:$0xf]
      %v2588 = vld [vmem:[%s2572 + $0x3c] sm:$0x1]
      %v2589 = vld [vmem:[%s2572 + $0x40] sm:$0xf]
      %v2590 = vld [vmem:[%s2572 + $0x44] sm:$0x1]
      %v2591 = vld [vmem:[%s2572 + $0x48] sm:$0xf]
      %v2592 = vld [vmem:[%s2572 + $0x4c] sm:$0x1]
      %v2601 = vunpack.c.l.b16 %v2575
      %v2602 = vunpack.c.l.b16 %v2577
      %v2603 = vunpack.c.l.b16 %v2579
      %v2604 = vunpack.c.l.b16 %v2581
      %v2605 = vunpack.c.l.b16 %v2583
      %v2606 = vunpack.c.l.b16 %v2585
      %v2607 = vunpack.c.l.b16 %v2587
      %v2608 = vunpack.c.l.b16 %v2589
      %v2609 = vpack.c.b16 %v2601, %v2601
      %v2610 = vpack.c.b16 %v2602, %v2602
      %v2611 = vpack.c.b16 %v2603, %v2603
      %v2612 = vpack.c.b16 %v2604, %v2604
      %v2613 = vpack.c.b16 %v2605, %v2605
      %v2614 = vpack.c.b16 %v2606, %v2606
      %v2615 = vpack.c.b16 %v2607, %v2607
      %v2616 = vpack.c.b16 %v2608, %v2608
      %2617 = vrot.lane.b32.xlu0 %v2609, 32
      %v2618 = vpop.permute.xlu0 %2617
      %2619 = vrot.lane.b32.xlu0 %v2610, 32
      %v2620 = vpop.permute.xlu0 %2619
      %2621 = vrot.lane.b32.xlu0 %v2611, 32
      %v2622 = vpop.permute.xlu0 %2621
      %2623 = vrot.lane.b32.xlu0 %v2612, 32
      %v2624 = vpop.permute.xlu0 %2623
      %2625 = vrot.lane.b32.xlu0 %v2613, 32
      %v2626 = vpop.permute.xlu0 %2625
      %2627 = vrot.lane.b32.xlu0 %v2614, 32
      %v2628 = vpop.permute.xlu0 %2627
      %2629 = vrot.lane.b32.xlu0 %v2615, 32
      %v2630 = vpop.permute.xlu0 %2629
      %2631 = vrot.lane.b32.xlu0 %v2616, 32
      %v2632 = vpop.permute.xlu0 %2631
      %v2634 = vunpack.c.l.b16 %v2591
      %v2635 = vpack.c.b16 %v2634, %v2634
      %2636 = vrot.lane.b32.xlu0 %v2610, 64
      %v2637 = vpop.permute.xlu0 %2636
      %2638 = vrot.lane.b32.xlu0 %v2611, 64
      %v2639 = vpop.permute.xlu0 %2638
      %2640 = vrot.lane.b32.xlu0 %v2612, 64
      %v2641 = vpop.permute.xlu0 %2640
      %2642 = vrot.lane.b32.xlu0 %v2613, 64
      %v2643 = vpop.permute.xlu0 %2642
      %2644 = vrot.lane.b32.xlu0 %v2614, 64
      %v2645 = vpop.permute.xlu0 %2644
      %2646 = vrot.lane.b32.xlu0 %v2615, 64
      %v2647 = vpop.permute.xlu0 %2646
      %2648 = vrot.lane.b32.xlu0 %v2616, 64
      %v2649 = vpop.permute.xlu0 %2648
      %2650 = vrot.lane.b32.xlu0 %v2635, 64
      %v2651 = vpop.permute.xlu0 %2650
      %v2654 = vsel %vm917, %v2573, %v2618
      %v2657 = vsel %vm917, %v2575, %v2620
      %v2660 = vsel %vm917, %v2577, %v2622
      %v2663 = vsel %vm917, %v2579, %v2624
      %v2666 = vsel %vm917, %v2581, %v2626
      %v2669 = vsel %vm917, %v2583, %v2628
      %v2672 = vsel %vm917, %v2585, %v2630
      %v2675 = vsel %vm917, %v2587, %v2632
      %v2677 = vsel %vm942, %v2654, %v2637
      %v2679 = vsel %vm942, %v2657, %v2639
      %v2681 = vsel %vm942, %v2660, %v2641
      %v2683 = vsel %vm942, %v2663, %v2643
      %v2685 = vsel %vm942, %v2666, %v2645
      %v2687 = vsel %vm942, %v2669, %v2647
      %v2689 = vsel %vm942, %v2672, %v2649
      %v2691 = vsel %vm942, %v2675, %v2651
      %s2692 = scalar_lea.vmem %s3, 288
      %v2693 = vld [vmem:[%s2692] sm:$0xf]
      %v2694 = vld [vmem:[%s2692 + $0x4] sm:$0xf]
      %v2695 = vld [vmem:[%s2692 + $0x8] sm:$0xf]
      %v2696 = vld [vmem:[%s2692 + $0xc] sm:$0xf]
      %v2697 = vld [vmem:[%s2692 + $0x10] sm:$0xf]
      %v2698 = vld [vmem:[%s2692 + $0x14] sm:$0xf]
      %v2699 = vld [vmem:[%s2692 + $0x18] sm:$0xf]
      %v2700 = vld [vmem:[%s2692 + $0x1c] sm:$0xf]
      %v2701 = vld [vmem:[%s2692 + $0x20] sm:$0xf]
      %v2702 = vld [vmem:[%s2692 + $0x24] sm:$0xf]
      %v2703 = vld [vmem:[%s2692 + $0x28] sm:$0xf]
      %v2704 = vld [vmem:[%s2692 + $0x2c] sm:$0xf]
      %v2713 = vunpack.c.l.b16 %v2677
      %v2714 = vunpack.c.l.b16 %v2679
      %v2715 = vunpack.c.l.b16 %v2681
      %v2716 = vunpack.c.l.b16 %v2683
      %v2717 = vunpack.c.l.b16 %v2685
      %v2718 = vunpack.c.l.b16 %v2687
      %v2719 = vunpack.c.l.b16 %v2689
      %v2720 = vunpack.c.l.b16 %v2691
      %v2721 = vpack.c.b16 %v2714, %v2713
      %v2722 = vpack.c.b16 %v2716, %v2715
      %v2723 = vpack.c.b16 %v2718, %v2717
      %v2724 = vpack.c.b16 %v2720, %v2719
      %v2737 = vunpack.c.l.b16 %v2693
      %v2738 = vunpack.c.l.b16 %v2694
      %v2739 = vunpack.c.l.b16 %v2695
      %v2740 = vunpack.c.l.b16 %v2696
      %v2741 = vunpack.c.l.b16 %v2697
      %v2742 = vunpack.c.l.b16 %v2698
      %v2743 = vunpack.c.l.b16 %v2699
      %v2744 = vunpack.c.l.b16 %v2700
      %v2745 = vunpack.c.l.b16 %v2701
      %v2746 = vunpack.c.l.b16 %v2702
      %v2747 = vunpack.c.l.b16 %v2703
      %v2748 = vunpack.c.l.b16 %v2704
      %v2749 = vpack.c.b16 %v2738, %v2737
      %v2750 = vpack.c.b16 %v2740, %v2739
      %v2751 = vpack.c.b16 %v2742, %v2741
      %v2752 = vpack.c.b16 %v2744, %v2743
      %v2753 = vpack.c.b16 %v2746, %v2745
      %v2754 = vpack.c.b16 %v2748, %v2747
      %v2762 = vsel %vm1291, %v2721, 0
      %v2765 = vsel %vm1291, %v2722, 0
      %v2768 = vsel %vm1291, %v2723, 0
      %v2771 = vsel %vm1291, %v2724, 0
      %2773 = vmatprep.subr.bf16.mxu0 0
      %2774 = vmatpush1.bf16.msra.mxu0 0
      %2775 = vmatprep.subr.bf16.mxu0 0
      %2776 = vmatpush1.bf16.msra.mxu0 0
      %2777 = vmatprep.subr.bf16.mxu0 0
      %2778 = vmatpush1.bf16.msra.mxu0 %v2754
      %2779 = vmatprep.subr.bf16.mxu0 0
      %2780 = vmatpush1.bf16.msra.mxu0 %v2753
      %2781 = vmatprep.subr.bf16.mxu0 0
      %2782 = vmatpush1.bf16.msra.mxu0 %v2752
      %2783 = vmatprep.subr.bf16.mxu0 0
      %2784 = vmatpush1.bf16.msra.mxu0 %v2751
      %2785 = vmatprep.subr.bf16.mxu0 0
      %2786 = vmatpush1.bf16.msra.mxu0 %v2750
      %2787 = vmatprep.subr.bf16.mxu0 0
      %2788 = vmatpush1.bf16.msra.mxu0 %v2749
      %2789 = vmatprep.subr.bf16.mxu0 0
      %2790 = vmatpush2.bf16.msra.mxu0 0
      %2791 = vmatprep.subr.bf16.mxu0 0
      %2792 = vmatpush2.bf16.msra.mxu0 0
      %2793 = vmatprep.subr.bf16.mxu0 0
      %2794 = vmatpush2.bf16.msra.mxu0 0
      %2795 = vmatprep.subr.bf16.mxu0 0
      %2796 = vmatpush2.bf16.msra.mxu0 0
      %2797 = vmatprep.subr.bf16.mxu0 0
      %2798 = vmatpush2.bf16.msra.mxu0 0
      %2799 = vmatprep.subr.bf16.mxu0 0
      %2800 = vmatpush2.bf16.msra.mxu0 0
      %2801 = vmatprep.subr.bf16.mxu0 0
      %2802 = vmatpush2.bf16.msra.mxu0 0
      %2803 = vmatprep.subr.bf16.mxu0 0
      %2804 = vmatpush2.bf16.msra.mxu0 0
      %2805 = vmatprep.mubr.bf16.mxu0 0
      %2806 = vmatmul.mubr.bf16.gmra.mxu0 %v2762
      %v2807 = vpop.f32.mrf.mxu0
      %v2808 = vadd.f32 0.0, %v2807
      %v2809 = vpop.f32.mrf.mxu0
      %v2810 = vpop.f32.mrf.mxu0
      %v2811 = vadd.f32 0.0, %v2810
      %v2812 = vpop.f32.mrf.mxu0
      %2813 = vmatprep.mubr.bf16.mxu0 0
      %2814 = vmatmul.mubr.bf16.gmra.mxu0 %v2765
      %v2815 = vpop.f32.mrf.mxu0
      %v2816 = vadd.f32 0.0, %v2815
      %v2817 = vpop.f32.mrf.mxu0
      %v2818 = vpop.f32.mrf.mxu0
      %v2819 = vadd.f32 0.0, %v2818
      %v2820 = vpop.f32.mrf.mxu0
      %2821 = vmatprep.mubr.bf16.mxu0 0
      %2822 = vmatmul.mubr.bf16.gmra.mxu0 %v2768
      %v2823 = vpop.f32.mrf.mxu0
      %v2824 = vadd.f32 0.0, %v2823
      %v2825 = vpop.f32.mrf.mxu0
      %v2826 = vpop.f32.mrf.mxu0
      %v2827 = vadd.f32 0.0, %v2826
      %v2828 = vpop.f32.mrf.mxu0
      %2829 = vmatprep.mubr.bf16.mxu0 0
      %2830 = vmatmul.mubr.bf16.gmra.mxu0 %v2771
      %v2831 = vpop.f32.mrf.mxu0
      %v2832 = vadd.f32 0.0, %v2831
      %v2833 = vpop.f32.mrf.mxu0
      %v2834 = vpop.f32.mrf.mxu0
      %v2835 = vadd.f32 0.0, %v2834
      %v2836 = vpop.f32.mrf.mxu0
      %2837 = vdwg.mxu0
      %v2838 = vadd.f32 %v2547, %v2808
      %v2839 = vadd.f32 %v2548, %v2811
      %v2840 = vadd.f32 %v2549, %v2816
      %v2841 = vadd.f32 %v2550, %v2819
      %v2842 = vadd.f32 %v2551, %v2824
      %v2843 = vadd.f32 %v2552, %v2827
      %v2844 = vadd.f32 %v2553, %v2832
      %v2845 = vadd.f32 %v2554, %v2835
      %v2855 = vunpack.c.l.b16 %v2573
      %v2856 = vunpack.c.l.b16 %v2574
      %v2857 = vunpack.c.l.b16 %v2576
      %v2858 = vunpack.c.l.b16 %v2578
      %v2859 = vunpack.c.l.b16 %v2580
      %v2860 = vunpack.c.l.b16 %v2582
      %v2861 = vunpack.c.l.b16 %v2584
      %v2862 = vunpack.c.l.b16 %v2586
      %v2863 = vunpack.c.l.b16 %v2588
      %v2864 = vpack.c.b16 %v2856, %v2855
      %v2865 = vpack.c.b16 %v2857, %v2601
      %v2866 = vpack.c.b16 %v2858, %v2602
      %v2867 = vpack.c.b16 %v2859, %v2603
      %v2868 = vpack.c.b16 %v2860, %v2604
      %v2869 = vpack.c.b16 %v2861, %v2605
      %v2870 = vpack.c.b16 %v2862, %v2606
      %v2871 = vpack.c.b16 %v2863, %v2607
      %v2873 = vunpack.c.l.b16 %v2590
      %v2874 = vpack.c.b16 %v2873, %v2608
      %2875 = vrot.lane.b32.xlu0 %v2865, 32
      %v2876 = vpop.permute.xlu0 %2875
      %2877 = vrot.lane.b32.xlu0 %v2866, 32
      %v2878 = vpop.permute.xlu0 %2877
      %2879 = vrot.lane.b32.xlu0 %v2867, 32
      %v2880 = vpop.permute.xlu0 %2879
      %2881 = vrot.lane.b32.xlu0 %v2868, 32
      %v2882 = vpop.permute.xlu0 %2881
      %2883 = vrot.lane.b32.xlu0 %v2869, 32
      %v2884 = vpop.permute.xlu0 %2883
      %2885 = vrot.lane.b32.xlu0 %v2870, 32
      %v2886 = vpop.permute.xlu0 %2885
      %2887 = vrot.lane.b32.xlu0 %v2871, 32
      %v2888 = vpop.permute.xlu0 %2887
      %2889 = vrot.lane.b32.xlu0 %v2874, 32
      %v2890 = vpop.permute.xlu0 %2889
      %v2892 = vunpack.c.l.b16 %v2592
      %v2893 = vpack.c.b16 %v2892, %v2634
      %2894 = vrot.lane.b32.xlu0 %v2866, 64
      %v2895 = vpop.permute.xlu0 %2894
      %2896 = vrot.lane.b32.xlu0 %v2867, 64
      %v2897 = vpop.permute.xlu0 %2896
      %2898 = vrot.lane.b32.xlu0 %v2868, 64
      %v2899 = vpop.permute.xlu0 %2898
      %2900 = vrot.lane.b32.xlu0 %v2869, 64
      %v2901 = vpop.permute.xlu0 %2900
      %2902 = vrot.lane.b32.xlu0 %v2870, 64
      %v2903 = vpop.permute.xlu0 %2902
      %2904 = vrot.lane.b32.xlu0 %v2871, 64
      %v2905 = vpop.permute.xlu0 %2904
      %2906 = vrot.lane.b32.xlu0 %v2874, 64
      %v2907 = vpop.permute.xlu0 %2906
      %2908 = vrot.lane.b32.xlu0 %v2893, 64
      %v2909 = vpop.permute.xlu0 %2908
      %v2912 = vsel %vm917, %v2864, %v2876
      %v2915 = vsel %vm917, %v2865, %v2878
      %v2918 = vsel %vm917, %v2866, %v2880
      %v2921 = vsel %vm917, %v2867, %v2882
      %v2924 = vsel %vm917, %v2868, %v2884
      %v2927 = vsel %vm917, %v2869, %v2886
      %v2930 = vsel %vm917, %v2870, %v2888
      %v2933 = vsel %vm917, %v2871, %v2890
      %v2935 = vsel %vm942, %v2912, %v2895
      %v2937 = vsel %vm942, %v2915, %v2897
      %v2939 = vsel %vm942, %v2918, %v2899
      %v2941 = vsel %vm942, %v2921, %v2901
      %v2943 = vsel %vm942, %v2924, %v2903
      %v2945 = vsel %vm942, %v2927, %v2905
      %v2947 = vsel %vm942, %v2930, %v2907
      %v2949 = vsel %vm942, %v2933, %v2909
      %v2958 = vunpack.c.l.b16 %v2935
      %v2959 = vunpack.c.h.b16 %v2935
      %v2960 = vunpack.c.l.b16 %v2937
      %v2961 = vunpack.c.h.b16 %v2937
      %v2962 = vunpack.c.l.b16 %v2939
      %v2963 = vunpack.c.h.b16 %v2939
      %v2964 = vunpack.c.l.b16 %v2941
      %v2965 = vunpack.c.h.b16 %v2941
      %v2966 = vunpack.c.l.b16 %v2943
      %v2967 = vunpack.c.h.b16 %v2943
      %v2968 = vunpack.c.l.b16 %v2945
      %v2969 = vunpack.c.h.b16 %v2945
      %v2970 = vunpack.c.l.b16 %v2947
      %v2971 = vunpack.c.h.b16 %v2947
      %v2972 = vunpack.c.l.b16 %v2949
      %v2973 = vunpack.c.h.b16 %v2949
      %v2974 = vpack.c.b16 %v2958, %v2958
      %v2975 = vpack.c.b16 %v2959, %v2959
      %v2976 = vpack.c.b16 %v2960, %v2960
      %v2977 = vpack.c.b16 %v2961, %v2961
      %v2978 = vpack.c.b16 %v2962, %v2962
      %v2979 = vpack.c.b16 %v2963, %v2963
      %v2980 = vpack.c.b16 %v2964, %v2964
      %v2981 = vpack.c.b16 %v2965, %v2965
      %v2982 = vpack.c.b16 %v2966, %v2966
      %v2983 = vpack.c.b16 %v2967, %v2967
      %v2984 = vpack.c.b16 %v2968, %v2968
      %v2985 = vpack.c.b16 %v2969, %v2969
      %v2986 = vpack.c.b16 %v2970, %v2970
      %v2987 = vpack.c.b16 %v2971, %v2971
      %v2988 = vpack.c.b16 %v2972, %v2972
      %v2989 = vpack.c.b16 %v2973, %v2973
      %v2991 = vshrl.u32 %v2974, 16
      %v2993 = vrot.slane %v2991, 4
      %v2994 = vshll.u32 %v2974, 16
      %v2996 = vrot.slane %v2994, 5
      %v2997 = vor.u32 %v2993, %v2996
      %v2998 = vrot.slane %v2997, 4
      %v3000 = vshll.u32 %v2975, 16
      %v3002 = vrot.slane %v3000, 5
      %v3003 = vsel %vm1117, %v2998, %v3002
      %v3005 = vshrl.u32 %v2976, 16
      %v3007 = vrot.slane %v3005, 4
      %v3008 = vshll.u32 %v2976, 16
      %v3010 = vrot.slane %v3008, 5
      %v3011 = vor.u32 %v3007, %v3010
      %v3012 = vrot.slane %v3011, 4
      %v3014 = vshll.u32 %v2977, 16
      %v3016 = vrot.slane %v3014, 5
      %v3017 = vsel %vm1117, %v3012, %v3016
      %v3019 = vshrl.u32 %v2978, 16
      %v3021 = vrot.slane %v3019, 4
      %v3022 = vshll.u32 %v2978, 16
      %v3024 = vrot.slane %v3022, 5
      %v3025 = vor.u32 %v3021, %v3024
      %v3026 = vrot.slane %v3025, 4
      %v3028 = vshll.u32 %v2979, 16
      %v3030 = vrot.slane %v3028, 5
      %v3031 = vsel %vm1117, %v3026, %v3030
      %v3033 = vshrl.u32 %v2980, 16
      %v3035 = vrot.slane %v3033, 4
      %v3036 = vshll.u32 %v2980, 16
      %v3038 = vrot.slane %v3036, 5
      %v3039 = vor.u32 %v3035, %v3038
      %v3040 = vrot.slane %v3039, 4
      %v3042 = vshll.u32 %v2981, 16
      %v3044 = vrot.slane %v3042, 5
      %v3045 = vsel %vm1117, %v3040, %v3044
      %v3047 = vshrl.u32 %v2982, 16
      %v3049 = vrot.slane %v3047, 4
      %v3050 = vshll.u32 %v2982, 16
      %v3052 = vrot.slane %v3050, 5
      %v3053 = vor.u32 %v3049, %v3052
      %v3054 = vrot.slane %v3053, 4
      %v3056 = vshll.u32 %v2983, 16
      %v3058 = vrot.slane %v3056, 5
      %v3059 = vsel %vm1117, %v3054, %v3058
      %v3061 = vshrl.u32 %v2984, 16
      %v3063 = vrot.slane %v3061, 4
      %v3064 = vshll.u32 %v2984, 16
      %v3066 = vrot.slane %v3064, 5
      %v3067 = vor.u32 %v3063, %v3066
      %v3068 = vrot.slane %v3067, 4
      %v3070 = vshll.u32 %v2985, 16
      %v3072 = vrot.slane %v3070, 5
      %v3073 = vsel %vm1117, %v3068, %v3072
      %v3075 = vshrl.u32 %v2986, 16
      %v3077 = vrot.slane %v3075, 4
      %v3078 = vshll.u32 %v2986, 16
      %v3080 = vrot.slane %v3078, 5
      %v3081 = vor.u32 %v3077, %v3080
      %v3082 = vrot.slane %v3081, 4
      %v3084 = vshll.u32 %v2987, 16
      %v3086 = vrot.slane %v3084, 5
      %v3087 = vsel %vm1117, %v3082, %v3086
      %v3089 = vshrl.u32 %v2988, 16
      %v3091 = vrot.slane %v3089, 4
      %v3092 = vshll.u32 %v2988, 16
      %v3094 = vrot.slane %v3092, 5
      %v3095 = vor.u32 %v3091, %v3094
      %v3096 = vrot.slane %v3095, 4
      %v3098 = vshll.u32 %v2989, 16
      %v3100 = vrot.slane %v3098, 5
      %v3101 = vsel %vm1117, %v3096, %v3100
      %s3102 = scalar_lea.vmem %s3, 336
      %v3103 = vld [vmem:[%s3102] sm:$0xf]
      %v3104 = vld [vmem:[%s3102 + $0x4] sm:$0xf]
      %v3105 = vld [vmem:[%s3102 + $0x8] sm:$0xf]
      %v3106 = vld [vmem:[%s3102 + $0xc] sm:$0xf]
      %v3107 = vld [vmem:[%s3102 + $0x10] sm:$0xf]
      %v3108 = vld [vmem:[%s3102 + $0x14] sm:$0xf]
      %v3109 = vld [vmem:[%s3102 + $0x18] sm:$0xf]
      %v3110 = vld [vmem:[%s3102 + $0x1c] sm:$0xf]
      %v3111 = vld [vmem:[%s3102 + $0x20] sm:$0xf]
      %v3112 = vld [vmem:[%s3102 + $0x24] sm:$0xf]
      %v3113 = vld [vmem:[%s3102 + $0x28] sm:$0xf]
      %v3114 = vld [vmem:[%s3102 + $0x2c] sm:$0xf]
      %v3115 = vunpack.c.l.b16 %v3003
      %v3116 = vunpack.c.l.b16 %v3017
      %v3117 = vunpack.c.l.b16 %v3031
      %v3118 = vunpack.c.l.b16 %v3045
      %v3119 = vunpack.c.l.b16 %v3059
      %v3120 = vunpack.c.l.b16 %v3073
      %v3121 = vunpack.c.l.b16 %v3087
      %v3122 = vunpack.c.l.b16 %v3101
      %v3123 = vpack.c.b16 %v3116, %v3115
      %v3124 = vpack.c.b16 %v3118, %v3117
      %v3125 = vpack.c.b16 %v3120, %v3119
      %v3126 = vpack.c.b16 %v3122, %v3121
      %v3139 = vunpack.c.l.b16 %v3103
      %v3140 = vunpack.c.l.b16 %v3104
      %v3141 = vunpack.c.l.b16 %v3105
      %v3142 = vunpack.c.l.b16 %v3106
      %v3143 = vunpack.c.l.b16 %v3107
      %v3144 = vunpack.c.l.b16 %v3108
      %v3145 = vunpack.c.l.b16 %v3109
      %v3146 = vunpack.c.l.b16 %v3110
      %v3147 = vunpack.c.l.b16 %v3111
      %v3148 = vunpack.c.l.b16 %v3112
      %v3149 = vunpack.c.l.b16 %v3113
      %v3150 = vunpack.c.l.b16 %v3114
      %v3151 = vpack.c.b16 %v3140, %v3139
      %v3152 = vpack.c.b16 %v3142, %v3141
      %v3153 = vpack.c.b16 %v3144, %v3143
      %v3154 = vpack.c.b16 %v3146, %v3145
      %v3155 = vpack.c.b16 %v3148, %v3147
      %v3156 = vpack.c.b16 %v3150, %v3149
      %v3164 = vsel %vm1291, %v3123, 0
      %v3167 = vsel %vm1291, %v3124, 0
      %v3170 = vsel %vm1291, %v3125, 0
      %v3173 = vsel %vm1291, %v3126, 0
      %3175 = vmatprep.subr.bf16.mxu0 0
      %3176 = vmatpush1.bf16.msra.mxu0 0
      %3177 = vmatprep.subr.bf16.mxu0 0
      %3178 = vmatpush1.bf16.msra.mxu0 0
      %3179 = vmatprep.subr.bf16.mxu0 0
      %3180 = vmatpush1.bf16.msra.mxu0 %v3156
      %3181 = vmatprep.subr.bf16.mxu0 0
      %3182 = vmatpush1.bf16.msra.mxu0 %v3155
      %3183 = vmatprep.subr.bf16.mxu0 0
      %3184 = vmatpush1.bf16.msra.mxu0 %v3154
      %3185 = vmatprep.subr.bf16.mxu0 0
      %3186 = vmatpush1.bf16.msra.mxu0 %v3153
      %3187 = vmatprep.subr.bf16.mxu0 0
      %3188 = vmatpush1.bf16.msra.mxu0 %v3152
      %3189 = vmatprep.subr.bf16.mxu0 0
      %3190 = vmatpush1.bf16.msra.mxu0 %v3151
      %3191 = vmatprep.subr.bf16.mxu0 0
      %3192 = vmatpush2.bf16.msra.mxu0 0
      %3193 = vmatprep.subr.bf16.mxu0 0
      %3194 = vmatpush2.bf16.msra.mxu0 0
      %3195 = vmatprep.subr.bf16.mxu0 0
      %3196 = vmatpush2.bf16.msra.mxu0 0
      %3197 = vmatprep.subr.bf16.mxu0 0
      %3198 = vmatpush2.bf16.msra.mxu0 0
      %3199 = vmatprep.subr.bf16.mxu0 0
      %3200 = vmatpush2.bf16.msra.mxu0 0
      %3201 = vmatprep.subr.bf16.mxu0 0
      %3202 = vmatpush2.bf16.msra.mxu0 0
      %3203 = vmatprep.subr.bf16.mxu0 0
      %3204 = vmatpush2.bf16.msra.mxu0 0
      %3205 = vmatprep.subr.bf16.mxu0 0
      %3206 = vmatpush2.bf16.msra.mxu0 0
      %3207 = vmatprep.mubr.bf16.mxu0 0
      %3208 = vmatmul.mubr.bf16.gmra.mxu0 %v3164
      %v3209 = vpop.f32.mrf.mxu0
      %v3210 = vadd.f32 0.0, %v3209
      %v3211 = vpop.f32.mrf.mxu0
      %v3212 = vpop.f32.mrf.mxu0
      %v3213 = vadd.f32 0.0, %v3212
      %v3214 = vpop.f32.mrf.mxu0
      %3215 = vmatprep.mubr.bf16.mxu0 0
      %3216 = vmatmul.mubr.bf16.gmra.mxu0 %v3167
      %v3217 = vpop.f32.mrf.mxu0
      %v3218 = vadd.f32 0.0, %v3217
      %v3219 = vpop.f32.mrf.mxu0
      %v3220 = vpop.f32.mrf.mxu0
      %v3221 = vadd.f32 0.0, %v3220
      %v3222 = vpop.f32.mrf.mxu0
      %3223 = vmatprep.mubr.bf16.mxu0 0
      %3224 = vmatmul.mubr.bf16.gmra.mxu0 %v3170
      %v3225 = vpop.f32.mrf.mxu0
      %v3226 = vadd.f32 0.0, %v3225
      %v3227 = vpop.f32.mrf.mxu0
      %v3228 = vpop.f32.mrf.mxu0
      %v3229 = vadd.f32 0.0, %v3228
      %v3230 = vpop.f32.mrf.mxu0
      %3231 = vmatprep.mubr.bf16.mxu0 0
      %3232 = vmatmul.mubr.bf16.gmra.mxu0 %v3173
      %v3233 = vpop.f32.mrf.mxu0
      %v3234 = vadd.f32 0.0, %v3233
      %v3235 = vpop.f32.mrf.mxu0
      %v3236 = vpop.f32.mrf.mxu0
      %v3237 = vadd.f32 0.0, %v3236
      %v3238 = vpop.f32.mrf.mxu0
      %3239 = vdwg.mxu0
      %v3240 = vadd.f32 %v2838, %v3210
      %v3241 = vadd.f32 %v2839, %v3213
      %v3242 = vadd.f32 %v2840, %v3218
      %v3243 = vadd.f32 %v2841, %v3221
      %v3244 = vadd.f32 %v2842, %v3226
      %v3245 = vadd.f32 %v2843, %v3229
      %v3246 = vadd.f32 %v2844, %v3234
      %v3247 = vadd.f32 %v2845, %v3237
      %v3248 = vrot.slane %v2974, 5
      %v3249 = vrot.slane %v3248, 4
      %v3250 = vrot.slane %v2975, 5
      %v3251 = vsel %vm1504, %v3249, %v3250
      %v3252 = vrot.slane %v2976, 5
      %v3253 = vrot.slane %v3252, 4
      %v3254 = vrot.slane %v2977, 5
      %v3255 = vsel %vm1504, %v3253, %v3254
      %v3256 = vrot.slane %v2978, 5
      %v3257 = vrot.slane %v3256, 4
      %v3258 = vrot.slane %v2979, 5
      %v3259 = vsel %vm1504, %v3257, %v3258
      %v3260 = vrot.slane %v2980, 5
      %v3261 = vrot.slane %v3260, 4
      %v3262 = vrot.slane %v2981, 5
      %v3263 = vsel %vm1504, %v3261, %v3262
      %v3264 = vrot.slane %v2982, 5
      %v3265 = vrot.slane %v3264, 4
      %v3266 = vrot.slane %v2983, 5
      %v3267 = vsel %vm1504, %v3265, %v3266
      %v3268 = vrot.slane %v2984, 5
      %v3269 = vrot.slane %v3268, 4
      %v3270 = vrot.slane %v2985, 5
      %v3271 = vsel %vm1504, %v3269, %v3270
      %v3272 = vrot.slane %v2986, 5
      %v3273 = vrot.slane %v3272, 4
      %v3274 = vrot.slane %v2987, 5
      %v3275 = vsel %vm1504, %v3273, %v3274
      %v3276 = vrot.slane %v2988, 5
      %v3277 = vrot.slane %v3276, 4
      %v3278 = vrot.slane %v2989, 5
      %v3279 = vsel %vm1504, %v3277, %v3278
      %s3280 = scalar_lea.vmem %s3, 384
      %v3281 = vld [vmem:[%s3280] sm:$0xf]
      %v3282 = vld [vmem:[%s3280 + $0x4] sm:$0xf]
      %v3283 = vld [vmem:[%s3280 + $0x8] sm:$0xf]
      %v3284 = vld [vmem:[%s3280 + $0xc] sm:$0xf]
      %v3285 = vld [vmem:[%s3280 + $0x10] sm:$0xf]
      %v3286 = vld [vmem:[%s3280 + $0x14] sm:$0xf]
      %v3287 = vld [vmem:[%s3280 + $0x18] sm:$0xf]
      %v3288 = vld [vmem:[%s3280 + $0x1c] sm:$0xf]
      %v3289 = vld [vmem:[%s3280 + $0x20] sm:$0xf]
      %v3290 = vld [vmem:[%s3280 + $0x24] sm:$0xf]
      %v3291 = vld [vmem:[%s3280 + $0x28] sm:$0xf]
      %v3292 = vld [vmem:[%s3280 + $0x2c] sm:$0xf]
      %v3293 = vunpack.c.l.b16 %v3251
      %v3294 = vunpack.c.l.b16 %v3255
      %v3295 = vunpack.c.l.b16 %v3259
      %v3296 = vunpack.c.l.b16 %v3263
      %v3297 = vunpack.c.l.b16 %v3267
      %v3298 = vunpack.c.l.b16 %v3271
      %v3299 = vunpack.c.l.b16 %v3275
      %v3300 = vunpack.c.l.b16 %v3279
      %v3301 = vpack.c.b16 %v3294, %v3293
      %v3302 = vpack.c.b16 %v3296, %v3295
      %v3303 = vpack.c.b16 %v3298, %v3297
      %v3304 = vpack.c.b16 %v3300, %v3299
      %v3317 = vunpack.c.l.b16 %v3281
      %v3318 = vunpack.c.l.b16 %v3282
      %v3319 = vunpack.c.l.b16 %v3283
      %v3320 = vunpack.c.l.b16 %v3284
      %v3321 = vunpack.c.l.b16 %v3285
      %v3322 = vunpack.c.l.b16 %v3286
      %v3323 = vunpack.c.l.b16 %v3287
      %v3324 = vunpack.c.l.b16 %v3288
      %v3325 = vunpack.c.l.b16 %v3289
      %v3326 = vunpack.c.l.b16 %v3290
      %v3327 = vunpack.c.l.b16 %v3291
      %v3328 = vunpack.c.l.b16 %v3292
      %v3329 = vpack.c.b16 %v3318, %v3317
      %v3330 = vpack.c.b16 %v3320, %v3319
      %v3331 = vpack.c.b16 %v3322, %v3321
      %v3332 = vpack.c.b16 %v3324, %v3323
      %v3333 = vpack.c.b16 %v3326, %v3325
      %v3334 = vpack.c.b16 %v3328, %v3327
      %v3342 = vsel %vm1291, %v3301, 0
      %v3345 = vsel %vm1291, %v3302, 0
      %v3348 = vsel %vm1291, %v3303, 0
      %v3351 = vsel %vm1291, %v3304, 0
      %3353 = vmatprep.subr.bf16.mxu0 0
      %3354 = vmatpush1.bf16.msra.mxu0 0
      %3355 = vmatprep.subr.bf16.mxu0 0
      %3356 = vmatpush1.bf16.msra.mxu0 0
      %3357 = vmatprep.subr.bf16.mxu0 0
      %3358 = vmatpush1.bf16.msra.mxu0 %v3334
      %3359 = vmatprep.subr.bf16.mxu0 0
      %3360 = vmatpush1.bf16.msra.mxu0 %v3333
      %3361 = vmatprep.subr.bf16.mxu0 0
      %3362 = vmatpush1.bf16.msra.mxu0 %v3332
      %3363 = vmatprep.subr.bf16.mxu0 0
      %3364 = vmatpush1.bf16.msra.mxu0 %v3331
      %3365 = vmatprep.subr.bf16.mxu0 0
      %3366 = vmatpush1.bf16.msra.mxu0 %v3330
      %3367 = vmatprep.subr.bf16.mxu0 0
      %3368 = vmatpush1.bf16.msra.mxu0 %v3329
      %3369 = vmatprep.subr.bf16.mxu0 0
      %3370 = vmatpush2.bf16.msra.mxu0 0
      %3371 = vmatprep.subr.bf16.mxu0 0
      %3372 = vmatpush2.bf16.msra.mxu0 0
      %3373 = vmatprep.subr.bf16.mxu0 0
      %3374 = vmatpush2.bf16.msra.mxu0 0
      %3375 = vmatprep.subr.bf16.mxu0 0
      %3376 = vmatpush2.bf16.msra.mxu0 0
      %3377 = vmatprep.subr.bf16.mxu0 0
      %3378 = vmatpush2.bf16.msra.mxu0 0
      %3379 = vmatprep.subr.bf16.mxu0 0
      %3380 = vmatpush2.bf16.msra.mxu0 0
      %3381 = vmatprep.subr.bf16.mxu0 0
      %3382 = vmatpush2.bf16.msra.mxu0 0
      %3383 = vmatprep.subr.bf16.mxu0 0
      %3384 = vmatpush2.bf16.msra.mxu0 0
      %3385 = vmatprep.mubr.bf16.mxu0 0
      %3386 = vmatmul.mubr.bf16.gmra.mxu0 %v3342
      %v3387 = vpop.f32.mrf.mxu0
      %v3388 = vadd.f32 0.0, %v3387
      %v3389 = vpop.f32.mrf.mxu0
      %v3390 = vpop.f32.mrf.mxu0
      %v3391 = vadd.f32 0.0, %v3390
      %v3392 = vpop.f32.mrf.mxu0
      %3393 = vmatprep.mubr.bf16.mxu0 0
      %3394 = vmatmul.mubr.bf16.gmra.mxu0 %v3345
      %v3395 = vpop.f32.mrf.mxu0
      %v3396 = vadd.f32 0.0, %v3395
      %v3397 = vpop.f32.mrf.mxu0
      %v3398 = vpop.f32.mrf.mxu0
      %v3399 = vadd.f32 0.0, %v3398
      %v3400 = vpop.f32.mrf.mxu0
      %3401 = vmatprep.mubr.bf16.mxu0 0
      %3402 = vmatmul.mubr.bf16.gmra.mxu0 %v3348
      %v3403 = vpop.f32.mrf.mxu0
      %v3404 = vadd.f32 0.0, %v3403
      %v3405 = vpop.f32.mrf.mxu0
      %v3406 = vpop.f32.mrf.mxu0
      %v3407 = vadd.f32 0.0, %v3406
      %v3408 = vpop.f32.mrf.mxu0
      %3409 = vmatprep.mubr.bf16.mxu0 0
      %3410 = vmatmul.mubr.bf16.gmra.mxu0 %v3351
      %v3411 = vpop.f32.mrf.mxu0
      %v3412 = vadd.f32 0.0, %v3411
      %v3413 = vpop.f32.mrf.mxu0
      %v3414 = vpop.f32.mrf.mxu0
      %v3415 = vadd.f32 0.0, %v3414
      %v3416 = vpop.f32.mrf.mxu0
      %3417 = vdwg.mxu0
      %v3418 = vadd.f32 %v3240, %v3388
      %v3419 = vadd.f32 %v3241, %v3391
      %v3420 = vadd.f32 %v3242, %v3396
      %v3421 = vadd.f32 %v3243, %v3399
      %v3422 = vadd.f32 %v3244, %v3404
      %v3423 = vadd.f32 %v3245, %v3407
      %v3424 = vadd.f32 %v3246, %v3412
      %v3425 = vadd.f32 %v3247, %v3415
      %v3426 = vld [vmem:[%s4] sm:$0x1]
      %v3428 = vlaneseq
      %v3429 = vshrl.u32 %v3428, 7
      %v3430 = vsub.s32 0, %v3429
      %v3431 = vrot.slane %v3426, %v3430
      %v3433 = vadd.f32 %v3418, %v3431
      %v3434 = vadd.f32 %v3419, %v3431
      %v3435 = vadd.f32 %v3420, %v3431
      %v3436 = vadd.f32 %v3421, %v3431
      %v3437 = vadd.f32 %v3422, %v3431
      %v3438 = vadd.f32 %v3423, %v3431
      %v3439 = vadd.f32 %v3424, %v3431
      %v3440 = vadd.f32 %v3425, %v3431
      %v3441 = vsel %vm942, %v3433, 0.0
      %v3442 = vsel %vm942, %v3434, 0.0
      %v3443 = vadd.f32 %v3441, %v3442
      %v3444 = vsel %vm942, %v3435, 0.0
      %v3445 = vadd.f32 %v3443, %v3444
      %v3446 = vsel %vm942, %v3436, 0.0
      %v3447 = vadd.f32 %v3445, %v3446
      %v3448 = vsel %vm942, %v3437, 0.0
      %v3449 = vadd.f32 %v3447, %v3448
      %v3450 = vsel %vm942, %v3438, 0.0
      %v3451 = vadd.f32 %v3449, %v3450
      %v3452 = vsel %vm942, %v3439, 0.0
      %v3453 = vadd.f32 %v3451, %v3452
      %v3454 = vsel %vm942, %v3440, 0.0
      %v3455 = vadd.f32 %v3453, %v3454
      %v3456 = vrot.slane %v3455, 4
      %v3457 = vadd.f32 %v3455, %v3456
      %v3458 = vrot.slane %v3457, 2
      %v3459 = vadd.f32 %v3457, %v3458
      %v3460 = vrot.slane %v3459, 1
      %v3461 = vadd.f32 %v3459, %v3460
      %vm3462 = vcmask 516096
      %3463 = vst.msk [vmem:[%s336] sm:$0x1] %vm3462, %v3461
      %v3464 = vmul.f32 %v3433, %v3433
      %v3465 = vmul.f32 %v3434, %v3434
      %v3466 = vmul.f32 %v3435, %v3435
      %v3467 = vmul.f32 %v3436, %v3436
      %v3468 = vmul.f32 %v3437, %v3437
      %v3469 = vmul.f32 %v3438, %v3438
      %v3470 = vmul.f32 %v3439, %v3439
      %v3471 = vmul.f32 %v3440, %v3440
      %v3472 = vsel %vm942, %v3464, 0.0
      %v3473 = vsel %vm942, %v3465, 0.0
      %v3474 = vadd.f32 %v3472, %v3473
      %v3475 = vsel %vm942, %v3466, 0.0
      %v3476 = vadd.f32 %v3474, %v3475
      %v3477 = vsel %vm942, %v3467, 0.0
      %v3478 = vadd.f32 %v3476, %v3477
      %v3479 = vsel %vm942, %v3468, 0.0
      %v3480 = vadd.f32 %v3478, %v3479
      %v3481 = vsel %vm942, %v3469, 0.0
      %v3482 = vadd.f32 %v3480, %v3481
      %v3483 = vsel %vm942, %v3470, 0.0
      %v3484 = vadd.f32 %v3482, %v3483
      %v3485 = vsel %vm942, %v3471, 0.0
      %v3486 = vadd.f32 %v3484, %v3485
      %v3487 = vrot.slane %v3486, 4
      %v3488 = vadd.f32 %v3486, %v3487
      %v3489 = vrot.slane %v3488, 2
      %v3490 = vadd.f32 %v3488, %v3489
      %v3491 = vrot.slane %v3490, 1
      %v3492 = vadd.f32 %v3490, %v3491
      %3493 = vst.msk [vmem:[%s336 + $0x1] sm:$0x1] %vm3462, %v3492
      %v3494 = vpack.c.bf16 %v3433, %v3433
      %v3495 = vpack.c.bf16 %v3434, %v3434
      %v3496 = vpack.c.bf16 %v3435, %v3435
      %v3497 = vpack.c.bf16 %v3436, %v3436
      %v3498 = vpack.c.bf16 %v3437, %v3437
      %v3499 = vpack.c.bf16 %v3438, %v3438
      %v3500 = vpack.c.bf16 %v3439, %v3439
      %v3501 = vpack.c.bf16 %v3440, %v3440
      %vm3502 = vcmask 519168
      %3503 = vst.msk [vmem:[%s328] sm:$0xf] %vm3502, %v3494
      %3504 = vst.msk [vmem:[%s328 + $0x4] sm:$0xf] %vm3502, %v3495
      %3505 = vst.msk [vmem:[%s328 + $0x8] sm:$0xf] %vm3502, %v3496
      %3506 = vst.msk [vmem:[%s328 + $0xc] sm:$0xf] %vm3502, %v3497
      %3507 = vst.msk [vmem:[%s328 + $0x10] sm:$0xf] %vm3502, %v3498
      %3508 = vst.msk [vmem:[%s328 + $0x14] sm:$0xf] %vm3502, %v3499
      %3509 = vst.msk [vmem:[%s328 + $0x18] sm:$0xf] %vm3502, %v3500
      %3510 = vst.msk [vmem:[%s328 + $0x1c] sm:$0xf] %vm3502, %v3501
      %p3511 = scmp.lt.s32.totalorder %s22, 1
      %s3512 = scalar_select %p3511, %s22, 1
      %p3513 = scmp.lt.s32.totalorder %s23, 3
      %s3514 = scalar_select %p3513, %s23, 3
      %s3515 = smul.addr %s3514, 8
      %s3516 = smul.addr %s3512, 32
      %s3517 = sadd.s32 %s3515, %s3516
      %s3518 = smul.addr %s3517, 4
      %s3519 = scalar_lea.vmem %s5, %s3518
      %p3520 = scmp.lt.s32.totalorder %s22, 1
      %s3521 = scalar_select %p3520, %s22, 1
      %p3522 = scmp.lt.s32.totalorder %s23, 3
      %s3523 = scalar_select %p3522, %s23, 3
      %s3524 = smul.addr %s3521, 4
      %s3525 = sadd.s32 %s3523, %s3524
      %s3526 = smul.addr %s3525, 2
      %s3527 = scalar_lea.vmem %s6, %s3526
      // Predicated region
      $region53: #{resnet_block_causal3d.4} parent=39 // pred_check
        %p3528 = pneg %p172
      $region54: #{resnet_block_causal3d.4} parent=39 // pred_check_branch
        %3530 = sbr.rel (%p3528) target = $region56
      $region55: #{resnet_block_causal3d.4} parent=39 // pred_region
        _
      $region56: #{resnet_block_causal3d.4} parent=39 // pred_fallthru
        _
      // Predicated region
      $region57: #{resnet_block_causal3d.4} parent=39 // pred_check
        %p3531 = pneg %p200
      $region58: #{resnet_block_causal3d.4} parent=39 // pred_check_branch
        %3533 = sbr.rel (%p3531) target = $region60
      $region59: #{resnet_block_causal3d.4} parent=39 // pred_region
        _
      $region60: #{resnet_block_causal3d.4} parent=39 // pred_fallthru
        _
    $region40: #{resnet_block_causal3d.4} parent=5 // pred_fallthru
      _
    %p3534 = scmp.le.s32.totalorder 2, %s13
    // Predicated region
    $region61: #{resnet_block_causal3d.4} parent=5 // pred_check
      %p3535 = pneg %p3534
    $region62: #{resnet_block_causal3d.4} parent=5 // pred_check_branch
      %3537 = sbr.rel (%p3535) target = $region64
    $region63: #{resnet_block_causal3d.4} parent=5 // pred_region
      %s3538 = ssub.s32 %s13, 2
      // Predicated region
      $region65: #{resnet_block_causal3d.4} parent=63 // pred_check
        %p3539 = pneg %p178
      $region66: #{resnet_block_causal3d.4} parent=63 // pred_check_branch
        %3541 = sbr.rel (%p3539) target = $region68
      $region67: #{resnet_block_causal3d.4} parent=63 // pred_region
        %p3542 = scmp.lt.s32.totalorder %s24, 1
        %s3543 = scalar_select %p3542, %s24, 1
        %p3544 = scmp.lt.s32.totalorder %s25, 3
        %s3545 = scalar_select %p3544, %s25, 3
        %s3546 = smul.addr %s3545, 8
        %s3547 = smul.addr %s3543, 32
        %s3548 = sadd.s32 %s3546, %s3547
        %s3549 = smul.addr %s3548, 4
        %s3550 = scalar_lea.vmem %s5, %s3549
      $region68: #{resnet_block_causal3d.4} parent=63 // pred_fallthru
        _
      // Predicated region
      $region69: #{resnet_block_causal3d.4} parent=63 // pred_check
        %p3551 = pneg %p206
      $region70: #{resnet_block_causal3d.4} parent=63 // pred_check_branch
        %3553 = sbr.rel (%p3551) target = $region72
      $region71: #{resnet_block_causal3d.4} parent=63 // pred_region
        %p3554 = scmp.lt.s32.totalorder %s24, 1
        %s3555 = scalar_select %p3554, %s24, 1
        %p3556 = scmp.lt.s32.totalorder %s25, 3
        %s3557 = scalar_select %p3556, %s25, 3
        %s3558 = smul.addr %s3555, 4
        %s3559 = sadd.s32 %s3557, %s3558
        %s3560 = smul.addr %s3559, 2
        %s3561 = scalar_lea.vmem %s6, %s3560
      $region72: #{resnet_block_causal3d.4} parent=63 // pred_fallthru
        _
    $region64: #{resnet_block_causal3d.4} parent=5 // pred_fallthru
      _
  $region6: #{resnet_block_causal3d.4} parent=0 // loop_footer
    %s17 = sadd.s32 1, %s13
  $region7: #{resnet_block_causal3d.4} parent=0 // loop_footer_branch
    %12 = sbr.rel target = $region3
  $region8: #{resnet_block_causal3d.4} parent=0 // loop_exit
    _

// kernel: resnet_block_causal3d.5
$region0: #{resnet_block_causal3d.5}
  #allocation0 [shape = 'u32[]', space=smem, size = 0x4, offset = 0x4, fixed_abs, tag = 'smem constant byte address 0x4 - core index']
  #allocation1 [shape = 'u32[144,128]{1,0:T(1,128)}', space=vmem, size = 0x12000, scoped, tag = 'internal scratch']
  #allocation2 [shape = 'bf16[3,10,10,64]{3,2,1,0:T(8,128)(2,1)}', space=vmem, size = 0x1e000, scoped, tag = 'scratch operand']
  %s0 = inlined_call_operand.vmem [shape: bf16[2,4,8,8,64], index: 0, kind: input, shape index: {}]
  %s1 = inlined_call_operand.vmem [shape: f32[2,1,64], index: 1, kind: input, shape index: {}]
  %s2 = inlined_call_operand.vmem [shape: f32[2,1,64], index: 2, kind: input, shape index: {}]
  %s3 = inlined_call_operand.vmem [shape: bf16[3,3,192,64], index: 3, kind: input, shape index: {}]
  %s4 = inlined_call_operand.vmem [shape: f32[1,1,64], index: 4, kind: input, shape index: {}]
  %s5 = inlined_call_operand.vmem [shape: bf16[2,4,8,8,32], index: 5, kind: input, shape index: {}]
  %s6 = inlined_call_operand.vmem [shape: bf16[32,64], index: 6, kind: input, shape index: {}]
  %s7 = inlined_call_operand.vmem [shape: f32[1,1,64], index: 7, kind: input, shape index: {}]
  %s8 = inlined_call_operand.hbm [shape: f32[2,4,8,8,64], index: 8, kind: output, shape index: {}]
  %s9 = sld [smem:[#allocation0]]
  $region77: #{resnet_block_causal3d.5} parent=0
    _
  %s11 = ssub.s32 1, %s9
  %s12 = scalar_select 0, %s11, %s9
  $region1: #{resnet_block_causal3d.5} parent=0
    #allocation3 [shape = 'u8[65536]{0}', space=vmem, size = 0x10000, scoped, tag = 'output window, operand 0']
    #allocation4 [shape = 's32[2]{0}', space=sflag, size = 0x8, scoped, tag = 'scoped memory for resnet_block_causal3d.5']
    %13 = vsyncpa [#allocation4], 0
    %s14 = scalar_lea.sflag [#allocation4], 1
    %15 = vsyncpa %s14, 0
    loop: start=0, step=1, limit=10
    $region2: #{resnet_block_causal3d.5} parent=1 // loop_pre_header
      _
    $region3: #{resnet_block_causal3d.5} parent=1 // loop_header
      %s17 = sphi 0, %s21
      %p18 = scmp.ge.s32.totalorder %s17, 10
      %s24 = sphi 0, %s36
      %s25 = sphi 0, %s32
      %s26 = sphi 0, %s24
      %s27 = sphi 0, %s25
      %s28 = sphi 0, %s26
      %s29 = sphi 0, %s27
      %s41 = sphi 0, %s43
      %s44 = sphi 0, %s41
      %s45 = sphi 0, %s44
      %s61 = sphi 0, %s45
      %s67 = sphi 0, %s69
      %s70 = sphi 0, %s67
      %s71 = sphi 0, %s70
      %s87 = sphi 0, %s71
      %s93 = sphi 0, %s95
      %s96 = sphi 0, %s93
      %s97 = sphi 0, %s96
      %s113 = sphi 0, %s97
      %s117 = sphi 0, %s117
      %s119 = sphi 0, %s117
      %s120 = sphi 0, %s119
      %s134 = sphi 0, %s120
      %s138 = sphi 0, %s138
      %s140 = sphi 0, %s138
      %s141 = sphi 0, %s140
      %s155 = sphi 0, %s141
      %s163 = sphi 0, %s165
      %s166 = sphi 0, %s163
      %s167 = sphi 0, %s166
      %s183 = sphi 0, %s167
      %s187 = sphi 0, %s187
      %s189 = sphi 0, %s187
      %s190 = sphi 0, %s189
      %s204 = sphi 0, %s190
      %s208 = sphi 0, %s208
      %s210 = sphi 0, %s208
      %s211 = sphi 0, %s210
      %s225 = sphi 0, %s211
      %s233 = sphi 0, %s235
      %s236 = sphi 0, %s233
      %s237 = sphi 0, %s236
      %s253 = sphi 0, %s237
    $region4: #{resnet_block_causal3d.5} parent=1 // loop_header_branch
      %20 = sbr.rel (%p18) target = $region8
    $region5: #{resnet_block_causal3d.5} parent=1 // loop_body
      %s22 = ssub.s32 %s17, 1
      %s23 = ssub.s32 %s17, 2
      %s30 = sadd.s32 1, %s25
      %p31 = scmp.ge.s32.totalorder %s30, 4
      %s32 = scalar_select %p31, 0, %s30
      %s33 = sadd.s32 1, %s24
      %s34 = scalar_select %p31, %s33, %s24
      %p35 = scmp.ge.s32.totalorder %s34, 2
      %s36 = scalar_select %p35, 0, %s34
      %s37 = ssub.s32 %s24, %s36
      %s38 = ssub.s32 %s25, %s32
      %s39 = sor.u32 %s37, %s38
      %p40 = scmp.eq.s32.totalorder %s39, 0
      %s42 = sadd.s32 %s41, 1
      %s43 = scalar_select %p40, %s41, %s42
      %p46 = pneg %p40
      %p47 = scmp.eq.s32.totalorder %s17, 7
      %p48 = por %p46, %p47
      %p49 = scmp.ne.s32.totalorder %s41, %s44
      %p50 = scmp.eq.s32.totalorder %s17, 0
      %p51 = por %p49, %p50
      %p52 = scmp.ne.s32.totalorder %s41, %s44
      %p53 = scmp.eq.s32.totalorder %s22, 7
      %p54 = por %p52, %p53
      %p55 = scmp.ne.s32.totalorder %s44, %s45
      %p56 = scmp.eq.s32.totalorder %s22, 0
      %p57 = por %p55, %p56
      %p58 = scmp.ne.s32.totalorder %s44, %s45
      %p59 = scmp.eq.s32.totalorder %s23, 7
      %p60 = por %p58, %p59
      %p62 = scmp.ne.s32.totalorder %s45, %s61
      %p63 = scmp.eq.s32.totalorder %s23, 0
      %p64 = por %p62, %p63
      %s65 = ssub.s32 %s24, %s36
      %p66 = scmp.eq.s32.totalorder %s65, 0
      %s68 = sadd.s32 %s67, 1
      %s69 = scalar_select %p66, %s67, %s68
      %p72 = pneg %p66
      %p73 = scmp.eq.s32.totalorder %s17, 7
      %p74 = por %p72, %p73
      %p75 = scmp.ne.s32.totalorder %s67, %s70
      %p76 = scmp.eq.s32.totalorder %s17, 0
      %p77 = por %p75, %p76
      %p78 = scmp.ne.s32.totalorder %s67, %s70
      %p79 = scmp.eq.s32.totalorder %s22, 7
      %p80 = por %p78, %p79
      %p81 = scmp.ne.s32.totalorder %s70, %s71
      %p82 = scmp.eq.s32.totalorder %s22, 0
      %p83 = por %p81, %p82
      %p84 = scmp.ne.s32.totalorder %s70, %s71
      %p85 = scmp.eq.s32.totalorder %s23, 7
      %p86 = por %p84, %p85
      %p88 = scmp.ne.s32.totalorder %s71, %s87
      %p89 = scmp.eq.s32.totalorder %s23, 0
      %p90 = por %p88, %p89
      %s91 = ssub.s32 %s24, %s36
      %p92 = scmp.eq.s32.totalorder %s91, 0
      %s94 = sadd.s32 %s93, 1
      %s95 = scalar_select %p92, %s93, %s94
      %p98 = pneg %p92
      %p99 = scmp.eq.s32.totalorder %s17, 7
      %p100 = por %p98, %p99
      %p101 = scmp.ne.s32.totalorder %s93, %s96
      %p102 = scmp.eq.s32.totalorder %s17, 0
      %p103 = por %p101, %p102
      %p104 = scmp.ne.s32.totalorder %s93, %s96
      %p105 = scmp.eq.s32.totalorder %s22, 7
      %p106 = por %p104, %p105
      %p107 = scmp.ne.s32.totalorder %s96, %s97
      %p108 = scmp.eq.s32.totalorder %s22, 0
      %p109 = por %p107, %p108
      %p110 = scmp.ne.s32.totalorder %s96, %s97
      %p111 = scmp.eq.s32.totalorder %s23, 7
      %p112 = por %p110, %p111
      %p114 = scmp.ne.s32.totalorder %s97, %s113
      %p115 = scmp.eq.s32.totalorder %s23, 0
      %p116 = por %p114, %p115
      %s118 = sadd.s32 %s117, 1
      %p121 = scmp.eq.s32.totalorder %s17, 7
      %p122 = scmp.ne.s32.totalorder %s117, %s119
      %p123 = scmp.eq.s32.totalorder %s17, 0
      %p124 = por %p122, %p123
      %p125 = scmp.ne.s32.totalorder %s117, %s119
      %p126 = scmp.eq.s32.totalorder %s22, 7
      %p127 = por %p125, %p126
      %p128 = scmp.ne.s32.totalorder %s119, %s120
      %p129 = scmp.eq.s32.totalorder %s22, 0
      %p130 = por %p128, %p129
      %p131 = scmp.ne.s32.totalorder %s119, %s120
      %p132 = scmp.eq.s32.totalorder %s23, 7
      %p133 = por %p131, %p132
      %p135 = scmp.ne.s32.totalorder %s120, %s134
      %p136 = scmp.eq.s32.totalorder %s23, 0
      %p137 = por %p135, %p136
      %s139 = sadd.s32 %s138, 1
      %p142 = scmp.eq.s32.totalorder %s17, 7
      %p143 = scmp.ne.s32.totalorder %s138, %s140
      %p144 = scmp.eq.s32.totalorder %s17, 0
      %p145 = por %p143, %p144
      %p146 = scmp.ne.s32.totalorder %s138, %s140
      %p147 = scmp.eq.s32.totalorder %s22, 7
      %p148 = por %p146, %p147
      %p149 = scmp.ne.s32.totalorder %s140, %s141
      %p150 = scmp.eq.s32.totalorder %s22, 0
      %p151 = por %p149, %p150
      %p152 = scmp.ne.s32.totalorder %s140, %s141
      %p153 = scmp.eq.s32.totalorder %s23, 7
      %p154 = por %p152, %p153
      %p156 = scmp.ne.s32.totalorder %s141, %s155
      %p157 = scmp.eq.s32.totalorder %s23, 0
      %p158 = por %p156, %p157
      %s159 = ssub.s32 %s24, %s36
      %s160 = ssub.s32 %s25, %s32
      %s161 = sor.u32 %s159, %s160
      %p162 = scmp.eq.s32.totalorder %s161, 0
      %s164 = sadd.s32 %s163, 1
      %s165 = scalar_select %p162, %s163, %s164
      %p168 = pneg %p162
      %p169 = scmp.eq.s32.totalorder %s17, 7
      %p170 = por %p168, %p169
      %p171 = scmp.ne.s32.totalorder %s163, %s166
      %p172 = scmp.eq.s32.totalorder %s17, 0
      %p173 = por %p171, %p172
      %p174 = scmp.ne.s32.totalorder %s163, %s166
      %p175 = scmp.eq.s32.totalorder %s22, 7
      %p176 = por %p174, %p175
      %p177 = scmp.ne.s32.totalorder %s166, %s167
      %p178 = scmp.eq.s32.totalorder %s22, 0
      %p179 = por %p177, %p178
      %p180 = scmp.ne.s32.totalorder %s166, %s167
      %p181 = scmp.eq.s32.totalorder %s23, 7
      %p182 = por %p180, %p181
      %p184 = scmp.ne.s32.totalorder %s167, %s183
      %p185 = scmp.eq.s32.totalorder %s23, 0
      %p186 = por %p184, %p185
      %s188 = sadd.s32 %s187, 1
      %p191 = scmp.eq.s32.totalorder %s17, 7
      %p192 = scmp.ne.s32.totalorder %s187, %s189
      %p193 = scmp.eq.s32.totalorder %s17, 0
      %p194 = por %p192, %p193
      %p195 = scmp.ne.s32.totalorder %s187, %s189
      %p196 = scmp.eq.s32.totalorder %s22, 7
      %p197 = por %p195, %p196
      %p198 = scmp.ne.s32.totalorder %s189, %s190
      %p199 = scmp.eq.s32.totalorder %s22, 0
      %p200 = por %p198, %p199
      %p201 = scmp.ne.s32.totalorder %s189, %s190
      %p202 = scmp.eq.s32.totalorder %s23, 7
      %p203 = por %p201, %p202
      %p205 = scmp.ne.s32.totalorder %s190, %s204
      %p206 = scmp.eq.s32.totalorder %s23, 0
      %p207 = por %p205, %p206
      %s209 = sadd.s32 %s208, 1
      %p212 = scmp.eq.s32.totalorder %s17, 7
      %p213 = scmp.ne.s32.totalorder %s208, %s210
      %p214 = scmp.eq.s32.totalorder %s17, 0
      %p215 = por %p213, %p214
      %p216 = scmp.ne.s32.totalorder %s208, %s210
      %p217 = scmp.eq.s32.totalorder %s22, 7
      %p218 = por %p216, %p217
      %p219 = scmp.ne.s32.totalorder %s210, %s211
      %p220 = scmp.eq.s32.totalorder %s22, 0
      %p221 = por %p219, %p220
      %p222 = scmp.ne.s32.totalorder %s210, %s211
      %p223 = scmp.eq.s32.totalorder %s23, 7
      %p224 = por %p222, %p223
      %p226 = scmp.ne.s32.totalorder %s211, %s225
      %p227 = scmp.eq.s32.totalorder %s23, 0
      %p228 = por %p226, %p227
      %s229 = ssub.s32 %s24, %s36
      %s230 = ssub.s32 %s25, %s32
      %s231 = sor.u32 %s229, %s230
      %p232 = scmp.eq.s32.totalorder %s231, 0
      %s234 = sadd.s32 %s233, 1
      %s235 = scalar_select %p232, %s233, %s234
      %p238 = pneg %p232
      %p239 = scmp.eq.s32.totalorder %s17, 7
      %p240 = por %p238, %p239
      %p241 = scmp.ne.s32.totalorder %s233, %s236
      %p242 = scmp.eq.s32.totalorder %s17, 0
      %p243 = por %p241, %p242
      %p244 = scmp.ne.s32.totalorder %s233, %s236
      %p245 = scmp.eq.s32.totalorder %s22, 7
      %p246 = por %p244, %p245
      %p247 = scmp.ne.s32.totalorder %s236, %s237
      %p248 = scmp.eq.s32.totalorder %s22, 0
      %p249 = por %p247, %p248
      %p250 = scmp.ne.s32.totalorder %s236, %s237
      %p251 = scmp.eq.s32.totalorder %s23, 7
      %p252 = por %p250, %p251
      %p254 = scmp.ne.s32.totalorder %s237, %s253
      %p255 = scmp.eq.s32.totalorder %s23, 0
      %p256 = por %p254, %p255
      %p257 = scmp.le.s32.totalorder 1, %s17
      %p258 = scmp.lt.s32.totalorder %s17, 9
      %p259 = pnand %p257, %p258
      %p260 = pneg %p259
      // Predicated region
      $region9: #{resnet_block_causal3d.5} parent=5 // pred_check
        _
      $region10: #{resnet_block_causal3d.5} parent=5 // pred_check_branch
        %262 = sbr.rel (%p259) target = $region12
      $region11: #{resnet_block_causal3d.5} parent=5 // pred_region
        %s263 = ssub.s32 %s17, 1
        // Predicated region
        $region13: #{resnet_block_causal3d.5} parent=11 // pred_check
          %p264 = pneg %p130
        $region14: #{resnet_block_causal3d.5} parent=11 // pred_check_branch
          %266 = sbr.rel (%p264) target = $region16
        $region15: #{resnet_block_causal3d.5} parent=11 // pred_region
          _
        $region16: #{resnet_block_causal3d.5} parent=11 // pred_fallthru
          _
        // Predicated region
        $region17: #{resnet_block_causal3d.5} parent=11 // pred_check
          %p267 = pneg %p151
        $region18: #{resnet_block_causal3d.5} parent=11 // pred_check_branch
          %269 = sbr.rel (%p267) target = $region20
        $region19: #{resnet_block_causal3d.5} parent=11 // pred_region
          _
        $region20: #{resnet_block_causal3d.5} parent=11 // pred_fallthru
          _
        // Predicated region
        $region21: #{resnet_block_causal3d.5} parent=11 // pred_check
          %p270 = pneg %p200
        $region22: #{resnet_block_causal3d.5} parent=11 // pred_check_branch
          %272 = sbr.rel (%p270) target = $region24
        $region23: #{resnet_block_causal3d.5} parent=11 // pred_region
          _
        $region24: #{resnet_block_causal3d.5} parent=11 // pred_fallthru
          _
        // Predicated region
        $region25: #{resnet_block_causal3d.5} parent=11 // pred_check
          %p273 = pneg %p221
        $region26: #{resnet_block_causal3d.5} parent=11 // pred_check_branch
          %275 = sbr.rel (%p273) target = $region28
        $region27: #{resnet_block_causal3d.5} parent=11 // pred_region
          _
        $region28: #{resnet_block_causal3d.5} parent=11 // pred_fallthru
          _
      $region12: #{resnet_block_causal3d.5} parent=5 // pred_fallthru
        _
      %p276 = scmp.lt.s32.totalorder %s17, 8
      // Predicated region
      $region29: #{resnet_block_causal3d.5} parent=5 // pred_check
        %p277 = pneg %p276
      $region30: #{resnet_block_causal3d.5} parent=5 // pred_check_branch
        %279 = sbr.rel (%p277) target = $region32
      $region31: #{resnet_block_causal3d.5} parent=5 // pred_region
        // Predicated region
        $region33: #{resnet_block_causal3d.5} parent=31 // pred_check
          %p280 = pneg %p51
        $region34: #{resnet_block_causal3d.5} parent=31 // pred_check_branch
          %282 = sbr.rel (%p280) target = $region36
        $region35: #{resnet_block_causal3d.5} parent=31 // pred_region
          %p283 = scmp.lt.s32.totalorder %s24, 1
          %s284 = scalar_select %p283, %s24, 1
          %p285 = scmp.lt.s32.totalorder %s25, 3
          %s286 = scalar_select %p285, %s25, 3
          %s287 = smul.addr %s286, 8
          %s288 = smul.addr %s284, 32
          %s289 = sadd.s32 %s287, %s288
          %s290 = smul.addr %s289, 4
          %s291 = scalar_lea.vmem %s0, %s290
        $region36: #{resnet_block_causal3d.5} parent=31 // pred_fallthru
          _
        // Predicated region
        $region37: #{resnet_block_causal3d.5} parent=31 // pred_check
          %p292 = pneg %p77
        $region38: #{resnet_block_causal3d.5} parent=31 // pred_check_branch
          %294 = sbr.rel (%p292) target = $region40
        $region39: #{resnet_block_causal3d.5} parent=31 // pred_region
          %p295 = scmp.lt.s32.totalorder %s24, 1
          %s296 = scalar_select %p295, %s24, 1
          %s297 = scalar_lea.vmem %s1, %s296
        $region40: #{resnet_block_causal3d.5} parent=31 // pred_fallthru
          _
        // Predicated region
        $region41: #{resnet_block_causal3d.5} parent=31 // pred_check
          %p298 = pneg %p103
        $region42: #{resnet_block_causal3d.5} parent=31 // pred_check_branch
          %300 = sbr.rel (%p298) target = $region44
        $region43: #{resnet_block_causal3d.5} parent=31 // pred_region
          %p301 = scmp.lt.s32.totalorder %s24, 1
          %s302 = scalar_select %p301, %s24, 1
          %s303 = scalar_lea.vmem %s2, %s302
        $region44: #{resnet_block_causal3d.5} parent=31 // pred_fallthru
          _
        // Predicated region
        $region45: #{resnet_block_causal3d.5} parent=31 // pred_check
          %p304 = pneg %p173
        $region46: #{resnet_block_causal3d.5} parent=31 // pred_check_branch
          %306 = sbr.rel (%p304) target = $region48
        $region47: #{resnet_block_causal3d.5} parent=31 // pred_region
          %p307 = scmp.lt.s32.totalorder %s24, 1
          %s308 = scalar_select %p307, %s24, 1
          %p309 = scmp.lt.s32.totalorder %s25, 3
          %s310 = scalar_select %p309, %s25, 3
          %s311 = smul.addr %s310, 8
          %s312 = smul.addr %s308, 32
          %s313 = sadd.s32 %s311, %s312
          %s314 = smul.addr %s313, 4
          %s315 = scalar_lea.vmem %s5, %s314
        $region48: #{resnet_block_causal3d.5} parent=31 // pred_fallthru
          _
      $region32: #{resnet_block_causal3d.5} parent=5 // pred_fallthru
        _
      %p316 = scmp.le.s32.totalorder 1, %s17
      %p317 = scmp.lt.s32.totalorder %s17, 9
      %p318 = pnand %p316, %p317
      %p319 = pneg %p318
      // Predicated region
      $region49: #{resnet_block_causal3d.5} parent=5 // pred_check
        _
      $region50: #{resnet_block_causal3d.5} parent=5 // pred_check_branch
        %321 = sbr.rel (%p318) target = $region52
      $region51: #{resnet_block_causal3d.5} parent=5 // pred_region
        %s322 = ssub.s32 %s17, 1
        %p323 = scmp.lt.s32.totalorder %s26, 1
        %s324 = scalar_select %p323, %s26, 1
        %p325 = scmp.lt.s32.totalorder %s27, 3
        %s326 = scalar_select %p325, %s27, 3
        %s327 = smul.addr %s326, 8
        %s328 = smul.addr %s324, 32
        %s329 = sadd.s32 %s327, %s328
        %s330 = smul.addr %s329, 4
        %s331 = scalar_lea.vmem %s0, %s330
        %p332 = pneg %p57
        %p333 = pneg %p54
        %p334 = scmp.lt.s32.totalorder %s26, 1
        %s335 = scalar_select %p334, %s26, 1
        %s336 = scalar_lea.vmem %s1, %s335
        %p337 = pneg %p83
        %p338 = pneg %p80
        %p339 = scmp.lt.s32.totalorder %s26, 1
        %s340 = scalar_select %p339, %s26, 1
        %s341 = scalar_lea.vmem %s2, %s340
        %p342 = pneg %p109
        %p343 = pneg %p106
        %p344 = pneg %p130
        %p345 = pneg %p127
        %p346 = pneg %p151
        %p347 = pneg %p148
        %p348 = scmp.lt.s32.totalorder %s26, 1
        %s349 = scalar_select %p348, %s26, 1
        %p350 = scmp.lt.s32.totalorder %s27, 3
        %s351 = scalar_select %p350, %s27, 3
        %s352 = smul.addr %s351, 8
        %s353 = smul.addr %s349, 32
        %s354 = sadd.s32 %s352, %s353
        %s355 = smul.addr %s354, 4
        %s356 = scalar_lea.vmem %s5, %s355
        %p357 = pneg %p179
        %p358 = pneg %p176
        %p359 = pneg %p200
        %p360 = pneg %p197
        %p361 = pneg %p221
        %p362 = pneg %p218
        %p363 = pneg %p249
        %p364 = pneg %p246
        %s365 = sand.u32 %s236, 1
        %s366 = scalar_lea.sflag [#allocation4], %s365
        %s367 = sand.u32 %s236, 1
        %s368 = smul.addr %s367, 64
        %s369 = scalar_lea.vmem [#allocation3], %s368
        %p370 = scmp.lt.s32.totalorder %s26, 1
        %s371 = scalar_select %p370, %s26, 1
        %p372 = scmp.lt.s32.totalorder %s27, 3
        %s373 = scalar_select %p372, %s27, 3
        %s374 = smul.addr %s373, 8
        %s375 = smul.addr %s371, 32
        %s376 = sadd.s32 %s374, %s375
        %s377 = smul.addr %s376, 4
        %s378 = scalar_lea.vmem %s0, %s377
        %p379 = scmp.lt.s32.totalorder %s26, 1
        %s380 = scalar_select %p379, %s26, 1
        %s381 = scalar_lea.vmem %s1, %s380
        %p382 = scmp.lt.s32.totalorder %s26, 1
        %s383 = scalar_select %p382, %s26, 1
        %s384 = scalar_lea.vmem %s2, %s383
        %p385 = scmp.lt.s32.totalorder %s26, 1
        %s386 = scalar_select %p385, %s26, 1
        %p387 = scmp.lt.s32.totalorder %s27, 3
        %s388 = scalar_select %p387, %s27, 3
        %s389 = smul.addr %s388, 8
        %s390 = smul.addr %s386, 32
        %s391 = sadd.s32 %s389, %s390
        %s392 = smul.addr %s391, 4
        %s393 = scalar_lea.vmem %s5, %s392
        %v395 = vld [vmem:[%s378] sm:$0xf]
        %v396 = vld [vmem:[%s378 + $0x4] sm:$0xf]
        %v397 = vld [vmem:[%s378 + $0x8] sm:$0xf]
        %v398 = vld [vmem:[%s378 + $0xc] sm:$0xf]
        %v399 = vld [vmem:[%s378 + $0x10] sm:$0xf]
        %v400 = vld [vmem:[%s378 + $0x14] sm:$0xf]
        %v401 = vld [vmem:[%s378 + $0x18] sm:$0xf]
        %v402 = vld [vmem:[%s378 + $0x1c] sm:$0xf]
        %v403 = vunpack.c.l.bf16 %v395
        %v404 = vunpack.c.l.bf16 %v396
        %v405 = vunpack.c.l.bf16 %v397
        %v406 = vunpack.c.l.bf16 %v398
        %v407 = vunpack.c.l.bf16 %v399
        %v408 = vunpack.c.l.bf16 %v400
        %v409 = vunpack.c.l.bf16 %v401
        %v410 = vunpack.c.l.bf16 %v402
        %v411 = vld [vmem:[%s381] sm:$0x1]
        %v412 = vld [vmem:[%s384] sm:$0x1]
        %v414 = vlaneseq
        %v415 = vshrl.u32 %v414, 7
        %v416 = vsub.s32 0, %v415
        %v417 = vrot.slane %v411, %v416
        %v419 = vmul.f32 %v403, %v417
        %v420 = vmul.f32 %v404, %v417
        %v421 = vmul.f32 %v405, %v417
        %v422 = vmul.f32 %v406, %v417
        %v423 = vmul.f32 %v407, %v417
        %v424 = vmul.f32 %v408, %v417
        %v425 = vmul.f32 %v409, %v417
        %v426 = vmul.f32 %v410, %v417
        %v428 = vlaneseq
        %v429 = vshrl.u32 %v428, 7
        %v430 = vsub.s32 0, %v429
        %v431 = vrot.slane %v412, %v430
        %v433 = vadd.f32 %v419, %v431
        %v434 = vadd.f32 %v420, %v431
        %v435 = vadd.f32 %v421, %v431
        %v436 = vadd.f32 %v422, %v431
        %v437 = vadd.f32 %v423, %v431
        %v438 = vadd.f32 %v424, %v431
        %v439 = vadd.f32 %v425, %v431
        %v440 = vadd.f32 %v426, %v431
        %v441 = vxor.u32 %v433, 2147483648
        %v442 = vxor.u32 %v434, 2147483648
        %v443 = vxor.u32 %v435, 2147483648
        %v444 = vxor.u32 %v436, 2147483648
        %v445 = vxor.u32 %v437, 2147483648
        %v446 = vxor.u32 %v438, 2147483648
        %v447 = vxor.u32 %v439, 2147483648
        %v448 = vxor.u32 %v440, 2147483648
        %v449 = vmul.f32 %v441, 1.442695
        %v450 = vpow.pop %v449
        %v451 = vmul.f32 %v442, 1.442695
        %v452 = vpow.pop %v451
        %v453 = vmul.f32 %v443, 1.442695
        %v454 = vpow.pop %v453
        %v455 = vmul.f32 %v444, 1.442695
        %v456 = vpow.pop %v455
        %v457 = vmul.f32 %v445, 1.442695
        %v458 = vpow.pop %v457
        %v459 = vmul.f32 %v446, 1.442695
        %v460 = vpow.pop %v459
        %v461 = vmul.f32 %v447, 1.442695
        %v462 = vpow.pop %v461
        %v463 = vmul.f32 %v448, 1.442695
        %v464 = vpow.pop %v463
        %v465 = vadd.f32 %v450, 1.0
        %v466 = vadd.f32 %v452, 1.0
        %v467 = vadd.f32 %v454, 1.0
        %v468 = vadd.f32 %v456, 1.0
        %v469 = vadd.f32 %v458, 1.0
        %v470 = vadd.f32 %v460, 1.0
        %v471 = vadd.f32 %v462, 1.0
        %v472 = vadd.f32 %v464, 1.0
        %v473 = vrcp.pop %v465
        %v474 = vmul.f32 1.0, %v473
        %v475 = vrcp.pop %v466
        %v476 = vmul.f32 1.0, %v475
        %v477 = vrcp.pop %v467
        %v478 = vmul.f32 1.0, %v477
        %v479 = vrcp.pop %v468
        %v480 = vmul.f32 1.0, %v479
        %v481 = vrcp.pop %v469
        %v482 = vmul.f32 1.0, %v481
        %v483 = vrcp.pop %v470
        %v484 = vmul.f32 1.0, %v483
        %v485 = vrcp.pop %v471
        %v486 = vmul.f32 1.0, %v485
        %v487 = vrcp.pop %v472
        %v488 = vmul.f32 1.0, %v487
        %v489 = vmul.f32 %v433, %v474
        %v490 = vmul.f32 %v434, %v476
        %v491 = vmul.f32 %v435, %v478
        %v492 = vmul.f32 %v436, %v480
        %v493 = vmul.f32 %v437, %v482
        %v494 = vmul.f32 %v438, %v484
        %v495 = vmul.f32 %v439, %v486
        %v496 = vmul.f32 %v440, %v488
        %v497 = vpack.c.bf16 %v489, %v489
        %v498 = vpack.c.bf16 %v490, %v490
        %v499 = vpack.c.bf16 %v491, %v491
        %v500 = vpack.c.bf16 %v492, %v492
        %v501 = vpack.c.bf16 %v493, %v493
        %v502 = vpack.c.bf16 %v494, %v494
        %v503 = vpack.c.bf16 %v495, %v495
        %v504 = vpack.c.bf16 %v496, %v496
        %v506 = vshrl.u32 %v497, 16
        %v508 = vrot.slane %v506, 7
        %v509 = vshll.u32 %v497, 16
        %v511 = vor.u32 %v508, %v509
        %v513 = vshrl.u32 %v498, 16
        %v515 = vrot.slane %v513, 7
        %v516 = vshll.u32 %v498, 16
        %v518 = vor.u32 %v515, %v516
        %v520 = vshrl.u32 %v499, 16
        %v522 = vrot.slane %v520, 7
        %v523 = vshll.u32 %v499, 16
        %v525 = vor.u32 %v522, %v523
        %v527 = vshrl.u32 %v500, 16
        %v529 = vrot.slane %v527, 7
        %v530 = vshll.u32 %v500, 16
        %v532 = vor.u32 %v529, %v530
        %v534 = vshrl.u32 %v501, 16
        %v536 = vrot.slane %v534, 7
        %v537 = vshll.u32 %v501, 16
        %v539 = vor.u32 %v536, %v537
        %v541 = vshrl.u32 %v502, 16
        %v543 = vrot.slane %v541, 7
        %v544 = vshll.u32 %v502, 16
        %v546 = vor.u32 %v543, %v544
        %v548 = vshrl.u32 %v503, 16
        %v550 = vrot.slane %v548, 7
        %v551 = vshll.u32 %v503, 16
        %v553 = vor.u32 %v550, %v551
        %v555 = vshrl.u32 %v504, 16
        %v557 = vrot.slane %v555, 7
        %v558 = vshll.u32 %v504, 16
        %v560 = vor.u32 %v557, %v558
        %v577 = vrot.slane %v497, 7
        %v578 = vrot.slane %v498, 7
        %v579 = vrot.slane %v499, 7
        %v580 = vrot.slane %v500, 7
        %v581 = vrot.slane %v501, 7
        %v582 = vrot.slane %v502, 7
        %v583 = vrot.slane %v503, 7
        %v584 = vrot.slane %v504, 7
        %vm593 = vcmask 1040384
        %vm594 = vsmask.f32 256
        %vm595 = vmand %vm593, %vm594
        %v596 = vsel %vm595, %v497, %v511
        %v597 = vsel %vm595, %v498, %v518
        %v598 = vsel %vm595, %v499, %v525
        %v599 = vsel %vm595, %v500, %v532
        %v600 = vsel %vm595, %v501, %v539
        %v601 = vsel %vm595, %v502, %v546
        %v602 = vsel %vm595, %v503, %v553
        %v603 = vsel %vm595, %v504, %v560
        %vm604 = vcmask 1044480
        %vm605 = vsmask.f32 4352
        %vm606 = vmand %vm604, %vm605
        %v607 = vsel %vm606, %v596, %v577
        %v608 = vsel %vm606, %v597, %v578
        %v609 = vsel %vm606, %v598, %v579
        %v610 = vsel %vm606, %v599, %v580
        %v611 = vsel %vm606, %v600, %v581
        %v612 = vsel %vm606, %v601, %v582
        %v613 = vsel %vm606, %v602, %v583
        %v614 = vsel %vm606, %v603, %v584
        %p615 = scmp.lt.s32.totalorder %s27, 0
        %s616 = ssub.s32 0, %s27
        %s617 = scalar_select %p615, %s616, %s27
        %s618 = sdiv.u32.pop %s617, 3
        %s619 = srem.u32.pop %s617, 3
        %s620 = ssub.s32 0, %s619
        %s621 = scalar_select %p615, %s620, %s619
        %p622 = scmp.ne.s32.totalorder %s621, 0
        %p623 = scmp.lt.s32.totalorder %s621, 0
        %p624 = pnand %p623, %p622
        %p625 = pneg %p624
        %s626 = sadd.s32 %s621, 3
        %s627 = scalar_select %p625, %s626, %s621
        %p628 = scmp.eq.s32.totalorder %s627, 0
        // Predicated region
        $region53: #{resnet_block_causal3d.5} parent=51 // pred_check
          %p629 = pneg %p628
        $region54: #{resnet_block_causal3d.5} parent=51 // pred_check_branch
          %631 = sbr.rel (%p629) target = $region56
        $region55: #{resnet_block_causal3d.5} parent=51 // pred_region
          %v640 = vunpack.c.l.b16 %v607
          %v641 = vunpack.c.h.b16 %v607
          %v642 = vunpack.c.l.b16 %v608
          %v643 = vunpack.c.h.b16 %v608
          %v644 = vunpack.c.l.b16 %v609
          %v645 = vunpack.c.h.b16 %v609
          %v646 = vunpack.c.l.b16 %v610
          %v647 = vunpack.c.h.b16 %v610
          %v648 = vunpack.c.l.b16 %v611
          %v649 = vunpack.c.h.b16 %v611
          %v650 = vunpack.c.l.b16 %v612
          %v651 = vunpack.c.h.b16 %v612
          %v652 = vunpack.c.l.b16 %v613
          %v653 = vunpack.c.h.b16 %v613
          %v654 = vunpack.c.l.b16 %v614
          %v655 = vunpack.c.h.b16 %v614
          %v656 = vpack.c.b16 %v640, %v640
          %v657 = vpack.c.b16 %v641, %v641
          %v658 = vpack.c.b16 %v642, %v642
          %v659 = vpack.c.b16 %v643, %v643
          %v660 = vpack.c.b16 %v644, %v644
          %v661 = vpack.c.b16 %v645, %v645
          %v662 = vpack.c.b16 %v646, %v646
          %v663 = vpack.c.b16 %v647, %v647
          %v664 = vpack.c.b16 %v648, %v648
          %v665 = vpack.c.b16 %v649, %v649
          %v666 = vpack.c.b16 %v650, %v650
          %v667 = vpack.c.b16 %v651, %v651
          %v668 = vpack.c.b16 %v652, %v652
          %v669 = vpack.c.b16 %v653, %v653
          %v670 = vpack.c.b16 %v654, %v654
          %v671 = vpack.c.b16 %v655, %v655
          %vm688 = vcmask 519168
          %689 = vst.msk [vmem:[#allocation2] sm:$0xf] %vm688, %v656
          %vm690 = vcmask 516096
          %691 = vst.msk [vmem:[#allocation2 + $0x4] sm:$0x1] %vm690, %v657
          %692 = vst.msk [vmem:[#allocation2 + $0x8] sm:$0xf] %vm688, %v656
          %693 = vst.msk [vmem:[#allocation2 + $0xc] sm:$0x1] %vm690, %v657
          %694 = vst.msk [vmem:[#allocation2 + $0x10] sm:$0xf] %vm688, %v658
          %695 = vst.msk [vmem:[#allocation2 + $0x14] sm:$0x1] %vm690, %v659
          %696 = vst.msk [vmem:[#allocation2 + $0x18] sm:$0xf] %vm688, %v660
          %697 = vst.msk [vmem:[#allocation2 + $0x1c] sm:$0x1] %vm690, %v661
          %698 = vst.msk [vmem:[#allocation2 + $0x20] sm:$0xf] %vm688, %v662
          %699 = vst.msk [vmem:[#allocation2 + $0x24] sm:$0x1] %vm690, %v663
          %700 = vst.msk [vmem:[#allocation2 + $0x28] sm:$0xf] %vm688, %v664
          %701 = vst.msk [vmem:[#allocation2 + $0x2c] sm:$0x1] %vm690, %v665
          %702 = vst.msk [vmem:[#allocation2 + $0x30] sm:$0xf] %vm688, %v666
          %703 = vst.msk [vmem:[#allocation2 + $0x34] sm:$0x1] %vm690, %v667
          %704 = vst.msk [vmem:[#allocation2 + $0x38] sm:$0xf] %vm688, %v668
          %705 = vst.msk [vmem:[#allocation2 + $0x3c] sm:$0x1] %vm690, %v669
          %706 = vst.msk [vmem:[#allocation2 + $0x40] sm:$0xf] %vm688, %v670
          %707 = vst.msk [vmem:[#allocation2 + $0x44] sm:$0x1] %vm690, %v671
          %708 = vst.msk [vmem:[#allocation2 + $0x48] sm:$0xf] %vm688, %v670
          %709 = vst.msk [vmem:[#allocation2 + $0x4c] sm:$0x1] %vm690, %v671
        $region56: #{resnet_block_causal3d.5} parent=51 // pred_fallthru
          _
        %p710 = scmp.eq.s32.totalorder %s627, 1
        // Predicated region
        $region57: #{resnet_block_causal3d.5} parent=51 // pred_check
          %p711 = pneg %p710
        $region58: #{resnet_block_causal3d.5} parent=51 // pred_check_branch
          %713 = sbr.rel (%p711) target = $region60
        $region59: #{resnet_block_causal3d.5} parent=51 // pred_region
          %v722 = vunpack.c.l.b16 %v607
          %v723 = vunpack.c.h.b16 %v607
          %v724 = vunpack.c.l.b16 %v608
          %v725 = vunpack.c.h.b16 %v608
          %v726 = vunpack.c.l.b16 %v609
          %v727 = vunpack.c.h.b16 %v609
          %v728 = vunpack.c.l.b16 %v610
          %v729 = vunpack.c.h.b16 %v610
          %v730 = vunpack.c.l.b16 %v611
          %v731 = vunpack.c.h.b16 %v611
          %v732 = vunpack.c.l.b16 %v612
          %v733 = vunpack.c.h.b16 %v612
          %v734 = vunpack.c.l.b16 %v613
          %v735 = vunpack.c.h.b16 %v613
          %v736 = vunpack.c.l.b16 %v614
          %v737 = vunpack.c.h.b16 %v614
          %v738 = vpack.c.b16 %v722, %v722
          %v739 = vpack.c.b16 %v723, %v723
          %v740 = vpack.c.b16 %v724, %v724
          %v741 = vpack.c.b16 %v725, %v725
          %v742 = vpack.c.b16 %v726, %v726
          %v743 = vpack.c.b16 %v727, %v727
          %v744 = vpack.c.b16 %v728, %v728
          %v745 = vpack.c.b16 %v729, %v729
          %v746 = vpack.c.b16 %v730, %v730
          %v747 = vpack.c.b16 %v731, %v731
          %v748 = vpack.c.b16 %v732, %v732
          %v749 = vpack.c.b16 %v733, %v733
          %v750 = vpack.c.b16 %v734, %v734
          %v751 = vpack.c.b16 %v735, %v735
          %v752 = vpack.c.b16 %v736, %v736
          %v753 = vpack.c.b16 %v737, %v737
          %s770 = scalar_lea.vmem [#allocation2], 80
          %vm771 = vcmask 519168
          %772 = vst.msk [vmem:[%s770] sm:$0xf] %vm771, %v738
          %vm773 = vcmask 516096
          %774 = vst.msk [vmem:[%s770 + $0x4] sm:$0x1] %vm773, %v739
          %775 = vst.msk [vmem:[%s770 + $0x8] sm:$0xf] %vm771, %v738
          %776 = vst.msk [vmem:[%s770 + $0xc] sm:$0x1] %vm773, %v739
          %777 = vst.msk [vmem:[%s770 + $0x10] sm:$0xf] %vm771, %v740
          %778 = vst.msk [vmem:[%s770 + $0x14] sm:$0x1] %vm773, %v741
          %779 = vst.msk [vmem:[%s770 + $0x18] sm:$0xf] %vm771, %v742
          %780 = vst.msk [vmem:[%s770 + $0x1c] sm:$0x1] %vm773, %v743
          %781 = vst.msk [vmem:[%s770 + $0x20] sm:$0xf] %vm771, %v744
          %782 = vst.msk [vmem:[%s770 + $0x24] sm:$0x1] %vm773, %v745
          %783 = vst.msk [vmem:[%s770 + $0x28] sm:$0xf] %vm771, %v746
          %784 = vst.msk [vmem:[%s770 + $0x2c] sm:$0x1] %vm773, %v747
          %785 = vst.msk [vmem:[%s770 + $0x30] sm:$0xf] %vm771, %v748
          %786 = vst.msk [vmem:[%s770 + $0x34] sm:$0x1] %vm773, %v749
          %787 = vst.msk [vmem:[%s770 + $0x38] sm:$0xf] %vm771, %v750
          %788 = vst.msk [vmem:[%s770 + $0x3c] sm:$0x1] %vm773, %v751
          %789 = vst.msk [vmem:[%s770 + $0x40] sm:$0xf] %vm771, %v752
          %790 = vst.msk [vmem:[%s770 + $0x44] sm:$0x1] %vm773, %v753
          %791 = vst.msk [vmem:[%s770 + $0x48] sm:$0xf] %vm771, %v752
          %792 = vst.msk [vmem:[%s770 + $0x4c] sm:$0x1] %vm773, %v753
        $region60: #{resnet_block_causal3d.5} parent=51 // pred_fallthru
          _
        %p793 = scmp.eq.s32.totalorder %s627, 2
        // Predicated region
        $region61: #{resnet_block_causal3d.5} parent=51 // pred_check
          %p794 = pneg %p793
        $region62: #{resnet_block_causal3d.5} parent=51 // pred_check_branch
          %796 = sbr.rel (%p794) target = $region64
        $region63: #{resnet_block_causal3d.5} parent=51 // pred_region
          %v805 = vunpack.c.l.b16 %v607
          %v806 = vunpack.c.h.b16 %v607
          %v807 = vunpack.c.l.b16 %v608
          %v808 = vunpack.c.h.b16 %v608
          %v809 = vunpack.c.l.b16 %v609
          %v810 = vunpack.c.h.b16 %v609
          %v811 = vunpack.c.l.b16 %v610
          %v812 = vunpack.c.h.b16 %v610
          %v813 = vunpack.c.l.b16 %v611
          %v814 = vunpack.c.h.b16 %v611
          %v815 = vunpack.c.l.b16 %v612
          %v816 = vunpack.c.h.b16 %v612
          %v817 = vunpack.c.l.b16 %v613
          %v818 = vunpack.c.h.b16 %v613
          %v819 = vunpack.c.l.b16 %v614
          %v820 = vunpack.c.h.b16 %v614
          %v821 = vpack.c.b16 %v805, %v805
          %v822 = vpack.c.b16 %v806, %v806
          %v823 = vpack.c.b16 %v807, %v807
          %v824 = vpack.c.b16 %v808, %v808
          %v825 = vpack.c.b16 %v809, %v809
          %v826 = vpack.c.b16 %v810, %v810
          %v827 = vpack.c.b16 %v811, %v811
          %v828 = vpack.c.b16 %v812, %v812
          %v829 = vpack.c.b16 %v813, %v813
          %v830 = vpack.c.b16 %v814, %v814
          %v831 = vpack.c.b16 %v815, %v815
          %v832 = vpack.c.b16 %v816, %v816
          %v833 = vpack.c.b16 %v817, %v817
          %v834 = vpack.c.b16 %v818, %v818
          %v835 = vpack.c.b16 %v819, %v819
          %v836 = vpack.c.b16 %v820, %v820
          %s853 = scalar_lea.vmem [#allocation2], 160
          %vm854 = vcmask 519168
          %855 = vst.msk [vmem:[%s853] sm:$0xf] %vm854, %v821
          %vm856 = vcmask 516096
          %857 = vst.msk [vmem:[%s853 + $0x4] sm:$0x1] %vm856, %v822
          %858 = vst.msk [vmem:[%s853 + $0x8] sm:$0xf] %vm854, %v821
          %859 = vst.msk [vmem:[%s853 + $0xc] sm:$0x1] %vm856, %v822
          %860 = vst.msk [vmem:[%s853 + $0x10] sm:$0xf] %vm854, %v823
          %861 = vst.msk [vmem:[%s853 + $0x14] sm:$0x1] %vm856, %v824
          %862 = vst.msk [vmem:[%s853 + $0x18] sm:$0xf] %vm854, %v825
          %863 = vst.msk [vmem:[%s853 + $0x1c] sm:$0x1] %vm856, %v826
          %864 = vst.msk [vmem:[%s853 + $0x20] sm:$0xf] %vm854, %v827
          %865 = vst.msk [vmem:[%s853 + $0x24] sm:$0x1] %vm856, %v828
          %866 = vst.msk [vmem:[%s853 + $0x28] sm:$0xf] %vm854, %v829
          %867 = vst.msk [vmem:[%s853 + $0x2c] sm:$0x1] %vm856, %v830
          %868 = vst.msk [vmem:[%s853 + $0x30] sm:$0xf] %vm854, %v831
          %869 = vst.msk [vmem:[%s853 + $0x34] sm:$0x1] %vm856, %v832
          %870 = vst.msk [vmem:[%s853 + $0x38] sm:$0xf] %vm854, %v833
          %871 = vst.msk [vmem:[%s853 + $0x3c] sm:$0x1] %vm856, %v834
          %872 = vst.msk [vmem:[%s853 + $0x40] sm:$0xf] %vm854, %v835
          %873 = vst.msk [vmem:[%s853 + $0x44] sm:$0x1] %vm856, %v836
          %874 = vst.msk [vmem:[%s853 + $0x48] sm:$0xf] %vm854, %v835
          %875 = vst.msk [vmem:[%s853 + $0x4c] sm:$0x1] %vm856, %v836
        $region64: #{resnet_block_causal3d.5} parent=51 // pred_fallthru
          _
        %s876 = sadd.s32 %s27, 4294967294
        %p877 = scmp.gt.s32.totalorder %s876, 0
        %s878 = scalar_select %p877, %s876, 0
        %p879 = scmp.lt.s32.totalorder %s878, 0
        %s880 = ssub.s32 0, %s878
        %s881 = scalar_select %p879, %s880, %s878
        %s882 = sdiv.u32.pop %s881, 3
        %s883 = srem.u32.pop %s881, 3
        %s884 = ssub.s32 0, %s883
        %s885 = scalar_select %p879, %s884, %s883
        %p886 = scmp.ne.s32.totalorder %s885, 0
        %p887 = scmp.lt.s32.totalorder %s885, 0
        %p888 = pnand %p887, %p886
        %p889 = pneg %p888
        %s890 = sadd.s32 %s885, 3
        %s891 = scalar_select %p889, %s890, %s885
        %s892 = smul.u32 %s891, 20
        %s893 = smul.addr %s892, 4
        %s894 = scalar_lea.vmem [#allocation2], %s893
        %v895 = vld [vmem:[%s894] sm:$0xf]
        %v896 = vld [vmem:[%s894 + $0x4] sm:$0x1]
        %v897 = vld [vmem:[%s894 + $0x8] sm:$0xf]
        %v898 = vld [vmem:[%s894 + $0xc] sm:$0x1]
        %v899 = vld [vmem:[%s894 + $0x10] sm:$0xf]
        %v900 = vld [vmem:[%s894 + $0x14] sm:$0x1]
        %v901 = vld [vmem:[%s894 + $0x18] sm:$0xf]
        %v902 = vld [vmem:[%s894 + $0x1c] sm:$0x1]
        %v903 = vld [vmem:[%s894 + $0x20] sm:$0xf]
        %v904 = vld [vmem:[%s894 + $0x24] sm:$0x1]
        %v905 = vld [vmem:[%s894 + $0x28] sm:$0xf]
        %v906 = vld [vmem:[%s894 + $0x2c] sm:$0x1]
        %v907 = vld [vmem:[%s894 + $0x30] sm:$0xf]
        %v908 = vld [vmem:[%s894 + $0x34] sm:$0x1]
        %v909 = vld [vmem:[%s894 + $0x38] sm:$0xf]
        %v910 = vld [vmem:[%s894 + $0x3c] sm:$0x1]
        %v911 = vld [vmem:[%s894 + $0x40] sm:$0xf]
        %v912 = vld [vmem:[%s894 + $0x44] sm:$0x1]
        %v913 = vld [vmem:[%s894 + $0x48] sm:$0xf]
        %v914 = vld [vmem:[%s894 + $0x4c] sm:$0x1]
        %v923 = vunpack.c.l.b16 %v897
        %v924 = vunpack.c.l.b16 %v899
        %v925 = vunpack.c.l.b16 %v901
        %v926 = vunpack.c.l.b16 %v903
        %v927 = vunpack.c.l.b16 %v905
        %v928 = vunpack.c.l.b16 %v907
        %v929 = vunpack.c.l.b16 %v909
        %v930 = vunpack.c.l.b16 %v911
        %v931 = vpack.c.b16 %v923, %v923
        %v932 = vpack.c.b16 %v924, %v924
        %v933 = vpack.c.b16 %v925, %v925
        %v934 = vpack.c.b16 %v926, %v926
        %v935 = vpack.c.b16 %v927, %v927
        %v936 = vpack.c.b16 %v928, %v928
        %v937 = vpack.c.b16 %v929, %v929
        %v938 = vpack.c.b16 %v930, %v930
        %939 = vrot.lane.b32.xlu0 %v931, 64
        %v940 = vpop.permute.xlu0 %939
        %941 = vrot.lane.b32.xlu0 %v932, 64
        %v942 = vpop.permute.xlu0 %941
        %943 = vrot.lane.b32.xlu0 %v933, 64
        %v944 = vpop.permute.xlu0 %943
        %945 = vrot.lane.b32.xlu0 %v934, 64
        %v946 = vpop.permute.xlu0 %945
        %947 = vrot.lane.b32.xlu0 %v935, 64
        %v948 = vpop.permute.xlu0 %947
        %949 = vrot.lane.b32.xlu0 %v936, 64
        %v950 = vpop.permute.xlu0 %949
        %951 = vrot.lane.b32.xlu0 %v937, 64
        %v952 = vpop.permute.xlu0 %951
        %953 = vrot.lane.b32.xlu0 %v938, 64
        %v954 = vpop.permute.xlu0 %953
        %vm955 = vcmask 523264
        %v958 = vsel %vm955, %v895, %v940
        %v961 = vsel %vm955, %v897, %v942
        %v964 = vsel %vm955, %v899, %v944
        %v967 = vsel %vm955, %v901, %v946
        %v970 = vsel %vm955, %v903, %v948
        %v973 = vsel %vm955, %v905, %v950
        %v976 = vsel %vm955, %v907, %v952
        %v979 = vsel %vm955, %v909, %v954
        %v989 = vunpack.c.l.b16 %v958
        %v990 = vunpack.c.l.b16 %v961
        %v991 = vunpack.c.l.b16 %v964
        %v992 = vunpack.c.l.b16 %v967
        %v993 = vunpack.c.l.b16 %v970
        %v994 = vunpack.c.l.b16 %v973
        %v995 = vunpack.c.l.b16 %v976
        %v996 = vunpack.c.l.b16 %v979
        %v997 = vunpack.c.l.b16 %v913
        %v998 = vld [vmem:[%s3] sm:$0xf]
        %v999 = vld [vmem:[%s3 + $0x4] sm:$0xf]
        %v1000 = vld [vmem:[%s3 + $0x8] sm:$0xf]
        %v1001 = vld [vmem:[%s3 + $0xc] sm:$0xf]
        %v1002 = vld [vmem:[%s3 + $0x10] sm:$0xf]
        %v1003 = vld [vmem:[%s3 + $0x14] sm:$0xf]
        %v1004 = vld [vmem:[%s3 + $0x18] sm:$0xf]
        %v1005 = vld [vmem:[%s3 + $0x1c] sm:$0xf]
        %v1006 = vld [vmem:[%s3 + $0x20] sm:$0xf]
        %v1007 = vld [vmem:[%s3 + $0x24] sm:$0xf]
        %v1008 = vld [vmem:[%s3 + $0x28] sm:$0xf]
        %v1009 = vld [vmem:[%s3 + $0x2c] sm:$0xf]
        %v1010 = vld [vmem:[%s3 + $0x30] sm:$0xf]
        %v1011 = vld [vmem:[%s3 + $0x34] sm:$0xf]
        %v1012 = vld [vmem:[%s3 + $0x38] sm:$0xf]
        %v1013 = vld [vmem:[%s3 + $0x3c] sm:$0xf]
        %v1014 = vld [vmem:[%s3 + $0x40] sm:$0xf]
        %v1015 = vld [vmem:[%s3 + $0x44] sm:$0xf]
        %v1016 = vld [vmem:[%s3 + $0x48] sm:$0xf]
        %v1017 = vld [vmem:[%s3 + $0x4c] sm:$0xf]
        %v1018 = vld [vmem:[%s3 + $0x50] sm:$0xf]
        %v1019 = vld [vmem:[%s3 + $0x54] sm:$0xf]
        %v1020 = vld [vmem:[%s3 + $0x58] sm:$0xf]
        %v1021 = vld [vmem:[%s3 + $0x5c] sm:$0xf]
        %v1031 = vunpack.c.l.b16 %v895
        %v1032 = vunpack.c.l.b16 %v896
        %v1033 = vunpack.c.l.b16 %v898
        %v1034 = vunpack.c.l.b16 %v900
        %v1035 = vunpack.c.l.b16 %v902
        %v1036 = vunpack.c.l.b16 %v904
        %v1037 = vunpack.c.l.b16 %v906
        %v1038 = vunpack.c.l.b16 %v908
        %v1039 = vunpack.c.l.b16 %v910
        %v1040 = vpack.c.b16 %v1032, %v1031
        %v1041 = vpack.c.b16 %v1033, %v923
        %v1042 = vpack.c.b16 %v1034, %v924
        %v1043 = vpack.c.b16 %v1035, %v925
        %v1044 = vpack.c.b16 %v1036, %v926
        %v1045 = vpack.c.b16 %v1037, %v927
        %v1046 = vpack.c.b16 %v1038, %v928
        %v1047 = vpack.c.b16 %v1039, %v929
        %v1049 = vunpack.c.l.b16 %v912
        %v1050 = vpack.c.b16 %v1049, %v930
        %1051 = vrot.lane.b32.xlu0 %v1041, 64
        %v1052 = vpop.permute.xlu0 %1051
        %1053 = vrot.lane.b32.xlu0 %v1042, 64
        %v1054 = vpop.permute.xlu0 %1053
        %1055 = vrot.lane.b32.xlu0 %v1043, 64
        %v1056 = vpop.permute.xlu0 %1055
        %1057 = vrot.lane.b32.xlu0 %v1044, 64
        %v1058 = vpop.permute.xlu0 %1057
        %1059 = vrot.lane.b32.xlu0 %v1045, 64
        %v1060 = vpop.permute.xlu0 %1059
        %1061 = vrot.lane.b32.xlu0 %v1046, 64
        %v1062 = vpop.permute.xlu0 %1061
        %1063 = vrot.lane.b32.xlu0 %v1047, 64
        %v1064 = vpop.permute.xlu0 %1063
        %1065 = vrot.lane.b32.xlu0 %v1050, 64
        %v1066 = vpop.permute.xlu0 %1065
        %v1068 = vunpack.c.l.b16 %v914
        %v1071 = vsel %vm955, %v1040, %v1052
        %v1074 = vsel %vm955, %v1041, %v1054
        %v1077 = vsel %vm955, %v1042, %v1056
        %v1080 = vsel %vm955, %v1043, %v1058
        %v1083 = vsel %vm955, %v1044, %v1060
        %v1086 = vsel %vm955, %v1045, %v1062
        %v1089 = vsel %vm955, %v1046, %v1064
        %v1092 = vsel %vm955, %v1047, %v1066
        %v1101 = vunpack.c.l.b16 %v1071
        %v1102 = vunpack.c.h.b16 %v1071
        %v1103 = vunpack.c.l.b16 %v1074
        %v1104 = vunpack.c.h.b16 %v1074
        %v1105 = vunpack.c.l.b16 %v1077
        %v1106 = vunpack.c.h.b16 %v1077
        %v1107 = vunpack.c.l.b16 %v1080
        %v1108 = vunpack.c.h.b16 %v1080
        %v1109 = vunpack.c.l.b16 %v1083
        %v1110 = vunpack.c.h.b16 %v1083
        %v1111 = vunpack.c.l.b16 %v1086
        %v1112 = vunpack.c.h.b16 %v1086
        %v1113 = vunpack.c.l.b16 %v1089
        %v1114 = vunpack.c.h.b16 %v1089
        %v1115 = vunpack.c.l.b16 %v1092
        %v1116 = vunpack.c.h.b16 %v1092
        %v1117 = vpack.c.b16 %v924, %v1101
        %v1118 = vpack.c.b16 %v1034, %v1102
        %v1119 = vpack.c.b16 %v925, %v1103
        %v1120 = vpack.c.b16 %v1035, %v1104
        %v1121 = vpack.c.b16 %v926, %v1105
        %v1122 = vpack.c.b16 %v1036, %v1106
        %v1123 = vpack.c.b16 %v927, %v1107
        %v1124 = vpack.c.b16 %v1037, %v1108
        %v1125 = vpack.c.b16 %v928, %v1109
        %v1126 = vpack.c.b16 %v1038, %v1110
        %v1127 = vpack.c.b16 %v929, %v1111
        %v1128 = vpack.c.b16 %v1039, %v1112
        %v1129 = vpack.c.b16 %v930, %v1113
        %v1130 = vpack.c.b16 %v1049, %v1114
        %v1131 = vpack.c.b16 %v997, %v1115
        %v1132 = vpack.c.b16 %v1068, %v1116
        %vm1133 = vsmask.f32 3328
        %vm1134 = vsmask.f32 7440
        %vm1135 = vmor %vm1133, %vm1134
        %v1137 = vshrl.u32 %v1117, 16
        %v1139 = vrot.slane %v1137, 4
        %v1140 = vshll.u32 %v1117, 16
        %v1142 = vrot.slane %v1140, 5
        %v1143 = vor.u32 %v1139, %v1142
        %v1144 = vrot.slane %v1143, 4
        %v1146 = vshll.u32 %v1118, 16
        %v1148 = vrot.slane %v1146, 5
        %v1149 = vsel %vm1135, %v1144, %v1148
        %v1151 = vshrl.u32 %v1119, 16
        %v1153 = vrot.slane %v1151, 4
        %v1154 = vshll.u32 %v1119, 16
        %v1156 = vrot.slane %v1154, 5
        %v1157 = vor.u32 %v1153, %v1156
        %v1158 = vrot.slane %v1157, 4
        %v1160 = vshll.u32 %v1120, 16
        %v1162 = vrot.slane %v1160, 5
        %v1163 = vsel %vm1135, %v1158, %v1162
        %v1165 = vshrl.u32 %v1121, 16
        %v1167 = vrot.slane %v1165, 4
        %v1168 = vshll.u32 %v1121, 16
        %v1170 = vrot.slane %v1168, 5
        %v1171 = vor.u32 %v1167, %v1170
        %v1172 = vrot.slane %v1171, 4
        %v1174 = vshll.u32 %v1122, 16
        %v1176 = vrot.slane %v1174, 5
        %v1177 = vsel %vm1135, %v1172, %v1176
        %v1179 = vshrl.u32 %v1123, 16
        %v1181 = vrot.slane %v1179, 4
        %v1182 = vshll.u32 %v1123, 16
        %v1184 = vrot.slane %v1182, 5
        %v1185 = vor.u32 %v1181, %v1184
        %v1186 = vrot.slane %v1185, 4
        %v1188 = vshll.u32 %v1124, 16
        %v1190 = vrot.slane %v1188, 5
        %v1191 = vsel %vm1135, %v1186, %v1190
        %v1193 = vshrl.u32 %v1125, 16
        %v1195 = vrot.slane %v1193, 4
        %v1196 = vshll.u32 %v1125, 16
        %v1198 = vrot.slane %v1196, 5
        %v1199 = vor.u32 %v1195, %v1198
        %v1200 = vrot.slane %v1199, 4
        %v1202 = vshll.u32 %v1126, 16
        %v1204 = vrot.slane %v1202, 5
        %v1205 = vsel %vm1135, %v1200, %v1204
        %v1207 = vshrl.u32 %v1127, 16
        %v1209 = vrot.slane %v1207, 4
        %v1210 = vshll.u32 %v1127, 16
        %v1212 = vrot.slane %v1210, 5
        %v1213 = vor.u32 %v1209, %v1212
        %v1214 = vrot.slane %v1213, 4
        %v1216 = vshll.u32 %v1128, 16
        %v1218 = vrot.slane %v1216, 5
        %v1219 = vsel %vm1135, %v1214, %v1218
        %v1221 = vshrl.u32 %v1129, 16
        %v1223 = vrot.slane %v1221, 4
        %v1224 = vshll.u32 %v1129, 16
        %v1226 = vrot.slane %v1224, 5
        %v1227 = vor.u32 %v1223, %v1226
        %v1228 = vrot.slane %v1227, 4
        %v1230 = vshll.u32 %v1130, 16
        %v1232 = vrot.slane %v1230, 5
        %v1233 = vsel %vm1135, %v1228, %v1232
        %v1235 = vshrl.u32 %v1131, 16
        %v1237 = vrot.slane %v1235, 4
        %v1238 = vshll.u32 %v1131, 16
        %v1240 = vrot.slane %v1238, 5
        %v1241 = vor.u32 %v1237, %v1240
        %v1242 = vrot.slane %v1241, 4
        %v1244 = vshll.u32 %v1132, 16
        %v1246 = vrot.slane %v1244, 5
        %v1247 = vsel %vm1135, %v1242, %v1246
        %s1248 = scalar_lea.vmem %s3, 96
        %v1249 = vld [vmem:[%s1248] sm:$0xf]
        %v1250 = vld [vmem:[%s1248 + $0x4] sm:$0xf]
        %v1251 = vld [vmem:[%s1248 + $0x8] sm:$0xf]
        %v1252 = vld [vmem:[%s1248 + $0xc] sm:$0xf]
        %v1253 = vld [vmem:[%s1248 + $0x10] sm:$0xf]
        %v1254 = vld [vmem:[%s1248 + $0x14] sm:$0xf]
        %v1255 = vld [vmem:[%s1248 + $0x18] sm:$0xf]
        %v1256 = vld [vmem:[%s1248 + $0x1c] sm:$0xf]
        %v1257 = vld [vmem:[%s1248 + $0x20] sm:$0xf]
        %v1258 = vld [vmem:[%s1248 + $0x24] sm:$0xf]
        %v1259 = vld [vmem:[%s1248 + $0x28] sm:$0xf]
        %v1260 = vld [vmem:[%s1248 + $0x2c] sm:$0xf]
        %v1261 = vld [vmem:[%s1248 + $0x30] sm:$0xf]
        %v1262 = vld [vmem:[%s1248 + $0x34] sm:$0xf]
        %v1263 = vld [vmem:[%s1248 + $0x38] sm:$0xf]
        %v1264 = vld [vmem:[%s1248 + $0x3c] sm:$0xf]
        %v1265 = vld [vmem:[%s1248 + $0x40] sm:$0xf]
        %v1266 = vld [vmem:[%s1248 + $0x44] sm:$0xf]
        %v1267 = vld [vmem:[%s1248 + $0x48] sm:$0xf]
        %v1268 = vld [vmem:[%s1248 + $0x4c] sm:$0xf]
        %v1269 = vld [vmem:[%s1248 + $0x50] sm:$0xf]
        %v1270 = vld [vmem:[%s1248 + $0x54] sm:$0xf]
        %v1271 = vld [vmem:[%s1248 + $0x58] sm:$0xf]
        %v1272 = vld [vmem:[%s1248 + $0x5c] sm:$0xf]
        %v1273 = vunpack.c.l.b16 %v1149
        %v1274 = vunpack.c.h.b16 %v1149
        %v1275 = vunpack.c.l.b16 %v1163
        %v1276 = vunpack.c.h.b16 %v1163
        %v1277 = vunpack.c.l.b16 %v1177
        %v1278 = vunpack.c.h.b16 %v1177
        %v1279 = vunpack.c.l.b16 %v1191
        %v1280 = vunpack.c.h.b16 %v1191
        %v1281 = vunpack.c.l.b16 %v1205
        %v1282 = vunpack.c.h.b16 %v1205
        %v1283 = vunpack.c.l.b16 %v1219
        %v1284 = vunpack.c.h.b16 %v1219
        %v1285 = vunpack.c.l.b16 %v1233
        %v1286 = vunpack.c.h.b16 %v1233
        %v1287 = vunpack.c.l.b16 %v1247
        %v1288 = vunpack.c.h.b16 %v1247
        %v1289 = vpack.c.b16 %v1275, %v1273
        %v1290 = vpack.c.b16 %v1276, %v1274
        %v1291 = vpack.c.b16 %v1279, %v1277
        %v1292 = vpack.c.b16 %v1280, %v1278
        %v1293 = vpack.c.b16 %v1283, %v1281
        %v1294 = vpack.c.b16 %v1284, %v1282
        %v1295 = vpack.c.b16 %v1287, %v1285
        %v1296 = vpack.c.b16 %v1288, %v1286
        %v1325 = vunpack.c.l.b16 %v1249
        %v1326 = vunpack.c.l.b16 %v1250
        %v1327 = vunpack.c.l.b16 %v1251
        %v1328 = vunpack.c.l.b16 %v1252
        %v1329 = vunpack.c.l.b16 %v1253
        %v1330 = vunpack.c.l.b16 %v1254
        %v1331 = vunpack.c.l.b16 %v1255
        %v1332 = vunpack.c.l.b16 %v1256
        %v1333 = vunpack.c.l.b16 %v1257
        %v1334 = vunpack.c.l.b16 %v1258
        %v1335 = vunpack.c.l.b16 %v1259
        %v1336 = vunpack.c.l.b16 %v1260
        %v1337 = vunpack.c.l.b16 %v1261
        %v1338 = vunpack.c.l.b16 %v1262
        %v1339 = vunpack.c.l.b16 %v1263
        %v1340 = vunpack.c.l.b16 %v1264
        %v1341 = vunpack.c.l.b16 %v1265
        %v1342 = vunpack.c.l.b16 %v1266
        %v1343 = vunpack.c.l.b16 %v1267
        %v1344 = vunpack.c.l.b16 %v1268
        %v1345 = vunpack.c.l.b16 %v1269
        %v1346 = vunpack.c.l.b16 %v1270
        %v1347 = vunpack.c.l.b16 %v1271
        %v1348 = vunpack.c.l.b16 %v1272
        %v1349 = vpack.c.b16 %v1326, %v1325
        %v1350 = vpack.c.b16 %v1328, %v1327
        %v1351 = vpack.c.b16 %v1330, %v1329
        %v1352 = vpack.c.b16 %v1332, %v1331
        %v1353 = vpack.c.b16 %v1334, %v1333
        %v1354 = vpack.c.b16 %v1336, %v1335
        %v1355 = vpack.c.b16 %v1338, %v1337
        %v1356 = vpack.c.b16 %v1340, %v1339
        %v1357 = vpack.c.b16 %v1342, %v1341
        %v1358 = vpack.c.b16 %v1344, %v1343
        %v1359 = vpack.c.b16 %v1346, %v1345
        %v1360 = vpack.c.b16 %v1348, %v1347
        %v1374 = vsel %vm955, %v1290, 0
        %v1377 = vsel %vm955, %v1292, 0
        %v1380 = vsel %vm955, %v1294, 0
        %v1383 = vsel %vm955, %v1296, 0
        %1385 = vmatprep.subr.bf16.mxu0 0
        %1386 = vmatpush1.bf16.msra.mxu0 %v1356
        %1387 = vmatprep.subr.bf16.mxu0 0
        %1388 = vmatpush1.bf16.msra.mxu0 %v1355
        %1389 = vmatprep.subr.bf16.mxu0 0
        %1390 = vmatpush1.bf16.msra.mxu0 %v1354
        %1391 = vmatprep.subr.bf16.mxu0 0
        %1392 = vmatpush1.bf16.msra.mxu0 %v1353
        %1393 = vmatprep.subr.bf16.mxu0 0
        %1394 = vmatpush1.bf16.msra.mxu0 %v1352
        %1395 = vmatprep.subr.bf16.mxu0 0
        %1396 = vmatpush1.bf16.msra.mxu0 %v1351
        %1397 = vmatprep.subr.bf16.mxu0 0
        %1398 = vmatpush1.bf16.msra.mxu0 %v1350
        %1399 = vmatprep.subr.bf16.mxu0 0
        %1400 = vmatpush1.bf16.msra.mxu0 %v1349
        %1401 = vmatprep.subr.bf16.mxu0 0
        %1402 = vmatpush2.bf16.msra.mxu0 0
        %1403 = vmatprep.subr.bf16.mxu0 0
        %1404 = vmatpush2.bf16.msra.mxu0 0
        %1405 = vmatprep.subr.bf16.mxu0 0
        %1406 = vmatpush2.bf16.msra.mxu0 0
        %1407 = vmatprep.subr.bf16.mxu0 0
        %1408 = vmatpush2.bf16.msra.mxu0 0
        %1409 = vmatprep.subr.bf16.mxu0 0
        %1410 = vmatpush2.bf16.msra.mxu0 %v1360
        %1411 = vmatprep.subr.bf16.mxu0 0
        %1412 = vmatpush2.bf16.msra.mxu0 %v1359
        %1413 = vmatprep.subr.bf16.mxu0 0
        %1414 = vmatpush2.bf16.msra.mxu0 %v1358
        %1415 = vmatprep.subr.bf16.mxu0 0
        %1416 = vmatpush2.bf16.msra.mxu0 %v1357
        %1417 = vmatprep.mubr.bf16.mxu0 %v1374
        %1418 = vmatmul.mubr.bf16.gmra.mxu0 %v1289
        %v1419 = vpop.f32.mrf.mxu0
        %v1420 = vadd.f32 0.0, %v1419
        %v1421 = vpop.f32.mrf.mxu0
        %v1422 = vpop.f32.mrf.mxu0
        %v1423 = vadd.f32 0.0, %v1422
        %v1424 = vpop.f32.mrf.mxu0
        %1425 = vmatprep.mubr.bf16.mxu0 %v1377
        %1426 = vmatmul.mubr.bf16.gmra.mxu0 %v1291
        %v1427 = vpop.f32.mrf.mxu0
        %v1428 = vadd.f32 0.0, %v1427
        %v1429 = vpop.f32.mrf.mxu0
        %v1430 = vpop.f32.mrf.mxu0
        %v1431 = vadd.f32 0.0, %v1430
        %v1432 = vpop.f32.mrf.mxu0
        %1433 = vmatprep.mubr.bf16.mxu0 %v1380
        %1434 = vmatmul.mubr.bf16.gmra.mxu0 %v1293
        %v1435 = vpop.f32.mrf.mxu0
        %v1436 = vadd.f32 0.0, %v1435
        %v1437 = vpop.f32.mrf.mxu0
        %v1438 = vpop.f32.mrf.mxu0
        %v1439 = vadd.f32 0.0, %v1438
        %v1440 = vpop.f32.mrf.mxu0
        %1441 = vmatprep.mubr.bf16.mxu0 %v1383
        %1442 = vmatmul.mubr.bf16.gmra.mxu0 %v1295
        %v1443 = vpop.f32.mrf.mxu0
        %v1444 = vadd.f32 0.0, %v1443
        %v1445 = vpop.f32.mrf.mxu0
        %v1446 = vpop.f32.mrf.mxu0
        %v1447 = vadd.f32 0.0, %v1446
        %v1448 = vpop.f32.mrf.mxu0
        %1449 = vdwg.mxu0
        %v1450 = vpack.c.b16 %v990, %v989
        %v1451 = vpack.c.b16 %v925, %v924
        %v1452 = vpack.c.b16 %v992, %v991
        %v1453 = vpack.c.b16 %v927, %v926
        %v1454 = vpack.c.b16 %v994, %v993
        %v1455 = vpack.c.b16 %v929, %v928
        %v1456 = vpack.c.b16 %v996, %v995
        %v1457 = vpack.c.b16 %v997, %v930
        %v1486 = vunpack.c.l.b16 %v998
        %v1487 = vunpack.c.l.b16 %v999
        %v1488 = vunpack.c.l.b16 %v1000
        %v1489 = vunpack.c.l.b16 %v1001
        %v1490 = vunpack.c.l.b16 %v1002
        %v1491 = vunpack.c.l.b16 %v1003
        %v1492 = vunpack.c.l.b16 %v1004
        %v1493 = vunpack.c.l.b16 %v1005
        %v1494 = vunpack.c.l.b16 %v1006
        %v1495 = vunpack.c.l.b16 %v1007
        %v1496 = vunpack.c.l.b16 %v1008
        %v1497 = vunpack.c.l.b16 %v1009
        %v1498 = vunpack.c.l.b16 %v1010
        %v1499 = vunpack.c.l.b16 %v1011
        %v1500 = vunpack.c.l.b16 %v1012
        %v1501 = vunpack.c.l.b16 %v1013
        %v1502 = vunpack.c.l.b16 %v1014
        %v1503 = vunpack.c.l.b16 %v1015
        %v1504 = vunpack.c.l.b16 %v1016
        %v1505 = vunpack.c.l.b16 %v1017
        %v1506 = vunpack.c.l.b16 %v1018
        %v1507 = vunpack.c.l.b16 %v1019
        %v1508 = vunpack.c.l.b16 %v1020
        %v1509 = vunpack.c.l.b16 %v1021
        %v1510 = vpack.c.b16 %v1487, %v1486
        %v1511 = vpack.c.b16 %v1489, %v1488
        %v1512 = vpack.c.b16 %v1491, %v1490
        %v1513 = vpack.c.b16 %v1493, %v1492
        %v1514 = vpack.c.b16 %v1495, %v1494
        %v1515 = vpack.c.b16 %v1497, %v1496
        %v1516 = vpack.c.b16 %v1499, %v1498
        %v1517 = vpack.c.b16 %v1501, %v1500
        %v1518 = vpack.c.b16 %v1503, %v1502
        %v1519 = vpack.c.b16 %v1505, %v1504
        %v1520 = vpack.c.b16 %v1507, %v1506
        %v1521 = vpack.c.b16 %v1509, %v1508
        %v1535 = vsel %vm955, %v1451, 0
        %v1538 = vsel %vm955, %v1453, 0
        %v1541 = vsel %vm955, %v1455, 0
        %v1544 = vsel %vm955, %v1457, 0
        %1546 = vmatprep.subr.bf16.mxu0 0
        %1547 = vmatpush1.bf16.msra.mxu0 %v1517
        %1548 = vmatprep.subr.bf16.mxu0 0
        %1549 = vmatpush1.bf16.msra.mxu0 %v1516
        %1550 = vmatprep.subr.bf16.mxu0 0
        %1551 = vmatpush1.bf16.msra.mxu0 %v1515
        %1552 = vmatprep.subr.bf16.mxu0 0
        %1553 = vmatpush1.bf16.msra.mxu0 %v1514
        %1554 = vmatprep.subr.bf16.mxu0 0
        %1555 = vmatpush1.bf16.msra.mxu0 %v1513
        %1556 = vmatprep.subr.bf16.mxu0 0
        %1557 = vmatpush1.bf16.msra.mxu0 %v1512
        %1558 = vmatprep.subr.bf16.mxu0 0
        %1559 = vmatpush1.bf16.msra.mxu0 %v1511
        %1560 = vmatprep.subr.bf16.mxu0 0
        %1561 = vmatpush1.bf16.msra.mxu0 %v1510
        %1562 = vmatprep.subr.bf16.mxu0 0
        %1563 = vmatpush2.bf16.msra.mxu0 0
        %1564 = vmatprep.subr.bf16.mxu0 0
        %1565 = vmatpush2.bf16.msra.mxu0 0
        %1566 = vmatprep.subr.bf16.mxu0 0
        %1567 = vmatpush2.bf16.msra.mxu0 0
        %1568 = vmatprep.subr.bf16.mxu0 0
        %1569 = vmatpush2.bf16.msra.mxu0 0
        %1570 = vmatprep.subr.bf16.mxu0 0
        %1571 = vmatpush2.bf16.msra.mxu0 %v1521
        %1572 = vmatprep.subr.bf16.mxu0 0
        %1573 = vmatpush2.bf16.msra.mxu0 %v1520
        %1574 = vmatprep.subr.bf16.mxu0 0
        %1575 = vmatpush2.bf16.msra.mxu0 %v1519
        %1576 = vmatprep.subr.bf16.mxu0 0
        %1577 = vmatpush2.bf16.msra.mxu0 %v1518
        %1578 = vmatprep.mubr.bf16.mxu0 %v1535
        %1579 = vmatmul.mubr.bf16.gmra.mxu0 %v1450
        %v1580 = vpop.f32.mrf.mxu0
        %v1581 = vadd.f32 %v1420, %v1580
        %v1582 = vpop.f32.mrf.mxu0
        %v1583 = vpop.f32.mrf.mxu0
        %v1584 = vadd.f32 %v1423, %v1583
        %v1585 = vpop.f32.mrf.mxu0
        %1586 = vmatprep.mubr.bf16.mxu0 %v1538
        %1587 = vmatmul.mubr.bf16.gmra.mxu0 %v1452
        %v1588 = vpop.f32.mrf.mxu0
        %v1589 = vadd.f32 %v1428, %v1588
        %v1590 = vpop.f32.mrf.mxu0
        %v1591 = vpop.f32.mrf.mxu0
        %v1592 = vadd.f32 %v1431, %v1591
        %v1593 = vpop.f32.mrf.mxu0
        %1594 = vmatprep.mubr.bf16.mxu0 %v1541
        %1595 = vmatmul.mubr.bf16.gmra.mxu0 %v1454
        %v1596 = vpop.f32.mrf.mxu0
        %v1597 = vadd.f32 %v1436, %v1596
        %v1598 = vpop.f32.mrf.mxu0
        %v1599 = vpop.f32.mrf.mxu0
        %v1600 = vadd.f32 %v1439, %v1599
        %v1601 = vpop.f32.mrf.mxu0
        %1602 = vmatprep.mubr.bf16.mxu0 %v1544
        %1603 = vmatmul.mubr.bf16.gmra.mxu0 %v1456
        %v1604 = vpop.f32.mrf.mxu0
        %v1605 = vadd.f32 %v1444, %v1604
        %v1606 = vpop.f32.mrf.mxu0
        %v1607 = vpop.f32.mrf.mxu0
        %v1608 = vadd.f32 %v1447, %v1607
        %v1609 = vpop.f32.mrf.mxu0
        %1610 = vdwg.mxu0
        %vm1611 = vcmask 1042432
        %vm1612 = vcmask 1046532
        %vm1613 = vmor %vm1611, %vm1612
        %v1614 = vrot.slane %v1117, 5
        %v1615 = vrot.slane %v1614, 4
        %v1616 = vrot.slane %v1118, 5
        %v1617 = vsel %vm1613, %v1615, %v1616
        %v1618 = vrot.slane %v1119, 5
        %v1619 = vrot.slane %v1618, 4
        %v1620 = vrot.slane %v1120, 5
        %v1621 = vsel %vm1613, %v1619, %v1620
        %v1622 = vrot.slane %v1121, 5
        %v1623 = vrot.slane %v1622, 4
        %v1624 = vrot.slane %v1122, 5
        %v1625 = vsel %vm1613, %v1623, %v1624
        %v1626 = vrot.slane %v1123, 5
        %v1627 = vrot.slane %v1626, 4
        %v1628 = vrot.slane %v1124, 5
        %v1629 = vsel %vm1613, %v1627, %v1628
        %v1630 = vrot.slane %v1125, 5
        %v1631 = vrot.slane %v1630, 4
        %v1632 = vrot.slane %v1126, 5
        %v1633 = vsel %vm1613, %v1631, %v1632
        %v1634 = vrot.slane %v1127, 5
        %v1635 = vrot.slane %v1634, 4
        %v1636 = vrot.slane %v1128, 5
        %v1637 = vsel %vm1613, %v1635, %v1636
        %v1638 = vrot.slane %v1129, 5
        %v1639 = vrot.slane %v1638, 4
        %v1640 = vrot.slane %v1130, 5
        %v1641 = vsel %vm1613, %v1639, %v1640
        %v1642 = vrot.slane %v1131, 5
        %v1643 = vrot.slane %v1642, 4
        %v1644 = vrot.slane %v1132, 5
        %v1645 = vsel %vm1613, %v1643, %v1644
        %s1646 = scalar_lea.vmem %s3, 192
        %v1647 = vld [vmem:[%s1646] sm:$0xf]
        %v1648 = vld [vmem:[%s1646 + $0x4] sm:$0xf]
        %v1649 = vld [vmem:[%s1646 + $0x8] sm:$0xf]
        %v1650 = vld [vmem:[%s1646 + $0xc] sm:$0xf]
        %v1651 = vld [vmem:[%s1646 + $0x10] sm:$0xf]
        %v1652 = vld [vmem:[%s1646 + $0x14] sm:$0xf]
        %v1653 = vld [vmem:[%s1646 + $0x18] sm:$0xf]
        %v1654 = vld [vmem:[%s1646 + $0x1c] sm:$0xf]
        %v1655 = vld [vmem:[%s1646 + $0x20] sm:$0xf]
        %v1656 = vld [vmem:[%s1646 + $0x24] sm:$0xf]
        %v1657 = vld [vmem:[%s1646 + $0x28] sm:$0xf]
        %v1658 = vld [vmem:[%s1646 + $0x2c] sm:$0xf]
        %v1659 = vld [vmem:[%s1646 + $0x30] sm:$0xf]
        %v1660 = vld [vmem:[%s1646 + $0x34] sm:$0xf]
        %v1661 = vld [vmem:[%s1646 + $0x38] sm:$0xf]
        %v1662 = vld [vmem:[%s1646 + $0x3c] sm:$0xf]
        %v1663 = vld [vmem:[%s1646 + $0x40] sm:$0xf]
        %v1664 = vld [vmem:[%s1646 + $0x44] sm:$0xf]
        %v1665 = vld [vmem:[%s1646 + $0x48] sm:$0xf]
        %v1666 = vld [vmem:[%s1646 + $0x4c] sm:$0xf]
        %v1667 = vld [vmem:[%s1646 + $0x50] sm:$0xf]
        %v1668 = vld [vmem:[%s1646 + $0x54] sm:$0xf]
        %v1669 = vld [vmem:[%s1646 + $0x58] sm:$0xf]
        %v1670 = vld [vmem:[%s1646 + $0x5c] sm:$0xf]
        %v1671 = vunpack.c.l.b16 %v1617
        %v1672 = vunpack.c.h.b16 %v1617
        %v1673 = vunpack.c.l.b16 %v1621
        %v1674 = vunpack.c.h.b16 %v1621
        %v1675 = vunpack.c.l.b16 %v1625
        %v1676 = vunpack.c.h.b16 %v1625
        %v1677 = vunpack.c.l.b16 %v1629
        %v1678 = vunpack.c.h.b16 %v1629
        %v1679 = vunpack.c.l.b16 %v1633
        %v1680 = vunpack.c.h.b16 %v1633
        %v1681 = vunpack.c.l.b16 %v1637
        %v1682 = vunpack.c.h.b16 %v1637
        %v1683 = vunpack.c.l.b16 %v1641
        %v1684 = vunpack.c.h.b16 %v1641
        %v1685 = vunpack.c.l.b16 %v1645
        %v1686 = vunpack.c.h.b16 %v1645
        %v1687 = vpack.c.b16 %v1673, %v1671
        %v1688 = vpack.c.b16 %v1674, %v1672
        %v1689 = vpack.c.b16 %v1677, %v1675
        %v1690 = vpack.c.b16 %v1678, %v1676
        %v1691 = vpack.c.b16 %v1681, %v1679
        %v1692 = vpack.c.b16 %v1682, %v1680
        %v1693 = vpack.c.b16 %v1685, %v1683
        %v1694 = vpack.c.b16 %v1686, %v1684
        %v1723 = vunpack.c.l.b16 %v1647
        %v1724 = vunpack.c.l.b16 %v1648
        %v1725 = vunpack.c.l.b16 %v1649
        %v1726 = vunpack.c.l.b16 %v1650
        %v1727 = vunpack.c.l.b16 %v1651
        %v1728 = vunpack.c.l.b16 %v1652
        %v1729 = vunpack.c.l.b16 %v1653
        %v1730 = vunpack.c.l.b16 %v1654
        %v1731 = vunpack.c.l.b16 %v1655
        %v1732 = vunpack.c.l.b16 %v1656
        %v1733 = vunpack.c.l.b16 %v1657
        %v1734 = vunpack.c.l.b16 %v1658
        %v1735 = vunpack.c.l.b16 %v1659
        %v1736 = vunpack.c.l.b16 %v1660
        %v1737 = vunpack.c.l.b16 %v1661
        %v1738 = vunpack.c.l.b16 %v1662
        %v1739 = vunpack.c.l.b16 %v1663
        %v1740 = vunpack.c.l.b16 %v1664
        %v1741 = vunpack.c.l.b16 %v1665
        %v1742 = vunpack.c.l.b16 %v1666
        %v1743 = vunpack.c.l.b16 %v1667
        %v1744 = vunpack.c.l.b16 %v1668
        %v1745 = vunpack.c.l.b16 %v1669
        %v1746 = vunpack.c.l.b16 %v1670
        %v1747 = vpack.c.b16 %v1724, %v1723
        %v1748 = vpack.c.b16 %v1726, %v1725
        %v1749 = vpack.c.b16 %v1728, %v1727
        %v1750 = vpack.c.b16 %v1730, %v1729
        %v1751 = vpack.c.b16 %v1732, %v1731
        %v1752 = vpack.c.b16 %v1734, %v1733
        %v1753 = vpack.c.b16 %v1736, %v1735
        %v1754 = vpack.c.b16 %v1738, %v1737
        %v1755 = vpack.c.b16 %v1740, %v1739
        %v1756 = vpack.c.b16 %v1742, %v1741
        %v1757 = vpack.c.b16 %v1744, %v1743
        %v1758 = vpack.c.b16 %v1746, %v1745
        %v1772 = vsel %vm955, %v1688, 0
        %v1775 = vsel %vm955, %v1690, 0
        %v1778 = vsel %vm955, %v1692, 0
        %v1781 = vsel %vm955, %v1694, 0
        %1783 = vmatprep.subr.bf16.mxu0 0
        %1784 = vmatpush1.bf16.msra.mxu0 %v1754
        %1785 = vmatprep.subr.bf16.mxu0 0
        %1786 = vmatpush1.bf16.msra.mxu0 %v1753
        %1787 = vmatprep.subr.bf16.mxu0 0
        %1788 = vmatpush1.bf16.msra.mxu0 %v1752
        %1789 = vmatprep.subr.bf16.mxu0 0
        %1790 = vmatpush1.bf16.msra.mxu0 %v1751
        %1791 = vmatprep.subr.bf16.mxu0 0
        %1792 = vmatpush1.bf16.msra.mxu0 %v1750
        %1793 = vmatprep.subr.bf16.mxu0 0
        %1794 = vmatpush1.bf16.msra.mxu0 %v1749
        %1795 = vmatprep.subr.bf16.mxu0 0
        %1796 = vmatpush1.bf16.msra.mxu0 %v1748
        %1797 = vmatprep.subr.bf16.mxu0 0
        %1798 = vmatpush1.bf16.msra.mxu0 %v1747
        %1799 = vmatprep.subr.bf16.mxu0 0
        %1800 = vmatpush2.bf16.msra.mxu0 0
        %1801 = vmatprep.subr.bf16.mxu0 0
        %1802 = vmatpush2.bf16.msra.mxu0 0
        %1803 = vmatprep.subr.bf16.mxu0 0
        %1804 = vmatpush2.bf16.msra.mxu0 0
        %1805 = vmatprep.subr.bf16.mxu0 0
        %1806 = vmatpush2.bf16.msra.mxu0 0
        %1807 = vmatprep.subr.bf16.mxu0 0
        %1808 = vmatpush2.bf16.msra.mxu0 %v1758
        %1809 = vmatprep.subr.bf16.mxu0 0
        %1810 = vmatpush2.bf16.msra.mxu0 %v1757
        %1811 = vmatprep.subr.bf16.mxu0 0
        %1812 = vmatpush2.bf16.msra.mxu0 %v1756
        %1813 = vmatprep.subr.bf16.mxu0 0
        %1814 = vmatpush2.bf16.msra.mxu0 %v1755
        %1815 = vmatprep.mubr.bf16.mxu0 %v1772
        %1816 = vmatmul.mubr.bf16.gmra.mxu0 %v1687
        %v1817 = vpop.f32.mrf.mxu0
        %v1818 = vadd.f32 0.0, %v1817
        %v1819 = vpop.f32.mrf.mxu0
        %v1820 = vpop.f32.mrf.mxu0
        %v1821 = vadd.f32 0.0, %v1820
        %v1822 = vpop.f32.mrf.mxu0
        %1823 = vmatprep.mubr.bf16.mxu0 %v1775
        %1824 = vmatmul.mubr.bf16.gmra.mxu0 %v1689
        %v1825 = vpop.f32.mrf.mxu0
        %v1826 = vadd.f32 0.0, %v1825
        %v1827 = vpop.f32.mrf.mxu0
        %v1828 = vpop.f32.mrf.mxu0
        %v1829 = vadd.f32 0.0, %v1828
        %v1830 = vpop.f32.mrf.mxu0
        %1831 = vmatprep.mubr.bf16.mxu0 %v1778
        %1832 = vmatmul.mubr.bf16.gmra.mxu0 %v1691
        %v1833 = vpop.f32.mrf.mxu0
        %v1834 = vadd.f32 0.0, %v1833
        %v1835 = vpop.f32.mrf.mxu0
        %v1836 = vpop.f32.mrf.mxu0
        %v1837 = vadd.f32 0.0, %v1836
        %v1838 = vpop.f32.mrf.mxu0
        %1839 = vmatprep.mubr.bf16.mxu0 %v1781
        %1840 = vmatmul.mubr.bf16.gmra.mxu0 %v1693
        %v1841 = vpop.f32.mrf.mxu0
        %v1842 = vadd.f32 0.0, %v1841
        %v1843 = vpop.f32.mrf.mxu0
        %v1844 = vpop.f32.mrf.mxu0
        %v1845 = vadd.f32 0.0, %v1844
        %v1846 = vpop.f32.mrf.mxu0
        %1847 = vdwg.mxu0
        %v1848 = vadd.f32 %v1581, %v1818
        %v1849 = vadd.f32 %v1584, %v1821
        %v1850 = vadd.f32 %v1589, %v1826
        %v1851 = vadd.f32 %v1592, %v1829
        %v1852 = vadd.f32 %v1597, %v1834
        %v1853 = vadd.f32 %v1600, %v1837
        %v1854 = vadd.f32 %v1605, %v1842
        %v1855 = vadd.f32 %v1608, %v1845
        %s1856 = sadd.s32 %s27, 4294967295
        %p1857 = scmp.gt.s32.totalorder %s1856, 0
        %s1858 = scalar_select %p1857, %s1856, 0
        %p1859 = scmp.lt.s32.totalorder %s1858, 0
        %s1860 = ssub.s32 0, %s1858
        %s1861 = scalar_select %p1859, %s1860, %s1858
        %s1862 = sdiv.u32.pop %s1861, 3
        %s1863 = srem.u32.pop %s1861, 3
        %s1864 = ssub.s32 0, %s1863
        %s1865 = scalar_select %p1859, %s1864, %s1863
        %p1866 = scmp.ne.s32.totalorder %s1865, 0
        %p1867 = scmp.lt.s32.totalorder %s1865, 0
        %p1868 = pnand %p1867, %p1866
        %p1869 = pneg %p1868
        %s1870 = sadd.s32 %s1865, 3
        %s1871 = scalar_select %p1869, %s1870, %s1865
        %s1872 = smul.u32 %s1871, 20
        %s1873 = smul.addr %s1872, 4
        %s1874 = scalar_lea.vmem [#allocation2], %s1873
        %v1875 = vld [vmem:[%s1874] sm:$0xf]
        %v1876 = vld [vmem:[%s1874 + $0x4] sm:$0x1]
        %v1877 = vld [vmem:[%s1874 + $0x8] sm:$0xf]
        %v1878 = vld [vmem:[%s1874 + $0xc] sm:$0x1]
        %v1879 = vld [vmem:[%s1874 + $0x10] sm:$0xf]
        %v1880 = vld [vmem:[%s1874 + $0x14] sm:$0x1]
        %v1881 = vld [vmem:[%s1874 + $0x18] sm:$0xf]
        %v1882 = vld [vmem:[%s1874 + $0x1c] sm:$0x1]
        %v1883 = vld [vmem:[%s1874 + $0x20] sm:$0xf]
        %v1884 = vld [vmem:[%s1874 + $0x24] sm:$0x1]
        %v1885 = vld [vmem:[%s1874 + $0x28] sm:$0xf]
        %v1886 = vld [vmem:[%s1874 + $0x2c] sm:$0x1]
        %v1887 = vld [vmem:[%s1874 + $0x30] sm:$0xf]
        %v1888 = vld [vmem:[%s1874 + $0x34] sm:$0x1]
        %v1889 = vld [vmem:[%s1874 + $0x38] sm:$0xf]
        %v1890 = vld [vmem:[%s1874 + $0x3c] sm:$0x1]
        %v1891 = vld [vmem:[%s1874 + $0x40] sm:$0xf]
        %v1892 = vld [vmem:[%s1874 + $0x44] sm:$0x1]
        %v1893 = vld [vmem:[%s1874 + $0x48] sm:$0xf]
        %v1894 = vld [vmem:[%s1874 + $0x4c] sm:$0x1]
        %v1903 = vunpack.c.l.b16 %v1877
        %v1904 = vunpack.c.l.b16 %v1879
        %v1905 = vunpack.c.l.b16 %v1881
        %v1906 = vunpack.c.l.b16 %v1883
        %v1907 = vunpack.c.l.b16 %v1885
        %v1908 = vunpack.c.l.b16 %v1887
        %v1909 = vunpack.c.l.b16 %v1889
        %v1910 = vunpack.c.l.b16 %v1891
        %v1911 = vpack.c.b16 %v1903, %v1903
        %v1912 = vpack.c.b16 %v1904, %v1904
        %v1913 = vpack.c.b16 %v1905, %v1905
        %v1914 = vpack.c.b16 %v1906, %v1906
        %v1915 = vpack.c.b16 %v1907, %v1907
        %v1916 = vpack.c.b16 %v1908, %v1908
        %v1917 = vpack.c.b16 %v1909, %v1909
        %v1918 = vpack.c.b16 %v1910, %v1910
        %1919 = vrot.lane.b32.xlu0 %v1911, 64
        %v1920 = vpop.permute.xlu0 %1919
        %1921 = vrot.lane.b32.xlu0 %v1912, 64
        %v1922 = vpop.permute.xlu0 %1921
        %1923 = vrot.lane.b32.xlu0 %v1913, 64
        %v1924 = vpop.permute.xlu0 %1923
        %1925 = vrot.lane.b32.xlu0 %v1914, 64
        %v1926 = vpop.permute.xlu0 %1925
        %1927 = vrot.lane.b32.xlu0 %v1915, 64
        %v1928 = vpop.permute.xlu0 %1927
        %1929 = vrot.lane.b32.xlu0 %v1916, 64
        %v1930 = vpop.permute.xlu0 %1929
        %1931 = vrot.lane.b32.xlu0 %v1917, 64
        %v1932 = vpop.permute.xlu0 %1931
        %1933 = vrot.lane.b32.xlu0 %v1918, 64
        %v1934 = vpop.permute.xlu0 %1933
        %v1937 = vsel %vm955, %v1875, %v1920
        %v1940 = vsel %vm955, %v1877, %v1922
        %v1943 = vsel %vm955, %v1879, %v1924
        %v1946 = vsel %vm955, %v1881, %v1926
        %v1949 = vsel %vm955, %v1883, %v1928
        %v1952 = vsel %vm955, %v1885, %v1930
        %v1955 = vsel %vm955, %v1887, %v1932
        %v1958 = vsel %vm955, %v1889, %v1934
        %v1968 = vunpack.c.l.b16 %v1937
        %v1969 = vunpack.c.l.b16 %v1940
        %v1970 = vunpack.c.l.b16 %v1943
        %v1971 = vunpack.c.l.b16 %v1946
        %v1972 = vunpack.c.l.b16 %v1949
        %v1973 = vunpack.c.l.b16 %v1952
        %v1974 = vunpack.c.l.b16 %v1955
        %v1975 = vunpack.c.l.b16 %v1958
        %v1976 = vunpack.c.l.b16 %v1893
        %s1977 = scalar_lea.vmem %s3, 288
        %v1978 = vld [vmem:[%s1977] sm:$0xf]
        %v1979 = vld [vmem:[%s1977 + $0x4] sm:$0xf]
        %v1980 = vld [vmem:[%s1977 + $0x8] sm:$0xf]
        %v1981 = vld [vmem:[%s1977 + $0xc] sm:$0xf]
        %v1982 = vld [vmem:[%s1977 + $0x10] sm:$0xf]
        %v1983 = vld [vmem:[%s1977 + $0x14] sm:$0xf]
        %v1984 = vld [vmem:[%s1977 + $0x18] sm:$0xf]
        %v1985 = vld [vmem:[%s1977 + $0x1c] sm:$0xf]
        %v1986 = vld [vmem:[%s1977 + $0x20] sm:$0xf]
        %v1987 = vld [vmem:[%s1977 + $0x24] sm:$0xf]
        %v1988 = vld [vmem:[%s1977 + $0x28] sm:$0xf]
        %v1989 = vld [vmem:[%s1977 + $0x2c] sm:$0xf]
        %v1990 = vld [vmem:[%s1977 + $0x30] sm:$0xf]
        %v1991 = vld [vmem:[%s1977 + $0x34] sm:$0xf]
        %v1992 = vld [vmem:[%s1977 + $0x38] sm:$0xf]
        %v1993 = vld [vmem:[%s1977 + $0x3c] sm:$0xf]
        %v1994 = vld [vmem:[%s1977 + $0x40] sm:$0xf]
        %v1995 = vld [vmem:[%s1977 + $0x44] sm:$0xf]
        %v1996 = vld [vmem:[%s1977 + $0x48] sm:$0xf]
        %v1997 = vld [vmem:[%s1977 + $0x4c] sm:$0xf]
        %v1998 = vld [vmem:[%s1977 + $0x50] sm:$0xf]
        %v1999 = vld [vmem:[%s1977 + $0x54] sm:$0xf]
        %v2000 = vld [vmem:[%s1977 + $0x58] sm:$0xf]
        %v2001 = vld [vmem:[%s1977 + $0x5c] sm:$0xf]
        %v2002 = vpack.c.b16 %v1969, %v1968
        %v2003 = vpack.c.b16 %v1905, %v1904
        %v2004 = vpack.c.b16 %v1971, %v1970
        %v2005 = vpack.c.b16 %v1907, %v1906
        %v2006 = vpack.c.b16 %v1973, %v1972
        %v2007 = vpack.c.b16 %v1909, %v1908
        %v2008 = vpack.c.b16 %v1975, %v1974
        %v2009 = vpack.c.b16 %v1976, %v1910
        %v2038 = vunpack.c.l.b16 %v1978
        %v2039 = vunpack.c.l.b16 %v1979
        %v2040 = vunpack.c.l.b16 %v1980
        %v2041 = vunpack.c.l.b16 %v1981
        %v2042 = vunpack.c.l.b16 %v1982
        %v2043 = vunpack.c.l.b16 %v1983
        %v2044 = vunpack.c.l.b16 %v1984
        %v2045 = vunpack.c.l.b16 %v1985
        %v2046 = vunpack.c.l.b16 %v1986
        %v2047 = vunpack.c.l.b16 %v1987
        %v2048 = vunpack.c.l.b16 %v1988
        %v2049 = vunpack.c.l.b16 %v1989
        %v2050 = vunpack.c.l.b16 %v1990
        %v2051 = vunpack.c.l.b16 %v1991
        %v2052 = vunpack.c.l.b16 %v1992
        %v2053 = vunpack.c.l.b16 %v1993
        %v2054 = vunpack.c.l.b16 %v1994
        %v2055 = vunpack.c.l.b16 %v1995
        %v2056 = vunpack.c.l.b16 %v1996
        %v2057 = vunpack.c.l.b16 %v1997
        %v2058 = vunpack.c.l.b16 %v1998
        %v2059 = vunpack.c.l.b16 %v1999
        %v2060 = vunpack.c.l.b16 %v2000
        %v2061 = vunpack.c.l.b16 %v2001
        %v2062 = vpack.c.b16 %v2039, %v2038
        %v2063 = vpack.c.b16 %v2041, %v2040
        %v2064 = vpack.c.b16 %v2043, %v2042
        %v2065 = vpack.c.b16 %v2045, %v2044
        %v2066 = vpack.c.b16 %v2047, %v2046
        %v2067 = vpack.c.b16 %v2049, %v2048
        %v2068 = vpack.c.b16 %v2051, %v2050
        %v2069 = vpack.c.b16 %v2053, %v2052
        %v2070 = vpack.c.b16 %v2055, %v2054
        %v2071 = vpack.c.b16 %v2057, %v2056
        %v2072 = vpack.c.b16 %v2059, %v2058
        %v2073 = vpack.c.b16 %v2061, %v2060
        %v2087 = vsel %vm955, %v2003, 0
        %v2090 = vsel %vm955, %v2005, 0
        %v2093 = vsel %vm955, %v2007, 0
        %v2096 = vsel %vm955, %v2009, 0
        %2098 = vmatprep.subr.bf16.mxu0 0
        %2099 = vmatpush1.bf16.msra.mxu0 %v2069
        %2100 = vmatprep.subr.bf16.mxu0 0
        %2101 = vmatpush1.bf16.msra.mxu0 %v2068
        %2102 = vmatprep.subr.bf16.mxu0 0
        %2103 = vmatpush1.bf16.msra.mxu0 %v2067
        %2104 = vmatprep.subr.bf16.mxu0 0
        %2105 = vmatpush1.bf16.msra.mxu0 %v2066
        %2106 = vmatprep.subr.bf16.mxu0 0
        %2107 = vmatpush1.bf16.msra.mxu0 %v2065
        %2108 = vmatprep.subr.bf16.mxu0 0
        %2109 = vmatpush1.bf16.msra.mxu0 %v2064
        %2110 = vmatprep.subr.bf16.mxu0 0
        %2111 = vmatpush1.bf16.msra.mxu0 %v2063
        %2112 = vmatprep.subr.bf16.mxu0 0
        %2113 = vmatpush1.bf16.msra.mxu0 %v2062
        %2114 = vmatprep.subr.bf16.mxu0 0
        %2115 = vmatpush2.bf16.msra.mxu0 0
        %2116 = vmatprep.subr.bf16.mxu0 0
        %2117 = vmatpush2.bf16.msra.mxu0 0
        %2118 = vmatprep.subr.bf16.mxu0 0
        %2119 = vmatpush2.bf16.msra.mxu0 0
        %2120 = vmatprep.subr.bf16.mxu0 0
        %2121 = vmatpush2.bf16.msra.mxu0 0
        %2122 = vmatprep.subr.bf16.mxu0 0
        %2123 = vmatpush2.bf16.msra.mxu0 %v2073
        %2124 = vmatprep.subr.bf16.mxu0 0
        %2125 = vmatpush2.bf16.msra.mxu0 %v2072
        %2126 = vmatprep.subr.bf16.mxu0 0
        %2127 = vmatpush2.bf16.msra.mxu0 %v2071
        %2128 = vmatprep.subr.bf16.mxu0 0
        %2129 = vmatpush2.bf16.msra.mxu0 %v2070
        %2130 = vmatprep.mubr.bf16.mxu0 %v2087
        %2131 = vmatmul.mubr.bf16.gmra.mxu0 %v2002
        %v2132 = vpop.f32.mrf.mxu0
        %v2133 = vadd.f32 0.0, %v2132
        %v2134 = vpop.f32.mrf.mxu0
        %v2135 = vpop.f32.mrf.mxu0
        %v2136 = vadd.f32 0.0, %v2135
        %v2137 = vpop.f32.mrf.mxu0
        %2138 = vmatprep.mubr.bf16.mxu0 %v2090
        %2139 = vmatmul.mubr.bf16.gmra.mxu0 %v2004
        %v2140 = vpop.f32.mrf.mxu0
        %v2141 = vadd.f32 0.0, %v2140
        %v2142 = vpop.f32.mrf.mxu0
        %v2143 = vpop.f32.mrf.mxu0
        %v2144 = vadd.f32 0.0, %v2143
        %v2145 = vpop.f32.mrf.mxu0
        %2146 = vmatprep.mubr.bf16.mxu0 %v2093
        %2147 = vmatmul.mubr.bf16.gmra.mxu0 %v2006
        %v2148 = vpop.f32.mrf.mxu0
        %v2149 = vadd.f32 0.0, %v2148
        %v2150 = vpop.f32.mrf.mxu0
        %v2151 = vpop.f32.mrf.mxu0
        %v2152 = vadd.f32 0.0, %v2151
        %v2153 = vpop.f32.mrf.mxu0
        %2154 = vmatprep.mubr.bf16.mxu0 %v2096
        %2155 = vmatmul.mubr.bf16.gmra.mxu0 %v2008
        %v2156 = vpop.f32.mrf.mxu0
        %v2157 = vadd.f32 0.0, %v2156
        %v2158 = vpop.f32.mrf.mxu0
        %v2159 = vpop.f32.mrf.mxu0
        %v2160 = vadd.f32 0.0, %v2159
        %v2161 = vpop.f32.mrf.mxu0
        %2162 = vdwg.mxu0
        %v2163 = vadd.f32 %v1848, %v2133
        %v2164 = vadd.f32 %v1849, %v2136
        %v2165 = vadd.f32 %v1850, %v2141
        %v2166 = vadd.f32 %v1851, %v2144
        %v2167 = vadd.f32 %v1852, %v2149
        %v2168 = vadd.f32 %v1853, %v2152
        %v2169 = vadd.f32 %v1854, %v2157
        %v2170 = vadd.f32 %v1855, %v2160
        %v2180 = vunpack.c.l.b16 %v1875
        %v2181 = vunpack.c.l.b16 %v1876
        %v2182 = vunpack.c.l.b16 %v1878
        %v2183 = vunpack.c.l.b16 %v1880
        %v2184 = vunpack.c.l.b16 %v1882
        %v2185 = vunpack.c.l.b16 %v1884
        %v2186 = vunpack.c.l.b16 %v1886
        %v2187 = vunpack.c.l.b16 %v1888
        %v2188 = vunpack.c.l.b16 %v1890
        %v2189 = vpack.c.b16 %v2181, %v2180
        %v2190 = vpack.c.b16 %v2182, %v1903
        %v2191 = vpack.c.b16 %v2183, %v1904
        %v2192 = vpack.c.b16 %v2184, %v1905
        %v2193 = vpack.c.b16 %v2185, %v1906
        %v2194 = vpack.c.b16 %v2186, %v1907
        %v2195 = vpack.c.b16 %v2187, %v1908
        %v2196 = vpack.c.b16 %v2188, %v1909
        %v2198 = vunpack.c.l.b16 %v1892
        %v2199 = vpack.c.b16 %v2198, %v1910
        %2200 = vrot.lane.b32.xlu0 %v2190, 64
        %v2201 = vpop.permute.xlu0 %2200
        %2202 = vrot.lane.b32.xlu0 %v2191, 64
        %v2203 = vpop.permute.xlu0 %2202
        %2204 = vrot.lane.b32.xlu0 %v2192, 64
        %v2205 = vpop.permute.xlu0 %2204
        %2206 = vrot.lane.b32.xlu0 %v2193, 64
        %v2207 = vpop.permute.xlu0 %2206
        %2208 = vrot.lane.b32.xlu0 %v2194, 64
        %v2209 = vpop.permute.xlu0 %2208
        %2210 = vrot.lane.b32.xlu0 %v2195, 64
        %v2211 = vpop.permute.xlu0 %2210
        %2212 = vrot.lane.b32.xlu0 %v2196, 64
        %v2213 = vpop.permute.xlu0 %2212
        %2214 = vrot.lane.b32.xlu0 %v2199, 64
        %v2215 = vpop.permute.xlu0 %2214
        %v2217 = vunpack.c.l.b16 %v1894
        %v2220 = vsel %vm955, %v2189, %v2201
        %v2223 = vsel %vm955, %v2190, %v2203
        %v2226 = vsel %vm955, %v2191, %v2205
        %v2229 = vsel %vm955, %v2192, %v2207
        %v2232 = vsel %vm955, %v2193, %v2209
        %v2235 = vsel %vm955, %v2194, %v2211
        %v2238 = vsel %vm955, %v2195, %v2213
        %v2241 = vsel %vm955, %v2196, %v2215
        %v2250 = vunpack.c.l.b16 %v2220
        %v2251 = vunpack.c.h.b16 %v2220
        %v2252 = vunpack.c.l.b16 %v2223
        %v2253 = vunpack.c.h.b16 %v2223
        %v2254 = vunpack.c.l.b16 %v2226
        %v2255 = vunpack.c.h.b16 %v2226
        %v2256 = vunpack.c.l.b16 %v2229
        %v2257 = vunpack.c.h.b16 %v2229
        %v2258 = vunpack.c.l.b16 %v2232
        %v2259 = vunpack.c.h.b16 %v2232
        %v2260 = vunpack.c.l.b16 %v2235
        %v2261 = vunpack.c.h.b16 %v2235
        %v2262 = vunpack.c.l.b16 %v2238
        %v2263 = vunpack.c.h.b16 %v2238
        %v2264 = vunpack.c.l.b16 %v2241
        %v2265 = vunpack.c.h.b16 %v2241
        %v2266 = vpack.c.b16 %v1904, %v2250
        %v2267 = vpack.c.b16 %v2183, %v2251
        %v2268 = vpack.c.b16 %v1905, %v2252
        %v2269 = vpack.c.b16 %v2184, %v2253
        %v2270 = vpack.c.b16 %v1906, %v2254
        %v2271 = vpack.c.b16 %v2185, %v2255
        %v2272 = vpack.c.b16 %v1907, %v2256
        %v2273 = vpack.c.b16 %v2186, %v2257
        %v2274 = vpack.c.b16 %v1908, %v2258
        %v2275 = vpack.c.b16 %v2187, %v2259
        %v2276 = vpack.c.b16 %v1909, %v2260
        %v2277 = vpack.c.b16 %v2188, %v2261
        %v2278 = vpack.c.b16 %v1910, %v2262
        %v2279 = vpack.c.b16 %v2198, %v2263
        %v2280 = vpack.c.b16 %v1976, %v2264
        %v2281 = vpack.c.b16 %v2217, %v2265
        %v2283 = vshrl.u32 %v2266, 16
        %v2285 = vrot.slane %v2283, 4
        %v2286 = vshll.u32 %v2266, 16
        %v2288 = vrot.slane %v2286, 5
        %v2289 = vor.u32 %v2285, %v2288
        %v2290 = vrot.slane %v2289, 4
        %v2292 = vshll.u32 %v2267, 16
        %v2294 = vrot.slane %v2292, 5
        %v2295 = vsel %vm1135, %v2290, %v2294
        %v2297 = vshrl.u32 %v2268, 16
        %v2299 = vrot.slane %v2297, 4
        %v2300 = vshll.u32 %v2268, 16
        %v2302 = vrot.slane %v2300, 5
        %v2303 = vor.u32 %v2299, %v2302
        %v2304 = vrot.slane %v2303, 4
        %v2306 = vshll.u32 %v2269, 16
        %v2308 = vrot.slane %v2306, 5
        %v2309 = vsel %vm1135, %v2304, %v2308
        %v2311 = vshrl.u32 %v2270, 16
        %v2313 = vrot.slane %v2311, 4
        %v2314 = vshll.u32 %v2270, 16
        %v2316 = vrot.slane %v2314, 5
        %v2317 = vor.u32 %v2313, %v2316
        %v2318 = vrot.slane %v2317, 4
        %v2320 = vshll.u32 %v2271, 16
        %v2322 = vrot.slane %v2320, 5
        %v2323 = vsel %vm1135, %v2318, %v2322
        %v2325 = vshrl.u32 %v2272, 16
        %v2327 = vrot.slane %v2325, 4
        %v2328 = vshll.u32 %v2272, 16
        %v2330 = vrot.slane %v2328, 5
        %v2331 = vor.u32 %v2327, %v2330
        %v2332 = vrot.slane %v2331, 4
        %v2334 = vshll.u32 %v2273, 16
        %v2336 = vrot.slane %v2334, 5
        %v2337 = vsel %vm1135, %v2332, %v2336
        %v2339 = vshrl.u32 %v2274, 16
        %v2341 = vrot.slane %v2339, 4
        %v2342 = vshll.u32 %v2274, 16
        %v2344 = vrot.slane %v2342, 5
        %v2345 = vor.u32 %v2341, %v2344
        %v2346 = vrot.slane %v2345, 4
        %v2348 = vshll.u32 %v2275, 16
        %v2350 = vrot.slane %v2348, 5
        %v2351 = vsel %vm1135, %v2346, %v2350
        %v2353 = vshrl.u32 %v2276, 16
        %v2355 = vrot.slane %v2353, 4
        %v2356 = vshll.u32 %v2276, 16
        %v2358 = vrot.slane %v2356, 5
        %v2359 = vor.u32 %v2355, %v2358
        %v2360 = vrot.slane %v2359, 4
        %v2362 = vshll.u32 %v2277, 16
        %v2364 = vrot.slane %v2362, 5
        %v2365 = vsel %vm1135, %v2360, %v2364
        %v2367 = vshrl.u32 %v2278, 16
        %v2369 = vrot.slane %v2367, 4
        %v2370 = vshll.u32 %v2278, 16
        %v2372 = vrot.slane %v2370, 5
        %v2373 = vor.u32 %v2369, %v2372
        %v2374 = vrot.slane %v2373, 4
        %v2376 = vshll.u32 %v2279, 16
        %v2378 = vrot.slane %v2376, 5
        %v2379 = vsel %vm1135, %v2374, %v2378
        %v2381 = vshrl.u32 %v2280, 16
        %v2383 = vrot.slane %v2381, 4
        %v2384 = vshll.u32 %v2280, 16
        %v2386 = vrot.slane %v2384, 5
        %v2387 = vor.u32 %v2383, %v2386
        %v2388 = vrot.slane %v2387, 4
        %v2390 = vshll.u32 %v2281, 16
        %v2392 = vrot.slane %v2390, 5
        %v2393 = vsel %vm1135, %v2388, %v2392
        %s2394 = scalar_lea.vmem %s3, 384
        %v2395 = vld [vmem:[%s2394] sm:$0xf]
        %v2396 = vld [vmem:[%s2394 + $0x4] sm:$0xf]
        %v2397 = vld [vmem:[%s2394 + $0x8] sm:$0xf]
        %v2398 = vld [vmem:[%s2394 + $0xc] sm:$0xf]
        %v2399 = vld [vmem:[%s2394 + $0x10] sm:$0xf]
        %v2400 = vld [vmem:[%s2394 + $0x14] sm:$0xf]
        %v2401 = vld [vmem:[%s2394 + $0x18] sm:$0xf]
        %v2402 = vld [vmem:[%s2394 + $0x1c] sm:$0xf]
        %v2403 = vld [vmem:[%s2394 + $0x20] sm:$0xf]
        %v2404 = vld [vmem:[%s2394 + $0x24] sm:$0xf]
        %v2405 = vld [vmem:[%s2394 + $0x28] sm:$0xf]
        %v2406 = vld [vmem:[%s2394 + $0x2c] sm:$0xf]
        %v2407 = vld [vmem:[%s2394 + $0x30] sm:$0xf]
        %v2408 = vld [vmem:[%s2394 + $0x34] sm:$0xf]
        %v2409 = vld [vmem:[%s2394 + $0x38] sm:$0xf]
        %v2410 = vld [vmem:[%s2394 + $0x3c] sm:$0xf]
        %v2411 = vld [vmem:[%s2394 + $0x40] sm:$0xf]
        %v2412 = vld [vmem:[%s2394 + $0x44] sm:$0xf]
        %v2413 = vld [vmem:[%s2394 + $0x48] sm:$0xf]
        %v2414 = vld [vmem:[%s2394 + $0x4c] sm:$0xf]
        %v2415 = vld [vmem:[%s2394 + $0x50] sm:$0xf]
        %v2416 = vld [vmem:[%s2394 + $0x54] sm:$0xf]
        %v2417 = vld [vmem:[%s2394 + $0x58] sm:$0xf]
        %v2418 = vld [vmem:[%s2394 + $0x5c] sm:$0xf]
        %v2419 = vunpack.c.l.b16 %v2295
        %v2420 = vunpack.c.h.b16 %v2295
        %v2421 = vunpack.c.l.b16 %v2309
        %v2422 = vunpack.c.h.b16 %v2309
        %v2423 = vunpack.c.l.b16 %v2323
        %v2424 = vunpack.c.h.b16 %v2323
        %v2425 = vunpack.c.l.b16 %v2337
        %v2426 = vunpack.c.h.b16 %v2337
        %v2427 = vunpack.c.l.b16 %v2351
        %v2428 = vunpack.c.h.b16 %v2351
        %v2429 = vunpack.c.l.b16 %v2365
        %v2430 = vunpack.c.h.b16 %v2365
        %v2431 = vunpack.c.l.b16 %v2379
        %v2432 = vunpack.c.h.b16 %v2379
        %v2433 = vunpack.c.l.b16 %v2393
        %v2434 = vunpack.c.h.b16 %v2393
        %v2435 = vpack.c.b16 %v2421, %v2419
        %v2436 = vpack.c.b16 %v2422, %v2420
        %v2437 = vpack.c.b16 %v2425, %v2423
        %v2438 = vpack.c.b16 %v2426, %v2424
        %v2439 = vpack.c.b16 %v2429, %v2427
        %v2440 = vpack.c.b16 %v2430, %v2428
        %v2441 = vpack.c.b16 %v2433, %v2431
        %v2442 = vpack.c.b16 %v2434, %v2432
        %v2471 = vunpack.c.l.b16 %v2395
        %v2472 = vunpack.c.l.b16 %v2396
        %v2473 = vunpack.c.l.b16 %v2397
        %v2474 = vunpack.c.l.b16 %v2398
        %v2475 = vunpack.c.l.b16 %v2399
        %v2476 = vunpack.c.l.b16 %v2400
        %v2477 = vunpack.c.l.b16 %v2401
        %v2478 = vunpack.c.l.b16 %v2402
        %v2479 = vunpack.c.l.b16 %v2403
        %v2480 = vunpack.c.l.b16 %v2404
        %v2481 = vunpack.c.l.b16 %v2405
        %v2482 = vunpack.c.l.b16 %v2406
        %v2483 = vunpack.c.l.b16 %v2407
        %v2484 = vunpack.c.l.b16 %v2408
        %v2485 = vunpack.c.l.b16 %v2409
        %v2486 = vunpack.c.l.b16 %v2410
        %v2487 = vunpack.c.l.b16 %v2411
        %v2488 = vunpack.c.l.b16 %v2412
        %v2489 = vunpack.c.l.b16 %v2413
        %v2490 = vunpack.c.l.b16 %v2414
        %v2491 = vunpack.c.l.b16 %v2415
        %v2492 = vunpack.c.l.b16 %v2416
        %v2493 = vunpack.c.l.b16 %v2417
        %v2494 = vunpack.c.l.b16 %v2418
        %v2495 = vpack.c.b16 %v2472, %v2471
        %v2496 = vpack.c.b16 %v2474, %v2473
        %v2497 = vpack.c.b16 %v2476, %v2475
        %v2498 = vpack.c.b16 %v2478, %v2477
        %v2499 = vpack.c.b16 %v2480, %v2479
        %v2500 = vpack.c.b16 %v2482, %v2481
        %v2501 = vpack.c.b16 %v2484, %v2483
        %v2502 = vpack.c.b16 %v2486, %v2485
        %v2503 = vpack.c.b16 %v2488, %v2487
        %v2504 = vpack.c.b16 %v2490, %v2489
        %v2505 = vpack.c.b16 %v2492, %v2491
        %v2506 = vpack.c.b16 %v2494, %v2493
        %v2520 = vsel %vm955, %v2436, 0
        %v2523 = vsel %vm955, %v2438, 0
        %v2526 = vsel %vm955, %v2440, 0
        %v2529 = vsel %vm955, %v2442, 0
        %2531 = vmatprep.subr.bf16.mxu0 0
        %2532 = vmatpush1.bf16.msra.mxu0 %v2502
        %2533 = vmatprep.subr.bf16.mxu0 0
        %2534 = vmatpush1.bf16.msra.mxu0 %v2501
        %2535 = vmatprep.subr.bf16.mxu0 0
        %2536 = vmatpush1.bf16.msra.mxu0 %v2500
        %2537 = vmatprep.subr.bf16.mxu0 0
        %2538 = vmatpush1.bf16.msra.mxu0 %v2499
        %2539 = vmatprep.subr.bf16.mxu0 0
        %2540 = vmatpush1.bf16.msra.mxu0 %v2498
        %2541 = vmatprep.subr.bf16.mxu0 0
        %2542 = vmatpush1.bf16.msra.mxu0 %v2497
        %2543 = vmatprep.subr.bf16.mxu0 0
        %2544 = vmatpush1.bf16.msra.mxu0 %v2496
        %2545 = vmatprep.subr.bf16.mxu0 0
        %2546 = vmatpush1.bf16.msra.mxu0 %v2495
        %2547 = vmatprep.subr.bf16.mxu0 0
        %2548 = vmatpush2.bf16.msra.mxu0 0
        %2549 = vmatprep.subr.bf16.mxu0 0
        %2550 = vmatpush2.bf16.msra.mxu0 0
        %2551 = vmatprep.subr.bf16.mxu0 0
        %2552 = vmatpush2.bf16.msra.mxu0 0
        %2553 = vmatprep.subr.bf16.mxu0 0
        %2554 = vmatpush2.bf16.msra.mxu0 0
        %2555 = vmatprep.subr.bf16.mxu0 0
        %2556 = vmatpush2.bf16.msra.mxu0 %v2506
        %2557 = vmatprep.subr.bf16.mxu0 0
        %2558 = vmatpush2.bf16.msra.mxu0 %v2505
        %2559 = vmatprep.subr.bf16.mxu0 0
        %2560 = vmatpush2.bf16.msra.mxu0 %v2504
        %2561 = vmatprep.subr.bf16.mxu0 0
        %2562 = vmatpush2.bf16.msra.mxu0 %v2503
        %2563 = vmatprep.mubr.bf16.mxu0 %v2520
        %2564 = vmatmul.mubr.bf16.gmra.mxu0 %v2435
        %v2565 = vpop.f32.mrf.mxu0
        %v2566 = vadd.f32 0.0, %v2565
        %v2567 = vpop.f32.mrf.mxu0
        %v2568 = vpop.f32.mrf.mxu0
        %v2569 = vadd.f32 0.0, %v2568
        %v2570 = vpop.f32.mrf.mxu0
        %2571 = vmatprep.mubr.bf16.mxu0 %v2523
        %2572 = vmatmul.mubr.bf16.gmra.mxu0 %v2437
        %v2573 = vpop.f32.mrf.mxu0
        %v2574 = vadd.f32 0.0, %v2573
        %v2575 = vpop.f32.mrf.mxu0
        %v2576 = vpop.f32.mrf.mxu0
        %v2577 = vadd.f32 0.0, %v2576
        %v2578 = vpop.f32.mrf.mxu0
        %2579 = vmatprep.mubr.bf16.mxu0 %v2526
        %2580 = vmatmul.mubr.bf16.gmra.mxu0 %v2439
        %v2581 = vpop.f32.mrf.mxu0
        %v2582 = vadd.f32 0.0, %v2581
        %v2583 = vpop.f32.mrf.mxu0
        %v2584 = vpop.f32.mrf.mxu0
        %v2585 = vadd.f32 0.0, %v2584
        %v2586 = vpop.f32.mrf.mxu0
        %2587 = vmatprep.mubr.bf16.mxu0 %v2529
        %2588 = vmatmul.mubr.bf16.gmra.mxu0 %v2441
        %v2589 = vpop.f32.mrf.mxu0
        %v2590 = vadd.f32 0.0, %v2589
        %v2591 = vpop.f32.mrf.mxu0
        %v2592 = vpop.f32.mrf.mxu0
        %v2593 = vadd.f32 0.0, %v2592
        %v2594 = vpop.f32.mrf.mxu0
        %2595 = vdwg.mxu0
        %v2596 = vadd.f32 %v2163, %v2566
        %v2597 = vadd.f32 %v2164, %v2569
        %v2598 = vadd.f32 %v2165, %v2574
        %v2599 = vadd.f32 %v2166, %v2577
        %v2600 = vadd.f32 %v2167, %v2582
        %v2601 = vadd.f32 %v2168, %v2585
        %v2602 = vadd.f32 %v2169, %v2590
        %v2603 = vadd.f32 %v2170, %v2593
        %v2604 = vrot.slane %v2266, 5
        %v2605 = vrot.slane %v2604, 4
        %v2606 = vrot.slane %v2267, 5
        %v2607 = vsel %vm1613, %v2605, %v2606
        %v2608 = vrot.slane %v2268, 5
        %v2609 = vrot.slane %v2608, 4
        %v2610 = vrot.slane %v2269, 5
        %v2611 = vsel %vm1613, %v2609, %v2610
        %v2612 = vrot.slane %v2270, 5
        %v2613 = vrot.slane %v2612, 4
        %v2614 = vrot.slane %v2271, 5
        %v2615 = vsel %vm1613, %v2613, %v2614
        %v2616 = vrot.slane %v2272, 5
        %v2617 = vrot.slane %v2616, 4
        %v2618 = vrot.slane %v2273, 5
        %v2619 = vsel %vm1613, %v2617, %v2618
        %v2620 = vrot.slane %v2274, 5
        %v2621 = vrot.slane %v2620, 4
        %v2622 = vrot.slane %v2275, 5
        %v2623 = vsel %vm1613, %v2621, %v2622
        %v2624 = vrot.slane %v2276, 5
        %v2625 = vrot.slane %v2624, 4
        %v2626 = vrot.slane %v2277, 5
        %v2627 = vsel %vm1613, %v2625, %v2626
        %v2628 = vrot.slane %v2278, 5
        %v2629 = vrot.slane %v2628, 4
        %v2630 = vrot.slane %v2279, 5
        %v2631 = vsel %vm1613, %v2629, %v2630
        %v2632 = vrot.slane %v2280, 5
        %v2633 = vrot.slane %v2632, 4
        %v2634 = vrot.slane %v2281, 5
        %v2635 = vsel %vm1613, %v2633, %v2634
        %s2636 = scalar_lea.vmem %s3, 480
        %v2637 = vld [vmem:[%s2636] sm:$0xf]
        %v2638 = vld [vmem:[%s2636 + $0x4] sm:$0xf]
        %v2639 = vld [vmem:[%s2636 + $0x8] sm:$0xf]
        %v2640 = vld [vmem:[%s2636 + $0xc] sm:$0xf]
        %v2641 = vld [vmem:[%s2636 + $0x10] sm:$0xf]
        %v2642 = vld [vmem:[%s2636 + $0x14] sm:$0xf]
        %v2643 = vld [vmem:[%s2636 + $0x18] sm:$0xf]
        %v2644 = vld [vmem:[%s2636 + $0x1c] sm:$0xf]
        %v2645 = vld [vmem:[%s2636 + $0x20] sm:$0xf]
        %v2646 = vld [vmem:[%s2636 + $0x24] sm:$0xf]
        %v2647 = vld [vmem:[%s2636 + $0x28] sm:$0xf]
        %v2648 = vld [vmem:[%s2636 + $0x2c] sm:$0xf]
        %v2649 = vld [vmem:[%s2636 + $0x30] sm:$0xf]
        %v2650 = vld [vmem:[%s2636 + $0x34] sm:$0xf]
        %v2651 = vld [vmem:[%s2636 + $0x38] sm:$0xf]
        %v2652 = vld [vmem:[%s2636 + $0x3c] sm:$0xf]
        %v2653 = vld [vmem:[%s2636 + $0x40] sm:$0xf]
        %v2654 = vld [vmem:[%s2636 + $0x44] sm:$0xf]
        %v2655 = vld [vmem:[%s2636 + $0x48] sm:$0xf]
        %v2656 = vld [vmem:[%s2636 + $0x4c] sm:$0xf]
        %v2657 = vld [vmem:[%s2636 + $0x50] sm:$0xf]
        %v2658 = vld [vmem:[%s2636 + $0x54] sm:$0xf]
        %v2659 = vld [vmem:[%s2636 + $0x58] sm:$0xf]
        %v2660 = vld [vmem:[%s2636 + $0x5c] sm:$0xf]
        %v2661 = vunpack.c.l.b16 %v2607
        %v2662 = vunpack.c.h.b16 %v2607
        %v2663 = vunpack.c.l.b16 %v2611
        %v2664 = vunpack.c.h.b16 %v2611
        %v2665 = vunpack.c.l.b16 %v2615
        %v2666 = vunpack.c.h.b16 %v2615
        %v2667 = vunpack.c.l.b16 %v2619
        %v2668 = vunpack.c.h.b16 %v2619
        %v2669 = vunpack.c.l.b16 %v2623
        %v2670 = vunpack.c.h.b16 %v2623
        %v2671 = vunpack.c.l.b16 %v2627
        %v2672 = vunpack.c.h.b16 %v2627
        %v2673 = vunpack.c.l.b16 %v2631
        %v2674 = vunpack.c.h.b16 %v2631
        %v2675 = vunpack.c.l.b16 %v2635
        %v2676 = vunpack.c.h.b16 %v2635
        %v2677 = vpack.c.b16 %v2663, %v2661
        %v2678 = vpack.c.b16 %v2664, %v2662
        %v2679 = vpack.c.b16 %v2667, %v2665
        %v2680 = vpack.c.b16 %v2668, %v2666
        %v2681 = vpack.c.b16 %v2671, %v2669
        %v2682 = vpack.c.b16 %v2672, %v2670
        %v2683 = vpack.c.b16 %v2675, %v2673
        %v2684 = vpack.c.b16 %v2676, %v2674
        %v2713 = vunpack.c.l.b16 %v2637
        %v2714 = vunpack.c.l.b16 %v2638
        %v2715 = vunpack.c.l.b16 %v2639
        %v2716 = vunpack.c.l.b16 %v2640
        %v2717 = vunpack.c.l.b16 %v2641
        %v2718 = vunpack.c.l.b16 %v2642
        %v2719 = vunpack.c.l.b16 %v2643
        %v2720 = vunpack.c.l.b16 %v2644
        %v2721 = vunpack.c.l.b16 %v2645
        %v2722 = vunpack.c.l.b16 %v2646
        %v2723 = vunpack.c.l.b16 %v2647
        %v2724 = vunpack.c.l.b16 %v2648
        %v2725 = vunpack.c.l.b16 %v2649
        %v2726 = vunpack.c.l.b16 %v2650
        %v2727 = vunpack.c.l.b16 %v2651
        %v2728 = vunpack.c.l.b16 %v2652
        %v2729 = vunpack.c.l.b16 %v2653
        %v2730 = vunpack.c.l.b16 %v2654
        %v2731 = vunpack.c.l.b16 %v2655
        %v2732 = vunpack.c.l.b16 %v2656
        %v2733 = vunpack.c.l.b16 %v2657
        %v2734 = vunpack.c.l.b16 %v2658
        %v2735 = vunpack.c.l.b16 %v2659
        %v2736 = vunpack.c.l.b16 %v2660
        %v2737 = vpack.c.b16 %v2714, %v2713
        %v2738 = vpack.c.b16 %v2716, %v2715
        %v2739 = vpack.c.b16 %v2718, %v2717
        %v2740 = vpack.c.b16 %v2720, %v2719
        %v2741 = vpack.c.b16 %v2722, %v2721
        %v2742 = vpack.c.b16 %v2724, %v2723
        %v2743 = vpack.c.b16 %v2726, %v2725
        %v2744 = vpack.c.b16 %v2728, %v2727
        %v2745 = vpack.c.b16 %v2730, %v2729
        %v2746 = vpack.c.b16 %v2732, %v2731
        %v2747 = vpack.c.b16 %v2734, %v2733
        %v2748 = vpack.c.b16 %v2736, %v2735
        %v2762 = vsel %vm955, %v2678, 0
        %v2765 = vsel %vm955, %v2680, 0
        %v2768 = vsel %vm955, %v2682, 0
        %v2771 = vsel %vm955, %v2684, 0
        %2773 = vmatprep.subr.bf16.mxu0 0
        %2774 = vmatpush1.bf16.msra.mxu0 %v2744
        %2775 = vmatprep.subr.bf16.mxu0 0
        %2776 = vmatpush1.bf16.msra.mxu0 %v2743
        %2777 = vmatprep.subr.bf16.mxu0 0
        %2778 = vmatpush1.bf16.msra.mxu0 %v2742
        %2779 = vmatprep.subr.bf16.mxu0 0
        %2780 = vmatpush1.bf16.msra.mxu0 %v2741
        %2781 = vmatprep.subr.bf16.mxu0 0
        %2782 = vmatpush1.bf16.msra.mxu0 %v2740
        %2783 = vmatprep.subr.bf16.mxu0 0
        %2784 = vmatpush1.bf16.msra.mxu0 %v2739
        %2785 = vmatprep.subr.bf16.mxu0 0
        %2786 = vmatpush1.bf16.msra.mxu0 %v2738
        %2787 = vmatprep.subr.bf16.mxu0 0
        %2788 = vmatpush1.bf16.msra.mxu0 %v2737
        %2789 = vmatprep.subr.bf16.mxu0 0
        %2790 = vmatpush2.bf16.msra.mxu0 0
        %2791 = vmatprep.subr.bf16.mxu0 0
        %2792 = vmatpush2.bf16.msra.mxu0 0
        %2793 = vmatprep.subr.bf16.mxu0 0
        %2794 = vmatpush2.bf16.msra.mxu0 0
        %2795 = vmatprep.subr.bf16.mxu0 0
        %2796 = vmatpush2.bf16.msra.mxu0 0
        %2797 = vmatprep.subr.bf16.mxu0 0
        %2798 = vmatpush2.bf16.msra.mxu0 %v2748
        %2799 = vmatprep.subr.bf16.mxu0 0
        %2800 = vmatpush2.bf16.msra.mxu0 %v2747
        %2801 = vmatprep.subr.bf16.mxu0 0
        %2802 = vmatpush2.bf16.msra.mxu0 %v2746
        %2803 = vmatprep.subr.bf16.mxu0 0
        %2804 = vmatpush2.bf16.msra.mxu0 %v2745
        %2805 = vmatprep.mubr.bf16.mxu0 %v2762
        %2806 = vmatmul.mubr.bf16.gmra.mxu0 %v2677
        %v2807 = vpop.f32.mrf.mxu0
        %v2808 = vadd.f32 0.0, %v2807
        %v2809 = vpop.f32.mrf.mxu0
        %v2810 = vpop.f32.mrf.mxu0
        %v2811 = vadd.f32 0.0, %v2810
        %v2812 = vpop.f32.mrf.mxu0
        %2813 = vmatprep.mubr.bf16.mxu0 %v2765
        %2814 = vmatmul.mubr.bf16.gmra.mxu0 %v2679
        %v2815 = vpop.f32.mrf.mxu0
        %v2816 = vadd.f32 0.0, %v2815
        %v2817 = vpop.f32.mrf.mxu0
        %v2818 = vpop.f32.mrf.mxu0
        %v2819 = vadd.f32 0.0, %v2818
        %v2820 = vpop.f32.mrf.mxu0
        %2821 = vmatprep.mubr.bf16.mxu0 %v2768
        %2822 = vmatmul.mubr.bf16.gmra.mxu0 %v2681
        %v2823 = vpop.f32.mrf.mxu0
        %v2824 = vadd.f32 0.0, %v2823
        %v2825 = vpop.f32.mrf.mxu0
        %v2826 = vpop.f32.mrf.mxu0
        %v2827 = vadd.f32 0.0, %v2826
        %v2828 = vpop.f32.mrf.mxu0
        %2829 = vmatprep.mubr.bf16.mxu0 %v2771
        %2830 = vmatmul.mubr.bf16.gmra.mxu0 %v2683
        %v2831 = vpop.f32.mrf.mxu0
        %v2832 = vadd.f32 0.0, %v2831
        %v2833 = vpop.f32.mrf.mxu0
        %v2834 = vpop.f32.mrf.mxu0
        %v2835 = vadd.f32 0.0, %v2834
        %v2836 = vpop.f32.mrf.mxu0
        %2837 = vdwg.mxu0
        %v2838 = vadd.f32 %v2596, %v2808
        %v2839 = vadd.f32 %v2597, %v2811
        %v2840 = vadd.f32 %v2598, %v2816
        %v2841 = vadd.f32 %v2599, %v2819
        %v2842 = vadd.f32 %v2600, %v2824
        %v2843 = vadd.f32 %v2601, %v2827
        %v2844 = vadd.f32 %v2602, %v2832
        %v2845 = vadd.f32 %v2603, %v2835
        %p2846 = scmp.gt.s32.totalorder %s27, 0
        %s2847 = scalar_select %p2846, %s27, 0
        %p2848 = scmp.lt.s32.totalorder %s2847, 0
        %s2849 = ssub.s32 0, %s2847
        %s2850 = scalar_select %p2848, %s2849, %s2847
        %s2851 = sdiv.u32.pop %s2850, 3
        %s2852 = srem.u32.pop %s2850, 3
        %s2853 = ssub.s32 0, %s2852
        %s2854 = scalar_select %p2848, %s2853, %s2852
        %p2855 = scmp.ne.s32.totalorder %s2854, 0
        %p2856 = scmp.lt.s32.totalorder %s2854, 0
        %p2857 = pnand %p2856, %p2855
        %p2858 = pneg %p2857
        %s2859 = sadd.s32 %s2854, 3
        %s2860 = scalar_select %p2858, %s2859, %s2854
        %s2861 = smul.u32 %s2860, 20
        %s2862 = smul.addr %s2861, 4
        %s2863 = scalar_lea.vmem [#allocation2], %s2862
        %v2864 = vld [vmem:[%s2863] sm:$0xf]
        %v2865 = vld [vmem:[%s2863 + $0x4] sm:$0x1]
        %v2866 = vld [vmem:[%s2863 + $0x8] sm:$0xf]
        %v2867 = vld [vmem:[%s2863 + $0xc] sm:$0x1]
        %v2868 = vld [vmem:[%s2863 + $0x10] sm:$0xf]
        %v2869 = vld [vmem:[%s2863 + $0x14] sm:$0x1]
        %v2870 = vld [vmem:[%s2863 + $0x18] sm:$0xf]
        %v2871 = vld [vmem:[%s2863 + $0x1c] sm:$0x1]
        %v2872 = vld [vmem:[%s2863 + $0x20] sm:$0xf]
        %v2873 = vld [vmem:[%s2863 + $0x24] sm:$0x1]
        %v2874 = vld [vmem:[%s2863 + $0x28] sm:$0xf]
        %v2875 = vld [vmem:[%s2863 + $0x2c] sm:$0x1]
        %v2876 = vld [vmem:[%s2863 + $0x30] sm:$0xf]
        %v2877 = vld [vmem:[%s2863 + $0x34] sm:$0x1]
        %v2878 = vld [vmem:[%s2863 + $0x38] sm:$0xf]
        %v2879 = vld [vmem:[%s2863 + $0x3c] sm:$0x1]
        %v2880 = vld [vmem:[%s2863 + $0x40] sm:$0xf]
        %v2881 = vld [vmem:[%s2863 + $0x44] sm:$0x1]
        %v2882 = vld [vmem:[%s2863 + $0x48] sm:$0xf]
        %v2883 = vld [vmem:[%s2863 + $0x4c] sm:$0x1]
        %v2892 = vunpack.c.l.b16 %v2866
        %v2893 = vunpack.c.l.b16 %v2868
        %v2894 = vunpack.c.l.b16 %v2870
        %v2895 = vunpack.c.l.b16 %v2872
        %v2896 = vunpack.c.l.b16 %v2874
        %v2897 = vunpack.c.l.b16 %v2876
        %v2898 = vunpack.c.l.b16 %v2878
        %v2899 = vunpack.c.l.b16 %v2880
        %v2900 = vpack.c.b16 %v2892, %v2892
        %v2901 = vpack.c.b16 %v2893, %v2893
        %v2902 = vpack.c.b16 %v2894, %v2894
        %v2903 = vpack.c.b16 %v2895, %v2895
        %v2904 = vpack.c.b16 %v2896, %v2896
        %v2905 = vpack.c.b16 %v2897, %v2897
        %v2906 = vpack.c.b16 %v2898, %v2898
        %v2907 = vpack.c.b16 %v2899, %v2899
        %2908 = vrot.lane.b32.xlu0 %v2900, 64
        %v2909 = vpop.permute.xlu0 %2908
        %2910 = vrot.lane.b32.xlu0 %v2901, 64
        %v2911 = vpop.permute.xlu0 %2910
        %2912 = vrot.lane.b32.xlu0 %v2902, 64
        %v2913 = vpop.permute.xlu0 %2912
        %2914 = vrot.lane.b32.xlu0 %v2903, 64
        %v2915 = vpop.permute.xlu0 %2914
        %2916 = vrot.lane.b32.xlu0 %v2904, 64
        %v2917 = vpop.permute.xlu0 %2916
        %2918 = vrot.lane.b32.xlu0 %v2905, 64
        %v2919 = vpop.permute.xlu0 %2918
        %2920 = vrot.lane.b32.xlu0 %v2906, 64
        %v2921 = vpop.permute.xlu0 %2920
        %2922 = vrot.lane.b32.xlu0 %v2907, 64
        %v2923 = vpop.permute.xlu0 %2922
        %v2926 = vsel %vm955, %v2864, %v2909
        %v2929 = vsel %vm955, %v2866, %v2911
        %v2932 = vsel %vm955, %v2868, %v2913
        %v2935 = vsel %vm955, %v2870, %v2915
        %v2938 = vsel %vm955, %v2872, %v2917
        %v2941 = vsel %vm955, %v2874, %v2919
        %v2944 = vsel %vm955, %v2876, %v2921
        %v2947 = vsel %vm955, %v2878, %v2923
        %v2957 = vunpack.c.l.b16 %v2926
        %v2958 = vunpack.c.l.b16 %v2929
        %v2959 = vunpack.c.l.b16 %v2932
        %v2960 = vunpack.c.l.b16 %v2935
        %v2961 = vunpack.c.l.b16 %v2938
        %v2962 = vunpack.c.l.b16 %v2941
        %v2963 = vunpack.c.l.b16 %v2944
        %v2964 = vunpack.c.l.b16 %v2947
        %v2965 = vunpack.c.l.b16 %v2882
        %s2966 = scalar_lea.vmem %s3, 576
        %v2967 = vld [vmem:[%s2966] sm:$0xf]
        %v2968 = vld [vmem:[%s2966 + $0x4] sm:$0xf]
        %v2969 = vld [vmem:[%s2966 + $0x8] sm:$0xf]
        %v2970 = vld [vmem:[%s2966 + $0xc] sm:$0xf]
        %v2971 = vld [vmem:[%s2966 + $0x10] sm:$0xf]
        %v2972 = vld [vmem:[%s2966 + $0x14] sm:$0xf]
        %v2973 = vld [vmem:[%s2966 + $0x18] sm:$0xf]
        %v2974 = vld [vmem:[%s2966 + $0x1c] sm:$0xf]
        %v2975 = vld [vmem:[%s2966 + $0x20] sm:$0xf]
        %v2976 = vld [vmem:[%s2966 + $0x24] sm:$0xf]
        %v2977 = vld [vmem:[%s2966 + $0x28] sm:$0xf]
        %v2978 = vld [vmem:[%s2966 + $0x2c] sm:$0xf]
        %v2979 = vld [vmem:[%s2966 + $0x30] sm:$0xf]
        %v2980 = vld [vmem:[%s2966 + $0x34] sm:$0xf]
        %v2981 = vld [vmem:[%s2966 + $0x38] sm:$0xf]
        %v2982 = vld [vmem:[%s2966 + $0x3c] sm:$0xf]
        %v2983 = vld [vmem:[%s2966 + $0x40] sm:$0xf]
        %v2984 = vld [vmem:[%s2966 + $0x44] sm:$0xf]
        %v2985 = vld [vmem:[%s2966 + $0x48] sm:$0xf]
        %v2986 = vld [vmem:[%s2966 + $0x4c] sm:$0xf]
        %v2987 = vld [vmem:[%s2966 + $0x50] sm:$0xf]
        %v2988 = vld [vmem:[%s2966 + $0x54] sm:$0xf]
        %v2989 = vld [vmem:[%s2966 + $0x58] sm:$0xf]
        %v2990 = vld [vmem:[%s2966 + $0x5c] sm:$0xf]
        %v2991 = vpack.c.b16 %v2958, %v2957
        %v2992 = vpack.c.b16 %v2894, %v2893
        %v2993 = vpack.c.b16 %v2960, %v2959
        %v2994 = vpack.c.b16 %v2896, %v2895
        %v2995 = vpack.c.b16 %v2962, %v2961
        %v2996 = vpack.c.b16 %v2898, %v2897
        %v2997 = vpack.c.b16 %v2964, %v2963
        %v2998 = vpack.c.b16 %v2965, %v2899
        %v3027 = vunpack.c.l.b16 %v2967
        %v3028 = vunpack.c.l.b16 %v2968
        %v3029 = vunpack.c.l.b16 %v2969
        %v3030 = vunpack.c.l.b16 %v2970
        %v3031 = vunpack.c.l.b16 %v2971
        %v3032 = vunpack.c.l.b16 %v2972
        %v3033 = vunpack.c.l.b16 %v2973
        %v3034 = vunpack.c.l.b16 %v2974
        %v3035 = vunpack.c.l.b16 %v2975
        %v3036 = vunpack.c.l.b16 %v2976
        %v3037 = vunpack.c.l.b16 %v2977
        %v3038 = vunpack.c.l.b16 %v2978
        %v3039 = vunpack.c.l.b16 %v2979
        %v3040 = vunpack.c.l.b16 %v2980
        %v3041 = vunpack.c.l.b16 %v2981
        %v3042 = vunpack.c.l.b16 %v2982
        %v3043 = vunpack.c.l.b16 %v2983
        %v3044 = vunpack.c.l.b16 %v2984
        %v3045 = vunpack.c.l.b16 %v2985
        %v3046 = vunpack.c.l.b16 %v2986
        %v3047 = vunpack.c.l.b16 %v2987
        %v3048 = vunpack.c.l.b16 %v2988
        %v3049 = vunpack.c.l.b16 %v2989
        %v3050 = vunpack.c.l.b16 %v2990
        %v3051 = vpack.c.b16 %v3028, %v3027
        %v3052 = vpack.c.b16 %v3030, %v3029
        %v3053 = vpack.c.b16 %v3032, %v3031
        %v3054 = vpack.c.b16 %v3034, %v3033
        %v3055 = vpack.c.b16 %v3036, %v3035
        %v3056 = vpack.c.b16 %v3038, %v3037
        %v3057 = vpack.c.b16 %v3040, %v3039
        %v3058 = vpack.c.b16 %v3042, %v3041
        %v3059 = vpack.c.b16 %v3044, %v3043
        %v3060 = vpack.c.b16 %v3046, %v3045
        %v3061 = vpack.c.b16 %v3048, %v3047
        %v3062 = vpack.c.b16 %v3050, %v3049
        %v3076 = vsel %vm955, %v2992, 0
        %v3079 = vsel %vm955, %v2994, 0
        %v3082 = vsel %vm955, %v2996, 0
        %v3085 = vsel %vm955, %v2998, 0
        %3087 = vmatprep.subr.bf16.mxu0 0
        %3088 = vmatpush1.bf16.msra.mxu0 %v3058
        %3089 = vmatprep.subr.bf16.mxu0 0
        %3090 = vmatpush1.bf16.msra.mxu0 %v3057
        %3091 = vmatprep.subr.bf16.mxu0 0
        %3092 = vmatpush1.bf16.msra.mxu0 %v3056
        %3093 = vmatprep.subr.bf16.mxu0 0
        %3094 = vmatpush1.bf16.msra.mxu0 %v3055
        %3095 = vmatprep.subr.bf16.mxu0 0
        %3096 = vmatpush1.bf16.msra.mxu0 %v3054
        %3097 = vmatprep.subr.bf16.mxu0 0
        %3098 = vmatpush1.bf16.msra.mxu0 %v3053
        %3099 = vmatprep.subr.bf16.mxu0 0
        %3100 = vmatpush1.bf16.msra.mxu0 %v3052
        %3101 = vmatprep.subr.bf16.mxu0 0
        %3102 = vmatpush1.bf16.msra.mxu0 %v3051
        %3103 = vmatprep.subr.bf16.mxu0 0
        %3104 = vmatpush2.bf16.msra.mxu0 0
        %3105 = vmatprep.subr.bf16.mxu0 0
        %3106 = vmatpush2.bf16.msra.mxu0 0
        %3107 = vmatprep.subr.bf16.mxu0 0
        %3108 = vmatpush2.bf16.msra.mxu0 0
        %3109 = vmatprep.subr.bf16.mxu0 0
        %3110 = vmatpush2.bf16.msra.mxu0 0
        %3111 = vmatprep.subr.bf16.mxu0 0
        %3112 = vmatpush2.bf16.msra.mxu0 %v3062
        %3113 = vmatprep.subr.bf16.mxu0 0
        %3114 = vmatpush2.bf16.msra.mxu0 %v3061
        %3115 = vmatprep.subr.bf16.mxu0 0
        %3116 = vmatpush2.bf16.msra.mxu0 %v3060
        %3117 = vmatprep.subr.bf16.mxu0 0
        %3118 = vmatpush2.bf16.msra.mxu0 %v3059
        %3119 = vmatprep.mubr.bf16.mxu0 %v3076
        %3120 = vmatmul.mubr.bf16.gmra.mxu0 %v2991
        %v3121 = vpop.f32.mrf.mxu0
        %v3122 = vadd.f32 0.0, %v3121
        %v3123 = vpop.f32.mrf.mxu0
        %v3124 = vpop.f32.mrf.mxu0
        %v3125 = vadd.f32 0.0, %v3124
        %v3126 = vpop.f32.mrf.mxu0
        %3127 = vmatprep.mubr.bf16.mxu0 %v3079
        %3128 = vmatmul.mubr.bf16.gmra.mxu0 %v2993
        %v3129 = vpop.f32.mrf.mxu0
        %v3130 = vadd.f32 0.0, %v3129
        %v3131 = vpop.f32.mrf.mxu0
        %v3132 = vpop.f32.mrf.mxu0
        %v3133 = vadd.f32 0.0, %v3132
        %v3134 = vpop.f32.mrf.mxu0
        %3135 = vmatprep.mubr.bf16.mxu0 %v3082
        %3136 = vmatmul.mubr.bf16.gmra.mxu0 %v2995
        %v3137 = vpop.f32.mrf.mxu0
        %v3138 = vadd.f32 0.0, %v3137
        %v3139 = vpop.f32.mrf.mxu0
        %v3140 = vpop.f32.mrf.mxu0
        %v3141 = vadd.f32 0.0, %v3140
        %v3142 = vpop.f32.mrf.mxu0
        %3143 = vmatprep.mubr.bf16.mxu0 %v3085
        %3144 = vmatmul.mubr.bf16.gmra.mxu0 %v2997
        %v3145 = vpop.f32.mrf.mxu0
        %v3146 = vadd.f32 0.0, %v3145
        %v3147 = vpop.f32.mrf.mxu0
        %v3148 = vpop.f32.mrf.mxu0
        %v3149 = vadd.f32 0.0, %v3148
        %v3150 = vpop.f32.mrf.mxu0
        %3151 = vdwg.mxu0
        %v3152 = vadd.f32 %v2838, %v3122
        %v3153 = vadd.f32 %v2839, %v3125
        %v3154 = vadd.f32 %v2840, %v3130
        %v3155 = vadd.f32 %v2841, %v3133
        %v3156 = vadd.f32 %v2842, %v3138
        %v3157 = vadd.f32 %v2843, %v3141
        %v3158 = vadd.f32 %v2844, %v3146
        %v3159 = vadd.f32 %v2845, %v3149
        %v3169 = vunpack.c.l.b16 %v2864
        %v3170 = vunpack.c.l.b16 %v2865
        %v3171 = vunpack.c.l.b16 %v2867
        %v3172 = vunpack.c.l.b16 %v2869
        %v3173 = vunpack.c.l.b16 %v2871
        %v3174 = vunpack.c.l.b16 %v2873
        %v3175 = vunpack.c.l.b16 %v2875
        %v3176 = vunpack.c.l.b16 %v2877
        %v3177 = vunpack.c.l.b16 %v2879
        %v3178 = vpack.c.b16 %v3170, %v3169
        %v3179 = vpack.c.b16 %v3171, %v2892
        %v3180 = vpack.c.b16 %v3172, %v2893
        %v3181 = vpack.c.b16 %v3173, %v2894
        %v3182 = vpack.c.b16 %v3174, %v2895
        %v3183 = vpack.c.b16 %v3175, %v2896
        %v3184 = vpack.c.b16 %v3176, %v2897
        %v3185 = vpack.c.b16 %v3177, %v2898
        %v3187 = vunpack.c.l.b16 %v2881
        %v3188 = vpack.c.b16 %v3187, %v2899
        %3189 = vrot.lane.b32.xlu0 %v3179, 64
        %v3190 = vpop.permute.xlu0 %3189
        %3191 = vrot.lane.b32.xlu0 %v3180, 64
        %v3192 = vpop.permute.xlu0 %3191
        %3193 = vrot.lane.b32.xlu0 %v3181, 64
        %v3194 = vpop.permute.xlu0 %3193
        %3195 = vrot.lane.b32.xlu0 %v3182, 64
        %v3196 = vpop.permute.xlu0 %3195
        %3197 = vrot.lane.b32.xlu0 %v3183, 64
        %v3198 = vpop.permute.xlu0 %3197
        %3199 = vrot.lane.b32.xlu0 %v3184, 64
        %v3200 = vpop.permute.xlu0 %3199
        %3201 = vrot.lane.b32.xlu0 %v3185, 64
        %v3202 = vpop.permute.xlu0 %3201
        %3203 = vrot.lane.b32.xlu0 %v3188, 64
        %v3204 = vpop.permute.xlu0 %3203
        %v3206 = vunpack.c.l.b16 %v2883
        %v3209 = vsel %vm955, %v3178, %v3190
        %v3212 = vsel %vm955, %v3179, %v3192
        %v3215 = vsel %vm955, %v3180, %v3194
        %v3218 = vsel %vm955, %v3181, %v3196
        %v3221 = vsel %vm955, %v3182, %v3198
        %v3224 = vsel %vm955, %v3183, %v3200
        %v3227 = vsel %vm955, %v3184, %v3202
        %v3230 = vsel %vm955, %v3185, %v3204
        %v3239 = vunpack.c.l.b16 %v3209
        %v3240 = vunpack.c.h.b16 %v3209
        %v3241 = vunpack.c.l.b16 %v3212
        %v3242 = vunpack.c.h.b16 %v3212
        %v3243 = vunpack.c.l.b16 %v3215
        %v3244 = vunpack.c.h.b16 %v3215
        %v3245 = vunpack.c.l.b16 %v3218
        %v3246 = vunpack.c.h.b16 %v3218
        %v3247 = vunpack.c.l.b16 %v3221
        %v3248 = vunpack.c.h.b16 %v3221
        %v3249 = vunpack.c.l.b16 %v3224
        %v3250 = vunpack.c.h.b16 %v3224
        %v3251 = vunpack.c.l.b16 %v3227
        %v3252 = vunpack.c.h.b16 %v3227
        %v3253 = vunpack.c.l.b16 %v3230
        %v3254 = vunpack.c.h.b16 %v3230
        %v3255 = vpack.c.b16 %v2893, %v3239
        %v3256 = vpack.c.b16 %v3172, %v3240
        %v3257 = vpack.c.b16 %v2894, %v3241
        %v3258 = vpack.c.b16 %v3173, %v3242
        %v3259 = vpack.c.b16 %v2895, %v3243
        %v3260 = vpack.c.b16 %v3174, %v3244
        %v3261 = vpack.c.b16 %v2896, %v3245
        %v3262 = vpack.c.b16 %v3175, %v3246
        %v3263 = vpack.c.b16 %v2897, %v3247
        %v3264 = vpack.c.b16 %v3176, %v3248
        %v3265 = vpack.c.b16 %v2898, %v3249
        %v3266 = vpack.c.b16 %v3177, %v3250
        %v3267 = vpack.c.b16 %v2899, %v3251
        %v3268 = vpack.c.b16 %v3187, %v3252
        %v3269 = vpack.c.b16 %v2965, %v3253
        %v3270 = vpack.c.b16 %v3206, %v3254
        %v3272 = vshrl.u32 %v3255, 16
        %v3274 = vrot.slane %v3272, 4
        %v3275 = vshll.u32 %v3255, 16
        %v3277 = vrot.slane %v3275, 5
        %v3278 = vor.u32 %v3274, %v3277
        %v3279 = vrot.slane %v3278, 4
        %v3281 = vshll.u32 %v3256, 16
        %v3283 = vrot.slane %v3281, 5
        %v3284 = vsel %vm1135, %v3279, %v3283
        %v3286 = vshrl.u32 %v3257, 16
        %v3288 = vrot.slane %v3286, 4
        %v3289 = vshll.u32 %v3257, 16
        %v3291 = vrot.slane %v3289, 5
        %v3292 = vor.u32 %v3288, %v3291
        %v3293 = vrot.slane %v3292, 4
        %v3295 = vshll.u32 %v3258, 16
        %v3297 = vrot.slane %v3295, 5
        %v3298 = vsel %vm1135, %v3293, %v3297
        %v3300 = vshrl.u32 %v3259, 16
        %v3302 = vrot.slane %v3300, 4
        %v3303 = vshll.u32 %v3259, 16
        %v3305 = vrot.slane %v3303, 5
        %v3306 = vor.u32 %v3302, %v3305
        %v3307 = vrot.slane %v3306, 4
        %v3309 = vshll.u32 %v3260, 16
        %v3311 = vrot.slane %v3309, 5
        %v3312 = vsel %vm1135, %v3307, %v3311
        %v3314 = vshrl.u32 %v3261, 16
        %v3316 = vrot.slane %v3314, 4
        %v3317 = vshll.u32 %v3261, 16
        %v3319 = vrot.slane %v3317, 5
        %v3320 = vor.u32 %v3316, %v3319
        %v3321 = vrot.slane %v3320, 4
        %v3323 = vshll.u32 %v3262, 16
        %v3325 = vrot.slane %v3323, 5
        %v3326 = vsel %vm1135, %v3321, %v3325
        %v3328 = vshrl.u32 %v3263, 16
        %v3330 = vrot.slane %v3328, 4
        %v3331 = vshll.u32 %v3263, 16
        %v3333 = vrot.slane %v3331, 5
        %v3334 = vor.u32 %v3330, %v3333
        %v3335 = vrot.slane %v3334, 4
        %v3337 = vshll.u32 %v3264, 16
        %v3339 = vrot.slane %v3337, 5
        %v3340 = vsel %vm1135, %v3335, %v3339
        %v3342 = vshrl.u32 %v3265, 16
        %v3344 = vrot.slane %v3342, 4
        %v3345 = vshll.u32 %v3265, 16
        %v3347 = vrot.slane %v3345, 5
        %v3348 = vor.u32 %v3344, %v3347
        %v3349 = vrot.slane %v3348, 4
        %v3351 = vshll.u32 %v3266, 16
        %v3353 = vrot.slane %v3351, 5
        %v3354 = vsel %vm1135, %v3349, %v3353
        %v3356 = vshrl.u32 %v3267, 16
        %v3358 = vrot.slane %v3356, 4
        %v3359 = vshll.u32 %v3267, 16
        %v3361 = vrot.slane %v3359, 5
        %v3362 = vor.u32 %v3358, %v3361
        %v3363 = vrot.slane %v3362, 4
        %v3365 = vshll.u32 %v3268, 16
        %v3367 = vrot.slane %v3365, 5
        %v3368 = vsel %vm1135, %v3363, %v3367
        %v3370 = vshrl.u32 %v3269, 16
        %v3372 = vrot.slane %v3370, 4
        %v3373 = vshll.u32 %v3269, 16
        %v3375 = vrot.slane %v3373, 5
        %v3376 = vor.u32 %v3372, %v3375
        %v3377 = vrot.slane %v3376, 4
        %v3379 = vshll.u32 %v3270, 16
        %v3381 = vrot.slane %v3379, 5
        %v3382 = vsel %vm1135, %v3377, %v3381
        %s3383 = scalar_lea.vmem %s3, 672
        %v3384 = vld [vmem:[%s3383] sm:$0xf]
        %v3385 = vld [vmem:[%s3383 + $0x4] sm:$0xf]
        %v3386 = vld [vmem:[%s3383 + $0x8] sm:$0xf]
        %v3387 = vld [vmem:[%s3383 + $0xc] sm:$0xf]
        %v3388 = vld [vmem:[%s3383 + $0x10] sm:$0xf]
        %v3389 = vld [vmem:[%s3383 + $0x14] sm:$0xf]
        %v3390 = vld [vmem:[%s3383 + $0x18] sm:$0xf]
        %v3391 = vld [vmem:[%s3383 + $0x1c] sm:$0xf]
        %v3392 = vld [vmem:[%s3383 + $0x20] sm:$0xf]
        %v3393 = vld [vmem:[%s3383 + $0x24] sm:$0xf]
        %v3394 = vld [vmem:[%s3383 + $0x28] sm:$0xf]
        %v3395 = vld [vmem:[%s3383 + $0x2c] sm:$0xf]
        %v3396 = vld [vmem:[%s3383 + $0x30] sm:$0xf]
        %v3397 = vld [vmem:[%s3383 + $0x34] sm:$0xf]
        %v3398 = vld [vmem:[%s3383 + $0x38] sm:$0xf]
        %v3399 = vld [vmem:[%s3383 + $0x3c] sm:$0xf]
        %v3400 = vld [vmem:[%s3383 + $0x40] sm:$0xf]
        %v3401 = vld [vmem:[%s3383 + $0x44] sm:$0xf]
        %v3402 = vld [vmem:[%s3383 + $0x48] sm:$0xf]
        %v3403 = vld [vmem:[%s3383 + $0x4c] sm:$0xf]
        %v3404 = vld [vmem:[%s3383 + $0x50] sm:$0xf]
        %v3405 = vld [vmem:[%s3383 + $0x54] sm:$0xf]
        %v3406 = vld [vmem:[%s3383 + $0x58] sm:$0xf]
        %v3407 = vld [vmem:[%s3383 + $0x5c] sm:$0xf]
        %v3408 = vunpack.c.l.b16 %v3284
        %v3409 = vunpack.c.h.b16 %v3284
        %v3410 = vunpack.c.l.b16 %v3298
        %v3411 = vunpack.c.h.b16 %v3298
        %v3412 = vunpack.c.l.b16 %v3312
        %v3413 = vunpack.c.h.b16 %v3312
        %v3414 = vunpack.c.l.b16 %v3326
        %v3415 = vunpack.c.h.b16 %v3326
        %v3416 = vunpack.c.l.b16 %v3340
        %v3417 = vunpack.c.h.b16 %v3340
        %v3418 = vunpack.c.l.b16 %v3354
        %v3419 = vunpack.c.h.b16 %v3354
        %v3420 = vunpack.c.l.b16 %v3368
        %v3421 = vunpack.c.h.b16 %v3368
        %v3422 = vunpack.c.l.b16 %v3382
        %v3423 = vunpack.c.h.b16 %v3382
        %v3424 = vpack.c.b16 %v3410, %v3408
        %v3425 = vpack.c.b16 %v3411, %v3409
        %v3426 = vpack.c.b16 %v3414, %v3412
        %v3427 = vpack.c.b16 %v3415, %v3413
        %v3428 = vpack.c.b16 %v3418, %v3416
        %v3429 = vpack.c.b16 %v3419, %v3417
        %v3430 = vpack.c.b16 %v3422, %v3420
        %v3431 = vpack.c.b16 %v3423, %v3421
        %v3460 = vunpack.c.l.b16 %v3384
        %v3461 = vunpack.c.l.b16 %v3385
        %v3462 = vunpack.c.l.b16 %v3386
        %v3463 = vunpack.c.l.b16 %v3387
        %v3464 = vunpack.c.l.b16 %v3388
        %v3465 = vunpack.c.l.b16 %v3389
        %v3466 = vunpack.c.l.b16 %v3390
        %v3467 = vunpack.c.l.b16 %v3391
        %v3468 = vunpack.c.l.b16 %v3392
        %v3469 = vunpack.c.l.b16 %v3393
        %v3470 = vunpack.c.l.b16 %v3394
        %v3471 = vunpack.c.l.b16 %v3395
        %v3472 = vunpack.c.l.b16 %v3396
        %v3473 = vunpack.c.l.b16 %v3397
        %v3474 = vunpack.c.l.b16 %v3398
        %v3475 = vunpack.c.l.b16 %v3399
        %v3476 = vunpack.c.l.b16 %v3400
        %v3477 = vunpack.c.l.b16 %v3401
        %v3478 = vunpack.c.l.b16 %v3402
        %v3479 = vunpack.c.l.b16 %v3403
        %v3480 = vunpack.c.l.b16 %v3404
        %v3481 = vunpack.c.l.b16 %v3405
        %v3482 = vunpack.c.l.b16 %v3406
        %v3483 = vunpack.c.l.b16 %v3407
        %v3484 = vpack.c.b16 %v3461, %v3460
        %v3485 = vpack.c.b16 %v3463, %v3462
        %v3486 = vpack.c.b16 %v3465, %v3464
        %v3487 = vpack.c.b16 %v3467, %v3466
        %v3488 = vpack.c.b16 %v3469, %v3468
        %v3489 = vpack.c.b16 %v3471, %v3470
        %v3490 = vpack.c.b16 %v3473, %v3472
        %v3491 = vpack.c.b16 %v3475, %v3474
        %v3492 = vpack.c.b16 %v3477, %v3476
        %v3493 = vpack.c.b16 %v3479, %v3478
        %v3494 = vpack.c.b16 %v3481, %v3480
        %v3495 = vpack.c.b16 %v3483, %v3482
        %v3509 = vsel %vm955, %v3425, 0
        %v3512 = vsel %vm955, %v3427, 0
        %v3515 = vsel %vm955, %v3429, 0
        %v3518 = vsel %vm955, %v3431, 0
        %3520 = vmatprep.subr.bf16.mxu0 0
        %3521 = vmatpush1.bf16.msra.mxu0 %v3491
        %3522 = vmatprep.subr.bf16.mxu0 0
        %3523 = vmatpush1.bf16.msra.mxu0 %v3490
        %3524 = vmatprep.subr.bf16.mxu0 0
        %3525 = vmatpush1.bf16.msra.mxu0 %v3489
        %3526 = vmatprep.subr.bf16.mxu0 0
        %3527 = vmatpush1.bf16.msra.mxu0 %v3488
        %3528 = vmatprep.subr.bf16.mxu0 0
        %3529 = vmatpush1.bf16.msra.mxu0 %v3487
        %3530 = vmatprep.subr.bf16.mxu0 0
        %3531 = vmatpush1.bf16.msra.mxu0 %v3486
        %3532 = vmatprep.subr.bf16.mxu0 0
        %3533 = vmatpush1.bf16.msra.mxu0 %v3485
        %3534 = vmatprep.subr.bf16.mxu0 0
        %3535 = vmatpush1.bf16.msra.mxu0 %v3484
        %3536 = vmatprep.subr.bf16.mxu0 0
        %3537 = vmatpush2.bf16.msra.mxu0 0
        %3538 = vmatprep.subr.bf16.mxu0 0
        %3539 = vmatpush2.bf16.msra.mxu0 0
        %3540 = vmatprep.subr.bf16.mxu0 0
        %3541 = vmatpush2.bf16.msra.mxu0 0
        %3542 = vmatprep.subr.bf16.mxu0 0
        %3543 = vmatpush2.bf16.msra.mxu0 0
        %3544 = vmatprep.subr.bf16.mxu0 0
        %3545 = vmatpush2.bf16.msra.mxu0 %v3495
        %3546 = vmatprep.subr.bf16.mxu0 0
        %3547 = vmatpush2.bf16.msra.mxu0 %v3494
        %3548 = vmatprep.subr.bf16.mxu0 0
        %3549 = vmatpush2.bf16.msra.mxu0 %v3493
        %3550 = vmatprep.subr.bf16.mxu0 0
        %3551 = vmatpush2.bf16.msra.mxu0 %v3492
        %3552 = vmatprep.mubr.bf16.mxu0 %v3509
        %3553 = vmatmul.mubr.bf16.gmra.mxu0 %v3424
        %v3554 = vpop.f32.mrf.mxu0
        %v3555 = vadd.f32 0.0, %v3554
        %v3556 = vpop.f32.mrf.mxu0
        %v3557 = vpop.f32.mrf.mxu0
        %v3558 = vadd.f32 0.0, %v3557
        %v3559 = vpop.f32.mrf.mxu0
        %3560 = vmatprep.mubr.bf16.mxu0 %v3512
        %3561 = vmatmul.mubr.bf16.gmra.mxu0 %v3426
        %v3562 = vpop.f32.mrf.mxu0
        %v3563 = vadd.f32 0.0, %v3562
        %v3564 = vpop.f32.mrf.mxu0
        %v3565 = vpop.f32.mrf.mxu0
        %v3566 = vadd.f32 0.0, %v3565
        %v3567 = vpop.f32.mrf.mxu0
        %3568 = vmatprep.mubr.bf16.mxu0 %v3515
        %3569 = vmatmul.mubr.bf16.gmra.mxu0 %v3428
        %v3570 = vpop.f32.mrf.mxu0
        %v3571 = vadd.f32 0.0, %v3570
        %v3572 = vpop.f32.mrf.mxu0
        %v3573 = vpop.f32.mrf.mxu0
        %v3574 = vadd.f32 0.0, %v3573
        %v3575 = vpop.f32.mrf.mxu0
        %3576 = vmatprep.mubr.bf16.mxu0 %v3518
        %3577 = vmatmul.mubr.bf16.gmra.mxu0 %v3430
        %v3578 = vpop.f32.mrf.mxu0
        %v3579 = vadd.f32 0.0, %v3578
        %v3580 = vpop.f32.mrf.mxu0
        %v3581 = vpop.f32.mrf.mxu0
        %v3582 = vadd.f32 0.0, %v3581
        %v3583 = vpop.f32.mrf.mxu0
        %3584 = vdwg.mxu0
        %v3585 = vadd.f32 %v3152, %v3555
        %v3586 = vadd.f32 %v3153, %v3558
        %v3587 = vadd.f32 %v3154, %v3563
        %v3588 = vadd.f32 %v3155, %v3566
        %v3589 = vadd.f32 %v3156, %v3571
        %v3590 = vadd.f32 %v3157, %v3574
        %v3591 = vadd.f32 %v3158, %v3579
        %v3592 = vadd.f32 %v3159, %v3582
        %v3593 = vrot.slane %v3255, 5
        %v3594 = vrot.slane %v3593, 4
        %v3595 = vrot.slane %v3256, 5
        %v3596 = vsel %vm1613, %v3594, %v3595
        %v3597 = vrot.slane %v3257, 5
        %v3598 = vrot.slane %v3597, 4
        %v3599 = vrot.slane %v3258, 5
        %v3600 = vsel %vm1613, %v3598, %v3599
        %v3601 = vrot.slane %v3259, 5
        %v3602 = vrot.slane %v3601, 4
        %v3603 = vrot.slane %v3260, 5
        %v3604 = vsel %vm1613, %v3602, %v3603
        %v3605 = vrot.slane %v3261, 5
        %v3606 = vrot.slane %v3605, 4
        %v3607 = vrot.slane %v3262, 5
        %v3608 = vsel %vm1613, %v3606, %v3607
        %v3609 = vrot.slane %v3263, 5
        %v3610 = vrot.slane %v3609, 4
        %v3611 = vrot.slane %v3264, 5
        %v3612 = vsel %vm1613, %v3610, %v3611
        %v3613 = vrot.slane %v3265, 5
        %v3614 = vrot.slane %v3613, 4
        %v3615 = vrot.slane %v3266, 5
        %v3616 = vsel %vm1613, %v3614, %v3615
        %v3617 = vrot.slane %v3267, 5
        %v3618 = vrot.slane %v3617, 4
        %v3619 = vrot.slane %v3268, 5
        %v3620 = vsel %vm1613, %v3618, %v3619
        %v3621 = vrot.slane %v3269, 5
        %v3622 = vrot.slane %v3621, 4
        %v3623 = vrot.slane %v3270, 5
        %v3624 = vsel %vm1613, %v3622, %v3623
        %s3625 = scalar_lea.vmem %s3, 768
        %v3626 = vld [vmem:[%s3625] sm:$0xf]
        %v3627 = vld [vmem:[%s3625 + $0x4] sm:$0xf]
        %v3628 = vld [vmem:[%s3625 + $0x8] sm:$0xf]
        %v3629 = vld [vmem:[%s3625 + $0xc] sm:$0xf]
        %v3630 = vld [vmem:[%s3625 + $0x10] sm:$0xf]
        %v3631 = vld [vmem:[%s3625 + $0x14] sm:$0xf]
        %v3632 = vld [vmem:[%s3625 + $0x18] sm:$0xf]
        %v3633 = vld [vmem:[%s3625 + $0x1c] sm:$0xf]
        %v3634 = vld [vmem:[%s3625 + $0x20] sm:$0xf]
        %v3635 = vld [vmem:[%s3625 + $0x24] sm:$0xf]
        %v3636 = vld [vmem:[%s3625 + $0x28] sm:$0xf]
        %v3637 = vld [vmem:[%s3625 + $0x2c] sm:$0xf]
        %v3638 = vld [vmem:[%s3625 + $0x30] sm:$0xf]
        %v3639 = vld [vmem:[%s3625 + $0x34] sm:$0xf]
        %v3640 = vld [vmem:[%s3625 + $0x38] sm:$0xf]
        %v3641 = vld [vmem:[%s3625 + $0x3c] sm:$0xf]
        %v3642 = vld [vmem:[%s3625 + $0x40] sm:$0xf]
        %v3643 = vld [vmem:[%s3625 + $0x44] sm:$0xf]
        %v3644 = vld [vmem:[%s3625 + $0x48] sm:$0xf]
        %v3645 = vld [vmem:[%s3625 + $0x4c] sm:$0xf]
        %v3646 = vld [vmem:[%s3625 + $0x50] sm:$0xf]
        %v3647 = vld [vmem:[%s3625 + $0x54] sm:$0xf]
        %v3648 = vld [vmem:[%s3625 + $0x58] sm:$0xf]
        %v3649 = vld [vmem:[%s3625 + $0x5c] sm:$0xf]
        %v3650 = vunpack.c.l.b16 %v3596
        %v3651 = vunpack.c.h.b16 %v3596
        %v3652 = vunpack.c.l.b16 %v3600
        %v3653 = vunpack.c.h.b16 %v3600
        %v3654 = vunpack.c.l.b16 %v3604
        %v3655 = vunpack.c.h.b16 %v3604
        %v3656 = vunpack.c.l.b16 %v3608
        %v3657 = vunpack.c.h.b16 %v3608
        %v3658 = vunpack.c.l.b16 %v3612
        %v3659 = vunpack.c.h.b16 %v3612
        %v3660 = vunpack.c.l.b16 %v3616
        %v3661 = vunpack.c.h.b16 %v3616
        %v3662 = vunpack.c.l.b16 %v3620
        %v3663 = vunpack.c.h.b16 %v3620
        %v3664 = vunpack.c.l.b16 %v3624
        %v3665 = vunpack.c.h.b16 %v3624
        %v3666 = vpack.c.b16 %v3652, %v3650
        %v3667 = vpack.c.b16 %v3653, %v3651
        %v3668 = vpack.c.b16 %v3656, %v3654
        %v3669 = vpack.c.b16 %v3657, %v3655
        %v3670 = vpack.c.b16 %v3660, %v3658
        %v3671 = vpack.c.b16 %v3661, %v3659
        %v3672 = vpack.c.b16 %v3664, %v3662
        %v3673 = vpack.c.b16 %v3665, %v3663
        %v3702 = vunpack.c.l.b16 %v3626
        %v3703 = vunpack.c.l.b16 %v3627
        %v3704 = vunpack.c.l.b16 %v3628
        %v3705 = vunpack.c.l.b16 %v3629
        %v3706 = vunpack.c.l.b16 %v3630
        %v3707 = vunpack.c.l.b16 %v3631
        %v3708 = vunpack.c.l.b16 %v3632
        %v3709 = vunpack.c.l.b16 %v3633
        %v3710 = vunpack.c.l.b16 %v3634
        %v3711 = vunpack.c.l.b16 %v3635
        %v3712 = vunpack.c.l.b16 %v3636
        %v3713 = vunpack.c.l.b16 %v3637
        %v3714 = vunpack.c.l.b16 %v3638
        %v3715 = vunpack.c.l.b16 %v3639
        %v3716 = vunpack.c.l.b16 %v3640
        %v3717 = vunpack.c.l.b16 %v3641
        %v3718 = vunpack.c.l.b16 %v3642
        %v3719 = vunpack.c.l.b16 %v3643
        %v3720 = vunpack.c.l.b16 %v3644
        %v3721 = vunpack.c.l.b16 %v3645
        %v3722 = vunpack.c.l.b16 %v3646
        %v3723 = vunpack.c.l.b16 %v3647
        %v3724 = vunpack.c.l.b16 %v3648
        %v3725 = vunpack.c.l.b16 %v3649
        %v3726 = vpack.c.b16 %v3703, %v3702
        %v3727 = vpack.c.b16 %v3705, %v3704
        %v3728 = vpack.c.b16 %v3707, %v3706
        %v3729 = vpack.c.b16 %v3709, %v3708
        %v3730 = vpack.c.b16 %v3711, %v3710
        %v3731 = vpack.c.b16 %v3713, %v3712
        %v3732 = vpack.c.b16 %v3715, %v3714
        %v3733 = vpack.c.b16 %v3717, %v3716
        %v3734 = vpack.c.b16 %v3719, %v3718
        %v3735 = vpack.c.b16 %v3721, %v3720
        %v3736 = vpack.c.b16 %v3723, %v3722
        %v3737 = vpack.c.b16 %v3725, %v3724
        %v3751 = vsel %vm955, %v3667, 0
        %v3754 = vsel %vm955, %v3669, 0
        %v3757 = vsel %vm955, %v3671, 0
        %v3760 = vsel %vm955, %v3673, 0
        %3762 = vmatprep.subr.bf16.mxu0 0
        %3763 = vmatpush1.bf16.msra.mxu0 %v3733
        %3764 = vmatprep.subr.bf16.mxu0 0
        %3765 = vmatpush1.bf16.msra.mxu0 %v3732
        %3766 = vmatprep.subr.bf16.mxu0 0
        %3767 = vmatpush1.bf16.msra.mxu0 %v3731
        %3768 = vmatprep.subr.bf16.mxu0 0
        %3769 = vmatpush1.bf16.msra.mxu0 %v3730
        %3770 = vmatprep.subr.bf16.mxu0 0
        %3771 = vmatpush1.bf16.msra.mxu0 %v3729
        %3772 = vmatprep.subr.bf16.mxu0 0
        %3773 = vmatpush1.bf16.msra.mxu0 %v3728
        %3774 = vmatprep.subr.bf16.mxu0 0
        %3775 = vmatpush1.bf16.msra.mxu0 %v3727
        %3776 = vmatprep.subr.bf16.mxu0 0
        %3777 = vmatpush1.bf16.msra.mxu0 %v3726
        %3778 = vmatprep.subr.bf16.mxu0 0
        %3779 = vmatpush2.bf16.msra.mxu0 0
        %3780 = vmatprep.subr.bf16.mxu0 0
        %3781 = vmatpush2.bf16.msra.mxu0 0
        %3782 = vmatprep.subr.bf16.mxu0 0
        %3783 = vmatpush2.bf16.msra.mxu0 0
        %3784 = vmatprep.subr.bf16.mxu0 0
        %3785 = vmatpush2.bf16.msra.mxu0 0
        %3786 = vmatprep.subr.bf16.mxu0 0
        %3787 = vmatpush2.bf16.msra.mxu0 %v3737
        %3788 = vmatprep.subr.bf16.mxu0 0
        %3789 = vmatpush2.bf16.msra.mxu0 %v3736
        %3790 = vmatprep.subr.bf16.mxu0 0
        %3791 = vmatpush2.bf16.msra.mxu0 %v3735
        %3792 = vmatprep.subr.bf16.mxu0 0
        %3793 = vmatpush2.bf16.msra.mxu0 %v3734
        %3794 = vmatprep.mubr.bf16.mxu0 %v3751
        %3795 = vmatmul.mubr.bf16.gmra.mxu0 %v3666
        %v3796 = vpop.f32.mrf.mxu0
        %v3797 = vadd.f32 0.0, %v3796
        %v3798 = vpop.f32.mrf.mxu0
        %v3799 = vpop.f32.mrf.mxu0
        %v3800 = vadd.f32 0.0, %v3799
        %v3801 = vpop.f32.mrf.mxu0
        %3802 = vmatprep.mubr.bf16.mxu0 %v3754
        %3803 = vmatmul.mubr.bf16.gmra.mxu0 %v3668
        %v3804 = vpop.f32.mrf.mxu0
        %v3805 = vadd.f32 0.0, %v3804
        %v3806 = vpop.f32.mrf.mxu0
        %v3807 = vpop.f32.mrf.mxu0
        %v3808 = vadd.f32 0.0, %v3807
        %v3809 = vpop.f32.mrf.mxu0
        %3810 = vmatprep.mubr.bf16.mxu0 %v3757
        %3811 = vmatmul.mubr.bf16.gmra.mxu0 %v3670
        %v3812 = vpop.f32.mrf.mxu0
        %v3813 = vadd.f32 0.0, %v3812
        %v3814 = vpop.f32.mrf.mxu0
        %v3815 = vpop.f32.mrf.mxu0
        %v3816 = vadd.f32 0.0, %v3815
        %v3817 = vpop.f32.mrf.mxu0
        %3818 = vmatprep.mubr.bf16.mxu0 %v3760
        %3819 = vmatmul.mubr.bf16.gmra.mxu0 %v3672
        %v3820 = vpop.f32.mrf.mxu0
        %v3821 = vadd.f32 0.0, %v3820
        %v3822 = vpop.f32.mrf.mxu0
        %v3823 = vpop.f32.mrf.mxu0
        %v3824 = vadd.f32 0.0, %v3823
        %v3825 = vpop.f32.mrf.mxu0
        %3826 = vdwg.mxu0
        %v3827 = vadd.f32 %v3585, %v3797
        %v3828 = vadd.f32 %v3586, %v3800
        %v3829 = vadd.f32 %v3587, %v3805
        %v3830 = vadd.f32 %v3588, %v3808
        %v3831 = vadd.f32 %v3589, %v3813
        %v3832 = vadd.f32 %v3590, %v3816
        %v3833 = vadd.f32 %v3591, %v3821
        %v3834 = vadd.f32 %v3592, %v3824
        %v3835 = vld [vmem:[%s4] sm:$0x1]
        %v3837 = vlaneseq
        %v3838 = vshrl.u32 %v3837, 7
        %v3839 = vsub.s32 0, %v3838
        %v3840 = vrot.slane %v3835, %v3839
        %v3842 = vadd.f32 %v3827, %v3840
        %v3843 = vadd.f32 %v3828, %v3840
        %v3844 = vadd.f32 %v3829, %v3840
        %v3845 = vadd.f32 %v3830, %v3840
        %v3846 = vadd.f32 %v3831, %v3840
        %v3847 = vadd.f32 %v3832, %v3840
        %v3848 = vadd.f32 %v3833, %v3840
        %v3849 = vadd.f32 %v3834, %v3840
        %v3850 = vld [vmem:[%s393] sm:$0xf]
        %v3851 = vld [vmem:[%s393 + $0x4] sm:$0xf]
        %v3852 = vld [vmem:[%s393 + $0x8] sm:$0xf]
        %v3853 = vld [vmem:[%s393 + $0xc] sm:$0xf]
        %v3854 = vld [vmem:[%s393 + $0x10] sm:$0xf]
        %v3855 = vld [vmem:[%s393 + $0x14] sm:$0xf]
        %v3856 = vld [vmem:[%s393 + $0x18] sm:$0xf]
        %v3857 = vld [vmem:[%s393 + $0x1c] sm:$0xf]
        %v3858 = vld [vmem:[%s6] sm:$0xf]
        %v3859 = vld [vmem:[%s6 + $0x4] sm:$0xf]
        %v3860 = vld [vmem:[%s6 + $0x8] sm:$0xf]
        %v3861 = vld [vmem:[%s6 + $0xc] sm:$0xf]
        %v3870 = vunpack.c.l.b16 %v3850
        %v3871 = vunpack.c.l.b16 %v3851
        %v3872 = vunpack.c.l.b16 %v3852
        %v3873 = vunpack.c.l.b16 %v3853
        %v3874 = vunpack.c.l.b16 %v3854
        %v3875 = vunpack.c.l.b16 %v3855
        %v3876 = vunpack.c.l.b16 %v3856
        %v3877 = vunpack.c.l.b16 %v3857
        %v3878 = vpack.c.b16 %v3871, %v3870
        %v3879 = vpack.c.b16 %v3873, %v3872
        %v3880 = vpack.c.b16 %v3875, %v3874
        %v3881 = vpack.c.b16 %v3877, %v3876
        %v3886 = vunpack.c.l.b16 %v3858
        %v3887 = vunpack.c.l.b16 %v3859
        %v3888 = vunpack.c.l.b16 %v3860
        %v3889 = vunpack.c.l.b16 %v3861
        %v3890 = vpack.c.b16 %v3887, %v3886
        %v3891 = vpack.c.b16 %v3889, %v3888
        %vm3894 = vcmask 261120
        %v3896 = vsel %vm3894, %v3878, 0
        %v3899 = vsel %vm3894, %v3879, 0
        %v3902 = vsel %vm3894, %v3880, 0
        %v3905 = vsel %vm3894, %v3881, 0
        %3907 = vmatprep.subr.bf16.mxu0 0
        %3908 = vmatpush1.bf16.msra.mxu0 0
        %3909 = vmatprep.subr.bf16.mxu0 0
        %3910 = vmatpush1.bf16.msra.mxu0 0
        %3911 = vmatprep.subr.bf16.mxu0 0
        %3912 = vmatpush1.bf16.msra.mxu0 0
        %3913 = vmatprep.subr.bf16.mxu0 0
        %3914 = vmatpush1.bf16.msra.mxu0 0
        %3915 = vmatprep.subr.bf16.mxu0 0
        %3916 = vmatpush1.bf16.msra.mxu0 0
        %3917 = vmatprep.subr.bf16.mxu0 0
        %3918 = vmatpush1.bf16.msra.mxu0 0
        %3919 = vmatprep.subr.bf16.mxu0 0
        %3920 = vmatpush1.bf16.msra.mxu0 %v3891
        %3921 = vmatprep.subr.bf16.mxu0 0
        %3922 = vmatpush1.bf16.msra.mxu0 %v3890
        %3923 = vmatprep.subr.bf16.mxu0 0
        %3924 = vmatpush2.bf16.msra.mxu0 0
        %3925 = vmatprep.subr.bf16.mxu0 0
        %3926 = vmatpush2.bf16.msra.mxu0 0
        %3927 = vmatprep.subr.bf16.mxu0 0
        %3928 = vmatpush2.bf16.msra.mxu0 0
        %3929 = vmatprep.subr.bf16.mxu0 0
        %3930 = vmatpush2.bf16.msra.mxu0 0
        %3931 = vmatprep.subr.bf16.mxu0 0
        %3932 = vmatpush2.bf16.msra.mxu0 0
        %3933 = vmatprep.subr.bf16.mxu0 0
        %3934 = vmatpush2.bf16.msra.mxu0 0
        %3935 = vmatprep.subr.bf16.mxu0 0
        %3936 = vmatpush2.bf16.msra.mxu0 0
        %3937 = vmatprep.subr.bf16.mxu0 0
        %3938 = vmatpush2.bf16.msra.mxu0 0
        %3939 = vmatprep.mubr.bf16.mxu0 0
        %3940 = vmatmul.mubr.bf16.gmra.mxu0 %v3896
        %v3941 = vpop.f32.mrf.mxu0
        %v3942 = vadd.f32 0.0, %v3941
        %v3943 = vpop.f32.mrf.mxu0
        %v3944 = vpop.f32.mrf.mxu0
        %v3945 = vadd.f32 0.0, %v3944
        %v3946 = vpop.f32.mrf.mxu0
        %3947 = vmatprep.mubr.bf16.mxu0 0
        %3948 = vmatmul.mubr.bf16.gmra.mxu0 %v3899
        %v3949 = vpop.f32.mrf.mxu0
        %v3950 = vadd.f32 0.0, %v3949
        %v3951 = vpop.f32.mrf.mxu0
        %v3952 = vpop.f32.mrf.mxu0
        %v3953 = vadd.f32 0.0, %v3952
        %v3954 = vpop.f32.mrf.mxu0
        %3955 = vmatprep.mubr.bf16.mxu0 0
        %3956 = vmatmul.mubr.bf16.gmra.mxu0 %v3902
        %v3957 = vpop.f32.mrf.mxu0
        %v3958 = vadd.f32 0.0, %v3957
        %v3959 = vpop.f32.mrf.mxu0
        %v3960 = vpop.f32.mrf.mxu0
        %v3961 = vadd.f32 0.0, %v3960
        %v3962 = vpop.f32.mrf.mxu0
        %3963 = vmatprep.mubr.bf16.mxu0 0
        %3964 = vmatmul.mubr.bf16.gmra.mxu0 %v3905
        %v3965 = vpop.f32.mrf.mxu0
        %v3966 = vadd.f32 0.0, %v3965
        %v3967 = vpop.f32.mrf.mxu0
        %v3968 = vpop.f32.mrf.mxu0
        %v3969 = vadd.f32 0.0, %v3968
        %v3970 = vpop.f32.mrf.mxu0
        %3971 = vdwg.mxu0
        %v3972 = vadd.f32 %v3842, %v3942
        %v3973 = vadd.f32 %v3843, %v3945
        %v3974 = vadd.f32 %v3844, %v3950
        %v3975 = vadd.f32 %v3845, %v3953
        %v3976 = vadd.f32 %v3846, %v3958
        %v3977 = vadd.f32 %v3847, %v3961
        %v3978 = vadd.f32 %v3848, %v3966
        %v3979 = vadd.f32 %v3849, %v3969
        %v3980 = vld [vmem:[%s7] sm:$0x1]
        %v3982 = vlaneseq
        %v3983 = vshrl.u32 %v3982, 7
        %v3984 = vsub.s32 0, %v3983
        %v3985 = vrot.slane %v3980, %v3984
        %v3987 = vadd.f32 %v3972, %v3985
        %v3988 = vadd.f32 %v3973, %v3985
        %v3989 = vadd.f32 %v3974, %v3985
        %v3990 = vadd.f32 %v3975, %v3985
        %v3991 = vadd.f32 %v3976, %v3985
        %v3992 = vadd.f32 %v3977, %v3985
        %v3993 = vadd.f32 %v3978, %v3985
        %v3994 = vadd.f32 %v3979, %v3985
        %3995 = vst.msk [vmem:[%s369] sm:$0xff] %vm955, %v3987
        %3996 = vst.msk [vmem:[%s369 + $0x8] sm:$0xff] %vm955, %v3988
        %3997 = vst.msk [vmem:[%s369 + $0x10] sm:$0xff] %vm955, %v3989
        %3998 = vst.msk [vmem:[%s369 + $0x18] sm:$0xff] %vm955, %v3990
        %3999 = vst.msk [vmem:[%s369 + $0x20] sm:$0xff] %vm955, %v3991
        %4000 = vst.msk [vmem:[%s369 + $0x28] sm:$0xff] %vm955, %v3992
        %4001 = vst.msk [vmem:[%s369 + $0x30] sm:$0xff] %vm955, %v3993
        %4002 = vst.msk [vmem:[%s369 + $0x38] sm:$0xff] %vm955, %v3994
        %s4003 = sand.u32 %s236, 1
        %s4004 = scalar_lea.sflag [#allocation4], %s4003
        %s4005 = sand.u32 %s236, 1
        %s4006 = smul.addr %s4005, 64
        %s4007 = scalar_lea.vmem [#allocation3], %s4006
        // Predicated region
        $region65: #{resnet_block_causal3d.5} parent=51 // pred_check
          %p4008 = pneg %p246
        $region66: #{resnet_block_causal3d.5} parent=51 // pred_check_branch
          %4010 = sbr.rel (%p4008) target = $region68
        $region67: #{resnet_block_causal3d.5} parent=51 // pred_region
          %s4012 = ssub.s32 1024, 1024
          %4013 = vsyncadd %s4004, %s4012
          %s4014 = smul.addr %s27, 8
          %s4015 = smul.addr %s26, 32
          %s4016 = sadd.s32 %s4014, %s4015
          %s4017 = smul.addr %s4016, 128
          %s4018 = scalar_lea.hbm %s8, %s4017
          %s4019 = sshll.u32 %s4007, 4
          %s4020 = int_to_ptr.vmem [resolvable:$true] %s4019
          %4025 = dma.vmem_to_hbm [thread:$0]  %s4020, 1024, %s4018, %s4004, 128, 128, 8
        $region68: #{resnet_block_causal3d.5} parent=51 // pred_fallthru
          _
      $region52: #{resnet_block_causal3d.5} parent=5 // pred_fallthru
        _
      %p4026 = scmp.le.s32.totalorder 2, %s17
      // Predicated region
      $region69: #{resnet_block_causal3d.5} parent=5 // pred_check
        %p4027 = pneg %p4026
      $region70: #{resnet_block_causal3d.5} parent=5 // pred_check_branch
        %4029 = sbr.rel (%p4027) target = $region72
      $region71: #{resnet_block_causal3d.5} parent=5 // pred_region
        %s4030 = ssub.s32 %s17, 2
        // Predicated region
        $region73: #{resnet_block_causal3d.5} parent=71 // pred_check
          %p4031 = pneg %p252
        $region74: #{resnet_block_causal3d.5} parent=71 // pred_check_branch
          %4033 = sbr.rel (%p4031) target = $region76
        $region75: #{resnet_block_causal3d.5} parent=71 // pred_region
          %s4034 = sand.u32 %s237, 1
          %s4035 = scalar_lea.sflag [#allocation4], %s4034
          %s4036 = sand.u32 %s237, 1
          %s4037 = smul.addr %s4036, 64
          %s4038 = scalar_lea.vmem [#allocation3], %s4037
          %4039 = dma.done %s4035, 1024
        $region76: #{resnet_block_causal3d.5} parent=71 // pred_fallthru
          _
      $region72: #{resnet_block_causal3d.5} parent=5 // pred_fallthru
        _
    $region6: #{resnet_block_causal3d.5} parent=1 // loop_footer
      %s21 = sadd.s32 1, %s17
    $region7: #{resnet_block_causal3d.5} parent=1 // loop_footer_branch
      %16 = sbr.rel target = $region3
    $region8: #{resnet_block_causal3d.5} parent=1 // loop_exit
      _
    %4040 = vsyncpa [#allocation4], 1
    %s4041 = scalar_lea.sflag [#allocation4], 1
    %4042 = vsyncpa %s4041, 1

</llo_original>
